<compile_context>
chip_gen: v6e
topology: v6e:2x2x1
jax: 0.10.0
libtpu: 0.0.40
codegen_flags: <defaults>
</compile_context>

<pallas_src>
import math

import jax
import jax.numpy as jnp
from jax.experimental import pallas as pl
from jax.experimental.pallas import tpu as pltpu

_EPS = 1e-5  # nn.BatchNorm2d default eps


# ---------------------------------------------------------------------------
# Fused forward kernel: one block of `bsz` images per grid step
# ---------------------------------------------------------------------------
def _fused_cnn_kernel(x_ref, w1_ref, s1_ref, t1_ref,
                      w2_ref, s2_ref, t2_ref,
                      w3_ref, s3_ref, t3_ref,
                      wfc1_ref, tfc1_ref, wfc2_ref, tfc2_ref,
                      o_ref,
                      ps1_ref, ps2_ref, a1_ref, a2_ref, flat_ref):
    f32, bf16 = jnp.float32, jnp.bfloat16
    bsz = x_ref.shape[1]

    def pad_rows(a, n_extra):
        # Extra zero rows so every shifted tap slice below stays in bounds.
        return jnp.concatenate(
            [a, jnp.zeros((n_extra, a.shape[1]), a.dtype)], axis=0)

    def conv_patches(a, h, w):
        # a: (h*w + 2, C) flat activation (channels minor).  Returns the
        # im2col patch matrix ((h-2)*w, 9*C).  Rows whose column index is
        # >= w-2 are wrap-around garbage; they are never consumed downstream.
        length = (h - 2) * w
        taps = [a[di * w + dj: di * w + dj + length, :]
                for di in range(3) for dj in range(3)]
        return jnp.concatenate(taps, axis=-1)

    def affine_relu(y, s, t):
        # Folded conv-bias + eval-mode BatchNorm + ReLU (f32 epilogue).
        return jnp.maximum(y * s + t, 0.0)

    def pool2x2(y, w, hp, wp, vmax_ref, cmp_ref):
        # 2x2 / stride-2 max-pool of a flat (rows*w, C) conv map.
        # VPU maxes of shifted sublane slices + a strided compaction copy
        # through a VMEM scratch (no MXU work; replaces the old gather mms).
        n0 = y.shape[0]
        nv = vmax_ref.shape[0]
        yp = pad_rows(y, 1)
        hmax = jnp.maximum(yp[0:n0, :], yp[1:n0 + 1, :])               # c,c+1
        vmax_ref[...] = jnp.maximum(hmax[0:nv, :], hmax[w:w + nv, :])  # r,r+1
        for p in range(hp):  # compact rows 2p, even columns only
            cmp_ref[pl.ds(p * wp, wp), :] = (
                vmax_ref[pl.ds(2 * p * w, wp, stride=2), :]
                .astype(cmp_ref.dtype))
        return cmp_ref[...]                                            # bf16

    # Block-invariant weights: read once per grid step (hoisted out of the
    # per-image loop; VMEM/vreg resident for the whole block).
    w1 = w1_ref[...]
    s1, t1 = s1_ref[...], t1_ref[...]
    w2 = w2_ref[...]
    s2, t2 = s2_ref[...], t2_ref[...]
    w3 = w3_ref[...]
    s3, t3 = s3_ref[...], t3_ref[...]

    @pl.loop(0, bsz)
    def _per_image(b):
        # ---- conv1 + bn1 + relu: VPU f32, 9 shifted FMAs (Cin=1 would waste
        #      the MXU; v5e has no bf16 VALU).  The lane-broadcast of x to 32
        #      output channels is hoisted out of the 3x3 tap loop.
        x = pad_rows(x_ref[0, b], 2)                       # (786, 1) f32
        xb = jnp.broadcast_to(x, (786, 32))                # one broadcast
        y1 = jnp.zeros((728, 32), f32)                     # 26 x 28 flat grid
        for di in range(3):
            for dj in range(3):
                k = di * 3 + dj
                off = di * 28 + dj
                y1 = y1 + xb[off:off + 728, :] * w1[k:k + 1, :]
        y1 = affine_relu(y1, s1, t1)
        a1 = pool2x2(y1, 28, 13, 13, ps1_ref, a1_ref)      # (169, 32) bf16

        # ---- conv2 + bn2 + relu + pool: MXU bf16 x bf16 -> f32 ------------
        p2 = conv_patches(pad_rows(a1, 2), 13, 13)         # (143, 288)
        y2 = jnp.dot(p2, w2, preferred_element_type=f32)
        y2 = affine_relu(y2, s2, t2)                       # (143, 64) f32
        a2 = pool2x2(y2, 13, 5, 5, ps2_ref, a2_ref)        # (25, 64) bf16

        # ---- conv3 + bn3 + relu -------------------------------------------
        p3 = conv_patches(pad_rows(a2, 2), 5, 5)           # (15, 576)
        y3 = jnp.dot(p3, w3, preferred_element_type=f32)
        y3 = affine_relu(y3, s3, t3).astype(bf16)          # (15, 128)

        # ---- flatten in (H, W, C) order (wfc1 rows pre-permuted at init) --
        valid = [i * 5 + j for i in range(3) for j in range(3)]
        flat = jnp.concatenate([y3[r:r + 1, :] for r in valid], axis=-1)
        flat_ref[pl.ds(b, 1), :] = flat                    # (1, 1152) bf16

    # ---- fc1 + relu + fc2: once per block, M = bsz rows on the MXU --------
    flat_all = flat_ref[...]                               # (bsz, 1152) bf16
    h = jnp.dot(flat_all, wfc1_ref[...], preferred_element_type=f32)
    h = jnp.maximum(h + tfc1_ref[...], 0.0)                # (bsz, 256) f32
    # TODO(synk): nn.Dropout(0.5) is an eval-mode identity (no RNG mask).
    out = jnp.dot(h.astype(bf16), wfc2_ref[...], preferred_element_type=f32)
    o_ref[0] = out + tfc2_ref[...]                         # (bsz, 128) f32


def _const_spec(shape):
    zeros = (0,) * len(shape)
    return pl.BlockSpec(shape, lambda i, zeros=zeros: zeros)


def _choose_block(n, max_block=8):
    """Images per grid step.  Use >= 2 grid steps whenever possible so v7x's
    two TensorCores both get work; 8 images/step amortizes per-step overhead
    and gives the fc matmuls M=8."""
    if n >= 2 * max_block:
        return max_block
    return max(1, (n + 1) // 2)


@jax.jit
def cnn_base_forward(params, x_nchw):
    """x_nchw: (N, 1, 28, 28) f32 (28x28 input is implied by fc1 = 128*3*3)."""
    n = x_nchw.shape[0]
    bsz = _choose_block(n)
    nb = pl.cdiv(n, bsz)
    n_pad = nb * bsz

    # C=1 -> flat row-major spatial layout (i*28 + j), channel minor.
    x = x_nchw.reshape(n, 784, 1)
    if n_pad != n:
        x = jnp.concatenate(
            [x, jnp.zeros((n_pad - n, 784, 1), x.dtype)], axis=0)
    x = x.reshape(nb, bsz, 784, 1)

    inputs = (x,
              params["w1"], params["s1"], params["t1"],
              params["w2"], params["s2"], params["t2"],
              params["w3"], params["s3"], params["t3"],
              params["wfc1"], params["tfc1"], params["wfc2"], params["tfc2"])

    in_specs = [pl.BlockSpec((1, bsz, 784, 1), lambda i: (i, 0, 0, 0))]
    in_specs += [_const_spec(a.shape) for a in inputs[1:]]

    # Advisory cost hint for XLA scheduling around the custom call.
    flops_per_img = 2 * (728 * 32 * 9 + 143 * 288 * 64 + 15 * 576 * 128
                         + 1152 * 256 + 256 * 128)
    const_bytes = sum(int(a.size) * a.dtype.itemsize for a in inputs[1:])
    cost = pl.CostEstimate(
        flops=flops_per_img * n_pad,
        transcendentals=0,
        bytes_accessed=n_pad * (784 * 4 + 128 * 4) + const_bytes)

    out = pl.pallas_call(
        _fused_cnn_kernel,
        out_shape=jax.ShapeDtypeStruct((nb, bsz, 128), jnp.float32),
        grid=(nb,),
        in_specs=in_specs,
        out_specs=pl.BlockSpec((1, bsz, 128), lambda i: (i, 0, 0)),
        scratch_shapes=[
            pltpu.VMEM((700, 32), jnp.float32),    # pool1 2x2-max buffer
            pltpu.VMEM((113, 64), jnp.float32),    # pool2 2x2-max buffer
            pltpu.VMEM((169, 32), jnp.bfloat16),   # pool1 compacted 13x13
            pltpu.VMEM((25, 64), jnp.bfloat16),    # pool2 compacted 5x5
            pltpu.VMEM((bsz, 1152), jnp.bfloat16), # fc1 input rows per block
        ],
        compiler_params=pltpu.CompilerParams(
            dimension_semantics=("parallel",)),
        cost_estimate=cost,
    )(*inputs)
    return out.reshape(n_pad, 128)[:n, :27]


# ---------------------------------------------------------------------------
# Deterministic parameter construction
# ---------------------------------------------------------------------------
def init_params(seed=42):
    key = jax.random.PRNGKey(seed)
    ks = iter(jax.random.split(key, 32))

    def uniform(k, shape, bound):
        return jax.random.uniform(k, shape, jnp.float32, -bound, bound)

    def conv(cin, cout):
        # Weight rows ordered as (kh*3 + kw)*cin + cin_idx (matches the
        # in-kernel patch concatenation order).
        bound = 1.0 / math.sqrt(cin * 9)
        w = uniform(next(ks), (9 * cin, cout), bound)
        b = uniform(next(ks), (cout,), bound)
        return w, b

    def bn(c):
        # Deterministic, slightly non-trivial eval-mode BN statistics.
        gamma = 1.0 + 0.05 * jax.random.normal(next(ks), (c,), jnp.float32)
        beta = 0.05 * jax.random.normal(next(ks), (c,), jnp.float32)
        mean = 0.05 * jax.random.normal(next(ks), (c,), jnp.float32)
        var = jnp.ones((c,), jnp.float32)
        return gamma, beta, mean, var

    def fold_bn(bias, gamma, beta, mean, var):
        # Eval-mode BN + conv bias folded into per-channel (scale, shift).
        s = gamma / jnp.sqrt(var + _EPS)
        t = (bias - mean) * s + beta
        return s.reshape(1, -1), t.reshape(1, -1)

    def linear(fin, fout):
        bound = 1.0 / math.sqrt(fin)
        w = uniform(next(ks), (fin, fout), bound)
        b = uniform(next(ks), (fout,), bound)
        return w, b

    p = {}
    w1, b1 = conv(1, 32)
    p["s1"], p["t1"] = fold_bn(b1, *bn(32))
    p["w1"] = w1                              # f32: conv1 runs on the VPU
    w2, b2 = conv(32, 64)
    p["s2"], p["t2"] = fold_bn(b2, *bn(64))
    p["w2"] = w2.astype(jnp.bfloat16)         # MXU operands in bf16
    w3, b3 = conv(64, 128)
    p["s3"], p["t3"] = fold_bn(b3, *bn(128))
    p["w3"] = w3.astype(jnp.bfloat16)

    wfc1, bfc1 = linear(128 * 3 * 3, 256)
    # NOTE: wfc1 rows are ordered for the kernel's (H, W, C) flatten, i.e.
    # row = (i*3 + j)*128 + c.  To load real PyTorch weights (flatten order
    # (C, H, W)) permute rows with torch_row = c*9 + i*3 + j at init time.
    p["wfc1"] = wfc1.astype(jnp.bfloat16)
    p["tfc1"] = bfc1.reshape(1, -1)

    wfc2, bfc2 = linear(256, 27)
    # Pad fc2 to 128 output lanes (lane-dense store); cols 27..127 are zero
    # and get sliced off in the wrapper.
    p["wfc2"] = jnp.pad(wfc2, ((0, 0), (0, 101))).astype(jnp.bfloat16)
    p["tfc2"] = jnp.pad(bfc2, (0, 101)).reshape(1, -1)
    return p


if __name__ == "__main__":
    params = init_params(seed=42)
    x = jax.random.normal(jax.random.PRNGKey(0), (2, 1, 28, 28), jnp.float32)
    out = cnn_base_forward(params, x)
    out = jax.block_until_ready(out)
    assert out.shape == (2, 27), out.shape
    assert out.dtype == jnp.float32
    print("KERNEL_OK")
</pallas_src>

<mosaic_0001>
module attributes {stable_mosaic.version = 11 : i64} {
  func.func @_fused_cnn_kernel(%arg0: i32, %arg1: memref<1x1x784x1xf32, #tpu.memory_space<vmem>>, %arg2: memref<9x32xf32, #tpu.memory_space<vmem>>, %arg3: memref<1x32xf32, #tpu.memory_space<vmem>>, %arg4: memref<1x32xf32, #tpu.memory_space<vmem>>, %arg5: memref<288x64xbf16, #tpu.memory_space<vmem>>, %arg6: memref<1x64xf32, #tpu.memory_space<vmem>>, %arg7: memref<1x64xf32, #tpu.memory_space<vmem>>, %arg8: memref<576x128xbf16, #tpu.memory_space<vmem>>, %arg9: memref<1x128xf32, #tpu.memory_space<vmem>>, %arg10: memref<1x128xf32, #tpu.memory_space<vmem>>, %arg11: memref<1152x256xbf16, #tpu.memory_space<vmem>>, %arg12: memref<1x256xf32, #tpu.memory_space<vmem>>, %arg13: memref<256x128xbf16, #tpu.memory_space<vmem>>, %arg14: memref<1x128xf32, #tpu.memory_space<vmem>>, %arg15: memref<1x1x128xf32, #tpu.memory_space<vmem>>, %arg16: memref<700x32xf32, #tpu.memory_space<vmem>>, %arg17: memref<113x64xf32, #tpu.memory_space<vmem>>, %arg18: memref<169x32xbf16, #tpu.memory_space<vmem>>, %arg19: memref<25x64xbf16, #tpu.memory_space<vmem>>, %arg20: memref<1x1152xbf16, #tpu.memory_space<vmem>>) attributes {dimension_semantics = [#tpu.dimension_semantics<parallel>], iteration_bounds = array<i64: 2>, scalar_prefetch = 0 : i64, scratch_operands = 5 : i64, tpu.core_type = #tpu.core_type<tc>, window_params = [{transform_indices = @transform_0, window_bounds = array<i64: 1, 1, 784, 1>}, {pipeline_mode = #tpu.pipeline_mode<synchronous>, transform_indices = @transform_1, window_bounds = array<i64: 9, 32>}, {pipeline_mode = #tpu.pipeline_mode<synchronous>, transform_indices = @transform_2, window_bounds = array<i64: 1, 32>}, {pipeline_mode = #tpu.pipeline_mode<synchronous>, transform_indices = @transform_3, window_bounds = array<i64: 1, 32>}, {pipeline_mode = #tpu.pipeline_mode<synchronous>, transform_indices = @transform_4, window_bounds = array<i64: 288, 64>}, {pipeline_mode = #tpu.pipeline_mode<synchronous>, transform_indices = @transform_5, window_bounds = array<i64: 1, 64>}, {pipeline_mode = #tpu.pipeline_mode<synchronous>, transform_indices = @transform_6, window_bounds = array<i64: 1, 64>}, {pipeline_mode = #tpu.pipeline_mode<synchronous>, transform_indices = @transform_7, window_bounds = array<i64: 576, 128>}, {pipeline_mode = #tpu.pipeline_mode<synchronous>, transform_indices = @transform_8, window_bounds = array<i64: 1, 128>}, {pipeline_mode = #tpu.pipeline_mode<synchronous>, transform_indices = @transform_9, window_bounds = array<i64: 1, 128>}, {pipeline_mode = #tpu.pipeline_mode<synchronous>, transform_indices = @transform_10, window_bounds = array<i64: 1152, 256>}, {pipeline_mode = #tpu.pipeline_mode<synchronous>, transform_indices = @transform_11, window_bounds = array<i64: 1, 256>}, {pipeline_mode = #tpu.pipeline_mode<synchronous>, transform_indices = @transform_12, window_bounds = array<i64: 256, 128>}, {pipeline_mode = #tpu.pipeline_mode<synchronous>, transform_indices = @transform_13, window_bounds = array<i64: 1, 128>}, {transform_indices = @transform_14, window_bounds = array<i64: 1, 1, 128>}]} {
    %c0 = arith.constant 0 : index
    %c0_0 = arith.constant 0 : index
    %0 = vector.load %arg2[%c0, %c0_0] : memref<9x32xf32, #tpu.memory_space<vmem>>, vector<9x32xf32>
    %c0_1 = arith.constant 0 : index
    %c0_2 = arith.constant 0 : index
    %1 = vector.load %arg3[%c0_1, %c0_2] : memref<1x32xf32, #tpu.memory_space<vmem>>, vector<1x32xf32>
    %c0_3 = arith.constant 0 : index
    %c0_4 = arith.constant 0 : index
    %2 = vector.load %arg4[%c0_3, %c0_4] : memref<1x32xf32, #tpu.memory_space<vmem>>, vector<1x32xf32>
    %c0_5 = arith.constant 0 : index
    %c0_6 = arith.constant 0 : index
    %3 = vector.load %arg5[%c0_5, %c0_6] : memref<288x64xbf16, #tpu.memory_space<vmem>>, vector<288x64xbf16>
    %c0_7 = arith.constant 0 : index
    %c0_8 = arith.constant 0 : index
    %4 = vector.load %arg6[%c0_7, %c0_8] : memref<1x64xf32, #tpu.memory_space<vmem>>, vector<1x64xf32>
    %c0_9 = arith.constant 0 : index
    %c0_10 = arith.constant 0 : index
    %5 = vector.load %arg7[%c0_9, %c0_10] : memref<1x64xf32, #tpu.memory_space<vmem>>, vector<1x64xf32>
    %c0_11 = arith.constant 0 : index
    %c0_12 = arith.constant 0 : index
    %6 = vector.load %arg8[%c0_11, %c0_12] : memref<576x128xbf16, #tpu.memory_space<vmem>>, vector<576x128xbf16>
    %c0_13 = arith.constant 0 : index
    %c0_14 = arith.constant 0 : index
    %7 = vector.load %arg9[%c0_13, %c0_14] : memref<1x128xf32, #tpu.memory_space<vmem>>, vector<1x128xf32>
    %c0_15 = arith.constant 0 : index
    %c0_16 = arith.constant 0 : index
    %8 = vector.load %arg10[%c0_15, %c0_16] : memref<1x128xf32, #tpu.memory_space<vmem>>, vector<1x128xf32>
    %c0_i32 = arith.constant 0 : i32
    %c1_i32 = arith.constant 1 : i32
    %9 = arith.muli %c0_i32, %c1_i32 : i32
    %c0_i32_17 = arith.constant 0 : i32
    %10 = arith.addi %c0_i32_17, %9 : i32
    %c0_18 = arith.constant 0 : index
    %11 = arith.index_cast %10 : i32 to index
    %c0_19 = arith.constant 0 : index
    %c0_20 = arith.constant 0 : index
    %12 = vector.load %arg1[%c0_18, %11, %c0_19, %c0_20] : memref<1x1x784x1xf32, #tpu.memory_space<vmem>>, vector<1x1x784x1xf32>
    %13 = vector.shape_cast %12 : vector<1x1x784x1xf32> to vector<784x1xf32>
    %cst = arith.constant 0.000000e+00 : f32
    %14 = vector.broadcast %cst : f32 to vector<2x1xf32>
    %15 = tpu.concatenate %13, %14 in 0 : vector<784x1xf32>, vector<2x1xf32> -> vector<786x1xf32>
    %16 = vector.shape_cast %15 : vector<786x1xf32> to vector<786x1xf32>
    %17 = vector.broadcast %16 : vector<786x1xf32> to vector<786x32xf32>
    %cst_21 = arith.constant 0.000000e+00 : f32
    %18 = vector.broadcast %cst_21 : f32 to vector<728x32xf32>
    %19 = vector.extract_strided_slice %17 {offsets = [0, 0], sizes = [728, 32], strides = [1, 1]} : vector<786x32xf32> to vector<728x32xf32>
    %20 = vector.extract_strided_slice %0 {offsets = [0, 0], sizes = [1, 32], strides = [1, 1]} : vector<9x32xf32> to vector<1x32xf32>
    %21 = vector.broadcast %20 : vector<1x32xf32> to vector<728x32xf32>
    %22 = arith.mulf %19, %21 : vector<728x32xf32>
    %23 = arith.addf %18, %22 : vector<728x32xf32>
    %24 = vector.extract_strided_slice %17 {offsets = [1, 0], sizes = [728, 32], strides = [1, 1]} : vector<786x32xf32> to vector<728x32xf32>
    %25 = vector.extract_strided_slice %0 {offsets = [1, 0], sizes = [1, 32], strides = [1, 1]} : vector<9x32xf32> to vector<1x32xf32>
    %26 = vector.broadcast %25 : vector<1x32xf32> to vector<728x32xf32>
    %27 = arith.mulf %24, %26 : vector<728x32xf32>
    %28 = arith.addf %23, %27 : vector<728x32xf32>
    %29 = vector.extract_strided_slice %17 {offsets = [2, 0], sizes = [728, 32], strides = [1, 1]} : vector<786x32xf32> to vector<728x32xf32>
    %30 = vector.extract_strided_slice %0 {offsets = [2, 0], sizes = [1, 32], strides = [1, 1]} : vector<9x32xf32> to vector<1x32xf32>
    %31 = vector.broadcast %30 : vector<1x32xf32> to vector<728x32xf32>
    %32 = arith.mulf %29, %31 : vector<728x32xf32>
    %33 = arith.addf %28, %32 : vector<728x32xf32>
    %34 = vector.extract_strided_slice %17 {offsets = [28, 0], sizes = [728, 32], strides = [1, 1]} : vector<786x32xf32> to vector<728x32xf32>
    %35 = vector.extract_strided_slice %0 {offsets = [3, 0], sizes = [1, 32], strides = [1, 1]} : vector<9x32xf32> to vector<1x32xf32>
    %36 = vector.broadcast %35 : vector<1x32xf32> to vector<728x32xf32>
    %37 = arith.mulf %34, %36 : vector<728x32xf32>
    %38 = arith.addf %33, %37 : vector<728x32xf32>
    %39 = vector.extract_strided_slice %17 {offsets = [29, 0], sizes = [728, 32], strides = [1, 1]} : vector<786x32xf32> to vector<728x32xf32>
    %40 = vector.extract_strided_slice %0 {offsets = [4, 0], sizes = [1, 32], strides = [1, 1]} : vector<9x32xf32> to vector<1x32xf32>
    %41 = vector.broadcast %40 : vector<1x32xf32> to vector<728x32xf32>
    %42 = arith.mulf %39, %41 : vector<728x32xf32>
    %43 = arith.addf %38, %42 : vector<728x32xf32>
    %44 = vector.extract_strided_slice %17 {offsets = [30, 0], sizes = [728, 32], strides = [1, 1]} : vector<786x32xf32> to vector<728x32xf32>
    %45 = vector.extract_strided_slice %0 {offsets = [5, 0], sizes = [1, 32], strides = [1, 1]} : vector<9x32xf32> to vector<1x32xf32>
    %46 = vector.broadcast %45 : vector<1x32xf32> to vector<728x32xf32>
    %47 = arith.mulf %44, %46 : vector<728x32xf32>
    %48 = arith.addf %43, %47 : vector<728x32xf32>
    %49 = vector.extract_strided_slice %17 {offsets = [56, 0], sizes = [728, 32], strides = [1, 1]} : vector<786x32xf32> to vector<728x32xf32>
    %50 = vector.extract_strided_slice %0 {offsets = [6, 0], sizes = [1, 32], strides = [1, 1]} : vector<9x32xf32> to vector<1x32xf32>
    %51 = vector.broadcast %50 : vector<1x32xf32> to vector<728x32xf32>
    %52 = arith.mulf %49, %51 : vector<728x32xf32>
    %53 = arith.addf %48, %52 : vector<728x32xf32>
    %54 = vector.extract_strided_slice %17 {offsets = [57, 0], sizes = [728, 32], strides = [1, 1]} : vector<786x32xf32> to vector<728x32xf32>
    %55 = vector.extract_strided_slice %0 {offsets = [7, 0], sizes = [1, 32], strides = [1, 1]} : vector<9x32xf32> to vector<1x32xf32>
    %56 = vector.broadcast %55 : vector<1x32xf32> to vector<728x32xf32>
    %57 = arith.mulf %54, %56 : vector<728x32xf32>
    %58 = arith.addf %53, %57 : vector<728x32xf32>
    %59 = vector.extract_strided_slice %17 {offsets = [58, 0], sizes = [728, 32], strides = [1, 1]} : vector<786x32xf32> to vector<728x32xf32>
    %60 = vector.extract_strided_slice %0 {offsets = [8, 0], sizes = [1, 32], strides = [1, 1]} : vector<9x32xf32> to vector<1x32xf32>
    %61 = vector.broadcast %60 : vector<1x32xf32> to vector<728x32xf32>
    %62 = arith.mulf %59, %61 : vector<728x32xf32>
    %63 = arith.addf %58, %62 : vector<728x32xf32>
    %64 = vector.broadcast %1 : vector<1x32xf32> to vector<728x32xf32>
    %65 = arith.mulf %63, %64 : vector<728x32xf32>
    %66 = vector.broadcast %2 : vector<1x32xf32> to vector<728x32xf32>
    %67 = arith.addf %65, %66 : vector<728x32xf32>
    %cst_22 = arith.constant 0.000000e+00 : f32
    %68 = vector.broadcast %cst_22 : f32 to vector<728x32xf32>
    %69 = arith.maximumf %67, %68 : vector<728x32xf32>
    %cst_23 = arith.constant 0.000000e+00 : f32
    %70 = vector.broadcast %cst_23 : f32 to vector<1x32xf32>
    %71 = tpu.concatenate %69, %70 in 0 : vector<728x32xf32>, vector<1x32xf32> -> vector<729x32xf32>
    %72 = vector.extract_strided_slice %71 {offsets = [0, 0], sizes = [728, 32], strides = [1, 1]} : vector<729x32xf32> to vector<728x32xf32>
    %73 = vector.extract_strided_slice %71 {offsets = [1, 0], sizes = [728, 32], strides = [1, 1]} : vector<729x32xf32> to vector<728x32xf32>
    %74 = arith.maximumf %72, %73 : vector<728x32xf32>
    %75 = vector.extract_strided_slice %74 {offsets = [0, 0], sizes = [700, 32], strides = [1, 1]} : vector<728x32xf32> to vector<700x32xf32>
    %76 = vector.extract_strided_slice %74 {offsets = [28, 0], sizes = [700, 32], strides = [1, 1]} : vector<728x32xf32> to vector<700x32xf32>
    %77 = arith.maximumf %75, %76 : vector<700x32xf32>
    %c0_24 = arith.constant 0 : index
    %c0_25 = arith.constant 0 : index
    %78 = vector.load %arg16[%c0_24, %c0_25] : memref<700x32xf32, #tpu.memory_space<vmem>>, vector<700x32xf32>
    tpu.vector_store %arg16[%c0_24, %c0_25], %77 {strides = array<i32>} : memref<700x32xf32, #tpu.memory_space<vmem>>, vector<700x32xf32>,
    %c0_26 = arith.constant 0 : index
    %c0_27 = arith.constant 0 : index
    %79 = tpu.strided_load %arg16[%c0_26, %c0_27] {strides = array<i32: 2, 1>} : memref<700x32xf32, #tpu.memory_space<vmem>>, vector<13x32xf32>
    %80 = arith.truncf %79 : vector<13x32xf32> to vector<13x32xbf16>
    %c0_28 = arith.constant 0 : index
    %c0_29 = arith.constant 0 : index
    %81 = vector.load %arg18[%c0_28, %c0_29] : memref<169x32xbf16, #tpu.memory_space<vmem>>, vector<13x32xbf16>
    tpu.vector_store %arg18[%c0_28, %c0_29], %80 {strides = array<i32>} : memref<169x32xbf16, #tpu.memory_space<vmem>>, vector<13x32xbf16>,
    %c56 = arith.constant 56 : index
    %c0_30 = arith.constant 0 : index
    %82 = tpu.strided_load %arg16[%c56, %c0_30] {strides = array<i32: 2, 1>} : memref<700x32xf32, #tpu.memory_space<vmem>>, vector<13x32xf32>
    %83 = arith.truncf %82 : vector<13x32xf32> to vector<13x32xbf16>
    %c13 = arith.constant 13 : index
    %c0_31 = arith.constant 0 : index
    %84 = vector.load %arg18[%c13, %c0_31] : memref<169x32xbf16, #tpu.memory_space<vmem>>, vector<13x32xbf16>
    tpu.vector_store %arg18[%c13, %c0_31], %83 {strides = array<i32>} : memref<169x32xbf16, #tpu.memory_space<vmem>>, vector<13x32xbf16>,
    %c112 = arith.constant 112 : index
    %c0_32 = arith.constant 0 : index
    %85 = tpu.strided_load %arg16[%c112, %c0_32] {strides = array<i32: 2, 1>} : memref<700x32xf32, #tpu.memory_space<vmem>>, vector<13x32xf32>
    %86 = arith.truncf %85 : vector<13x32xf32> to vector<13x32xbf16>
    %c26 = arith.constant 26 : index
    %c0_33 = arith.constant 0 : index
    %87 = vector.load %arg18[%c26, %c0_33] : memref<169x32xbf16, #tpu.memory_space<vmem>>, vector<13x32xbf16>
    tpu.vector_store %arg18[%c26, %c0_33], %86 {strides = array<i32>} : memref<169x32xbf16, #tpu.memory_space<vmem>>, vector<13x32xbf16>,
    %c168 = arith.constant 168 : index
    %c0_34 = arith.constant 0 : index
    %88 = tpu.strided_load %arg16[%c168, %c0_34] {strides = array<i32: 2, 1>} : memref<700x32xf32, #tpu.memory_space<vmem>>, vector<13x32xf32>
    %89 = arith.truncf %88 : vector<13x32xf32> to vector<13x32xbf16>
    %c39 = arith.constant 39 : index
    %c0_35 = arith.constant 0 : index
    %90 = vector.load %arg18[%c39, %c0_35] : memref<169x32xbf16, #tpu.memory_space<vmem>>, vector<13x32xbf16>
    tpu.vector_store %arg18[%c39, %c0_35], %89 {strides = array<i32>} : memref<169x32xbf16, #tpu.memory_space<vmem>>, vector<13x32xbf16>,
    %c224 = arith.constant 224 : index
    %c0_36 = arith.constant 0 : index
    %91 = tpu.strided_load %arg16[%c224, %c0_36] {strides = array<i32: 2, 1>} : memref<700x32xf32, #tpu.memory_space<vmem>>, vector<13x32xf32>
    %92 = arith.truncf %91 : vector<13x32xf32> to vector<13x32xbf16>
    %c52 = arith.constant 52 : index
    %c0_37 = arith.constant 0 : index
    %93 = vector.load %arg18[%c52, %c0_37] : memref<169x32xbf16, #tpu.memory_space<vmem>>, vector<13x32xbf16>
    tpu.vector_store %arg18[%c52, %c0_37], %92 {strides = array<i32>} : memref<169x32xbf16, #tpu.memory_space<vmem>>, vector<13x32xbf16>,
    %c280 = arith.constant 280 : index
    %c0_38 = arith.constant 0 : index
    %94 = tpu.strided_load %arg16[%c280, %c0_38] {strides = array<i32: 2, 1>} : memref<700x32xf32, #tpu.memory_space<vmem>>, vector<13x32xf32>
    %95 = arith.truncf %94 : vector<13x32xf32> to vector<13x32xbf16>
    %c65 = arith.constant 65 : index
    %c0_39 = arith.constant 0 : index
    %96 = vector.load %arg18[%c65, %c0_39] : memref<169x32xbf16, #tpu.memory_space<vmem>>, vector<13x32xbf16>
    tpu.vector_store %arg18[%c65, %c0_39], %95 {strides = array<i32>} : memref<169x32xbf16, #tpu.memory_space<vmem>>, vector<13x32xbf16>,
    %c336 = arith.constant 336 : index
    %c0_40 = arith.constant 0 : index
    %97 = tpu.strided_load %arg16[%c336, %c0_40] {strides = array<i32: 2, 1>} : memref<700x32xf32, #tpu.memory_space<vmem>>, vector<13x32xf32>
    %98 = arith.truncf %97 : vector<13x32xf32> to vector<13x32xbf16>
    %c78 = arith.constant 78 : index
    %c0_41 = arith.constant 0 : index
    %99 = vector.load %arg18[%c78, %c0_41] : memref<169x32xbf16, #tpu.memory_space<vmem>>, vector<13x32xbf16>
    tpu.vector_store %arg18[%c78, %c0_41], %98 {strides = array<i32>} : memref<169x32xbf16, #tpu.memory_space<vmem>>, vector<13x32xbf16>,
    %c392 = arith.constant 392 : index
    %c0_42 = arith.constant 0 : index
    %100 = tpu.strided_load %arg16[%c392, %c0_42] {strides = array<i32: 2, 1>} : memref<700x32xf32, #tpu.memory_space<vmem>>, vector<13x32xf32>
    %101 = arith.truncf %100 : vector<13x32xf32> to vector<13x32xbf16>
    %c91 = arith.constant 91 : index
    %c0_43 = arith.constant 0 : index
    %102 = vector.load %arg18[%c91, %c0_43] : memref<169x32xbf16, #tpu.memory_space<vmem>>, vector<13x32xbf16>
    tpu.vector_store %arg18[%c91, %c0_43], %101 {strides = array<i32>} : memref<169x32xbf16, #tpu.memory_space<vmem>>, vector<13x32xbf16>,
    %c448 = arith.constant 448 : index
    %c0_44 = arith.constant 0 : index
    %103 = tpu.strided_load %arg16[%c448, %c0_44] {strides = array<i32: 2, 1>} : memref<700x32xf32, #tpu.memory_space<vmem>>, vector<13x32xf32>
    %104 = arith.truncf %103 : vector<13x32xf32> to vector<13x32xbf16>
    %c104 = arith.constant 104 : index
    %c0_45 = arith.constant 0 : index
    %105 = vector.load %arg18[%c104, %c0_45] : memref<169x32xbf16, #tpu.memory_space<vmem>>, vector<13x32xbf16>
    tpu.vector_store %arg18[%c104, %c0_45], %104 {strides = array<i32>} : memref<169x32xbf16, #tpu.memory_space<vmem>>, vector<13x32xbf16>,
    %c504 = arith.constant 504 : index
    %c0_46 = arith.constant 0 : index
    %106 = tpu.strided_load %arg16[%c504, %c0_46] {strides = array<i32: 2, 1>} : memref<700x32xf32, #tpu.memory_space<vmem>>, vector<13x32xf32>
    %107 = arith.truncf %106 : vector<13x32xf32> to vector<13x32xbf16>
    %c117 = arith.constant 117 : index
    %c0_47 = arith.constant 0 : index
    %108 = vector.load %arg18[%c117, %c0_47] : memref<169x32xbf16, #tpu.memory_space<vmem>>, vector<13x32xbf16>
    tpu.vector_store %arg18[%c117, %c0_47], %107 {strides = array<i32>} : memref<169x32xbf16, #tpu.memory_space<vmem>>, vector<13x32xbf16>,
    %c560 = arith.constant 560 : index
    %c0_48 = arith.constant 0 : index
    %109 = tpu.strided_load %arg16[%c560, %c0_48] {strides = array<i32: 2, 1>} : memref<700x32xf32, #tpu.memory_space<vmem>>, vector<13x32xf32>
    %110 = arith.truncf %109 : vector<13x32xf32> to vector<13x32xbf16>
    %c130 = arith.constant 130 : index
    %c0_49 = arith.constant 0 : index
    %111 = vector.load %arg18[%c130, %c0_49] : memref<169x32xbf16, #tpu.memory_space<vmem>>, vector<13x32xbf16>
    tpu.vector_store %arg18[%c130, %c0_49], %110 {strides = array<i32>} : memref<169x32xbf16, #tpu.memory_space<vmem>>, vector<13x32xbf16>,
    %c616 = arith.constant 616 : index
    %c0_50 = arith.constant 0 : index
    %112 = tpu.strided_load %arg16[%c616, %c0_50] {strides = array<i32: 2, 1>} : memref<700x32xf32, #tpu.memory_space<vmem>>, vector<13x32xf32>
    %113 = arith.truncf %112 : vector<13x32xf32> to vector<13x32xbf16>
    %c143 = arith.constant 143 : index
    %c0_51 = arith.constant 0 : index
    %114 = vector.load %arg18[%c143, %c0_51] : memref<169x32xbf16, #tpu.memory_space<vmem>>, vector<13x32xbf16>
    tpu.vector_store %arg18[%c143, %c0_51], %113 {strides = array<i32>} : memref<169x32xbf16, #tpu.memory_space<vmem>>, vector<13x32xbf16>,
    %c672 = arith.constant 672 : index
    %c0_52 = arith.constant 0 : index
    %115 = tpu.strided_load %arg16[%c672, %c0_52] {strides = array<i32: 2, 1>} : memref<700x32xf32, #tpu.memory_space<vmem>>, vector<13x32xf32>
    %116 = arith.truncf %115 : vector<13x32xf32> to vector<13x32xbf16>
    %c156 = arith.constant 156 : index
    %c0_53 = arith.constant 0 : index
    %117 = vector.load %arg18[%c156, %c0_53] : memref<169x32xbf16, #tpu.memory_space<vmem>>, vector<13x32xbf16>
    tpu.vector_store %arg18[%c156, %c0_53], %116 {strides = array<i32>} : memref<169x32xbf16, #tpu.memory_space<vmem>>, vector<13x32xbf16>,
    %c0_54 = arith.constant 0 : index
    %c0_55 = arith.constant 0 : index
    %118 = vector.load %arg18[%c0_54, %c0_55] : memref<169x32xbf16, #tpu.memory_space<vmem>>, vector<169x32xbf16>
    %cst_56 = arith.constant 0.000000e+00 : bf16
    %119 = vector.broadcast %cst_56 : bf16 to vector<2x32xbf16>
    %120 = tpu.concatenate %118, %119 in 0 : vector<169x32xbf16>, vector<2x32xbf16> -> vector<171x32xbf16>
    %121 = vector.extract_strided_slice %120 {offsets = [0, 0], sizes = [143, 32], strides = [1, 1]} : vector<171x32xbf16> to vector<143x32xbf16>
    %122 = vector.extract_strided_slice %120 {offsets = [1, 0], sizes = [143, 32], strides = [1, 1]} : vector<171x32xbf16> to vector<143x32xbf16>
    %123 = vector.extract_strided_slice %120 {offsets = [2, 0], sizes = [143, 32], strides = [1, 1]} : vector<171x32xbf16> to vector<143x32xbf16>
    %124 = vector.extract_strided_slice %120 {offsets = [13, 0], sizes = [143, 32], strides = [1, 1]} : vector<171x32xbf16> to vector<143x32xbf16>
    %125 = vector.extract_strided_slice %120 {offsets = [14, 0], sizes = [143, 32], strides = [1, 1]} : vector<171x32xbf16> to vector<143x32xbf16>
    %126 = vector.extract_strided_slice %120 {offsets = [15, 0], sizes = [143, 32], strides = [1, 1]} : vector<171x32xbf16> to vector<143x32xbf16>
    %127 = vector.extract_strided_slice %120 {offsets = [26, 0], sizes = [143, 32], strides = [1, 1]} : vector<171x32xbf16> to vector<143x32xbf16>
    %128 = vector.extract_strided_slice %120 {offsets = [27, 0], sizes = [143, 32], strides = [1, 1]} : vector<171x32xbf16> to vector<143x32xbf16>
    %129 = vector.extract_strided_slice %120 {offsets = [28, 0], sizes = [143, 32], strides = [1, 1]} : vector<171x32xbf16> to vector<143x32xbf16>
    %130 = tpu.concatenate %121, %122, %123, %124, %125, %126, %127, %128, %129 in 1 : vector<143x32xbf16>, vector<143x32xbf16>, vector<143x32xbf16>, vector<143x32xbf16>, vector<143x32xbf16>, vector<143x32xbf16>, vector<143x32xbf16>, vector<143x32xbf16>, vector<143x32xbf16> -> vector<143x288xbf16>
    %cst_57 = arith.constant dense<0.000000e+00> : vector<143x64xf32>
    %131 = tpu.matmul %130, %3, %cst_57 {dimension_numbers = #tpu.dot_dimension_numbers<[1], [0], [0], [1], [0, 0, 1, 1], [], []>} : vector<143x288xbf16>, vector<288x64xbf16>, vector<143x64xf32> -> vector<143x64xf32>
    %132 = vector.broadcast %4 : vector<1x64xf32> to vector<143x64xf32>
    %133 = arith.mulf %131, %132 : vector<143x64xf32>
    %134 = vector.broadcast %5 : vector<1x64xf32> to vector<143x64xf32>
    %135 = arith.addf %133, %134 : vector<143x64xf32>
    %cst_58 = arith.constant 0.000000e+00 : f32
    %136 = vector.broadcast %cst_58 : f32 to vector<143x64xf32>
    %137 = arith.maximumf %135, %136 : vector<143x64xf32>
    %cst_59 = arith.constant 0.000000e+00 : f32
    %138 = vector.broadcast %cst_59 : f32 to vector<1x64xf32>
    %139 = tpu.concatenate %137, %138 in 0 : vector<143x64xf32>, vector<1x64xf32> -> vector<144x64xf32>
    %140 = vector.extract_strided_slice %139 {offsets = [0, 0], sizes = [143, 64], strides = [1, 1]} : vector<144x64xf32> to vector<143x64xf32>
    %141 = vector.extract_strided_slice %139 {offsets = [1, 0], sizes = [143, 64], strides = [1, 1]} : vector<144x64xf32> to vector<143x64xf32>
    %142 = arith.maximumf %140, %141 : vector<143x64xf32>
    %143 = vector.extract_strided_slice %142 {offsets = [0, 0], sizes = [113, 64], strides = [1, 1]} : vector<143x64xf32> to vector<113x64xf32>
    %144 = vector.extract_strided_slice %142 {offsets = [13, 0], sizes = [113, 64], strides = [1, 1]} : vector<143x64xf32> to vector<113x64xf32>
    %145 = arith.maximumf %143, %144 : vector<113x64xf32>
    %c0_60 = arith.constant 0 : index
    %c0_61 = arith.constant 0 : index
    %146 = vector.load %arg17[%c0_60, %c0_61] : memref<113x64xf32, #tpu.memory_space<vmem>>, vector<113x64xf32>
    tpu.vector_store %arg17[%c0_60, %c0_61], %145 {strides = array<i32>} : memref<113x64xf32, #tpu.memory_space<vmem>>, vector<113x64xf32>,
    %c0_62 = arith.constant 0 : index
    %c0_63 = arith.constant 0 : index
    %147 = tpu.strided_load %arg17[%c0_62, %c0_63] {strides = array<i32: 2, 1>} : memref<113x64xf32, #tpu.memory_space<vmem>>, vector<5x64xf32>
    %148 = arith.truncf %147 : vector<5x64xf32> to vector<5x64xbf16>
    %c0_64 = arith.constant 0 : index
    %c0_65 = arith.constant 0 : index
    %149 = vector.load %arg19[%c0_64, %c0_65] : memref<25x64xbf16, #tpu.memory_space<vmem>>, vector<5x64xbf16>
    tpu.vector_store %arg19[%c0_64, %c0_65], %148 {strides = array<i32>} : memref<25x64xbf16, #tpu.memory_space<vmem>>, vector<5x64xbf16>,
    %c26_66 = arith.constant 26 : index
    %c0_67 = arith.constant 0 : index
    %150 = tpu.strided_load %arg17[%c26_66, %c0_67] {strides = array<i32: 2, 1>} : memref<113x64xf32, #tpu.memory_space<vmem>>, vector<5x64xf32>
    %151 = arith.truncf %150 : vector<5x64xf32> to vector<5x64xbf16>
    %c5 = arith.constant 5 : index
    %c0_68 = arith.constant 0 : index
    %152 = vector.load %arg19[%c5, %c0_68] : memref<25x64xbf16, #tpu.memory_space<vmem>>, vector<5x64xbf16>
    tpu.vector_store %arg19[%c5, %c0_68], %151 {strides = array<i32>} : memref<25x64xbf16, #tpu.memory_space<vmem>>, vector<5x64xbf16>,
    %c52_69 = arith.constant 52 : index
    %c0_70 = arith.constant 0 : index
    %153 = tpu.strided_load %arg17[%c52_69, %c0_70] {strides = array<i32: 2, 1>} : memref<113x64xf32, #tpu.memory_space<vmem>>, vector<5x64xf32>
    %154 = arith.truncf %153 : vector<5x64xf32> to vector<5x64xbf16>
    %c10 = arith.constant 10 : index
    %c0_71 = arith.constant 0 : index
    %155 = vector.load %arg19[%c10, %c0_71] : memref<25x64xbf16, #tpu.memory_space<vmem>>, vector<5x64xbf16>
    tpu.vector_store %arg19[%c10, %c0_71], %154 {strides = array<i32>} : memref<25x64xbf16, #tpu.memory_space<vmem>>, vector<5x64xbf16>,
    %c78_72 = arith.constant 78 : index
    %c0_73 = arith.constant 0 : index
    %156 = tpu.strided_load %arg17[%c78_72, %c0_73] {strides = array<i32: 2, 1>} : memref<113x64xf32, #tpu.memory_space<vmem>>, vector<5x64xf32>
    %157 = arith.truncf %156 : vector<5x64xf32> to vector<5x64xbf16>
    %c15 = arith.constant 15 : index
    %c0_74 = arith.constant 0 : index
    %158 = vector.load %arg19[%c15, %c0_74] : memref<25x64xbf16, #tpu.memory_space<vmem>>, vector<5x64xbf16>
    tpu.vector_store %arg19[%c15, %c0_74], %157 {strides = array<i32>} : memref<25x64xbf16, #tpu.memory_space<vmem>>, vector<5x64xbf16>,
    %c104_75 = arith.constant 104 : index
    %c0_76 = arith.constant 0 : index
    %159 = tpu.strided_load %arg17[%c104_75, %c0_76] {strides = array<i32: 2, 1>} : memref<113x64xf32, #tpu.memory_space<vmem>>, vector<5x64xf32>
    %160 = arith.truncf %159 : vector<5x64xf32> to vector<5x64xbf16>
    %c20 = arith.constant 20 : index
    %c0_77 = arith.constant 0 : index
    %161 = vector.load %arg19[%c20, %c0_77] : memref<25x64xbf16, #tpu.memory_space<vmem>>, vector<5x64xbf16>
    tpu.vector_store %arg19[%c20, %c0_77], %160 {strides = array<i32>} : memref<25x64xbf16, #tpu.memory_space<vmem>>, vector<5x64xbf16>,
    %c0_78 = arith.constant 0 : index
    %c0_79 = arith.constant 0 : index
    %162 = vector.load %arg19[%c0_78, %c0_79] : memref<25x64xbf16, #tpu.memory_space<vmem>>, vector<25x64xbf16>
    %cst_80 = arith.constant 0.000000e+00 : bf16
    %163 = vector.broadcast %cst_80 : bf16 to vector<2x64xbf16>
    %164 = tpu.concatenate %162, %163 in 0 : vector<25x64xbf16>, vector<2x64xbf16> -> vector<27x64xbf16>
    %165 = vector.extract_strided_slice %164 {offsets = [0, 0], sizes = [15, 64], strides = [1, 1]} : vector<27x64xbf16> to vector<15x64xbf16>
    %166 = vector.extract_strided_slice %164 {offsets = [1, 0], sizes = [15, 64], strides = [1, 1]} : vector<27x64xbf16> to vector<15x64xbf16>
    %167 = vector.extract_strided_slice %164 {offsets = [2, 0], sizes = [15, 64], strides = [1, 1]} : vector<27x64xbf16> to vector<15x64xbf16>
    %168 = vector.extract_strided_slice %164 {offsets = [5, 0], sizes = [15, 64], strides = [1, 1]} : vector<27x64xbf16> to vector<15x64xbf16>
    %169 = vector.extract_strided_slice %164 {offsets = [6, 0], sizes = [15, 64], strides = [1, 1]} : vector<27x64xbf16> to vector<15x64xbf16>
    %170 = vector.extract_strided_slice %164 {offsets = [7, 0], sizes = [15, 64], strides = [1, 1]} : vector<27x64xbf16> to vector<15x64xbf16>
    %171 = vector.extract_strided_slice %164 {offsets = [10, 0], sizes = [15, 64], strides = [1, 1]} : vector<27x64xbf16> to vector<15x64xbf16>
    %172 = vector.extract_strided_slice %164 {offsets = [11, 0], sizes = [15, 64], strides = [1, 1]} : vector<27x64xbf16> to vector<15x64xbf16>
    %173 = vector.extract_strided_slice %164 {offsets = [12, 0], sizes = [15, 64], strides = [1, 1]} : vector<27x64xbf16> to vector<15x64xbf16>
    %174 = tpu.concatenate %165, %166, %167, %168, %169, %170, %171, %172, %173 in 1 : vector<15x64xbf16>, vector<15x64xbf16>, vector<15x64xbf16>, vector<15x64xbf16>, vector<15x64xbf16>, vector<15x64xbf16>, vector<15x64xbf16>, vector<15x64xbf16>, vector<15x64xbf16> -> vector<15x576xbf16>
    %cst_81 = arith.constant dense<0.000000e+00> : vector<15x128xf32>
    %175 = tpu.matmul %174, %6, %cst_81 {dimension_numbers = #tpu.dot_dimension_numbers<[1], [0], [0], [1], [0, 0, 1, 1], [], []>} : vector<15x576xbf16>, vector<576x128xbf16>, vector<15x128xf32> -> vector<15x128xf32>
    %176 = vector.broadcast %7 : vector<1x128xf32> to vector<15x128xf32>
    %177 = arith.mulf %175, %176 : vector<15x128xf32>
    %178 = vector.broadcast %8 : vector<1x128xf32> to vector<15x128xf32>
    %179 = arith.addf %177, %178 : vector<15x128xf32>
    %cst_82 = arith.constant 0.000000e+00 : f32
    %180 = vector.broadcast %cst_82 : f32 to vector<15x128xf32>
    %181 = arith.maximumf %179, %180 : vector<15x128xf32>
    %182 = arith.truncf %181 : vector<15x128xf32> to vector<15x128xbf16>
    %183 = vector.extract_strided_slice %182 {offsets = [0, 0], sizes = [1, 128], strides = [1, 1]} : vector<15x128xbf16> to vector<1x128xbf16>
    %184 = vector.extract_strided_slice %182 {offsets = [1, 0], sizes = [1, 128], strides = [1, 1]} : vector<15x128xbf16> to vector<1x128xbf16>
    %185 = vector.extract_strided_slice %182 {offsets = [2, 0], sizes = [1, 128], strides = [1, 1]} : vector<15x128xbf16> to vector<1x128xbf16>
    %186 = vector.extract_strided_slice %182 {offsets = [5, 0], sizes = [1, 128], strides = [1, 1]} : vector<15x128xbf16> to vector<1x128xbf16>
    %187 = vector.extract_strided_slice %182 {offsets = [6, 0], sizes = [1, 128], strides = [1, 1]} : vector<15x128xbf16> to vector<1x128xbf16>
    %188 = vector.extract_strided_slice %182 {offsets = [7, 0], sizes = [1, 128], strides = [1, 1]} : vector<15x128xbf16> to vector<1x128xbf16>
    %189 = vector.extract_strided_slice %182 {offsets = [10, 0], sizes = [1, 128], strides = [1, 1]} : vector<15x128xbf16> to vector<1x128xbf16>
    %190 = vector.extract_strided_slice %182 {offsets = [11, 0], sizes = [1, 128], strides = [1, 1]} : vector<15x128xbf16> to vector<1x128xbf16>
    %191 = vector.extract_strided_slice %182 {offsets = [12, 0], sizes = [1, 128], strides = [1, 1]} : vector<15x128xbf16> to vector<1x128xbf16>
    %192 = tpu.concatenate %183, %184, %185, %186, %187, %188, %189, %190, %191 in 1 : vector<1x128xbf16>, vector<1x128xbf16>, vector<1x128xbf16>, vector<1x128xbf16>, vector<1x128xbf16>, vector<1x128xbf16>, vector<1x128xbf16>, vector<1x128xbf16>, vector<1x128xbf16> -> vector<1x1152xbf16>
    %193 = arith.index_cast %10 : i32 to index
    %c0_83 = arith.constant 0 : index
    %194 = vector.load %arg20[%193, %c0_83] : memref<1x1152xbf16, #tpu.memory_space<vmem>>, vector<1x1152xbf16>
    tpu.vector_store %arg20[%193, %c0_83], %192 {strides = array<i32>} : memref<1x1152xbf16, #tpu.memory_space<vmem>>, vector<1x1152xbf16>,
    %c1_i32_84 = arith.constant 1 : i32
    %c0_85 = arith.constant 0 : index
    %c0_86 = arith.constant 0 : index
    %195 = vector.load %arg20[%c0_85, %c0_86] : memref<1x1152xbf16, #tpu.memory_space<vmem>>, vector<1x1152xbf16>
    %c0_87 = arith.constant 0 : index
    %c0_88 = arith.constant 0 : index
    %196 = vector.load %arg11[%c0_87, %c0_88] : memref<1152x256xbf16, #tpu.memory_space<vmem>>, vector<1152x256xbf16>
    %cst_89 = arith.constant dense<0.000000e+00> : vector<1x256xf32>
    %197 = tpu.matmul %195, %196, %cst_89 {dimension_numbers = #tpu.dot_dimension_numbers<[1], [0], [0], [1], [0, 0, 1, 1], [], []>} : vector<1x1152xbf16>, vector<1152x256xbf16>, vector<1x256xf32> -> vector<1x256xf32>
    %c0_90 = arith.constant 0 : index
    %c0_91 = arith.constant 0 : index
    %198 = vector.load %arg12[%c0_90, %c0_91] : memref<1x256xf32, #tpu.memory_space<vmem>>, vector<1x256xf32>
    %199 = arith.addf %197, %198 : vector<1x256xf32>
    %cst_92 = arith.constant 0.000000e+00 : f32
    %200 = vector.broadcast %cst_92 : f32 to vector<1x256xf32>
    %201 = arith.maximumf %199, %200 : vector<1x256xf32>
    %202 = arith.truncf %201 : vector<1x256xf32> to vector<1x256xbf16>
    %c0_93 = arith.constant 0 : index
    %c0_94 = arith.constant 0 : index
    %203 = vector.load %arg13[%c0_93, %c0_94] : memref<256x128xbf16, #tpu.memory_space<vmem>>, vector<256x128xbf16>
    %cst_95 = arith.constant dense<0.000000e+00> : vector<1x128xf32>
    %204 = tpu.matmul %202, %203, %cst_95 {dimension_numbers = #tpu.dot_dimension_numbers<[1], [0], [0], [1], [0, 0, 1, 1], [], []>} : vector<1x256xbf16>, vector<256x128xbf16>, vector<1x128xf32> -> vector<1x128xf32>
    %c0_96 = arith.constant 0 : index
    %c0_97 = arith.constant 0 : index
    %205 = vector.load %arg14[%c0_96, %c0_97] : memref<1x128xf32, #tpu.memory_space<vmem>>, vector<1x128xf32>
    %206 = arith.addf %204, %205 : vector<1x128xf32>
    %c0_98 = arith.constant 0 : index
    %c0_99 = arith.constant 0 : index
    %c0_100 = arith.constant 0 : index
    %207 = vector.load %arg15[%c0_98, %c0_99, %c0_100] : memref<1x1x128xf32, #tpu.memory_space<vmem>>, vector<1x1x128xf32>
    %208 = vector.shape_cast %207 : vector<1x1x128xf32> to vector<1x128xf32>
    %209 = vector.shape_cast %206 : vector<1x128xf32> to vector<1x1x128xf32>
    tpu.vector_store %arg15[%c0_98, %c0_99, %c0_100], %209 {strides = array<i32>} : memref<1x1x128xf32, #tpu.memory_space<vmem>>, vector<1x1x128xf32>,
    return
  }
  func.func @transform_0(%arg0: i32) -> (i32, i32, i32, i32) {
    %c0_i32 = arith.constant 0 : i32
    %c0_i32_0 = arith.constant 0 : i32
    %c0_i32_1 = arith.constant 0 : i32
    %c0_i32_2 = arith.constant 0 : i32
    return %arg0, %c0_i32, %c0_i32_0, %c0_i32_1 : i32, i32, i32, i32
  }
  func.func @transform_1(%arg0: i32) -> (i32, i32) {
    %c0_i32 = arith.constant 0 : i32
    %c0_i32_0 = arith.constant 0 : i32
    %c0_i32_1 = arith.constant 0 : i32
    return %c0_i32, %c0_i32_0 : i32, i32
  }
  func.func @transform_2(%arg0: i32) -> (i32, i32) {
    %c0_i32 = arith.constant 0 : i32
    %c0_i32_0 = arith.constant 0 : i32
    %c0_i32_1 = arith.constant 0 : i32
    return %c0_i32, %c0_i32_0 : i32, i32
  }
  func.func @transform_3(%arg0: i32) -> (i32, i32) {
    %c0_i32 = arith.constant 0 : i32
    %c0_i32_0 = arith.constant 0 : i32
    %c0_i32_1 = arith.constant 0 : i32
    return %c0_i32, %c0_i32_0 : i32, i32
  }
  func.func @transform_4(%arg0: i32) -> (i32, i32) {
    %c0_i32 = arith.constant 0 : i32
    %c0_i32_0 = arith.constant 0 : i32
    %c0_i32_1 = arith.constant 0 : i32
    return %c0_i32, %c0_i32_0 : i32, i32
  }
  func.func @transform_5(%arg0: i32) -> (i32, i32) {
    %c0_i32 = arith.constant 0 : i32
    %c0_i32_0 = arith.constant 0 : i32
    %c0_i32_1 = arith.constant 0 : i32
    return %c0_i32, %c0_i32_0 : i32, i32
  }
  func.func @transform_6(%arg0: i32) -> (i32, i32) {
    %c0_i32 = arith.constant 0 : i32
    %c0_i32_0 = arith.constant 0 : i32
    %c0_i32_1 = arith.constant 0 : i32
    return %c0_i32, %c0_i32_0 : i32, i32
  }
  func.func @transform_7(%arg0: i32) -> (i32, i32) {
    %c0_i32 = arith.constant 0 : i32
    %c0_i32_0 = arith.constant 0 : i32
    %c0_i32_1 = arith.constant 0 : i32
    return %c0_i32, %c0_i32_0 : i32, i32
  }
  func.func @transform_8(%arg0: i32) -> (i32, i32) {
    %c0_i32 = arith.constant 0 : i32
    %c0_i32_0 = arith.constant 0 : i32
    %c0_i32_1 = arith.constant 0 : i32
    return %c0_i32, %c0_i32_0 : i32, i32
  }
  func.func @transform_9(%arg0: i32) -> (i32, i32) {
    %c0_i32 = arith.constant 0 : i32
    %c0_i32_0 = arith.constant 0 : i32
    %c0_i32_1 = arith.constant 0 : i32
    return %c0_i32, %c0_i32_0 : i32, i32
  }
  func.func @transform_10(%arg0: i32) -> (i32, i32) {
    %c0_i32 = arith.constant 0 : i32
    %c0_i32_0 = arith.constant 0 : i32
    %c0_i32_1 = arith.constant 0 : i32
    return %c0_i32, %c0_i32_0 : i32, i32
  }
  func.func @transform_11(%arg0: i32) -> (i32, i32) {
    %c0_i32 = arith.constant 0 : i32
    %c0_i32_0 = arith.constant 0 : i32
    %c0_i32_1 = arith.constant 0 : i32
    return %c0_i32, %c0_i32_0 : i32, i32
  }
  func.func @transform_12(%arg0: i32) -> (i32, i32) {
    %c0_i32 = arith.constant 0 : i32
    %c0_i32_0 = arith.constant 0 : i32
    %c0_i32_1 = arith.constant 0 : i32
    return %c0_i32, %c0_i32_0 : i32, i32
  }
  func.func @transform_13(%arg0: i32) -> (i32, i32) {
    %c0_i32 = arith.constant 0 : i32
    %c0_i32_0 = arith.constant 0 : i32
    %c0_i32_1 = arith.constant 0 : i32
    return %c0_i32, %c0_i32_0 : i32, i32
  }
  func.func @transform_14(%arg0: i32) -> (i32, i32, i32) {
    %c0_i32 = arith.constant 0 : i32
    %c0_i32_0 = arith.constant 0 : i32
    %c0_i32_1 = arith.constant 0 : i32
    return %arg0, %c0_i32, %c0_i32_0 : i32, i32, i32
  }
}

</mosaic_0001>

<llo_original>
// kernel: cnn_base_forward.1
$region0: #{cnn_base_forward.1}
  #allocation0 [shape = 'u32[]', space=smem, size = 0x4, offset = 0x4, fixed_abs, tag = 'smem constant byte address 0x4 - core index']
  #allocation1 [shape = 'u32[144,128]{1,0:T(1,128)}', space=vmem, size = 0x12000, scoped, tag = 'internal scratch']
  #allocation2 [shape = 'f32[700,32]{1,0:T(8,128)}', space=vmem, size = 0x58000, scoped, tag = 'scratch operand']
  #allocation3 [shape = 'f32[113,64]{1,0:T(8,128)}', space=vmem, size = 0xf000, scoped, tag = 'scratch operand']
  #allocation4 [shape = 'bf16[169,32]{1,0:T(8,128)(2,1)}', space=vmem, size = 0xb000, scoped, tag = 'scratch operand']
  #allocation5 [shape = 'bf16[25,64]{1,0:T(8,128)(2,1)}', space=vmem, size = 0x2000, scoped, tag = 'scratch operand']
  #allocation6 [shape = 'bf16[1,1152]{1,0:T(2,128)(2,1)}', space=vmem, size = 0x1200, scoped, tag = 'scratch operand']
  %s0 = inlined_call_operand.vmem [shape: f32[2,1,784,1], index: 0, kind: input, shape index: {}]
  %s1 = inlined_call_operand.vmem [shape: f32[9,32], index: 1, kind: input, shape index: {}]
  %s2 = inlined_call_operand.vmem [shape: f32[1,32], index: 2, kind: input, shape index: {}]
  %s3 = inlined_call_operand.vmem [shape: f32[1,32], index: 3, kind: input, shape index: {}]
  %s4 = inlined_call_operand.vmem [shape: bf16[288,64], index: 4, kind: input, shape index: {}]
  %s5 = inlined_call_operand.vmem [shape: f32[1,64], index: 5, kind: input, shape index: {}]
  %s6 = inlined_call_operand.vmem [shape: f32[1,64], index: 6, kind: input, shape index: {}]
  %s7 = inlined_call_operand.vmem [shape: bf16[576,128], index: 7, kind: input, shape index: {}]
  %s8 = inlined_call_operand.vmem [shape: f32[1,128], index: 8, kind: input, shape index: {}]
  %s9 = inlined_call_operand.vmem [shape: f32[1,128], index: 9, kind: input, shape index: {}]
  %s10 = inlined_call_operand.vmem [shape: bf16[1152,256], index: 10, kind: input, shape index: {}]
  %s11 = inlined_call_operand.vmem [shape: f32[1,256], index: 11, kind: input, shape index: {}]
  %s12 = inlined_call_operand.vmem [shape: bf16[256,128], index: 12, kind: input, shape index: {}]
  %s13 = inlined_call_operand.vmem [shape: f32[1,128], index: 13, kind: input, shape index: {}]
  %s14 = inlined_call_operand.hbm [shape: f32[2,1,128], index: 14, kind: output, shape index: {}]
  %s15 = sld [smem:[#allocation0]]
  $region89: #{cnn_base_forward.1} parent=0
    _
  %s17 = ssub.s32 1, %s15
  %s18 = scalar_select 0, %s17, %s15
  $region1: #{cnn_base_forward.1} parent=0
    #allocation7 [shape = 'u8[1024]{0}', space=vmem, size = 0x400, scoped, tag = 'output window, operand 0']
    #allocation8 [shape = 's32[2]{0}', space=sflag, size = 0x8, scoped, tag = 'scoped memory for cnn_base_forward.1']
    %19 = vsyncpa [#allocation8], 0
    %s20 = scalar_lea.sflag [#allocation8], 1
    %21 = vsyncpa %s20, 0
    loop: start=0, step=1, limit=4
    $region2: #{cnn_base_forward.1} parent=1 // loop_pre_header
      _
    $region3: #{cnn_base_forward.1} parent=1 // loop_header
      %s23 = sphi 0, %s27
      %p24 = scmp.ge.s32.totalorder %s23, 4
      %s33 = sphi 0, %s35
      %s36 = sphi 0, %s33
      %s37 = sphi 0, %s36
      %s53 = sphi 0, %s37
      %s57 = sphi 0, %s57
      %s59 = sphi 0, %s57
      %s60 = sphi 0, %s59
      %s74 = sphi 0, %s60
      %s78 = sphi 0, %s78
      %s80 = sphi 0, %s78
      %s81 = sphi 0, %s80
      %s95 = sphi 0, %s81
      %s99 = sphi 0, %s99
      %s101 = sphi 0, %s99
      %s102 = sphi 0, %s101
      %s116 = sphi 0, %s102
      %s120 = sphi 0, %s120
      %s122 = sphi 0, %s120
      %s123 = sphi 0, %s122
      %s137 = sphi 0, %s123
      %s141 = sphi 0, %s141
      %s143 = sphi 0, %s141
      %s144 = sphi 0, %s143
      %s158 = sphi 0, %s144
      %s162 = sphi 0, %s162
      %s164 = sphi 0, %s162
      %s165 = sphi 0, %s164
      %s179 = sphi 0, %s165
      %s183 = sphi 0, %s183
      %s185 = sphi 0, %s183
      %s186 = sphi 0, %s185
      %s200 = sphi 0, %s186
      %s204 = sphi 0, %s204
      %s206 = sphi 0, %s204
      %s207 = sphi 0, %s206
      %s221 = sphi 0, %s207
      %s225 = sphi 0, %s225
      %s227 = sphi 0, %s225
      %s228 = sphi 0, %s227
      %s242 = sphi 0, %s228
      %s246 = sphi 0, %s246
      %s248 = sphi 0, %s246
      %s249 = sphi 0, %s248
      %s263 = sphi 0, %s249
      %s267 = sphi 0, %s267
      %s269 = sphi 0, %s267
      %s270 = sphi 0, %s269
      %s284 = sphi 0, %s270
      %s288 = sphi 0, %s288
      %s290 = sphi 0, %s288
      %s291 = sphi 0, %s290
      %s305 = sphi 0, %s291
      %s309 = sphi 0, %s309
      %s311 = sphi 0, %s309
      %s312 = sphi 0, %s311
      %s326 = sphi 0, %s312
      %s332 = sphi 0, %s334
      %s335 = sphi 0, %s332
      %s336 = sphi 0, %s335
      %s352 = sphi 0, %s336
    $region4: #{cnn_base_forward.1} parent=1 // loop_header_branch
      %26 = sbr.rel (%p24) target = $region8
    $region5: #{cnn_base_forward.1} parent=1 // loop_body
      %s28 = ssub.s32 %s23, 1
      %s29 = ssub.s32 %s23, 2
      %s30 = sadd.s32 %s23, 1
      %s31 = ssub.s32 %s23, %s30
      %p32 = scmp.eq.s32.totalorder %s31, 0
      %s34 = sadd.s32 %s33, 1
      %s35 = scalar_select %p32, %s33, %s34
      %p38 = pneg %p32
      %p39 = scmp.eq.s32.totalorder %s23, 1
      %p40 = por %p38, %p39
      %p41 = scmp.ne.s32.totalorder %s33, %s36
      %p42 = scmp.eq.s32.totalorder %s23, 0
      %p43 = por %p41, %p42
      %p44 = scmp.ne.s32.totalorder %s33, %s36
      %p45 = scmp.eq.s32.totalorder %s28, 1
      %p46 = por %p44, %p45
      %p47 = scmp.ne.s32.totalorder %s36, %s37
      %p48 = scmp.eq.s32.totalorder %s28, 0
      %p49 = por %p47, %p48
      %p50 = scmp.ne.s32.totalorder %s36, %s37
      %p51 = scmp.eq.s32.totalorder %s29, 1
      %p52 = por %p50, %p51
      %p54 = scmp.ne.s32.totalorder %s37, %s53
      %p55 = scmp.eq.s32.totalorder %s29, 0
      %p56 = por %p54, %p55
      %s58 = sadd.s32 %s57, 1
      %p61 = scmp.eq.s32.totalorder %s23, 1
      %p62 = scmp.ne.s32.totalorder %s57, %s59
      %p63 = scmp.eq.s32.totalorder %s23, 0
      %p64 = por %p62, %p63
      %p65 = scmp.ne.s32.totalorder %s57, %s59
      %p66 = scmp.eq.s32.totalorder %s28, 1
      %p67 = por %p65, %p66
      %p68 = scmp.ne.s32.totalorder %s59, %s60
      %p69 = scmp.eq.s32.totalorder %s28, 0
      %p70 = por %p68, %p69
      %p71 = scmp.ne.s32.totalorder %s59, %s60
      %p72 = scmp.eq.s32.totalorder %s29, 1
      %p73 = por %p71, %p72
      %p75 = scmp.ne.s32.totalorder %s60, %s74
      %p76 = scmp.eq.s32.totalorder %s29, 0
      %p77 = por %p75, %p76
      %s79 = sadd.s32 %s78, 1
      %p82 = scmp.eq.s32.totalorder %s23, 1
      %p83 = scmp.ne.s32.totalorder %s78, %s80
      %p84 = scmp.eq.s32.totalorder %s23, 0
      %p85 = por %p83, %p84
      %p86 = scmp.ne.s32.totalorder %s78, %s80
      %p87 = scmp.eq.s32.totalorder %s28, 1
      %p88 = por %p86, %p87
      %p89 = scmp.ne.s32.totalorder %s80, %s81
      %p90 = scmp.eq.s32.totalorder %s28, 0
      %p91 = por %p89, %p90
      %p92 = scmp.ne.s32.totalorder %s80, %s81
      %p93 = scmp.eq.s32.totalorder %s29, 1
      %p94 = por %p92, %p93
      %p96 = scmp.ne.s32.totalorder %s81, %s95
      %p97 = scmp.eq.s32.totalorder %s29, 0
      %p98 = por %p96, %p97
      %s100 = sadd.s32 %s99, 1
      %p103 = scmp.eq.s32.totalorder %s23, 1
      %p104 = scmp.ne.s32.totalorder %s99, %s101
      %p105 = scmp.eq.s32.totalorder %s23, 0
      %p106 = por %p104, %p105
      %p107 = scmp.ne.s32.totalorder %s99, %s101
      %p108 = scmp.eq.s32.totalorder %s28, 1
      %p109 = por %p107, %p108
      %p110 = scmp.ne.s32.totalorder %s101, %s102
      %p111 = scmp.eq.s32.totalorder %s28, 0
      %p112 = por %p110, %p111
      %p113 = scmp.ne.s32.totalorder %s101, %s102
      %p114 = scmp.eq.s32.totalorder %s29, 1
      %p115 = por %p113, %p114
      %p117 = scmp.ne.s32.totalorder %s102, %s116
      %p118 = scmp.eq.s32.totalorder %s29, 0
      %p119 = por %p117, %p118
      %s121 = sadd.s32 %s120, 1
      %p124 = scmp.eq.s32.totalorder %s23, 1
      %p125 = scmp.ne.s32.totalorder %s120, %s122
      %p126 = scmp.eq.s32.totalorder %s23, 0
      %p127 = por %p125, %p126
      %p128 = scmp.ne.s32.totalorder %s120, %s122
      %p129 = scmp.eq.s32.totalorder %s28, 1
      %p130 = por %p128, %p129
      %p131 = scmp.ne.s32.totalorder %s122, %s123
      %p132 = scmp.eq.s32.totalorder %s28, 0
      %p133 = por %p131, %p132
      %p134 = scmp.ne.s32.totalorder %s122, %s123
      %p135 = scmp.eq.s32.totalorder %s29, 1
      %p136 = por %p134, %p135
      %p138 = scmp.ne.s32.totalorder %s123, %s137
      %p139 = scmp.eq.s32.totalorder %s29, 0
      %p140 = por %p138, %p139
      %s142 = sadd.s32 %s141, 1
      %p145 = scmp.eq.s32.totalorder %s23, 1
      %p146 = scmp.ne.s32.totalorder %s141, %s143
      %p147 = scmp.eq.s32.totalorder %s23, 0
      %p148 = por %p146, %p147
      %p149 = scmp.ne.s32.totalorder %s141, %s143
      %p150 = scmp.eq.s32.totalorder %s28, 1
      %p151 = por %p149, %p150
      %p152 = scmp.ne.s32.totalorder %s143, %s144
      %p153 = scmp.eq.s32.totalorder %s28, 0
      %p154 = por %p152, %p153
      %p155 = scmp.ne.s32.totalorder %s143, %s144
      %p156 = scmp.eq.s32.totalorder %s29, 1
      %p157 = por %p155, %p156
      %p159 = scmp.ne.s32.totalorder %s144, %s158
      %p160 = scmp.eq.s32.totalorder %s29, 0
      %p161 = por %p159, %p160
      %s163 = sadd.s32 %s162, 1
      %p166 = scmp.eq.s32.totalorder %s23, 1
      %p167 = scmp.ne.s32.totalorder %s162, %s164
      %p168 = scmp.eq.s32.totalorder %s23, 0
      %p169 = por %p167, %p168
      %p170 = scmp.ne.s32.totalorder %s162, %s164
      %p171 = scmp.eq.s32.totalorder %s28, 1
      %p172 = por %p170, %p171
      %p173 = scmp.ne.s32.totalorder %s164, %s165
      %p174 = scmp.eq.s32.totalorder %s28, 0
      %p175 = por %p173, %p174
      %p176 = scmp.ne.s32.totalorder %s164, %s165
      %p177 = scmp.eq.s32.totalorder %s29, 1
      %p178 = por %p176, %p177
      %p180 = scmp.ne.s32.totalorder %s165, %s179
      %p181 = scmp.eq.s32.totalorder %s29, 0
      %p182 = por %p180, %p181
      %s184 = sadd.s32 %s183, 1
      %p187 = scmp.eq.s32.totalorder %s23, 1
      %p188 = scmp.ne.s32.totalorder %s183, %s185
      %p189 = scmp.eq.s32.totalorder %s23, 0
      %p190 = por %p188, %p189
      %p191 = scmp.ne.s32.totalorder %s183, %s185
      %p192 = scmp.eq.s32.totalorder %s28, 1
      %p193 = por %p191, %p192
      %p194 = scmp.ne.s32.totalorder %s185, %s186
      %p195 = scmp.eq.s32.totalorder %s28, 0
      %p196 = por %p194, %p195
      %p197 = scmp.ne.s32.totalorder %s185, %s186
      %p198 = scmp.eq.s32.totalorder %s29, 1
      %p199 = por %p197, %p198
      %p201 = scmp.ne.s32.totalorder %s186, %s200
      %p202 = scmp.eq.s32.totalorder %s29, 0
      %p203 = por %p201, %p202
      %s205 = sadd.s32 %s204, 1
      %p208 = scmp.eq.s32.totalorder %s23, 1
      %p209 = scmp.ne.s32.totalorder %s204, %s206
      %p210 = scmp.eq.s32.totalorder %s23, 0
      %p211 = por %p209, %p210
      %p212 = scmp.ne.s32.totalorder %s204, %s206
      %p213 = scmp.eq.s32.totalorder %s28, 1
      %p214 = por %p212, %p213
      %p215 = scmp.ne.s32.totalorder %s206, %s207
      %p216 = scmp.eq.s32.totalorder %s28, 0
      %p217 = por %p215, %p216
      %p218 = scmp.ne.s32.totalorder %s206, %s207
      %p219 = scmp.eq.s32.totalorder %s29, 1
      %p220 = por %p218, %p219
      %p222 = scmp.ne.s32.totalorder %s207, %s221
      %p223 = scmp.eq.s32.totalorder %s29, 0
      %p224 = por %p222, %p223
      %s226 = sadd.s32 %s225, 1
      %p229 = scmp.eq.s32.totalorder %s23, 1
      %p230 = scmp.ne.s32.totalorder %s225, %s227
      %p231 = scmp.eq.s32.totalorder %s23, 0
      %p232 = por %p230, %p231
      %p233 = scmp.ne.s32.totalorder %s225, %s227
      %p234 = scmp.eq.s32.totalorder %s28, 1
      %p235 = por %p233, %p234
      %p236 = scmp.ne.s32.totalorder %s227, %s228
      %p237 = scmp.eq.s32.totalorder %s28, 0
      %p238 = por %p236, %p237
      %p239 = scmp.ne.s32.totalorder %s227, %s228
      %p240 = scmp.eq.s32.totalorder %s29, 1
      %p241 = por %p239, %p240
      %p243 = scmp.ne.s32.totalorder %s228, %s242
      %p244 = scmp.eq.s32.totalorder %s29, 0
      %p245 = por %p243, %p244
      %s247 = sadd.s32 %s246, 1
      %p250 = scmp.eq.s32.totalorder %s23, 1
      %p251 = scmp.ne.s32.totalorder %s246, %s248
      %p252 = scmp.eq.s32.totalorder %s23, 0
      %p253 = por %p251, %p252
      %p254 = scmp.ne.s32.totalorder %s246, %s248
      %p255 = scmp.eq.s32.totalorder %s28, 1
      %p256 = por %p254, %p255
      %p257 = scmp.ne.s32.totalorder %s248, %s249
      %p258 = scmp.eq.s32.totalorder %s28, 0
      %p259 = por %p257, %p258
      %p260 = scmp.ne.s32.totalorder %s248, %s249
      %p261 = scmp.eq.s32.totalorder %s29, 1
      %p262 = por %p260, %p261
      %p264 = scmp.ne.s32.totalorder %s249, %s263
      %p265 = scmp.eq.s32.totalorder %s29, 0
      %p266 = por %p264, %p265
      %s268 = sadd.s32 %s267, 1
      %p271 = scmp.eq.s32.totalorder %s23, 1
      %p272 = scmp.ne.s32.totalorder %s267, %s269
      %p273 = scmp.eq.s32.totalorder %s23, 0
      %p274 = por %p272, %p273
      %p275 = scmp.ne.s32.totalorder %s267, %s269
      %p276 = scmp.eq.s32.totalorder %s28, 1
      %p277 = por %p275, %p276
      %p278 = scmp.ne.s32.totalorder %s269, %s270
      %p279 = scmp.eq.s32.totalorder %s28, 0
      %p280 = por %p278, %p279
      %p281 = scmp.ne.s32.totalorder %s269, %s270
      %p282 = scmp.eq.s32.totalorder %s29, 1
      %p283 = por %p281, %p282
      %p285 = scmp.ne.s32.totalorder %s270, %s284
      %p286 = scmp.eq.s32.totalorder %s29, 0
      %p287 = por %p285, %p286
      %s289 = sadd.s32 %s288, 1
      %p292 = scmp.eq.s32.totalorder %s23, 1
      %p293 = scmp.ne.s32.totalorder %s288, %s290
      %p294 = scmp.eq.s32.totalorder %s23, 0
      %p295 = por %p293, %p294
      %p296 = scmp.ne.s32.totalorder %s288, %s290
      %p297 = scmp.eq.s32.totalorder %s28, 1
      %p298 = por %p296, %p297
      %p299 = scmp.ne.s32.totalorder %s290, %s291
      %p300 = scmp.eq.s32.totalorder %s28, 0
      %p301 = por %p299, %p300
      %p302 = scmp.ne.s32.totalorder %s290, %s291
      %p303 = scmp.eq.s32.totalorder %s29, 1
      %p304 = por %p302, %p303
      %p306 = scmp.ne.s32.totalorder %s291, %s305
      %p307 = scmp.eq.s32.totalorder %s29, 0
      %p308 = por %p306, %p307
      %s310 = sadd.s32 %s309, 1
      %p313 = scmp.eq.s32.totalorder %s23, 1
      %p314 = scmp.ne.s32.totalorder %s309, %s311
      %p315 = scmp.eq.s32.totalorder %s23, 0
      %p316 = por %p314, %p315
      %p317 = scmp.ne.s32.totalorder %s309, %s311
      %p318 = scmp.eq.s32.totalorder %s28, 1
      %p319 = por %p317, %p318
      %p320 = scmp.ne.s32.totalorder %s311, %s312
      %p321 = scmp.eq.s32.totalorder %s28, 0
      %p322 = por %p320, %p321
      %p323 = scmp.ne.s32.totalorder %s311, %s312
      %p324 = scmp.eq.s32.totalorder %s29, 1
      %p325 = por %p323, %p324
      %p327 = scmp.ne.s32.totalorder %s312, %s326
      %p328 = scmp.eq.s32.totalorder %s29, 0
      %p329 = por %p327, %p328
      %s330 = ssub.s32 %s23, %s30
      %p331 = scmp.eq.s32.totalorder %s330, 0
      %s333 = sadd.s32 %s332, 1
      %s334 = scalar_select %p331, %s332, %s333
      %p337 = pneg %p331
      %p338 = scmp.eq.s32.totalorder %s23, 1
      %p339 = por %p337, %p338
      %p340 = scmp.ne.s32.totalorder %s332, %s335
      %p341 = scmp.eq.s32.totalorder %s23, 0
      %p342 = por %p340, %p341
      %p343 = scmp.ne.s32.totalorder %s332, %s335
      %p344 = scmp.eq.s32.totalorder %s28, 1
      %p345 = por %p343, %p344
      %p346 = scmp.ne.s32.totalorder %s335, %s336
      %p347 = scmp.eq.s32.totalorder %s28, 0
      %p348 = por %p346, %p347
      %p349 = scmp.ne.s32.totalorder %s335, %s336
      %p350 = scmp.eq.s32.totalorder %s29, 1
      %p351 = por %p349, %p350
      %p353 = scmp.ne.s32.totalorder %s336, %s352
      %p354 = scmp.eq.s32.totalorder %s29, 0
      %p355 = por %p353, %p354
      %p356 = scmp.le.s32.totalorder 1, %s23
      %p357 = scmp.lt.s32.totalorder %s23, 3
      %p358 = pnand %p356, %p357
      %p359 = pneg %p358
      // Predicated region
      $region9: #{cnn_base_forward.1} parent=5 // pred_check
        _
      $region10: #{cnn_base_forward.1} parent=5 // pred_check_branch
        %361 = sbr.rel (%p358) target = $region12
      $region11: #{cnn_base_forward.1} parent=5 // pred_region
        %s362 = ssub.s32 %s23, 1
        // Predicated region
        $region13: #{cnn_base_forward.1} parent=11 // pred_check
          %p363 = pneg %p70
        $region14: #{cnn_base_forward.1} parent=11 // pred_check_branch
          %365 = sbr.rel (%p363) target = $region16
        $region15: #{cnn_base_forward.1} parent=11 // pred_region
          _
        $region16: #{cnn_base_forward.1} parent=11 // pred_fallthru
          _
        // Predicated region
        $region17: #{cnn_base_forward.1} parent=11 // pred_check
          %p366 = pneg %p91
        $region18: #{cnn_base_forward.1} parent=11 // pred_check_branch
          %368 = sbr.rel (%p366) target = $region20
        $region19: #{cnn_base_forward.1} parent=11 // pred_region
          _
        $region20: #{cnn_base_forward.1} parent=11 // pred_fallthru
          _
        // Predicated region
        $region21: #{cnn_base_forward.1} parent=11 // pred_check
          %p369 = pneg %p112
        $region22: #{cnn_base_forward.1} parent=11 // pred_check_branch
          %371 = sbr.rel (%p369) target = $region24
        $region23: #{cnn_base_forward.1} parent=11 // pred_region
          _
        $region24: #{cnn_base_forward.1} parent=11 // pred_fallthru
          _
        // Predicated region
        $region25: #{cnn_base_forward.1} parent=11 // pred_check
          %p372 = pneg %p133
        $region26: #{cnn_base_forward.1} parent=11 // pred_check_branch
          %374 = sbr.rel (%p372) target = $region28
        $region27: #{cnn_base_forward.1} parent=11 // pred_region
          _
        $region28: #{cnn_base_forward.1} parent=11 // pred_fallthru
          _
        // Predicated region
        $region29: #{cnn_base_forward.1} parent=11 // pred_check
          %p375 = pneg %p154
        $region30: #{cnn_base_forward.1} parent=11 // pred_check_branch
          %377 = sbr.rel (%p375) target = $region32
        $region31: #{cnn_base_forward.1} parent=11 // pred_region
          _
        $region32: #{cnn_base_forward.1} parent=11 // pred_fallthru
          _
        // Predicated region
        $region33: #{cnn_base_forward.1} parent=11 // pred_check
          %p378 = pneg %p175
        $region34: #{cnn_base_forward.1} parent=11 // pred_check_branch
          %380 = sbr.rel (%p378) target = $region36
        $region35: #{cnn_base_forward.1} parent=11 // pred_region
          _
        $region36: #{cnn_base_forward.1} parent=11 // pred_fallthru
          _
        // Predicated region
        $region37: #{cnn_base_forward.1} parent=11 // pred_check
          %p381 = pneg %p196
        $region38: #{cnn_base_forward.1} parent=11 // pred_check_branch
          %383 = sbr.rel (%p381) target = $region40
        $region39: #{cnn_base_forward.1} parent=11 // pred_region
          _
        $region40: #{cnn_base_forward.1} parent=11 // pred_fallthru
          _
        // Predicated region
        $region41: #{cnn_base_forward.1} parent=11 // pred_check
          %p384 = pneg %p217
        $region42: #{cnn_base_forward.1} parent=11 // pred_check_branch
          %386 = sbr.rel (%p384) target = $region44
        $region43: #{cnn_base_forward.1} parent=11 // pred_region
          _
        $region44: #{cnn_base_forward.1} parent=11 // pred_fallthru
          _
        // Predicated region
        $region45: #{cnn_base_forward.1} parent=11 // pred_check
          %p387 = pneg %p238
        $region46: #{cnn_base_forward.1} parent=11 // pred_check_branch
          %389 = sbr.rel (%p387) target = $region48
        $region47: #{cnn_base_forward.1} parent=11 // pred_region
          _
        $region48: #{cnn_base_forward.1} parent=11 // pred_fallthru
          _
        // Predicated region
        $region49: #{cnn_base_forward.1} parent=11 // pred_check
          %p390 = pneg %p259
        $region50: #{cnn_base_forward.1} parent=11 // pred_check_branch
          %392 = sbr.rel (%p390) target = $region52
        $region51: #{cnn_base_forward.1} parent=11 // pred_region
          _
        $region52: #{cnn_base_forward.1} parent=11 // pred_fallthru
          _
        // Predicated region
        $region53: #{cnn_base_forward.1} parent=11 // pred_check
          %p393 = pneg %p280
        $region54: #{cnn_base_forward.1} parent=11 // pred_check_branch
          %395 = sbr.rel (%p393) target = $region56
        $region55: #{cnn_base_forward.1} parent=11 // pred_region
          _
        $region56: #{cnn_base_forward.1} parent=11 // pred_fallthru
          _
        // Predicated region
        $region57: #{cnn_base_forward.1} parent=11 // pred_check
          %p396 = pneg %p301
        $region58: #{cnn_base_forward.1} parent=11 // pred_check_branch
          %398 = sbr.rel (%p396) target = $region60
        $region59: #{cnn_base_forward.1} parent=11 // pred_region
          _
        $region60: #{cnn_base_forward.1} parent=11 // pred_fallthru
          _
        // Predicated region
        $region61: #{cnn_base_forward.1} parent=11 // pred_check
          %p399 = pneg %p322
        $region62: #{cnn_base_forward.1} parent=11 // pred_check_branch
          %401 = sbr.rel (%p399) target = $region64
        $region63: #{cnn_base_forward.1} parent=11 // pred_region
          _
        $region64: #{cnn_base_forward.1} parent=11 // pred_fallthru
          _
      $region12: #{cnn_base_forward.1} parent=5 // pred_fallthru
        _
      %p402 = scmp.lt.s32.totalorder %s23, 2
      // Predicated region
      $region65: #{cnn_base_forward.1} parent=5 // pred_check
        %p403 = pneg %p402
      $region66: #{cnn_base_forward.1} parent=5 // pred_check_branch
        %405 = sbr.rel (%p403) target = $region68
      $region67: #{cnn_base_forward.1} parent=5 // pred_region
        // Predicated region
        $region69: #{cnn_base_forward.1} parent=67 // pred_check
          %p406 = pneg %p43
        $region70: #{cnn_base_forward.1} parent=67 // pred_check_branch
          %408 = sbr.rel (%p406) target = $region72
        $region71: #{cnn_base_forward.1} parent=67 // pred_region
          %p409 = scmp.lt.s32.totalorder %s23, 1
          %s410 = scalar_select %p409, %s23, 1
          %s411 = smul.addr %s410, 98
          %s412 = smul.addr %s411, 8
          %s413 = scalar_lea.vmem %s0, %s412
        $region72: #{cnn_base_forward.1} parent=67 // pred_fallthru
          _
      $region68: #{cnn_base_forward.1} parent=5 // pred_fallthru
        _
      %p414 = scmp.le.s32.totalorder 1, %s23
      %p415 = scmp.lt.s32.totalorder %s23, 3
      %p416 = pnand %p414, %p415
      %p417 = pneg %p416
      // Predicated region
      $region73: #{cnn_base_forward.1} parent=5 // pred_check
        _
      $region74: #{cnn_base_forward.1} parent=5 // pred_check_branch
        %419 = sbr.rel (%p416) target = $region76
      $region75: #{cnn_base_forward.1} parent=5 // pred_region
        %s420 = ssub.s32 %s23, 1
        %p421 = scmp.lt.s32.totalorder %s28, 1
        %s422 = scalar_select %p421, %s28, 1
        %s423 = smul.addr %s422, 98
        %s424 = smul.addr %s423, 8
        %s425 = scalar_lea.vmem %s0, %s424
        %p426 = pneg %p49
        %p427 = pneg %p46
        %p428 = pneg %p70
        %p429 = pneg %p67
        %p430 = pneg %p91
        %p431 = pneg %p88
        %p432 = pneg %p112
        %p433 = pneg %p109
        %p434 = pneg %p133
        %p435 = pneg %p130
        %p436 = pneg %p154
        %p437 = pneg %p151
        %p438 = pneg %p175
        %p439 = pneg %p172
        %p440 = pneg %p196
        %p441 = pneg %p193
        %p442 = pneg %p217
        %p443 = pneg %p214
        %p444 = pneg %p238
        %p445 = pneg %p235
        %p446 = pneg %p259
        %p447 = pneg %p256
        %p448 = pneg %p280
        %p449 = pneg %p277
        %p450 = pneg %p301
        %p451 = pneg %p298
        %p452 = pneg %p322
        %p453 = pneg %p319
        %p454 = pneg %p348
        %p455 = pneg %p345
        %s456 = sand.u32 %s335, 1
        %s457 = scalar_lea.sflag [#allocation8], %s456
        %s458 = sand.u32 %s335, 1
        %s459 = scalar_lea.vmem [#allocation7], %s458
        %p460 = scmp.lt.s32.totalorder %s28, 1
        %s461 = scalar_select %p460, %s28, 1
        %s462 = smul.addr %s461, 98
        %s463 = smul.addr %s462, 8
        %s464 = scalar_lea.vmem %s0, %s463
        %v466 = vld [vmem:[%s1] sm:$0xff]
        %v467 = vld [vmem:[%s1 + $0x8] sm:$0x1]
        %v468 = vld [vmem:[%s2] sm:$0x1]
        %v469 = vld [vmem:[%s3] sm:$0x1]
        %v470 = vld [vmem:[%s4] sm:$0xf]
        %v471 = vld [vmem:[%s4 + $0x4] sm:$0xf]
        %v472 = vld [vmem:[%s4 + $0x8] sm:$0xf]
        %v473 = vld [vmem:[%s4 + $0xc] sm:$0xf]
        %v474 = vld [vmem:[%s4 + $0x10] sm:$0xf]
        %v475 = vld [vmem:[%s4 + $0x14] sm:$0xf]
        %v476 = vld [vmem:[%s4 + $0x18] sm:$0xf]
        %v477 = vld [vmem:[%s4 + $0x1c] sm:$0xf]
        %v478 = vld [vmem:[%s4 + $0x20] sm:$0xf]
        %v479 = vld [vmem:[%s4 + $0x24] sm:$0xf]
        %v480 = vld [vmem:[%s4 + $0x28] sm:$0xf]
        %v481 = vld [vmem:[%s4 + $0x2c] sm:$0xf]
        %v482 = vld [vmem:[%s4 + $0x30] sm:$0xf]
        %v483 = vld [vmem:[%s4 + $0x34] sm:$0xf]
        %v484 = vld [vmem:[%s4 + $0x38] sm:$0xf]
        %v485 = vld [vmem:[%s4 + $0x3c] sm:$0xf]
        %v486 = vld [vmem:[%s4 + $0x40] sm:$0xf]
        %v487 = vld [vmem:[%s4 + $0x44] sm:$0xf]
        %v488 = vld [vmem:[%s4 + $0x48] sm:$0xf]
        %v489 = vld [vmem:[%s4 + $0x4c] sm:$0xf]
        %v490 = vld [vmem:[%s4 + $0x50] sm:$0xf]
        %v491 = vld [vmem:[%s4 + $0x54] sm:$0xf]
        %v492 = vld [vmem:[%s4 + $0x58] sm:$0xf]
        %v493 = vld [vmem:[%s4 + $0x5c] sm:$0xf]
        %v494 = vld [vmem:[%s4 + $0x60] sm:$0xf]
        %v495 = vld [vmem:[%s4 + $0x64] sm:$0xf]
        %v496 = vld [vmem:[%s4 + $0x68] sm:$0xf]
        %v497 = vld [vmem:[%s4 + $0x6c] sm:$0xf]
        %v498 = vld [vmem:[%s4 + $0x70] sm:$0xf]
        %v499 = vld [vmem:[%s4 + $0x74] sm:$0xf]
        %v500 = vld [vmem:[%s4 + $0x78] sm:$0xf]
        %v501 = vld [vmem:[%s4 + $0x7c] sm:$0xf]
        %v502 = vld [vmem:[%s4 + $0x80] sm:$0xf]
        %v503 = vld [vmem:[%s4 + $0x84] sm:$0xf]
        %v504 = vld [vmem:[%s4 + $0x88] sm:$0xf]
        %v505 = vld [vmem:[%s4 + $0x8c] sm:$0xf]
        %v506 = vld [vmem:[%s5] sm:$0x1]
        %v507 = vld [vmem:[%s6] sm:$0x1]
        %v508 = vld [vmem:[%s7] sm:$0xf]
        %v509 = vld [vmem:[%s7 + $0x4] sm:$0xf]
        %v510 = vld [vmem:[%s7 + $0x8] sm:$0xf]
        %v511 = vld [vmem:[%s7 + $0xc] sm:$0xf]
        %v512 = vld [vmem:[%s7 + $0x10] sm:$0xf]
        %v513 = vld [vmem:[%s7 + $0x14] sm:$0xf]
        %v514 = vld [vmem:[%s7 + $0x18] sm:$0xf]
        %v515 = vld [vmem:[%s7 + $0x1c] sm:$0xf]
        %v516 = vld [vmem:[%s7 + $0x20] sm:$0xf]
        %v517 = vld [vmem:[%s7 + $0x24] sm:$0xf]
        %v518 = vld [vmem:[%s7 + $0x28] sm:$0xf]
        %v519 = vld [vmem:[%s7 + $0x2c] sm:$0xf]
        %v520 = vld [vmem:[%s7 + $0x30] sm:$0xf]
        %v521 = vld [vmem:[%s7 + $0x34] sm:$0xf]
        %v522 = vld [vmem:[%s7 + $0x38] sm:$0xf]
        %v523 = vld [vmem:[%s7 + $0x3c] sm:$0xf]
        %v524 = vld [vmem:[%s7 + $0x40] sm:$0xf]
        %v525 = vld [vmem:[%s7 + $0x44] sm:$0xf]
        %v526 = vld [vmem:[%s7 + $0x48] sm:$0xf]
        %v527 = vld [vmem:[%s7 + $0x4c] sm:$0xf]
        %v528 = vld [vmem:[%s7 + $0x50] sm:$0xf]
        %v529 = vld [vmem:[%s7 + $0x54] sm:$0xf]
        %v530 = vld [vmem:[%s7 + $0x58] sm:$0xf]
        %v531 = vld [vmem:[%s7 + $0x5c] sm:$0xf]
        %v532 = vld [vmem:[%s7 + $0x60] sm:$0xf]
        %v533 = vld [vmem:[%s7 + $0x64] sm:$0xf]
        %v534 = vld [vmem:[%s7 + $0x68] sm:$0xf]
        %v535 = vld [vmem:[%s7 + $0x6c] sm:$0xf]
        %v536 = vld [vmem:[%s7 + $0x70] sm:$0xf]
        %v537 = vld [vmem:[%s7 + $0x74] sm:$0xf]
        %v538 = vld [vmem:[%s7 + $0x78] sm:$0xf]
        %v539 = vld [vmem:[%s7 + $0x7c] sm:$0xf]
        %v540 = vld [vmem:[%s7 + $0x80] sm:$0xf]
        %v541 = vld [vmem:[%s7 + $0x84] sm:$0xf]
        %v542 = vld [vmem:[%s7 + $0x88] sm:$0xf]
        %v543 = vld [vmem:[%s7 + $0x8c] sm:$0xf]
        %v544 = vld [vmem:[%s7 + $0x90] sm:$0xf]
        %v545 = vld [vmem:[%s7 + $0x94] sm:$0xf]
        %v546 = vld [vmem:[%s7 + $0x98] sm:$0xf]
        %v547 = vld [vmem:[%s7 + $0x9c] sm:$0xf]
        %v548 = vld [vmem:[%s7 + $0xa0] sm:$0xf]
        %v549 = vld [vmem:[%s7 + $0xa4] sm:$0xf]
        %v550 = vld [vmem:[%s7 + $0xa8] sm:$0xf]
        %v551 = vld [vmem:[%s7 + $0xac] sm:$0xf]
        %v552 = vld [vmem:[%s7 + $0xb0] sm:$0xf]
        %v553 = vld [vmem:[%s7 + $0xb4] sm:$0xf]
        %v554 = vld [vmem:[%s7 + $0xb8] sm:$0xf]
        %v555 = vld [vmem:[%s7 + $0xbc] sm:$0xf]
        %v556 = vld [vmem:[%s7 + $0xc0] sm:$0xf]
        %v557 = vld [vmem:[%s7 + $0xc4] sm:$0xf]
        %v558 = vld [vmem:[%s7 + $0xc8] sm:$0xf]
        %v559 = vld [vmem:[%s7 + $0xcc] sm:$0xf]
        %v560 = vld [vmem:[%s7 + $0xd0] sm:$0xf]
        %v561 = vld [vmem:[%s7 + $0xd4] sm:$0xf]
        %v562 = vld [vmem:[%s7 + $0xd8] sm:$0xf]
        %v563 = vld [vmem:[%s7 + $0xdc] sm:$0xf]
        %v564 = vld [vmem:[%s7 + $0xe0] sm:$0xf]
        %v565 = vld [vmem:[%s7 + $0xe4] sm:$0xf]
        %v566 = vld [vmem:[%s7 + $0xe8] sm:$0xf]
        %v567 = vld [vmem:[%s7 + $0xec] sm:$0xf]
        %v568 = vld [vmem:[%s7 + $0xf0] sm:$0xf]
        %v569 = vld [vmem:[%s7 + $0xf4] sm:$0xf]
        %v570 = vld [vmem:[%s7 + $0xf8] sm:$0xf]
        %v571 = vld [vmem:[%s7 + $0xfc] sm:$0xf]
        %v572 = vld [vmem:[%s7 + $0x100] sm:$0xf]
        %v573 = vld [vmem:[%s7 + $0x104] sm:$0xf]
        %v574 = vld [vmem:[%s7 + $0x108] sm:$0xf]
        %v575 = vld [vmem:[%s7 + $0x10c] sm:$0xf]
        %v576 = vld [vmem:[%s7 + $0x110] sm:$0xf]
        %v577 = vld [vmem:[%s7 + $0x114] sm:$0xf]
        %v578 = vld [vmem:[%s7 + $0x118] sm:$0xf]
        %v579 = vld [vmem:[%s7 + $0x11c] sm:$0xf]
        %v580 = vld [vmem:[%s8] sm:$0x1]
        %v581 = vld [vmem:[%s9] sm:$0x1]
        %v582 = vld [vmem:[%s464] sm:$0xff]
        %v583 = vld [vmem:[%s464 + $0x8] sm:$0xff]
        %v584 = vld [vmem:[%s464 + $0x10] sm:$0xff]
        %v585 = vld [vmem:[%s464 + $0x18] sm:$0xff]
        %v586 = vld [vmem:[%s464 + $0x20] sm:$0xff]
        %v587 = vld [vmem:[%s464 + $0x28] sm:$0xff]
        %v588 = vld [vmem:[%s464 + $0x30] sm:$0xff]
        %v589 = vld [vmem:[%s464 + $0x38] sm:$0xff]
        %v590 = vld [vmem:[%s464 + $0x40] sm:$0xff]
        %v591 = vld [vmem:[%s464 + $0x48] sm:$0xff]
        %v592 = vld [vmem:[%s464 + $0x50] sm:$0xff]
        %v593 = vld [vmem:[%s464 + $0x58] sm:$0xff]
        %v594 = vld [vmem:[%s464 + $0x60] sm:$0xff]
        %v595 = vld [vmem:[%s464 + $0x68] sm:$0xff]
        %v596 = vld [vmem:[%s464 + $0x70] sm:$0xff]
        %v597 = vld [vmem:[%s464 + $0x78] sm:$0xff]
        %v598 = vld [vmem:[%s464 + $0x80] sm:$0xff]
        %v599 = vld [vmem:[%s464 + $0x88] sm:$0xff]
        %v600 = vld [vmem:[%s464 + $0x90] sm:$0xff]
        %v601 = vld [vmem:[%s464 + $0x98] sm:$0xff]
        %v602 = vld [vmem:[%s464 + $0xa0] sm:$0xff]
        %v603 = vld [vmem:[%s464 + $0xa8] sm:$0xff]
        %v604 = vld [vmem:[%s464 + $0xb0] sm:$0xff]
        %v605 = vld [vmem:[%s464 + $0xb8] sm:$0xff]
        %v606 = vld [vmem:[%s464 + $0xc0] sm:$0xff]
        %v607 = vld [vmem:[%s464 + $0xc8] sm:$0xff]
        %v608 = vld [vmem:[%s464 + $0xd0] sm:$0xff]
        %v609 = vld [vmem:[%s464 + $0xd8] sm:$0xff]
        %v610 = vld [vmem:[%s464 + $0xe0] sm:$0xff]
        %v611 = vld [vmem:[%s464 + $0xe8] sm:$0xff]
        %v612 = vld [vmem:[%s464 + $0xf0] sm:$0xff]
        %v613 = vld [vmem:[%s464 + $0xf8] sm:$0xff]
        %v614 = vld [vmem:[%s464 + $0x100] sm:$0xff]
        %v615 = vld [vmem:[%s464 + $0x108] sm:$0xff]
        %v616 = vld [vmem:[%s464 + $0x110] sm:$0xff]
        %v617 = vld [vmem:[%s464 + $0x118] sm:$0xff]
        %v618 = vld [vmem:[%s464 + $0x120] sm:$0xff]
        %v619 = vld [vmem:[%s464 + $0x128] sm:$0xff]
        %v620 = vld [vmem:[%s464 + $0x130] sm:$0xff]
        %v621 = vld [vmem:[%s464 + $0x138] sm:$0xff]
        %v622 = vld [vmem:[%s464 + $0x140] sm:$0xff]
        %v623 = vld [vmem:[%s464 + $0x148] sm:$0xff]
        %v624 = vld [vmem:[%s464 + $0x150] sm:$0xff]
        %v625 = vld [vmem:[%s464 + $0x158] sm:$0xff]
        %v626 = vld [vmem:[%s464 + $0x160] sm:$0xff]
        %v627 = vld [vmem:[%s464 + $0x168] sm:$0xff]
        %v628 = vld [vmem:[%s464 + $0x170] sm:$0xff]
        %v629 = vld [vmem:[%s464 + $0x178] sm:$0xff]
        %v630 = vld [vmem:[%s464 + $0x180] sm:$0xff]
        %v631 = vld [vmem:[%s464 + $0x188] sm:$0xff]
        %v632 = vld [vmem:[%s464 + $0x190] sm:$0xff]
        %v633 = vld [vmem:[%s464 + $0x198] sm:$0xff]
        %v634 = vld [vmem:[%s464 + $0x1a0] sm:$0xff]
        %v635 = vld [vmem:[%s464 + $0x1a8] sm:$0xff]
        %v636 = vld [vmem:[%s464 + $0x1b0] sm:$0xff]
        %v637 = vld [vmem:[%s464 + $0x1b8] sm:$0xff]
        %v638 = vld [vmem:[%s464 + $0x1c0] sm:$0xff]
        %v639 = vld [vmem:[%s464 + $0x1c8] sm:$0xff]
        %v640 = vld [vmem:[%s464 + $0x1d0] sm:$0xff]
        %v641 = vld [vmem:[%s464 + $0x1d8] sm:$0xff]
        %v642 = vld [vmem:[%s464 + $0x1e0] sm:$0xff]
        %v643 = vld [vmem:[%s464 + $0x1e8] sm:$0xff]
        %v644 = vld [vmem:[%s464 + $0x1f0] sm:$0xff]
        %v645 = vld [vmem:[%s464 + $0x1f8] sm:$0xff]
        %v646 = vld [vmem:[%s464 + $0x200] sm:$0xff]
        %v647 = vld [vmem:[%s464 + $0x208] sm:$0xff]
        %v648 = vld [vmem:[%s464 + $0x210] sm:$0xff]
        %v649 = vld [vmem:[%s464 + $0x218] sm:$0xff]
        %v650 = vld [vmem:[%s464 + $0x220] sm:$0xff]
        %v651 = vld [vmem:[%s464 + $0x228] sm:$0xff]
        %v652 = vld [vmem:[%s464 + $0x230] sm:$0xff]
        %v653 = vld [vmem:[%s464 + $0x238] sm:$0xff]
        %v654 = vld [vmem:[%s464 + $0x240] sm:$0xff]
        %v655 = vld [vmem:[%s464 + $0x248] sm:$0xff]
        %v656 = vld [vmem:[%s464 + $0x250] sm:$0xff]
        %v657 = vld [vmem:[%s464 + $0x258] sm:$0xff]
        %v658 = vld [vmem:[%s464 + $0x260] sm:$0xff]
        %v659 = vld [vmem:[%s464 + $0x268] sm:$0xff]
        %v660 = vld [vmem:[%s464 + $0x270] sm:$0xff]
        %v661 = vld [vmem:[%s464 + $0x278] sm:$0xff]
        %v662 = vld [vmem:[%s464 + $0x280] sm:$0xff]
        %v663 = vld [vmem:[%s464 + $0x288] sm:$0xff]
        %v664 = vld [vmem:[%s464 + $0x290] sm:$0xff]
        %v665 = vld [vmem:[%s464 + $0x298] sm:$0xff]
        %v666 = vld [vmem:[%s464 + $0x2a0] sm:$0xff]
        %v667 = vld [vmem:[%s464 + $0x2a8] sm:$0xff]
        %v668 = vld [vmem:[%s464 + $0x2b0] sm:$0xff]
        %v669 = vld [vmem:[%s464 + $0x2b8] sm:$0xff]
        %v670 = vld [vmem:[%s464 + $0x2c0] sm:$0xff]
        %v671 = vld [vmem:[%s464 + $0x2c8] sm:$0xff]
        %v672 = vld [vmem:[%s464 + $0x2d0] sm:$0xff]
        %v673 = vld [vmem:[%s464 + $0x2d8] sm:$0xff]
        %v674 = vld [vmem:[%s464 + $0x2e0] sm:$0xff]
        %v675 = vld [vmem:[%s464 + $0x2e8] sm:$0xff]
        %v676 = vld [vmem:[%s464 + $0x2f0] sm:$0xff]
        %v677 = vld [vmem:[%s464 + $0x2f8] sm:$0xff]
        %v678 = vld [vmem:[%s464 + $0x300] sm:$0xff]
        %v679 = vld [vmem:[%s464 + $0x308] sm:$0xff]
        %681 = vset.pattern.permute.xlu0 0
        %682 = vperm.xlu0 %681, %v582
        %v683 = vpop.permute.xlu0 %682
        %686 = vset.pattern.permute.xlu0 0
        %687 = vperm.xlu0 %686, %v583
        %v688 = vpop.permute.xlu0 %687
        %691 = vset.pattern.permute.xlu0 0
        %692 = vperm.xlu0 %691, %v584
        %v693 = vpop.permute.xlu0 %692
        %696 = vset.pattern.permute.xlu0 0
        %697 = vperm.xlu0 %696, %v585
        %v698 = vpop.permute.xlu0 %697
        %701 = vset.pattern.permute.xlu0 0
        %702 = vperm.xlu0 %701, %v586
        %v703 = vpop.permute.xlu0 %702
        %706 = vset.pattern.permute.xlu0 0
        %707 = vperm.xlu0 %706, %v587
        %v708 = vpop.permute.xlu0 %707
        %711 = vset.pattern.permute.xlu0 0
        %712 = vperm.xlu0 %711, %v588
        %v713 = vpop.permute.xlu0 %712
        %716 = vset.pattern.permute.xlu0 0
        %717 = vperm.xlu0 %716, %v589
        %v718 = vpop.permute.xlu0 %717
        %721 = vset.pattern.permute.xlu0 0
        %722 = vperm.xlu0 %721, %v590
        %v723 = vpop.permute.xlu0 %722
        %726 = vset.pattern.permute.xlu0 0
        %727 = vperm.xlu0 %726, %v591
        %v728 = vpop.permute.xlu0 %727
        %731 = vset.pattern.permute.xlu0 0
        %732 = vperm.xlu0 %731, %v592
        %v733 = vpop.permute.xlu0 %732
        %736 = vset.pattern.permute.xlu0 0
        %737 = vperm.xlu0 %736, %v593
        %v738 = vpop.permute.xlu0 %737
        %741 = vset.pattern.permute.xlu0 0
        %742 = vperm.xlu0 %741, %v594
        %v743 = vpop.permute.xlu0 %742
        %746 = vset.pattern.permute.xlu0 0
        %747 = vperm.xlu0 %746, %v595
        %v748 = vpop.permute.xlu0 %747
        %751 = vset.pattern.permute.xlu0 0
        %752 = vperm.xlu0 %751, %v596
        %v753 = vpop.permute.xlu0 %752
        %756 = vset.pattern.permute.xlu0 0
        %757 = vperm.xlu0 %756, %v597
        %v758 = vpop.permute.xlu0 %757
        %761 = vset.pattern.permute.xlu0 0
        %762 = vperm.xlu0 %761, %v598
        %v763 = vpop.permute.xlu0 %762
        %766 = vset.pattern.permute.xlu0 0
        %767 = vperm.xlu0 %766, %v599
        %v768 = vpop.permute.xlu0 %767
        %771 = vset.pattern.permute.xlu0 0
        %772 = vperm.xlu0 %771, %v600
        %v773 = vpop.permute.xlu0 %772
        %776 = vset.pattern.permute.xlu0 0
        %777 = vperm.xlu0 %776, %v601
        %v778 = vpop.permute.xlu0 %777
        %781 = vset.pattern.permute.xlu0 0
        %782 = vperm.xlu0 %781, %v602
        %v783 = vpop.permute.xlu0 %782
        %786 = vset.pattern.permute.xlu0 0
        %787 = vperm.xlu0 %786, %v603
        %v788 = vpop.permute.xlu0 %787
        %791 = vset.pattern.permute.xlu0 0
        %792 = vperm.xlu0 %791, %v604
        %v793 = vpop.permute.xlu0 %792
        %796 = vset.pattern.permute.xlu0 0
        %797 = vperm.xlu0 %796, %v605
        %v798 = vpop.permute.xlu0 %797
        %801 = vset.pattern.permute.xlu0 0
        %802 = vperm.xlu0 %801, %v606
        %v803 = vpop.permute.xlu0 %802
        %806 = vset.pattern.permute.xlu0 0
        %807 = vperm.xlu0 %806, %v607
        %v808 = vpop.permute.xlu0 %807
        %811 = vset.pattern.permute.xlu0 0
        %812 = vperm.xlu0 %811, %v608
        %v813 = vpop.permute.xlu0 %812
        %816 = vset.pattern.permute.xlu0 0
        %817 = vperm.xlu0 %816, %v609
        %v818 = vpop.permute.xlu0 %817
        %821 = vset.pattern.permute.xlu0 0
        %822 = vperm.xlu0 %821, %v610
        %v823 = vpop.permute.xlu0 %822
        %826 = vset.pattern.permute.xlu0 0
        %827 = vperm.xlu0 %826, %v611
        %v828 = vpop.permute.xlu0 %827
        %831 = vset.pattern.permute.xlu0 0
        %832 = vperm.xlu0 %831, %v612
        %v833 = vpop.permute.xlu0 %832
        %836 = vset.pattern.permute.xlu0 0
        %837 = vperm.xlu0 %836, %v613
        %v838 = vpop.permute.xlu0 %837
        %841 = vset.pattern.permute.xlu0 0
        %842 = vperm.xlu0 %841, %v614
        %v843 = vpop.permute.xlu0 %842
        %846 = vset.pattern.permute.xlu0 0
        %847 = vperm.xlu0 %846, %v615
        %v848 = vpop.permute.xlu0 %847
        %851 = vset.pattern.permute.xlu0 0
        %852 = vperm.xlu0 %851, %v616
        %v853 = vpop.permute.xlu0 %852
        %856 = vset.pattern.permute.xlu0 0
        %857 = vperm.xlu0 %856, %v617
        %v858 = vpop.permute.xlu0 %857
        %861 = vset.pattern.permute.xlu0 0
        %862 = vperm.xlu0 %861, %v618
        %v863 = vpop.permute.xlu0 %862
        %866 = vset.pattern.permute.xlu0 0
        %867 = vperm.xlu0 %866, %v619
        %v868 = vpop.permute.xlu0 %867
        %871 = vset.pattern.permute.xlu0 0
        %872 = vperm.xlu0 %871, %v620
        %v873 = vpop.permute.xlu0 %872
        %876 = vset.pattern.permute.xlu0 0
        %877 = vperm.xlu0 %876, %v621
        %v878 = vpop.permute.xlu0 %877
        %881 = vset.pattern.permute.xlu0 0
        %882 = vperm.xlu0 %881, %v622
        %v883 = vpop.permute.xlu0 %882
        %886 = vset.pattern.permute.xlu0 0
        %887 = vperm.xlu0 %886, %v623
        %v888 = vpop.permute.xlu0 %887
        %891 = vset.pattern.permute.xlu0 0
        %892 = vperm.xlu0 %891, %v624
        %v893 = vpop.permute.xlu0 %892
        %896 = vset.pattern.permute.xlu0 0
        %897 = vperm.xlu0 %896, %v625
        %v898 = vpop.permute.xlu0 %897
        %901 = vset.pattern.permute.xlu0 0
        %902 = vperm.xlu0 %901, %v626
        %v903 = vpop.permute.xlu0 %902
        %906 = vset.pattern.permute.xlu0 0
        %907 = vperm.xlu0 %906, %v627
        %v908 = vpop.permute.xlu0 %907
        %911 = vset.pattern.permute.xlu0 0
        %912 = vperm.xlu0 %911, %v628
        %v913 = vpop.permute.xlu0 %912
        %916 = vset.pattern.permute.xlu0 0
        %917 = vperm.xlu0 %916, %v629
        %v918 = vpop.permute.xlu0 %917
        %921 = vset.pattern.permute.xlu0 0
        %922 = vperm.xlu0 %921, %v630
        %v923 = vpop.permute.xlu0 %922
        %926 = vset.pattern.permute.xlu0 0
        %927 = vperm.xlu0 %926, %v631
        %v928 = vpop.permute.xlu0 %927
        %931 = vset.pattern.permute.xlu0 0
        %932 = vperm.xlu0 %931, %v632
        %v933 = vpop.permute.xlu0 %932
        %936 = vset.pattern.permute.xlu0 0
        %937 = vperm.xlu0 %936, %v633
        %v938 = vpop.permute.xlu0 %937
        %941 = vset.pattern.permute.xlu0 0
        %942 = vperm.xlu0 %941, %v634
        %v943 = vpop.permute.xlu0 %942
        %946 = vset.pattern.permute.xlu0 0
        %947 = vperm.xlu0 %946, %v635
        %v948 = vpop.permute.xlu0 %947
        %951 = vset.pattern.permute.xlu0 0
        %952 = vperm.xlu0 %951, %v636
        %v953 = vpop.permute.xlu0 %952
        %956 = vset.pattern.permute.xlu0 0
        %957 = vperm.xlu0 %956, %v637
        %v958 = vpop.permute.xlu0 %957
        %961 = vset.pattern.permute.xlu0 0
        %962 = vperm.xlu0 %961, %v638
        %v963 = vpop.permute.xlu0 %962
        %966 = vset.pattern.permute.xlu0 0
        %967 = vperm.xlu0 %966, %v639
        %v968 = vpop.permute.xlu0 %967
        %971 = vset.pattern.permute.xlu0 0
        %972 = vperm.xlu0 %971, %v640
        %v973 = vpop.permute.xlu0 %972
        %976 = vset.pattern.permute.xlu0 0
        %977 = vperm.xlu0 %976, %v641
        %v978 = vpop.permute.xlu0 %977
        %981 = vset.pattern.permute.xlu0 0
        %982 = vperm.xlu0 %981, %v642
        %v983 = vpop.permute.xlu0 %982
        %986 = vset.pattern.permute.xlu0 0
        %987 = vperm.xlu0 %986, %v643
        %v988 = vpop.permute.xlu0 %987
        %991 = vset.pattern.permute.xlu0 0
        %992 = vperm.xlu0 %991, %v644
        %v993 = vpop.permute.xlu0 %992
        %996 = vset.pattern.permute.xlu0 0
        %997 = vperm.xlu0 %996, %v645
        %v998 = vpop.permute.xlu0 %997
        %1001 = vset.pattern.permute.xlu0 0
        %1002 = vperm.xlu0 %1001, %v646
        %v1003 = vpop.permute.xlu0 %1002
        %1006 = vset.pattern.permute.xlu0 0
        %1007 = vperm.xlu0 %1006, %v647
        %v1008 = vpop.permute.xlu0 %1007
        %1011 = vset.pattern.permute.xlu0 0
        %1012 = vperm.xlu0 %1011, %v648
        %v1013 = vpop.permute.xlu0 %1012
        %1016 = vset.pattern.permute.xlu0 0
        %1017 = vperm.xlu0 %1016, %v649
        %v1018 = vpop.permute.xlu0 %1017
        %1021 = vset.pattern.permute.xlu0 0
        %1022 = vperm.xlu0 %1021, %v650
        %v1023 = vpop.permute.xlu0 %1022
        %1026 = vset.pattern.permute.xlu0 0
        %1027 = vperm.xlu0 %1026, %v651
        %v1028 = vpop.permute.xlu0 %1027
        %1031 = vset.pattern.permute.xlu0 0
        %1032 = vperm.xlu0 %1031, %v652
        %v1033 = vpop.permute.xlu0 %1032
        %1036 = vset.pattern.permute.xlu0 0
        %1037 = vperm.xlu0 %1036, %v653
        %v1038 = vpop.permute.xlu0 %1037
        %1041 = vset.pattern.permute.xlu0 0
        %1042 = vperm.xlu0 %1041, %v654
        %v1043 = vpop.permute.xlu0 %1042
        %1046 = vset.pattern.permute.xlu0 0
        %1047 = vperm.xlu0 %1046, %v655
        %v1048 = vpop.permute.xlu0 %1047
        %1051 = vset.pattern.permute.xlu0 0
        %1052 = vperm.xlu0 %1051, %v656
        %v1053 = vpop.permute.xlu0 %1052
        %1056 = vset.pattern.permute.xlu0 0
        %1057 = vperm.xlu0 %1056, %v657
        %v1058 = vpop.permute.xlu0 %1057
        %1061 = vset.pattern.permute.xlu0 0
        %1062 = vperm.xlu0 %1061, %v658
        %v1063 = vpop.permute.xlu0 %1062
        %1066 = vset.pattern.permute.xlu0 0
        %1067 = vperm.xlu0 %1066, %v659
        %v1068 = vpop.permute.xlu0 %1067
        %1071 = vset.pattern.permute.xlu0 0
        %1072 = vperm.xlu0 %1071, %v660
        %v1073 = vpop.permute.xlu0 %1072
        %1076 = vset.pattern.permute.xlu0 0
        %1077 = vperm.xlu0 %1076, %v661
        %v1078 = vpop.permute.xlu0 %1077
        %1081 = vset.pattern.permute.xlu0 0
        %1082 = vperm.xlu0 %1081, %v662
        %v1083 = vpop.permute.xlu0 %1082
        %1086 = vset.pattern.permute.xlu0 0
        %1087 = vperm.xlu0 %1086, %v663
        %v1088 = vpop.permute.xlu0 %1087
        %1091 = vset.pattern.permute.xlu0 0
        %1092 = vperm.xlu0 %1091, %v664
        %v1093 = vpop.permute.xlu0 %1092
        %1096 = vset.pattern.permute.xlu0 0
        %1097 = vperm.xlu0 %1096, %v665
        %v1098 = vpop.permute.xlu0 %1097
        %1101 = vset.pattern.permute.xlu0 0
        %1102 = vperm.xlu0 %1101, %v666
        %v1103 = vpop.permute.xlu0 %1102
        %1106 = vset.pattern.permute.xlu0 0
        %1107 = vperm.xlu0 %1106, %v667
        %v1108 = vpop.permute.xlu0 %1107
        %1111 = vset.pattern.permute.xlu0 0
        %1112 = vperm.xlu0 %1111, %v668
        %v1113 = vpop.permute.xlu0 %1112
        %1116 = vset.pattern.permute.xlu0 0
        %1117 = vperm.xlu0 %1116, %v669
        %v1118 = vpop.permute.xlu0 %1117
        %1121 = vset.pattern.permute.xlu0 0
        %1122 = vperm.xlu0 %1121, %v670
        %v1123 = vpop.permute.xlu0 %1122
        %1126 = vset.pattern.permute.xlu0 0
        %1127 = vperm.xlu0 %1126, %v671
        %v1128 = vpop.permute.xlu0 %1127
        %1131 = vset.pattern.permute.xlu0 0
        %1132 = vperm.xlu0 %1131, %v672
        %v1133 = vpop.permute.xlu0 %1132
        %v1135 = vlaneseq
        %v1136 = vshrl.u32 %v1135, 7
        %v1137 = vsub.s32 0, %v1136
        %v1138 = vrot.slane %v466, %v1137
        %v1139 = vmul.f32 %v683, %v1138
        %v1140 = vmul.f32 %v688, %v1138
        %v1141 = vmul.f32 %v693, %v1138
        %v1142 = vmul.f32 %v698, %v1138
        %v1143 = vmul.f32 %v703, %v1138
        %v1144 = vmul.f32 %v708, %v1138
        %v1145 = vmul.f32 %v713, %v1138
        %v1146 = vmul.f32 %v718, %v1138
        %v1147 = vmul.f32 %v723, %v1138
        %v1148 = vmul.f32 %v728, %v1138
        %v1149 = vmul.f32 %v733, %v1138
        %v1150 = vmul.f32 %v738, %v1138
        %v1151 = vmul.f32 %v743, %v1138
        %v1152 = vmul.f32 %v748, %v1138
        %v1153 = vmul.f32 %v753, %v1138
        %v1154 = vmul.f32 %v758, %v1138
        %v1155 = vmul.f32 %v763, %v1138
        %v1156 = vmul.f32 %v768, %v1138
        %v1157 = vmul.f32 %v773, %v1138
        %v1158 = vmul.f32 %v778, %v1138
        %v1159 = vmul.f32 %v783, %v1138
        %v1160 = vmul.f32 %v788, %v1138
        %v1161 = vmul.f32 %v793, %v1138
        %v1162 = vmul.f32 %v798, %v1138
        %v1163 = vmul.f32 %v803, %v1138
        %v1164 = vmul.f32 %v808, %v1138
        %v1165 = vmul.f32 %v813, %v1138
        %v1166 = vmul.f32 %v818, %v1138
        %v1167 = vmul.f32 %v823, %v1138
        %v1168 = vmul.f32 %v828, %v1138
        %v1169 = vmul.f32 %v833, %v1138
        %v1170 = vmul.f32 %v838, %v1138
        %v1171 = vmul.f32 %v843, %v1138
        %v1172 = vmul.f32 %v848, %v1138
        %v1173 = vmul.f32 %v853, %v1138
        %v1174 = vmul.f32 %v858, %v1138
        %v1175 = vmul.f32 %v863, %v1138
        %v1176 = vmul.f32 %v868, %v1138
        %v1177 = vmul.f32 %v873, %v1138
        %v1178 = vmul.f32 %v878, %v1138
        %v1179 = vmul.f32 %v883, %v1138
        %v1180 = vmul.f32 %v888, %v1138
        %v1181 = vmul.f32 %v893, %v1138
        %v1182 = vmul.f32 %v898, %v1138
        %v1183 = vmul.f32 %v903, %v1138
        %v1184 = vmul.f32 %v908, %v1138
        %v1185 = vmul.f32 %v913, %v1138
        %v1186 = vmul.f32 %v918, %v1138
        %v1187 = vmul.f32 %v923, %v1138
        %v1188 = vmul.f32 %v928, %v1138
        %v1189 = vmul.f32 %v933, %v1138
        %v1190 = vmul.f32 %v938, %v1138
        %v1191 = vmul.f32 %v943, %v1138
        %v1192 = vmul.f32 %v948, %v1138
        %v1193 = vmul.f32 %v953, %v1138
        %v1194 = vmul.f32 %v958, %v1138
        %v1195 = vmul.f32 %v963, %v1138
        %v1196 = vmul.f32 %v968, %v1138
        %v1197 = vmul.f32 %v973, %v1138
        %v1198 = vmul.f32 %v978, %v1138
        %v1199 = vmul.f32 %v983, %v1138
        %v1200 = vmul.f32 %v988, %v1138
        %v1201 = vmul.f32 %v993, %v1138
        %v1202 = vmul.f32 %v998, %v1138
        %v1203 = vmul.f32 %v1003, %v1138
        %v1204 = vmul.f32 %v1008, %v1138
        %v1205 = vmul.f32 %v1013, %v1138
        %v1206 = vmul.f32 %v1018, %v1138
        %v1207 = vmul.f32 %v1023, %v1138
        %v1208 = vmul.f32 %v1028, %v1138
        %v1209 = vmul.f32 %v1033, %v1138
        %v1210 = vmul.f32 %v1038, %v1138
        %v1211 = vmul.f32 %v1043, %v1138
        %v1212 = vmul.f32 %v1048, %v1138
        %v1213 = vmul.f32 %v1053, %v1138
        %v1214 = vmul.f32 %v1058, %v1138
        %v1215 = vmul.f32 %v1063, %v1138
        %v1216 = vmul.f32 %v1068, %v1138
        %v1217 = vmul.f32 %v1073, %v1138
        %v1218 = vmul.f32 %v1078, %v1138
        %v1219 = vmul.f32 %v1083, %v1138
        %v1220 = vmul.f32 %v1088, %v1138
        %v1221 = vmul.f32 %v1093, %v1138
        %v1222 = vmul.f32 %v1098, %v1138
        %v1223 = vmul.f32 %v1103, %v1138
        %v1224 = vmul.f32 %v1108, %v1138
        %v1225 = vmul.f32 %v1113, %v1138
        %v1226 = vmul.f32 %v1118, %v1138
        %v1227 = vmul.f32 %v1123, %v1138
        %v1228 = vmul.f32 %v1128, %v1138
        %v1229 = vmul.f32 %v1133, %v1138
        %v1230 = vadd.f32 %v1139, 0.0
        %v1231 = vadd.f32 %v1140, 0.0
        %v1232 = vadd.f32 %v1141, 0.0
        %v1233 = vadd.f32 %v1142, 0.0
        %v1234 = vadd.f32 %v1143, 0.0
        %v1235 = vadd.f32 %v1144, 0.0
        %v1236 = vadd.f32 %v1145, 0.0
        %v1237 = vadd.f32 %v1146, 0.0
        %v1238 = vadd.f32 %v1147, 0.0
        %v1239 = vadd.f32 %v1148, 0.0
        %v1240 = vadd.f32 %v1149, 0.0
        %v1241 = vadd.f32 %v1150, 0.0
        %v1242 = vadd.f32 %v1151, 0.0
        %v1243 = vadd.f32 %v1152, 0.0
        %v1244 = vadd.f32 %v1153, 0.0
        %v1245 = vadd.f32 %v1154, 0.0
        %v1246 = vadd.f32 %v1155, 0.0
        %v1247 = vadd.f32 %v1156, 0.0
        %v1248 = vadd.f32 %v1157, 0.0
        %v1249 = vadd.f32 %v1158, 0.0
        %v1250 = vadd.f32 %v1159, 0.0
        %v1251 = vadd.f32 %v1160, 0.0
        %v1252 = vadd.f32 %v1161, 0.0
        %v1253 = vadd.f32 %v1162, 0.0
        %v1254 = vadd.f32 %v1163, 0.0
        %v1255 = vadd.f32 %v1164, 0.0
        %v1256 = vadd.f32 %v1165, 0.0
        %v1257 = vadd.f32 %v1166, 0.0
        %v1258 = vadd.f32 %v1167, 0.0
        %v1259 = vadd.f32 %v1168, 0.0
        %v1260 = vadd.f32 %v1169, 0.0
        %v1261 = vadd.f32 %v1170, 0.0
        %v1262 = vadd.f32 %v1171, 0.0
        %v1263 = vadd.f32 %v1172, 0.0
        %v1264 = vadd.f32 %v1173, 0.0
        %v1265 = vadd.f32 %v1174, 0.0
        %v1266 = vadd.f32 %v1175, 0.0
        %v1267 = vadd.f32 %v1176, 0.0
        %v1268 = vadd.f32 %v1177, 0.0
        %v1269 = vadd.f32 %v1178, 0.0
        %v1270 = vadd.f32 %v1179, 0.0
        %v1271 = vadd.f32 %v1180, 0.0
        %v1272 = vadd.f32 %v1181, 0.0
        %v1273 = vadd.f32 %v1182, 0.0
        %v1274 = vadd.f32 %v1183, 0.0
        %v1275 = vadd.f32 %v1184, 0.0
        %v1276 = vadd.f32 %v1185, 0.0
        %v1277 = vadd.f32 %v1186, 0.0
        %v1278 = vadd.f32 %v1187, 0.0
        %v1279 = vadd.f32 %v1188, 0.0
        %v1280 = vadd.f32 %v1189, 0.0
        %v1281 = vadd.f32 %v1190, 0.0
        %v1282 = vadd.f32 %v1191, 0.0
        %v1283 = vadd.f32 %v1192, 0.0
        %v1284 = vadd.f32 %v1193, 0.0
        %v1285 = vadd.f32 %v1194, 0.0
        %v1286 = vadd.f32 %v1195, 0.0
        %v1287 = vadd.f32 %v1196, 0.0
        %v1288 = vadd.f32 %v1197, 0.0
        %v1289 = vadd.f32 %v1198, 0.0
        %v1290 = vadd.f32 %v1199, 0.0
        %v1291 = vadd.f32 %v1200, 0.0
        %v1292 = vadd.f32 %v1201, 0.0
        %v1293 = vadd.f32 %v1202, 0.0
        %v1294 = vadd.f32 %v1203, 0.0
        %v1295 = vadd.f32 %v1204, 0.0
        %v1296 = vadd.f32 %v1205, 0.0
        %v1297 = vadd.f32 %v1206, 0.0
        %v1298 = vadd.f32 %v1207, 0.0
        %v1299 = vadd.f32 %v1208, 0.0
        %v1300 = vadd.f32 %v1209, 0.0
        %v1301 = vadd.f32 %v1210, 0.0
        %v1302 = vadd.f32 %v1211, 0.0
        %v1303 = vadd.f32 %v1212, 0.0
        %v1304 = vadd.f32 %v1213, 0.0
        %v1305 = vadd.f32 %v1214, 0.0
        %v1306 = vadd.f32 %v1215, 0.0
        %v1307 = vadd.f32 %v1216, 0.0
        %v1308 = vadd.f32 %v1217, 0.0
        %v1309 = vadd.f32 %v1218, 0.0
        %v1310 = vadd.f32 %v1219, 0.0
        %v1311 = vadd.f32 %v1220, 0.0
        %v1312 = vadd.f32 %v1221, 0.0
        %v1313 = vadd.f32 %v1222, 0.0
        %v1314 = vadd.f32 %v1223, 0.0
        %v1315 = vadd.f32 %v1224, 0.0
        %v1316 = vadd.f32 %v1225, 0.0
        %v1317 = vadd.f32 %v1226, 0.0
        %v1318 = vadd.f32 %v1227, 0.0
        %v1319 = vadd.f32 %v1228, 0.0
        %v1320 = vadd.f32 %v1229, 0.0
        %1322 = vset.pattern.permute.xlu0 0
        %1323 = vperm.xlu0 %1322, %v673
        %v1324 = vpop.permute.xlu0 %1323
        %v1326 = vlaneseq
        %v1327 = vshrl.u32 %v1326, 7
        %v1328 = vsub.s32 1, %v1327
        %v1329 = vrot.slane %v466, %v1328
        %v1330 = vmul.f32 %v683, %v1329
        %v1331 = vmul.f32 %v688, %v1329
        %v1332 = vmul.f32 %v693, %v1329
        %v1333 = vmul.f32 %v698, %v1329
        %v1334 = vmul.f32 %v703, %v1329
        %v1335 = vmul.f32 %v708, %v1329
        %v1336 = vmul.f32 %v713, %v1329
        %v1337 = vmul.f32 %v718, %v1329
        %v1338 = vmul.f32 %v723, %v1329
        %v1339 = vmul.f32 %v728, %v1329
        %v1340 = vmul.f32 %v733, %v1329
        %v1341 = vmul.f32 %v738, %v1329
        %v1342 = vmul.f32 %v743, %v1329
        %v1343 = vmul.f32 %v748, %v1329
        %v1344 = vmul.f32 %v753, %v1329
        %v1345 = vmul.f32 %v758, %v1329
        %v1346 = vmul.f32 %v763, %v1329
        %v1347 = vmul.f32 %v768, %v1329
        %v1348 = vmul.f32 %v773, %v1329
        %v1349 = vmul.f32 %v778, %v1329
        %v1350 = vmul.f32 %v783, %v1329
        %v1351 = vmul.f32 %v788, %v1329
        %v1352 = vmul.f32 %v793, %v1329
        %v1353 = vmul.f32 %v798, %v1329
        %v1354 = vmul.f32 %v803, %v1329
        %v1355 = vmul.f32 %v808, %v1329
        %v1356 = vmul.f32 %v813, %v1329
        %v1357 = vmul.f32 %v818, %v1329
        %v1358 = vmul.f32 %v823, %v1329
        %v1359 = vmul.f32 %v828, %v1329
        %v1360 = vmul.f32 %v833, %v1329
        %v1361 = vmul.f32 %v838, %v1329
        %v1362 = vmul.f32 %v843, %v1329
        %v1363 = vmul.f32 %v848, %v1329
        %v1364 = vmul.f32 %v853, %v1329
        %v1365 = vmul.f32 %v858, %v1329
        %v1366 = vmul.f32 %v863, %v1329
        %v1367 = vmul.f32 %v868, %v1329
        %v1368 = vmul.f32 %v873, %v1329
        %v1369 = vmul.f32 %v878, %v1329
        %v1370 = vmul.f32 %v883, %v1329
        %v1371 = vmul.f32 %v888, %v1329
        %v1372 = vmul.f32 %v893, %v1329
        %v1373 = vmul.f32 %v898, %v1329
        %v1374 = vmul.f32 %v903, %v1329
        %v1375 = vmul.f32 %v908, %v1329
        %v1376 = vmul.f32 %v913, %v1329
        %v1377 = vmul.f32 %v918, %v1329
        %v1378 = vmul.f32 %v923, %v1329
        %v1379 = vmul.f32 %v928, %v1329
        %v1380 = vmul.f32 %v933, %v1329
        %v1381 = vmul.f32 %v938, %v1329
        %v1382 = vmul.f32 %v943, %v1329
        %v1383 = vmul.f32 %v948, %v1329
        %v1384 = vmul.f32 %v953, %v1329
        %v1385 = vmul.f32 %v958, %v1329
        %v1386 = vmul.f32 %v963, %v1329
        %v1387 = vmul.f32 %v968, %v1329
        %v1388 = vmul.f32 %v973, %v1329
        %v1389 = vmul.f32 %v978, %v1329
        %v1390 = vmul.f32 %v983, %v1329
        %v1391 = vmul.f32 %v988, %v1329
        %v1392 = vmul.f32 %v993, %v1329
        %v1393 = vmul.f32 %v998, %v1329
        %v1394 = vmul.f32 %v1003, %v1329
        %v1395 = vmul.f32 %v1008, %v1329
        %v1396 = vmul.f32 %v1013, %v1329
        %v1397 = vmul.f32 %v1018, %v1329
        %v1398 = vmul.f32 %v1023, %v1329
        %v1399 = vmul.f32 %v1028, %v1329
        %v1400 = vmul.f32 %v1033, %v1329
        %v1401 = vmul.f32 %v1038, %v1329
        %v1402 = vmul.f32 %v1043, %v1329
        %v1403 = vmul.f32 %v1048, %v1329
        %v1404 = vmul.f32 %v1053, %v1329
        %v1405 = vmul.f32 %v1058, %v1329
        %v1406 = vmul.f32 %v1063, %v1329
        %v1407 = vmul.f32 %v1068, %v1329
        %v1408 = vmul.f32 %v1073, %v1329
        %v1409 = vmul.f32 %v1078, %v1329
        %v1410 = vmul.f32 %v1083, %v1329
        %v1411 = vmul.f32 %v1088, %v1329
        %v1412 = vmul.f32 %v1093, %v1329
        %v1413 = vmul.f32 %v1098, %v1329
        %v1414 = vmul.f32 %v1103, %v1329
        %v1415 = vmul.f32 %v1108, %v1329
        %v1416 = vmul.f32 %v1113, %v1329
        %v1417 = vmul.f32 %v1118, %v1329
        %v1418 = vmul.f32 %v1123, %v1329
        %v1419 = vmul.f32 %v1128, %v1329
        %v1420 = vmul.f32 %v1133, %v1329
        %v1421 = vmul.f32 %v1324, %v1329
        %vm1514 = vcmask 1046528
        %v1515 = vrot.slane %v1330, 1
        %v1516 = vrot.slane %v1331, 1
        %v1517 = vsel %vm1514, %v1515, %v1516
        %v1518 = vrot.slane %v1332, 1
        %v1519 = vsel %vm1514, %v1516, %v1518
        %v1520 = vrot.slane %v1333, 1
        %v1521 = vsel %vm1514, %v1518, %v1520
        %v1522 = vrot.slane %v1334, 1
        %v1523 = vsel %vm1514, %v1520, %v1522
        %v1524 = vrot.slane %v1335, 1
        %v1525 = vsel %vm1514, %v1522, %v1524
        %v1526 = vrot.slane %v1336, 1
        %v1527 = vsel %vm1514, %v1524, %v1526
        %v1528 = vrot.slane %v1337, 1
        %v1529 = vsel %vm1514, %v1526, %v1528
        %v1530 = vrot.slane %v1338, 1
        %v1531 = vsel %vm1514, %v1528, %v1530
        %v1532 = vrot.slane %v1339, 1
        %v1533 = vsel %vm1514, %v1530, %v1532
        %v1534 = vrot.slane %v1340, 1
        %v1535 = vsel %vm1514, %v1532, %v1534
        %v1536 = vrot.slane %v1341, 1
        %v1537 = vsel %vm1514, %v1534, %v1536
        %v1538 = vrot.slane %v1342, 1
        %v1539 = vsel %vm1514, %v1536, %v1538
        %v1540 = vrot.slane %v1343, 1
        %v1541 = vsel %vm1514, %v1538, %v1540
        %v1542 = vrot.slane %v1344, 1
        %v1543 = vsel %vm1514, %v1540, %v1542
        %v1544 = vrot.slane %v1345, 1
        %v1545 = vsel %vm1514, %v1542, %v1544
        %v1546 = vrot.slane %v1346, 1
        %v1547 = vsel %vm1514, %v1544, %v1546
        %v1548 = vrot.slane %v1347, 1
        %v1549 = vsel %vm1514, %v1546, %v1548
        %v1550 = vrot.slane %v1348, 1
        %v1551 = vsel %vm1514, %v1548, %v1550
        %v1552 = vrot.slane %v1349, 1
        %v1553 = vsel %vm1514, %v1550, %v1552
        %v1554 = vrot.slane %v1350, 1
        %v1555 = vsel %vm1514, %v1552, %v1554
        %v1556 = vrot.slane %v1351, 1
        %v1557 = vsel %vm1514, %v1554, %v1556
        %v1558 = vrot.slane %v1352, 1
        %v1559 = vsel %vm1514, %v1556, %v1558
        %v1560 = vrot.slane %v1353, 1
        %v1561 = vsel %vm1514, %v1558, %v1560
        %v1562 = vrot.slane %v1354, 1
        %v1563 = vsel %vm1514, %v1560, %v1562
        %v1564 = vrot.slane %v1355, 1
        %v1565 = vsel %vm1514, %v1562, %v1564
        %v1566 = vrot.slane %v1356, 1
        %v1567 = vsel %vm1514, %v1564, %v1566
        %v1568 = vrot.slane %v1357, 1
        %v1569 = vsel %vm1514, %v1566, %v1568
        %v1570 = vrot.slane %v1358, 1
        %v1571 = vsel %vm1514, %v1568, %v1570
        %v1572 = vrot.slane %v1359, 1
        %v1573 = vsel %vm1514, %v1570, %v1572
        %v1574 = vrot.slane %v1360, 1
        %v1575 = vsel %vm1514, %v1572, %v1574
        %v1576 = vrot.slane %v1361, 1
        %v1577 = vsel %vm1514, %v1574, %v1576
        %v1578 = vrot.slane %v1362, 1
        %v1579 = vsel %vm1514, %v1576, %v1578
        %v1580 = vrot.slane %v1363, 1
        %v1581 = vsel %vm1514, %v1578, %v1580
        %v1582 = vrot.slane %v1364, 1
        %v1583 = vsel %vm1514, %v1580, %v1582
        %v1584 = vrot.slane %v1365, 1
        %v1585 = vsel %vm1514, %v1582, %v1584
        %v1586 = vrot.slane %v1366, 1
        %v1587 = vsel %vm1514, %v1584, %v1586
        %v1588 = vrot.slane %v1367, 1
        %v1589 = vsel %vm1514, %v1586, %v1588
        %v1590 = vrot.slane %v1368, 1
        %v1591 = vsel %vm1514, %v1588, %v1590
        %v1592 = vrot.slane %v1369, 1
        %v1593 = vsel %vm1514, %v1590, %v1592
        %v1594 = vrot.slane %v1370, 1
        %v1595 = vsel %vm1514, %v1592, %v1594
        %v1596 = vrot.slane %v1371, 1
        %v1597 = vsel %vm1514, %v1594, %v1596
        %v1598 = vrot.slane %v1372, 1
        %v1599 = vsel %vm1514, %v1596, %v1598
        %v1600 = vrot.slane %v1373, 1
        %v1601 = vsel %vm1514, %v1598, %v1600
        %v1602 = vrot.slane %v1374, 1
        %v1603 = vsel %vm1514, %v1600, %v1602
        %v1604 = vrot.slane %v1375, 1
        %v1605 = vsel %vm1514, %v1602, %v1604
        %v1606 = vrot.slane %v1376, 1
        %v1607 = vsel %vm1514, %v1604, %v1606
        %v1608 = vrot.slane %v1377, 1
        %v1609 = vsel %vm1514, %v1606, %v1608
        %v1610 = vrot.slane %v1378, 1
        %v1611 = vsel %vm1514, %v1608, %v1610
        %v1612 = vrot.slane %v1379, 1
        %v1613 = vsel %vm1514, %v1610, %v1612
        %v1614 = vrot.slane %v1380, 1
        %v1615 = vsel %vm1514, %v1612, %v1614
        %v1616 = vrot.slane %v1381, 1
        %v1617 = vsel %vm1514, %v1614, %v1616
        %v1618 = vrot.slane %v1382, 1
        %v1619 = vsel %vm1514, %v1616, %v1618
        %v1620 = vrot.slane %v1383, 1
        %v1621 = vsel %vm1514, %v1618, %v1620
        %v1622 = vrot.slane %v1384, 1
        %v1623 = vsel %vm1514, %v1620, %v1622
        %v1624 = vrot.slane %v1385, 1
        %v1625 = vsel %vm1514, %v1622, %v1624
        %v1626 = vrot.slane %v1386, 1
        %v1627 = vsel %vm1514, %v1624, %v1626
        %v1628 = vrot.slane %v1387, 1
        %v1629 = vsel %vm1514, %v1626, %v1628
        %v1630 = vrot.slane %v1388, 1
        %v1631 = vsel %vm1514, %v1628, %v1630
        %v1632 = vrot.slane %v1389, 1
        %v1633 = vsel %vm1514, %v1630, %v1632
        %v1634 = vrot.slane %v1390, 1
        %v1635 = vsel %vm1514, %v1632, %v1634
        %v1636 = vrot.slane %v1391, 1
        %v1637 = vsel %vm1514, %v1634, %v1636
        %v1638 = vrot.slane %v1392, 1
        %v1639 = vsel %vm1514, %v1636, %v1638
        %v1640 = vrot.slane %v1393, 1
        %v1641 = vsel %vm1514, %v1638, %v1640
        %v1642 = vrot.slane %v1394, 1
        %v1643 = vsel %vm1514, %v1640, %v1642
        %v1644 = vrot.slane %v1395, 1
        %v1645 = vsel %vm1514, %v1642, %v1644
        %v1646 = vrot.slane %v1396, 1
        %v1647 = vsel %vm1514, %v1644, %v1646
        %v1648 = vrot.slane %v1397, 1
        %v1649 = vsel %vm1514, %v1646, %v1648
        %v1650 = vrot.slane %v1398, 1
        %v1651 = vsel %vm1514, %v1648, %v1650
        %v1652 = vrot.slane %v1399, 1
        %v1653 = vsel %vm1514, %v1650, %v1652
        %v1654 = vrot.slane %v1400, 1
        %v1655 = vsel %vm1514, %v1652, %v1654
        %v1656 = vrot.slane %v1401, 1
        %v1657 = vsel %vm1514, %v1654, %v1656
        %v1658 = vrot.slane %v1402, 1
        %v1659 = vsel %vm1514, %v1656, %v1658
        %v1660 = vrot.slane %v1403, 1
        %v1661 = vsel %vm1514, %v1658, %v1660
        %v1662 = vrot.slane %v1404, 1
        %v1663 = vsel %vm1514, %v1660, %v1662
        %v1664 = vrot.slane %v1405, 1
        %v1665 = vsel %vm1514, %v1662, %v1664
        %v1666 = vrot.slane %v1406, 1
        %v1667 = vsel %vm1514, %v1664, %v1666
        %v1668 = vrot.slane %v1407, 1
        %v1669 = vsel %vm1514, %v1666, %v1668
        %v1670 = vrot.slane %v1408, 1
        %v1671 = vsel %vm1514, %v1668, %v1670
        %v1672 = vrot.slane %v1409, 1
        %v1673 = vsel %vm1514, %v1670, %v1672
        %v1674 = vrot.slane %v1410, 1
        %v1675 = vsel %vm1514, %v1672, %v1674
        %v1676 = vrot.slane %v1411, 1
        %v1677 = vsel %vm1514, %v1674, %v1676
        %v1678 = vrot.slane %v1412, 1
        %v1679 = vsel %vm1514, %v1676, %v1678
        %v1680 = vrot.slane %v1413, 1
        %v1681 = vsel %vm1514, %v1678, %v1680
        %v1682 = vrot.slane %v1414, 1
        %v1683 = vsel %vm1514, %v1680, %v1682
        %v1684 = vrot.slane %v1415, 1
        %v1685 = vsel %vm1514, %v1682, %v1684
        %v1686 = vrot.slane %v1416, 1
        %v1687 = vsel %vm1514, %v1684, %v1686
        %v1688 = vrot.slane %v1417, 1
        %v1689 = vsel %vm1514, %v1686, %v1688
        %v1690 = vrot.slane %v1418, 1
        %v1691 = vsel %vm1514, %v1688, %v1690
        %v1692 = vrot.slane %v1419, 1
        %v1693 = vsel %vm1514, %v1690, %v1692
        %v1694 = vrot.slane %v1420, 1
        %v1695 = vsel %vm1514, %v1692, %v1694
        %v1696 = vrot.slane %v1421, 1
        %v1697 = vsel %vm1514, %v1694, %v1696
        %v1789 = vadd.f32 %v1230, %v1517
        %v1790 = vadd.f32 %v1231, %v1519
        %v1791 = vadd.f32 %v1232, %v1521
        %v1792 = vadd.f32 %v1233, %v1523
        %v1793 = vadd.f32 %v1234, %v1525
        %v1794 = vadd.f32 %v1235, %v1527
        %v1795 = vadd.f32 %v1236, %v1529
        %v1796 = vadd.f32 %v1237, %v1531
        %v1797 = vadd.f32 %v1238, %v1533
        %v1798 = vadd.f32 %v1239, %v1535
        %v1799 = vadd.f32 %v1240, %v1537
        %v1800 = vadd.f32 %v1241, %v1539
        %v1801 = vadd.f32 %v1242, %v1541
        %v1802 = vadd.f32 %v1243, %v1543
        %v1803 = vadd.f32 %v1244, %v1545
        %v1804 = vadd.f32 %v1245, %v1547
        %v1805 = vadd.f32 %v1246, %v1549
        %v1806 = vadd.f32 %v1247, %v1551
        %v1807 = vadd.f32 %v1248, %v1553
        %v1808 = vadd.f32 %v1249, %v1555
        %v1809 = vadd.f32 %v1250, %v1557
        %v1810 = vadd.f32 %v1251, %v1559
        %v1811 = vadd.f32 %v1252, %v1561
        %v1812 = vadd.f32 %v1253, %v1563
        %v1813 = vadd.f32 %v1254, %v1565
        %v1814 = vadd.f32 %v1255, %v1567
        %v1815 = vadd.f32 %v1256, %v1569
        %v1816 = vadd.f32 %v1257, %v1571
        %v1817 = vadd.f32 %v1258, %v1573
        %v1818 = vadd.f32 %v1259, %v1575
        %v1819 = vadd.f32 %v1260, %v1577
        %v1820 = vadd.f32 %v1261, %v1579
        %v1821 = vadd.f32 %v1262, %v1581
        %v1822 = vadd.f32 %v1263, %v1583
        %v1823 = vadd.f32 %v1264, %v1585
        %v1824 = vadd.f32 %v1265, %v1587
        %v1825 = vadd.f32 %v1266, %v1589
        %v1826 = vadd.f32 %v1267, %v1591
        %v1827 = vadd.f32 %v1268, %v1593
        %v1828 = vadd.f32 %v1269, %v1595
        %v1829 = vadd.f32 %v1270, %v1597
        %v1830 = vadd.f32 %v1271, %v1599
        %v1831 = vadd.f32 %v1272, %v1601
        %v1832 = vadd.f32 %v1273, %v1603
        %v1833 = vadd.f32 %v1274, %v1605
        %v1834 = vadd.f32 %v1275, %v1607
        %v1835 = vadd.f32 %v1276, %v1609
        %v1836 = vadd.f32 %v1277, %v1611
        %v1837 = vadd.f32 %v1278, %v1613
        %v1838 = vadd.f32 %v1279, %v1615
        %v1839 = vadd.f32 %v1280, %v1617
        %v1840 = vadd.f32 %v1281, %v1619
        %v1841 = vadd.f32 %v1282, %v1621
        %v1842 = vadd.f32 %v1283, %v1623
        %v1843 = vadd.f32 %v1284, %v1625
        %v1844 = vadd.f32 %v1285, %v1627
        %v1845 = vadd.f32 %v1286, %v1629
        %v1846 = vadd.f32 %v1287, %v1631
        %v1847 = vadd.f32 %v1288, %v1633
        %v1848 = vadd.f32 %v1289, %v1635
        %v1849 = vadd.f32 %v1290, %v1637
        %v1850 = vadd.f32 %v1291, %v1639
        %v1851 = vadd.f32 %v1292, %v1641
        %v1852 = vadd.f32 %v1293, %v1643
        %v1853 = vadd.f32 %v1294, %v1645
        %v1854 = vadd.f32 %v1295, %v1647
        %v1855 = vadd.f32 %v1296, %v1649
        %v1856 = vadd.f32 %v1297, %v1651
        %v1857 = vadd.f32 %v1298, %v1653
        %v1858 = vadd.f32 %v1299, %v1655
        %v1859 = vadd.f32 %v1300, %v1657
        %v1860 = vadd.f32 %v1301, %v1659
        %v1861 = vadd.f32 %v1302, %v1661
        %v1862 = vadd.f32 %v1303, %v1663
        %v1863 = vadd.f32 %v1304, %v1665
        %v1864 = vadd.f32 %v1305, %v1667
        %v1865 = vadd.f32 %v1306, %v1669
        %v1866 = vadd.f32 %v1307, %v1671
        %v1867 = vadd.f32 %v1308, %v1673
        %v1868 = vadd.f32 %v1309, %v1675
        %v1869 = vadd.f32 %v1310, %v1677
        %v1870 = vadd.f32 %v1311, %v1679
        %v1871 = vadd.f32 %v1312, %v1681
        %v1872 = vadd.f32 %v1313, %v1683
        %v1873 = vadd.f32 %v1314, %v1685
        %v1874 = vadd.f32 %v1315, %v1687
        %v1875 = vadd.f32 %v1316, %v1689
        %v1876 = vadd.f32 %v1317, %v1691
        %v1877 = vadd.f32 %v1318, %v1693
        %v1878 = vadd.f32 %v1319, %v1695
        %v1879 = vadd.f32 %v1320, %v1697
        %v1880 = vlaneseq
        %v1881 = vshrl.u32 %v1880, 7
        %v1882 = vsub.s32 2, %v1881
        %v1883 = vrot.slane %v466, %v1882
        %v1884 = vmul.f32 %v683, %v1883
        %v1885 = vmul.f32 %v688, %v1883
        %v1886 = vmul.f32 %v693, %v1883
        %v1887 = vmul.f32 %v698, %v1883
        %v1888 = vmul.f32 %v703, %v1883
        %v1889 = vmul.f32 %v708, %v1883
        %v1890 = vmul.f32 %v713, %v1883
        %v1891 = vmul.f32 %v718, %v1883
        %v1892 = vmul.f32 %v723, %v1883
        %v1893 = vmul.f32 %v728, %v1883
        %v1894 = vmul.f32 %v733, %v1883
        %v1895 = vmul.f32 %v738, %v1883
        %v1896 = vmul.f32 %v743, %v1883
        %v1897 = vmul.f32 %v748, %v1883
        %v1898 = vmul.f32 %v753, %v1883
        %v1899 = vmul.f32 %v758, %v1883
        %v1900 = vmul.f32 %v763, %v1883
        %v1901 = vmul.f32 %v768, %v1883
        %v1902 = vmul.f32 %v773, %v1883
        %v1903 = vmul.f32 %v778, %v1883
        %v1904 = vmul.f32 %v783, %v1883
        %v1905 = vmul.f32 %v788, %v1883
        %v1906 = vmul.f32 %v793, %v1883
        %v1907 = vmul.f32 %v798, %v1883
        %v1908 = vmul.f32 %v803, %v1883
        %v1909 = vmul.f32 %v808, %v1883
        %v1910 = vmul.f32 %v813, %v1883
        %v1911 = vmul.f32 %v818, %v1883
        %v1912 = vmul.f32 %v823, %v1883
        %v1913 = vmul.f32 %v828, %v1883
        %v1914 = vmul.f32 %v833, %v1883
        %v1915 = vmul.f32 %v838, %v1883
        %v1916 = vmul.f32 %v843, %v1883
        %v1917 = vmul.f32 %v848, %v1883
        %v1918 = vmul.f32 %v853, %v1883
        %v1919 = vmul.f32 %v858, %v1883
        %v1920 = vmul.f32 %v863, %v1883
        %v1921 = vmul.f32 %v868, %v1883
        %v1922 = vmul.f32 %v873, %v1883
        %v1923 = vmul.f32 %v878, %v1883
        %v1924 = vmul.f32 %v883, %v1883
        %v1925 = vmul.f32 %v888, %v1883
        %v1926 = vmul.f32 %v893, %v1883
        %v1927 = vmul.f32 %v898, %v1883
        %v1928 = vmul.f32 %v903, %v1883
        %v1929 = vmul.f32 %v908, %v1883
        %v1930 = vmul.f32 %v913, %v1883
        %v1931 = vmul.f32 %v918, %v1883
        %v1932 = vmul.f32 %v923, %v1883
        %v1933 = vmul.f32 %v928, %v1883
        %v1934 = vmul.f32 %v933, %v1883
        %v1935 = vmul.f32 %v938, %v1883
        %v1936 = vmul.f32 %v943, %v1883
        %v1937 = vmul.f32 %v948, %v1883
        %v1938 = vmul.f32 %v953, %v1883
        %v1939 = vmul.f32 %v958, %v1883
        %v1940 = vmul.f32 %v963, %v1883
        %v1941 = vmul.f32 %v968, %v1883
        %v1942 = vmul.f32 %v973, %v1883
        %v1943 = vmul.f32 %v978, %v1883
        %v1944 = vmul.f32 %v983, %v1883
        %v1945 = vmul.f32 %v988, %v1883
        %v1946 = vmul.f32 %v993, %v1883
        %v1947 = vmul.f32 %v998, %v1883
        %v1948 = vmul.f32 %v1003, %v1883
        %v1949 = vmul.f32 %v1008, %v1883
        %v1950 = vmul.f32 %v1013, %v1883
        %v1951 = vmul.f32 %v1018, %v1883
        %v1952 = vmul.f32 %v1023, %v1883
        %v1953 = vmul.f32 %v1028, %v1883
        %v1954 = vmul.f32 %v1033, %v1883
        %v1955 = vmul.f32 %v1038, %v1883
        %v1956 = vmul.f32 %v1043, %v1883
        %v1957 = vmul.f32 %v1048, %v1883
        %v1958 = vmul.f32 %v1053, %v1883
        %v1959 = vmul.f32 %v1058, %v1883
        %v1960 = vmul.f32 %v1063, %v1883
        %v1961 = vmul.f32 %v1068, %v1883
        %v1962 = vmul.f32 %v1073, %v1883
        %v1963 = vmul.f32 %v1078, %v1883
        %v1964 = vmul.f32 %v1083, %v1883
        %v1965 = vmul.f32 %v1088, %v1883
        %v1966 = vmul.f32 %v1093, %v1883
        %v1967 = vmul.f32 %v1098, %v1883
        %v1968 = vmul.f32 %v1103, %v1883
        %v1969 = vmul.f32 %v1108, %v1883
        %v1970 = vmul.f32 %v1113, %v1883
        %v1971 = vmul.f32 %v1118, %v1883
        %v1972 = vmul.f32 %v1123, %v1883
        %v1973 = vmul.f32 %v1128, %v1883
        %v1974 = vmul.f32 %v1133, %v1883
        %v1975 = vmul.f32 %v1324, %v1883
        %vm2068 = vcmask 1045504
        %v2069 = vrot.slane %v1884, 2
        %v2070 = vrot.slane %v1885, 2
        %v2071 = vsel %vm2068, %v2069, %v2070
        %v2072 = vrot.slane %v1886, 2
        %v2073 = vsel %vm2068, %v2070, %v2072
        %v2074 = vrot.slane %v1887, 2
        %v2075 = vsel %vm2068, %v2072, %v2074
        %v2076 = vrot.slane %v1888, 2
        %v2077 = vsel %vm2068, %v2074, %v2076
        %v2078 = vrot.slane %v1889, 2
        %v2079 = vsel %vm2068, %v2076, %v2078
        %v2080 = vrot.slane %v1890, 2
        %v2081 = vsel %vm2068, %v2078, %v2080
        %v2082 = vrot.slane %v1891, 2
        %v2083 = vsel %vm2068, %v2080, %v2082
        %v2084 = vrot.slane %v1892, 2
        %v2085 = vsel %vm2068, %v2082, %v2084
        %v2086 = vrot.slane %v1893, 2
        %v2087 = vsel %vm2068, %v2084, %v2086
        %v2088 = vrot.slane %v1894, 2
        %v2089 = vsel %vm2068, %v2086, %v2088
        %v2090 = vrot.slane %v1895, 2
        %v2091 = vsel %vm2068, %v2088, %v2090
        %v2092 = vrot.slane %v1896, 2
        %v2093 = vsel %vm2068, %v2090, %v2092
        %v2094 = vrot.slane %v1897, 2
        %v2095 = vsel %vm2068, %v2092, %v2094
        %v2096 = vrot.slane %v1898, 2
        %v2097 = vsel %vm2068, %v2094, %v2096
        %v2098 = vrot.slane %v1899, 2
        %v2099 = vsel %vm2068, %v2096, %v2098
        %v2100 = vrot.slane %v1900, 2
        %v2101 = vsel %vm2068, %v2098, %v2100
        %v2102 = vrot.slane %v1901, 2
        %v2103 = vsel %vm2068, %v2100, %v2102
        %v2104 = vrot.slane %v1902, 2
        %v2105 = vsel %vm2068, %v2102, %v2104
        %v2106 = vrot.slane %v1903, 2
        %v2107 = vsel %vm2068, %v2104, %v2106
        %v2108 = vrot.slane %v1904, 2
        %v2109 = vsel %vm2068, %v2106, %v2108
        %v2110 = vrot.slane %v1905, 2
        %v2111 = vsel %vm2068, %v2108, %v2110
        %v2112 = vrot.slane %v1906, 2
        %v2113 = vsel %vm2068, %v2110, %v2112
        %v2114 = vrot.slane %v1907, 2
        %v2115 = vsel %vm2068, %v2112, %v2114
        %v2116 = vrot.slane %v1908, 2
        %v2117 = vsel %vm2068, %v2114, %v2116
        %v2118 = vrot.slane %v1909, 2
        %v2119 = vsel %vm2068, %v2116, %v2118
        %v2120 = vrot.slane %v1910, 2
        %v2121 = vsel %vm2068, %v2118, %v2120
        %v2122 = vrot.slane %v1911, 2
        %v2123 = vsel %vm2068, %v2120, %v2122
        %v2124 = vrot.slane %v1912, 2
        %v2125 = vsel %vm2068, %v2122, %v2124
        %v2126 = vrot.slane %v1913, 2
        %v2127 = vsel %vm2068, %v2124, %v2126
        %v2128 = vrot.slane %v1914, 2
        %v2129 = vsel %vm2068, %v2126, %v2128
        %v2130 = vrot.slane %v1915, 2
        %v2131 = vsel %vm2068, %v2128, %v2130
        %v2132 = vrot.slane %v1916, 2
        %v2133 = vsel %vm2068, %v2130, %v2132
        %v2134 = vrot.slane %v1917, 2
        %v2135 = vsel %vm2068, %v2132, %v2134
        %v2136 = vrot.slane %v1918, 2
        %v2137 = vsel %vm2068, %v2134, %v2136
        %v2138 = vrot.slane %v1919, 2
        %v2139 = vsel %vm2068, %v2136, %v2138
        %v2140 = vrot.slane %v1920, 2
        %v2141 = vsel %vm2068, %v2138, %v2140
        %v2142 = vrot.slane %v1921, 2
        %v2143 = vsel %vm2068, %v2140, %v2142
        %v2144 = vrot.slane %v1922, 2
        %v2145 = vsel %vm2068, %v2142, %v2144
        %v2146 = vrot.slane %v1923, 2
        %v2147 = vsel %vm2068, %v2144, %v2146
        %v2148 = vrot.slane %v1924, 2
        %v2149 = vsel %vm2068, %v2146, %v2148
        %v2150 = vrot.slane %v1925, 2
        %v2151 = vsel %vm2068, %v2148, %v2150
        %v2152 = vrot.slane %v1926, 2
        %v2153 = vsel %vm2068, %v2150, %v2152
        %v2154 = vrot.slane %v1927, 2
        %v2155 = vsel %vm2068, %v2152, %v2154
        %v2156 = vrot.slane %v1928, 2
        %v2157 = vsel %vm2068, %v2154, %v2156
        %v2158 = vrot.slane %v1929, 2
        %v2159 = vsel %vm2068, %v2156, %v2158
        %v2160 = vrot.slane %v1930, 2
        %v2161 = vsel %vm2068, %v2158, %v2160
        %v2162 = vrot.slane %v1931, 2
        %v2163 = vsel %vm2068, %v2160, %v2162
        %v2164 = vrot.slane %v1932, 2
        %v2165 = vsel %vm2068, %v2162, %v2164
        %v2166 = vrot.slane %v1933, 2
        %v2167 = vsel %vm2068, %v2164, %v2166
        %v2168 = vrot.slane %v1934, 2
        %v2169 = vsel %vm2068, %v2166, %v2168
        %v2170 = vrot.slane %v1935, 2
        %v2171 = vsel %vm2068, %v2168, %v2170
        %v2172 = vrot.slane %v1936, 2
        %v2173 = vsel %vm2068, %v2170, %v2172
        %v2174 = vrot.slane %v1937, 2
        %v2175 = vsel %vm2068, %v2172, %v2174
        %v2176 = vrot.slane %v1938, 2
        %v2177 = vsel %vm2068, %v2174, %v2176
        %v2178 = vrot.slane %v1939, 2
        %v2179 = vsel %vm2068, %v2176, %v2178
        %v2180 = vrot.slane %v1940, 2
        %v2181 = vsel %vm2068, %v2178, %v2180
        %v2182 = vrot.slane %v1941, 2
        %v2183 = vsel %vm2068, %v2180, %v2182
        %v2184 = vrot.slane %v1942, 2
        %v2185 = vsel %vm2068, %v2182, %v2184
        %v2186 = vrot.slane %v1943, 2
        %v2187 = vsel %vm2068, %v2184, %v2186
        %v2188 = vrot.slane %v1944, 2
        %v2189 = vsel %vm2068, %v2186, %v2188
        %v2190 = vrot.slane %v1945, 2
        %v2191 = vsel %vm2068, %v2188, %v2190
        %v2192 = vrot.slane %v1946, 2
        %v2193 = vsel %vm2068, %v2190, %v2192
        %v2194 = vrot.slane %v1947, 2
        %v2195 = vsel %vm2068, %v2192, %v2194
        %v2196 = vrot.slane %v1948, 2
        %v2197 = vsel %vm2068, %v2194, %v2196
        %v2198 = vrot.slane %v1949, 2
        %v2199 = vsel %vm2068, %v2196, %v2198
        %v2200 = vrot.slane %v1950, 2
        %v2201 = vsel %vm2068, %v2198, %v2200
        %v2202 = vrot.slane %v1951, 2
        %v2203 = vsel %vm2068, %v2200, %v2202
        %v2204 = vrot.slane %v1952, 2
        %v2205 = vsel %vm2068, %v2202, %v2204
        %v2206 = vrot.slane %v1953, 2
        %v2207 = vsel %vm2068, %v2204, %v2206
        %v2208 = vrot.slane %v1954, 2
        %v2209 = vsel %vm2068, %v2206, %v2208
        %v2210 = vrot.slane %v1955, 2
        %v2211 = vsel %vm2068, %v2208, %v2210
        %v2212 = vrot.slane %v1956, 2
        %v2213 = vsel %vm2068, %v2210, %v2212
        %v2214 = vrot.slane %v1957, 2
        %v2215 = vsel %vm2068, %v2212, %v2214
        %v2216 = vrot.slane %v1958, 2
        %v2217 = vsel %vm2068, %v2214, %v2216
        %v2218 = vrot.slane %v1959, 2
        %v2219 = vsel %vm2068, %v2216, %v2218
        %v2220 = vrot.slane %v1960, 2
        %v2221 = vsel %vm2068, %v2218, %v2220
        %v2222 = vrot.slane %v1961, 2
        %v2223 = vsel %vm2068, %v2220, %v2222
        %v2224 = vrot.slane %v1962, 2
        %v2225 = vsel %vm2068, %v2222, %v2224
        %v2226 = vrot.slane %v1963, 2
        %v2227 = vsel %vm2068, %v2224, %v2226
        %v2228 = vrot.slane %v1964, 2
        %v2229 = vsel %vm2068, %v2226, %v2228
        %v2230 = vrot.slane %v1965, 2
        %v2231 = vsel %vm2068, %v2228, %v2230
        %v2232 = vrot.slane %v1966, 2
        %v2233 = vsel %vm2068, %v2230, %v2232
        %v2234 = vrot.slane %v1967, 2
        %v2235 = vsel %vm2068, %v2232, %v2234
        %v2236 = vrot.slane %v1968, 2
        %v2237 = vsel %vm2068, %v2234, %v2236
        %v2238 = vrot.slane %v1969, 2
        %v2239 = vsel %vm2068, %v2236, %v2238
        %v2240 = vrot.slane %v1970, 2
        %v2241 = vsel %vm2068, %v2238, %v2240
        %v2242 = vrot.slane %v1971, 2
        %v2243 = vsel %vm2068, %v2240, %v2242
        %v2244 = vrot.slane %v1972, 2
        %v2245 = vsel %vm2068, %v2242, %v2244
        %v2246 = vrot.slane %v1973, 2
        %v2247 = vsel %vm2068, %v2244, %v2246
        %v2248 = vrot.slane %v1974, 2
        %v2249 = vsel %vm2068, %v2246, %v2248
        %v2250 = vrot.slane %v1975, 2
        %v2251 = vsel %vm2068, %v2248, %v2250
        %v2343 = vadd.f32 %v1789, %v2071
        %v2344 = vadd.f32 %v1790, %v2073
        %v2345 = vadd.f32 %v1791, %v2075
        %v2346 = vadd.f32 %v1792, %v2077
        %v2347 = vadd.f32 %v1793, %v2079
        %v2348 = vadd.f32 %v1794, %v2081
        %v2349 = vadd.f32 %v1795, %v2083
        %v2350 = vadd.f32 %v1796, %v2085
        %v2351 = vadd.f32 %v1797, %v2087
        %v2352 = vadd.f32 %v1798, %v2089
        %v2353 = vadd.f32 %v1799, %v2091
        %v2354 = vadd.f32 %v1800, %v2093
        %v2355 = vadd.f32 %v1801, %v2095
        %v2356 = vadd.f32 %v1802, %v2097
        %v2357 = vadd.f32 %v1803, %v2099
        %v2358 = vadd.f32 %v1804, %v2101
        %v2359 = vadd.f32 %v1805, %v2103
        %v2360 = vadd.f32 %v1806, %v2105
        %v2361 = vadd.f32 %v1807, %v2107
        %v2362 = vadd.f32 %v1808, %v2109
        %v2363 = vadd.f32 %v1809, %v2111
        %v2364 = vadd.f32 %v1810, %v2113
        %v2365 = vadd.f32 %v1811, %v2115
        %v2366 = vadd.f32 %v1812, %v2117
        %v2367 = vadd.f32 %v1813, %v2119
        %v2368 = vadd.f32 %v1814, %v2121
        %v2369 = vadd.f32 %v1815, %v2123
        %v2370 = vadd.f32 %v1816, %v2125
        %v2371 = vadd.f32 %v1817, %v2127
        %v2372 = vadd.f32 %v1818, %v2129
        %v2373 = vadd.f32 %v1819, %v2131
        %v2374 = vadd.f32 %v1820, %v2133
        %v2375 = vadd.f32 %v1821, %v2135
        %v2376 = vadd.f32 %v1822, %v2137
        %v2377 = vadd.f32 %v1823, %v2139
        %v2378 = vadd.f32 %v1824, %v2141
        %v2379 = vadd.f32 %v1825, %v2143
        %v2380 = vadd.f32 %v1826, %v2145
        %v2381 = vadd.f32 %v1827, %v2147
        %v2382 = vadd.f32 %v1828, %v2149
        %v2383 = vadd.f32 %v1829, %v2151
        %v2384 = vadd.f32 %v1830, %v2153
        %v2385 = vadd.f32 %v1831, %v2155
        %v2386 = vadd.f32 %v1832, %v2157
        %v2387 = vadd.f32 %v1833, %v2159
        %v2388 = vadd.f32 %v1834, %v2161
        %v2389 = vadd.f32 %v1835, %v2163
        %v2390 = vadd.f32 %v1836, %v2165
        %v2391 = vadd.f32 %v1837, %v2167
        %v2392 = vadd.f32 %v1838, %v2169
        %v2393 = vadd.f32 %v1839, %v2171
        %v2394 = vadd.f32 %v1840, %v2173
        %v2395 = vadd.f32 %v1841, %v2175
        %v2396 = vadd.f32 %v1842, %v2177
        %v2397 = vadd.f32 %v1843, %v2179
        %v2398 = vadd.f32 %v1844, %v2181
        %v2399 = vadd.f32 %v1845, %v2183
        %v2400 = vadd.f32 %v1846, %v2185
        %v2401 = vadd.f32 %v1847, %v2187
        %v2402 = vadd.f32 %v1848, %v2189
        %v2403 = vadd.f32 %v1849, %v2191
        %v2404 = vadd.f32 %v1850, %v2193
        %v2405 = vadd.f32 %v1851, %v2195
        %v2406 = vadd.f32 %v1852, %v2197
        %v2407 = vadd.f32 %v1853, %v2199
        %v2408 = vadd.f32 %v1854, %v2201
        %v2409 = vadd.f32 %v1855, %v2203
        %v2410 = vadd.f32 %v1856, %v2205
        %v2411 = vadd.f32 %v1857, %v2207
        %v2412 = vadd.f32 %v1858, %v2209
        %v2413 = vadd.f32 %v1859, %v2211
        %v2414 = vadd.f32 %v1860, %v2213
        %v2415 = vadd.f32 %v1861, %v2215
        %v2416 = vadd.f32 %v1862, %v2217
        %v2417 = vadd.f32 %v1863, %v2219
        %v2418 = vadd.f32 %v1864, %v2221
        %v2419 = vadd.f32 %v1865, %v2223
        %v2420 = vadd.f32 %v1866, %v2225
        %v2421 = vadd.f32 %v1867, %v2227
        %v2422 = vadd.f32 %v1868, %v2229
        %v2423 = vadd.f32 %v1869, %v2231
        %v2424 = vadd.f32 %v1870, %v2233
        %v2425 = vadd.f32 %v1871, %v2235
        %v2426 = vadd.f32 %v1872, %v2237
        %v2427 = vadd.f32 %v1873, %v2239
        %v2428 = vadd.f32 %v1874, %v2241
        %v2429 = vadd.f32 %v1875, %v2243
        %v2430 = vadd.f32 %v1876, %v2245
        %v2431 = vadd.f32 %v1877, %v2247
        %v2432 = vadd.f32 %v1878, %v2249
        %v2433 = vadd.f32 %v1879, %v2251
        %2435 = vset.pattern.permute.xlu0 0
        %2436 = vperm.xlu0 %2435, %v674
        %v2437 = vpop.permute.xlu0 %2436
        %2440 = vset.pattern.permute.xlu0 0
        %2441 = vperm.xlu0 %2440, %v675
        %v2442 = vpop.permute.xlu0 %2441
        %2445 = vset.pattern.permute.xlu0 0
        %2446 = vperm.xlu0 %2445, %v676
        %v2447 = vpop.permute.xlu0 %2446
        %v2449 = vlaneseq
        %v2450 = vshrl.u32 %v2449, 7
        %v2451 = vsub.s32 3, %v2450
        %v2452 = vrot.slane %v466, %v2451
        %v2453 = vmul.f32 %v698, %v2452
        %v2454 = vmul.f32 %v703, %v2452
        %v2455 = vmul.f32 %v708, %v2452
        %v2456 = vmul.f32 %v713, %v2452
        %v2457 = vmul.f32 %v718, %v2452
        %v2458 = vmul.f32 %v723, %v2452
        %v2459 = vmul.f32 %v728, %v2452
        %v2460 = vmul.f32 %v733, %v2452
        %v2461 = vmul.f32 %v738, %v2452
        %v2462 = vmul.f32 %v743, %v2452
        %v2463 = vmul.f32 %v748, %v2452
        %v2464 = vmul.f32 %v753, %v2452
        %v2465 = vmul.f32 %v758, %v2452
        %v2466 = vmul.f32 %v763, %v2452
        %v2467 = vmul.f32 %v768, %v2452
        %v2468 = vmul.f32 %v773, %v2452
        %v2469 = vmul.f32 %v778, %v2452
        %v2470 = vmul.f32 %v783, %v2452
        %v2471 = vmul.f32 %v788, %v2452
        %v2472 = vmul.f32 %v793, %v2452
        %v2473 = vmul.f32 %v798, %v2452
        %v2474 = vmul.f32 %v803, %v2452
        %v2475 = vmul.f32 %v808, %v2452
        %v2476 = vmul.f32 %v813, %v2452
        %v2477 = vmul.f32 %v818, %v2452
        %v2478 = vmul.f32 %v823, %v2452
        %v2479 = vmul.f32 %v828, %v2452
        %v2480 = vmul.f32 %v833, %v2452
        %v2481 = vmul.f32 %v838, %v2452
        %v2482 = vmul.f32 %v843, %v2452
        %v2483 = vmul.f32 %v848, %v2452
        %v2484 = vmul.f32 %v853, %v2452
        %v2485 = vmul.f32 %v858, %v2452
        %v2486 = vmul.f32 %v863, %v2452
        %v2487 = vmul.f32 %v868, %v2452
        %v2488 = vmul.f32 %v873, %v2452
        %v2489 = vmul.f32 %v878, %v2452
        %v2490 = vmul.f32 %v883, %v2452
        %v2491 = vmul.f32 %v888, %v2452
        %v2492 = vmul.f32 %v893, %v2452
        %v2493 = vmul.f32 %v898, %v2452
        %v2494 = vmul.f32 %v903, %v2452
        %v2495 = vmul.f32 %v908, %v2452
        %v2496 = vmul.f32 %v913, %v2452
        %v2497 = vmul.f32 %v918, %v2452
        %v2498 = vmul.f32 %v923, %v2452
        %v2499 = vmul.f32 %v928, %v2452
        %v2500 = vmul.f32 %v933, %v2452
        %v2501 = vmul.f32 %v938, %v2452
        %v2502 = vmul.f32 %v943, %v2452
        %v2503 = vmul.f32 %v948, %v2452
        %v2504 = vmul.f32 %v953, %v2452
        %v2505 = vmul.f32 %v958, %v2452
        %v2506 = vmul.f32 %v963, %v2452
        %v2507 = vmul.f32 %v968, %v2452
        %v2508 = vmul.f32 %v973, %v2452
        %v2509 = vmul.f32 %v978, %v2452
        %v2510 = vmul.f32 %v983, %v2452
        %v2511 = vmul.f32 %v988, %v2452
        %v2512 = vmul.f32 %v993, %v2452
        %v2513 = vmul.f32 %v998, %v2452
        %v2514 = vmul.f32 %v1003, %v2452
        %v2515 = vmul.f32 %v1008, %v2452
        %v2516 = vmul.f32 %v1013, %v2452
        %v2517 = vmul.f32 %v1018, %v2452
        %v2518 = vmul.f32 %v1023, %v2452
        %v2519 = vmul.f32 %v1028, %v2452
        %v2520 = vmul.f32 %v1033, %v2452
        %v2521 = vmul.f32 %v1038, %v2452
        %v2522 = vmul.f32 %v1043, %v2452
        %v2523 = vmul.f32 %v1048, %v2452
        %v2524 = vmul.f32 %v1053, %v2452
        %v2525 = vmul.f32 %v1058, %v2452
        %v2526 = vmul.f32 %v1063, %v2452
        %v2527 = vmul.f32 %v1068, %v2452
        %v2528 = vmul.f32 %v1073, %v2452
        %v2529 = vmul.f32 %v1078, %v2452
        %v2530 = vmul.f32 %v1083, %v2452
        %v2531 = vmul.f32 %v1088, %v2452
        %v2532 = vmul.f32 %v1093, %v2452
        %v2533 = vmul.f32 %v1098, %v2452
        %v2534 = vmul.f32 %v1103, %v2452
        %v2535 = vmul.f32 %v1108, %v2452
        %v2536 = vmul.f32 %v1113, %v2452
        %v2537 = vmul.f32 %v1118, %v2452
        %v2538 = vmul.f32 %v1123, %v2452
        %v2539 = vmul.f32 %v1128, %v2452
        %v2540 = vmul.f32 %v1133, %v2452
        %v2541 = vmul.f32 %v1324, %v2452
        %v2542 = vmul.f32 %v2437, %v2452
        %v2543 = vmul.f32 %v2442, %v2452
        %v2544 = vmul.f32 %v2447, %v2452
        %vm2637 = vcmask 1043456
        %v2638 = vrot.slane %v2453, 4
        %v2639 = vrot.slane %v2454, 4
        %v2640 = vsel %vm2637, %v2638, %v2639
        %v2641 = vrot.slane %v2455, 4
        %v2642 = vsel %vm2637, %v2639, %v2641
        %v2643 = vrot.slane %v2456, 4
        %v2644 = vsel %vm2637, %v2641, %v2643
        %v2645 = vrot.slane %v2457, 4
        %v2646 = vsel %vm2637, %v2643, %v2645
        %v2647 = vrot.slane %v2458, 4
        %v2648 = vsel %vm2637, %v2645, %v2647
        %v2649 = vrot.slane %v2459, 4
        %v2650 = vsel %vm2637, %v2647, %v2649
        %v2651 = vrot.slane %v2460, 4
        %v2652 = vsel %vm2637, %v2649, %v2651
        %v2653 = vrot.slane %v2461, 4
        %v2654 = vsel %vm2637, %v2651, %v2653
        %v2655 = vrot.slane %v2462, 4
        %v2656 = vsel %vm2637, %v2653, %v2655
        %v2657 = vrot.slane %v2463, 4
        %v2658 = vsel %vm2637, %v2655, %v2657
        %v2659 = vrot.slane %v2464, 4
        %v2660 = vsel %vm2637, %v2657, %v2659
        %v2661 = vrot.slane %v2465, 4
        %v2662 = vsel %vm2637, %v2659, %v2661
        %v2663 = vrot.slane %v2466, 4
        %v2664 = vsel %vm2637, %v2661, %v2663
        %v2665 = vrot.slane %v2467, 4
        %v2666 = vsel %vm2637, %v2663, %v2665
        %v2667 = vrot.slane %v2468, 4
        %v2668 = vsel %vm2637, %v2665, %v2667
        %v2669 = vrot.slane %v2469, 4
        %v2670 = vsel %vm2637, %v2667, %v2669
        %v2671 = vrot.slane %v2470, 4
        %v2672 = vsel %vm2637, %v2669, %v2671
        %v2673 = vrot.slane %v2471, 4
        %v2674 = vsel %vm2637, %v2671, %v2673
        %v2675 = vrot.slane %v2472, 4
        %v2676 = vsel %vm2637, %v2673, %v2675
        %v2677 = vrot.slane %v2473, 4
        %v2678 = vsel %vm2637, %v2675, %v2677
        %v2679 = vrot.slane %v2474, 4
        %v2680 = vsel %vm2637, %v2677, %v2679
        %v2681 = vrot.slane %v2475, 4
        %v2682 = vsel %vm2637, %v2679, %v2681
        %v2683 = vrot.slane %v2476, 4
        %v2684 = vsel %vm2637, %v2681, %v2683
        %v2685 = vrot.slane %v2477, 4
        %v2686 = vsel %vm2637, %v2683, %v2685
        %v2687 = vrot.slane %v2478, 4
        %v2688 = vsel %vm2637, %v2685, %v2687
        %v2689 = vrot.slane %v2479, 4
        %v2690 = vsel %vm2637, %v2687, %v2689
        %v2691 = vrot.slane %v2480, 4
        %v2692 = vsel %vm2637, %v2689, %v2691
        %v2693 = vrot.slane %v2481, 4
        %v2694 = vsel %vm2637, %v2691, %v2693
        %v2695 = vrot.slane %v2482, 4
        %v2696 = vsel %vm2637, %v2693, %v2695
        %v2697 = vrot.slane %v2483, 4
        %v2698 = vsel %vm2637, %v2695, %v2697
        %v2699 = vrot.slane %v2484, 4
        %v2700 = vsel %vm2637, %v2697, %v2699
        %v2701 = vrot.slane %v2485, 4
        %v2702 = vsel %vm2637, %v2699, %v2701
        %v2703 = vrot.slane %v2486, 4
        %v2704 = vsel %vm2637, %v2701, %v2703
        %v2705 = vrot.slane %v2487, 4
        %v2706 = vsel %vm2637, %v2703, %v2705
        %v2707 = vrot.slane %v2488, 4
        %v2708 = vsel %vm2637, %v2705, %v2707
        %v2709 = vrot.slane %v2489, 4
        %v2710 = vsel %vm2637, %v2707, %v2709
        %v2711 = vrot.slane %v2490, 4
        %v2712 = vsel %vm2637, %v2709, %v2711
        %v2713 = vrot.slane %v2491, 4
        %v2714 = vsel %vm2637, %v2711, %v2713
        %v2715 = vrot.slane %v2492, 4
        %v2716 = vsel %vm2637, %v2713, %v2715
        %v2717 = vrot.slane %v2493, 4
        %v2718 = vsel %vm2637, %v2715, %v2717
        %v2719 = vrot.slane %v2494, 4
        %v2720 = vsel %vm2637, %v2717, %v2719
        %v2721 = vrot.slane %v2495, 4
        %v2722 = vsel %vm2637, %v2719, %v2721
        %v2723 = vrot.slane %v2496, 4
        %v2724 = vsel %vm2637, %v2721, %v2723
        %v2725 = vrot.slane %v2497, 4
        %v2726 = vsel %vm2637, %v2723, %v2725
        %v2727 = vrot.slane %v2498, 4
        %v2728 = vsel %vm2637, %v2725, %v2727
        %v2729 = vrot.slane %v2499, 4
        %v2730 = vsel %vm2637, %v2727, %v2729
        %v2731 = vrot.slane %v2500, 4
        %v2732 = vsel %vm2637, %v2729, %v2731
        %v2733 = vrot.slane %v2501, 4
        %v2734 = vsel %vm2637, %v2731, %v2733
        %v2735 = vrot.slane %v2502, 4
        %v2736 = vsel %vm2637, %v2733, %v2735
        %v2737 = vrot.slane %v2503, 4
        %v2738 = vsel %vm2637, %v2735, %v2737
        %v2739 = vrot.slane %v2504, 4
        %v2740 = vsel %vm2637, %v2737, %v2739
        %v2741 = vrot.slane %v2505, 4
        %v2742 = vsel %vm2637, %v2739, %v2741
        %v2743 = vrot.slane %v2506, 4
        %v2744 = vsel %vm2637, %v2741, %v2743
        %v2745 = vrot.slane %v2507, 4
        %v2746 = vsel %vm2637, %v2743, %v2745
        %v2747 = vrot.slane %v2508, 4
        %v2748 = vsel %vm2637, %v2745, %v2747
        %v2749 = vrot.slane %v2509, 4
        %v2750 = vsel %vm2637, %v2747, %v2749
        %v2751 = vrot.slane %v2510, 4
        %v2752 = vsel %vm2637, %v2749, %v2751
        %v2753 = vrot.slane %v2511, 4
        %v2754 = vsel %vm2637, %v2751, %v2753
        %v2755 = vrot.slane %v2512, 4
        %v2756 = vsel %vm2637, %v2753, %v2755
        %v2757 = vrot.slane %v2513, 4
        %v2758 = vsel %vm2637, %v2755, %v2757
        %v2759 = vrot.slane %v2514, 4
        %v2760 = vsel %vm2637, %v2757, %v2759
        %v2761 = vrot.slane %v2515, 4
        %v2762 = vsel %vm2637, %v2759, %v2761
        %v2763 = vrot.slane %v2516, 4
        %v2764 = vsel %vm2637, %v2761, %v2763
        %v2765 = vrot.slane %v2517, 4
        %v2766 = vsel %vm2637, %v2763, %v2765
        %v2767 = vrot.slane %v2518, 4
        %v2768 = vsel %vm2637, %v2765, %v2767
        %v2769 = vrot.slane %v2519, 4
        %v2770 = vsel %vm2637, %v2767, %v2769
        %v2771 = vrot.slane %v2520, 4
        %v2772 = vsel %vm2637, %v2769, %v2771
        %v2773 = vrot.slane %v2521, 4
        %v2774 = vsel %vm2637, %v2771, %v2773
        %v2775 = vrot.slane %v2522, 4
        %v2776 = vsel %vm2637, %v2773, %v2775
        %v2777 = vrot.slane %v2523, 4
        %v2778 = vsel %vm2637, %v2775, %v2777
        %v2779 = vrot.slane %v2524, 4
        %v2780 = vsel %vm2637, %v2777, %v2779
        %v2781 = vrot.slane %v2525, 4
        %v2782 = vsel %vm2637, %v2779, %v2781
        %v2783 = vrot.slane %v2526, 4
        %v2784 = vsel %vm2637, %v2781, %v2783
        %v2785 = vrot.slane %v2527, 4
        %v2786 = vsel %vm2637, %v2783, %v2785
        %v2787 = vrot.slane %v2528, 4
        %v2788 = vsel %vm2637, %v2785, %v2787
        %v2789 = vrot.slane %v2529, 4
        %v2790 = vsel %vm2637, %v2787, %v2789
        %v2791 = vrot.slane %v2530, 4
        %v2792 = vsel %vm2637, %v2789, %v2791
        %v2793 = vrot.slane %v2531, 4
        %v2794 = vsel %vm2637, %v2791, %v2793
        %v2795 = vrot.slane %v2532, 4
        %v2796 = vsel %vm2637, %v2793, %v2795
        %v2797 = vrot.slane %v2533, 4
        %v2798 = vsel %vm2637, %v2795, %v2797
        %v2799 = vrot.slane %v2534, 4
        %v2800 = vsel %vm2637, %v2797, %v2799
        %v2801 = vrot.slane %v2535, 4
        %v2802 = vsel %vm2637, %v2799, %v2801
        %v2803 = vrot.slane %v2536, 4
        %v2804 = vsel %vm2637, %v2801, %v2803
        %v2805 = vrot.slane %v2537, 4
        %v2806 = vsel %vm2637, %v2803, %v2805
        %v2807 = vrot.slane %v2538, 4
        %v2808 = vsel %vm2637, %v2805, %v2807
        %v2809 = vrot.slane %v2539, 4
        %v2810 = vsel %vm2637, %v2807, %v2809
        %v2811 = vrot.slane %v2540, 4
        %v2812 = vsel %vm2637, %v2809, %v2811
        %v2813 = vrot.slane %v2541, 4
        %v2814 = vsel %vm2637, %v2811, %v2813
        %v2815 = vrot.slane %v2542, 4
        %v2816 = vsel %vm2637, %v2813, %v2815
        %v2817 = vrot.slane %v2543, 4
        %v2818 = vsel %vm2637, %v2815, %v2817
        %v2819 = vrot.slane %v2544, 4
        %v2820 = vsel %vm2637, %v2817, %v2819
        %v2912 = vadd.f32 %v2343, %v2640
        %v2913 = vadd.f32 %v2344, %v2642
        %v2914 = vadd.f32 %v2345, %v2644
        %v2915 = vadd.f32 %v2346, %v2646
        %v2916 = vadd.f32 %v2347, %v2648
        %v2917 = vadd.f32 %v2348, %v2650
        %v2918 = vadd.f32 %v2349, %v2652
        %v2919 = vadd.f32 %v2350, %v2654
        %v2920 = vadd.f32 %v2351, %v2656
        %v2921 = vadd.f32 %v2352, %v2658
        %v2922 = vadd.f32 %v2353, %v2660
        %v2923 = vadd.f32 %v2354, %v2662
        %v2924 = vadd.f32 %v2355, %v2664
        %v2925 = vadd.f32 %v2356, %v2666
        %v2926 = vadd.f32 %v2357, %v2668
        %v2927 = vadd.f32 %v2358, %v2670
        %v2928 = vadd.f32 %v2359, %v2672
        %v2929 = vadd.f32 %v2360, %v2674
        %v2930 = vadd.f32 %v2361, %v2676
        %v2931 = vadd.f32 %v2362, %v2678
        %v2932 = vadd.f32 %v2363, %v2680
        %v2933 = vadd.f32 %v2364, %v2682
        %v2934 = vadd.f32 %v2365, %v2684
        %v2935 = vadd.f32 %v2366, %v2686
        %v2936 = vadd.f32 %v2367, %v2688
        %v2937 = vadd.f32 %v2368, %v2690
        %v2938 = vadd.f32 %v2369, %v2692
        %v2939 = vadd.f32 %v2370, %v2694
        %v2940 = vadd.f32 %v2371, %v2696
        %v2941 = vadd.f32 %v2372, %v2698
        %v2942 = vadd.f32 %v2373, %v2700
        %v2943 = vadd.f32 %v2374, %v2702
        %v2944 = vadd.f32 %v2375, %v2704
        %v2945 = vadd.f32 %v2376, %v2706
        %v2946 = vadd.f32 %v2377, %v2708
        %v2947 = vadd.f32 %v2378, %v2710
        %v2948 = vadd.f32 %v2379, %v2712
        %v2949 = vadd.f32 %v2380, %v2714
        %v2950 = vadd.f32 %v2381, %v2716
        %v2951 = vadd.f32 %v2382, %v2718
        %v2952 = vadd.f32 %v2383, %v2720
        %v2953 = vadd.f32 %v2384, %v2722
        %v2954 = vadd.f32 %v2385, %v2724
        %v2955 = vadd.f32 %v2386, %v2726
        %v2956 = vadd.f32 %v2387, %v2728
        %v2957 = vadd.f32 %v2388, %v2730
        %v2958 = vadd.f32 %v2389, %v2732
        %v2959 = vadd.f32 %v2390, %v2734
        %v2960 = vadd.f32 %v2391, %v2736
        %v2961 = vadd.f32 %v2392, %v2738
        %v2962 = vadd.f32 %v2393, %v2740
        %v2963 = vadd.f32 %v2394, %v2742
        %v2964 = vadd.f32 %v2395, %v2744
        %v2965 = vadd.f32 %v2396, %v2746
        %v2966 = vadd.f32 %v2397, %v2748
        %v2967 = vadd.f32 %v2398, %v2750
        %v2968 = vadd.f32 %v2399, %v2752
        %v2969 = vadd.f32 %v2400, %v2754
        %v2970 = vadd.f32 %v2401, %v2756
        %v2971 = vadd.f32 %v2402, %v2758
        %v2972 = vadd.f32 %v2403, %v2760
        %v2973 = vadd.f32 %v2404, %v2762
        %v2974 = vadd.f32 %v2405, %v2764
        %v2975 = vadd.f32 %v2406, %v2766
        %v2976 = vadd.f32 %v2407, %v2768
        %v2977 = vadd.f32 %v2408, %v2770
        %v2978 = vadd.f32 %v2409, %v2772
        %v2979 = vadd.f32 %v2410, %v2774
        %v2980 = vadd.f32 %v2411, %v2776
        %v2981 = vadd.f32 %v2412, %v2778
        %v2982 = vadd.f32 %v2413, %v2780
        %v2983 = vadd.f32 %v2414, %v2782
        %v2984 = vadd.f32 %v2415, %v2784
        %v2985 = vadd.f32 %v2416, %v2786
        %v2986 = vadd.f32 %v2417, %v2788
        %v2987 = vadd.f32 %v2418, %v2790
        %v2988 = vadd.f32 %v2419, %v2792
        %v2989 = vadd.f32 %v2420, %v2794
        %v2990 = vadd.f32 %v2421, %v2796
        %v2991 = vadd.f32 %v2422, %v2798
        %v2992 = vadd.f32 %v2423, %v2800
        %v2993 = vadd.f32 %v2424, %v2802
        %v2994 = vadd.f32 %v2425, %v2804
        %v2995 = vadd.f32 %v2426, %v2806
        %v2996 = vadd.f32 %v2427, %v2808
        %v2997 = vadd.f32 %v2428, %v2810
        %v2998 = vadd.f32 %v2429, %v2812
        %v2999 = vadd.f32 %v2430, %v2814
        %v3000 = vadd.f32 %v2431, %v2816
        %v3001 = vadd.f32 %v2432, %v2818
        %v3002 = vadd.f32 %v2433, %v2820
        %v3003 = vlaneseq
        %v3004 = vshrl.u32 %v3003, 7
        %v3005 = vsub.s32 4, %v3004
        %v3006 = vrot.slane %v466, %v3005
        %v3007 = vmul.f32 %v698, %v3006
        %v3008 = vmul.f32 %v703, %v3006
        %v3009 = vmul.f32 %v708, %v3006
        %v3010 = vmul.f32 %v713, %v3006
        %v3011 = vmul.f32 %v718, %v3006
        %v3012 = vmul.f32 %v723, %v3006
        %v3013 = vmul.f32 %v728, %v3006
        %v3014 = vmul.f32 %v733, %v3006
        %v3015 = vmul.f32 %v738, %v3006
        %v3016 = vmul.f32 %v743, %v3006
        %v3017 = vmul.f32 %v748, %v3006
        %v3018 = vmul.f32 %v753, %v3006
        %v3019 = vmul.f32 %v758, %v3006
        %v3020 = vmul.f32 %v763, %v3006
        %v3021 = vmul.f32 %v768, %v3006
        %v3022 = vmul.f32 %v773, %v3006
        %v3023 = vmul.f32 %v778, %v3006
        %v3024 = vmul.f32 %v783, %v3006
        %v3025 = vmul.f32 %v788, %v3006
        %v3026 = vmul.f32 %v793, %v3006
        %v3027 = vmul.f32 %v798, %v3006
        %v3028 = vmul.f32 %v803, %v3006
        %v3029 = vmul.f32 %v808, %v3006
        %v3030 = vmul.f32 %v813, %v3006
        %v3031 = vmul.f32 %v818, %v3006
        %v3032 = vmul.f32 %v823, %v3006
        %v3033 = vmul.f32 %v828, %v3006
        %v3034 = vmul.f32 %v833, %v3006
        %v3035 = vmul.f32 %v838, %v3006
        %v3036 = vmul.f32 %v843, %v3006
        %v3037 = vmul.f32 %v848, %v3006
        %v3038 = vmul.f32 %v853, %v3006
        %v3039 = vmul.f32 %v858, %v3006
        %v3040 = vmul.f32 %v863, %v3006
        %v3041 = vmul.f32 %v868, %v3006
        %v3042 = vmul.f32 %v873, %v3006
        %v3043 = vmul.f32 %v878, %v3006
        %v3044 = vmul.f32 %v883, %v3006
        %v3045 = vmul.f32 %v888, %v3006
        %v3046 = vmul.f32 %v893, %v3006
        %v3047 = vmul.f32 %v898, %v3006
        %v3048 = vmul.f32 %v903, %v3006
        %v3049 = vmul.f32 %v908, %v3006
        %v3050 = vmul.f32 %v913, %v3006
        %v3051 = vmul.f32 %v918, %v3006
        %v3052 = vmul.f32 %v923, %v3006
        %v3053 = vmul.f32 %v928, %v3006
        %v3054 = vmul.f32 %v933, %v3006
        %v3055 = vmul.f32 %v938, %v3006
        %v3056 = vmul.f32 %v943, %v3006
        %v3057 = vmul.f32 %v948, %v3006
        %v3058 = vmul.f32 %v953, %v3006
        %v3059 = vmul.f32 %v958, %v3006
        %v3060 = vmul.f32 %v963, %v3006
        %v3061 = vmul.f32 %v968, %v3006
        %v3062 = vmul.f32 %v973, %v3006
        %v3063 = vmul.f32 %v978, %v3006
        %v3064 = vmul.f32 %v983, %v3006
        %v3065 = vmul.f32 %v988, %v3006
        %v3066 = vmul.f32 %v993, %v3006
        %v3067 = vmul.f32 %v998, %v3006
        %v3068 = vmul.f32 %v1003, %v3006
        %v3069 = vmul.f32 %v1008, %v3006
        %v3070 = vmul.f32 %v1013, %v3006
        %v3071 = vmul.f32 %v1018, %v3006
        %v3072 = vmul.f32 %v1023, %v3006
        %v3073 = vmul.f32 %v1028, %v3006
        %v3074 = vmul.f32 %v1033, %v3006
        %v3075 = vmul.f32 %v1038, %v3006
        %v3076 = vmul.f32 %v1043, %v3006
        %v3077 = vmul.f32 %v1048, %v3006
        %v3078 = vmul.f32 %v1053, %v3006
        %v3079 = vmul.f32 %v1058, %v3006
        %v3080 = vmul.f32 %v1063, %v3006
        %v3081 = vmul.f32 %v1068, %v3006
        %v3082 = vmul.f32 %v1073, %v3006
        %v3083 = vmul.f32 %v1078, %v3006
        %v3084 = vmul.f32 %v1083, %v3006
        %v3085 = vmul.f32 %v1088, %v3006
        %v3086 = vmul.f32 %v1093, %v3006
        %v3087 = vmul.f32 %v1098, %v3006
        %v3088 = vmul.f32 %v1103, %v3006
        %v3089 = vmul.f32 %v1108, %v3006
        %v3090 = vmul.f32 %v1113, %v3006
        %v3091 = vmul.f32 %v1118, %v3006
        %v3092 = vmul.f32 %v1123, %v3006
        %v3093 = vmul.f32 %v1128, %v3006
        %v3094 = vmul.f32 %v1133, %v3006
        %v3095 = vmul.f32 %v1324, %v3006
        %v3096 = vmul.f32 %v2437, %v3006
        %v3097 = vmul.f32 %v2442, %v3006
        %v3098 = vmul.f32 %v2447, %v3006
        %vm3191 = vcmask 1042432
        %v3192 = vrot.slane %v3007, 5
        %v3193 = vrot.slane %v3008, 5
        %v3194 = vsel %vm3191, %v3192, %v3193
        %v3195 = vrot.slane %v3009, 5
        %v3196 = vsel %vm3191, %v3193, %v3195
        %v3197 = vrot.slane %v3010, 5
        %v3198 = vsel %vm3191, %v3195, %v3197
        %v3199 = vrot.slane %v3011, 5
        %v3200 = vsel %vm3191, %v3197, %v3199
        %v3201 = vrot.slane %v3012, 5
        %v3202 = vsel %vm3191, %v3199, %v3201
        %v3203 = vrot.slane %v3013, 5
        %v3204 = vsel %vm3191, %v3201, %v3203
        %v3205 = vrot.slane %v3014, 5
        %v3206 = vsel %vm3191, %v3203, %v3205
        %v3207 = vrot.slane %v3015, 5
        %v3208 = vsel %vm3191, %v3205, %v3207
        %v3209 = vrot.slane %v3016, 5
        %v3210 = vsel %vm3191, %v3207, %v3209
        %v3211 = vrot.slane %v3017, 5
        %v3212 = vsel %vm3191, %v3209, %v3211
        %v3213 = vrot.slane %v3018, 5
        %v3214 = vsel %vm3191, %v3211, %v3213
        %v3215 = vrot.slane %v3019, 5
        %v3216 = vsel %vm3191, %v3213, %v3215
        %v3217 = vrot.slane %v3020, 5
        %v3218 = vsel %vm3191, %v3215, %v3217
        %v3219 = vrot.slane %v3021, 5
        %v3220 = vsel %vm3191, %v3217, %v3219
        %v3221 = vrot.slane %v3022, 5
        %v3222 = vsel %vm3191, %v3219, %v3221
        %v3223 = vrot.slane %v3023, 5
        %v3224 = vsel %vm3191, %v3221, %v3223
        %v3225 = vrot.slane %v3024, 5
        %v3226 = vsel %vm3191, %v3223, %v3225
        %v3227 = vrot.slane %v3025, 5
        %v3228 = vsel %vm3191, %v3225, %v3227
        %v3229 = vrot.slane %v3026, 5
        %v3230 = vsel %vm3191, %v3227, %v3229
        %v3231 = vrot.slane %v3027, 5
        %v3232 = vsel %vm3191, %v3229, %v3231
        %v3233 = vrot.slane %v3028, 5
        %v3234 = vsel %vm3191, %v3231, %v3233
        %v3235 = vrot.slane %v3029, 5
        %v3236 = vsel %vm3191, %v3233, %v3235
        %v3237 = vrot.slane %v3030, 5
        %v3238 = vsel %vm3191, %v3235, %v3237
        %v3239 = vrot.slane %v3031, 5
        %v3240 = vsel %vm3191, %v3237, %v3239
        %v3241 = vrot.slane %v3032, 5
        %v3242 = vsel %vm3191, %v3239, %v3241
        %v3243 = vrot.slane %v3033, 5
        %v3244 = vsel %vm3191, %v3241, %v3243
        %v3245 = vrot.slane %v3034, 5
        %v3246 = vsel %vm3191, %v3243, %v3245
        %v3247 = vrot.slane %v3035, 5
        %v3248 = vsel %vm3191, %v3245, %v3247
        %v3249 = vrot.slane %v3036, 5
        %v3250 = vsel %vm3191, %v3247, %v3249
        %v3251 = vrot.slane %v3037, 5
        %v3252 = vsel %vm3191, %v3249, %v3251
        %v3253 = vrot.slane %v3038, 5
        %v3254 = vsel %vm3191, %v3251, %v3253
        %v3255 = vrot.slane %v3039, 5
        %v3256 = vsel %vm3191, %v3253, %v3255
        %v3257 = vrot.slane %v3040, 5
        %v3258 = vsel %vm3191, %v3255, %v3257
        %v3259 = vrot.slane %v3041, 5
        %v3260 = vsel %vm3191, %v3257, %v3259
        %v3261 = vrot.slane %v3042, 5
        %v3262 = vsel %vm3191, %v3259, %v3261
        %v3263 = vrot.slane %v3043, 5
        %v3264 = vsel %vm3191, %v3261, %v3263
        %v3265 = vrot.slane %v3044, 5
        %v3266 = vsel %vm3191, %v3263, %v3265
        %v3267 = vrot.slane %v3045, 5
        %v3268 = vsel %vm3191, %v3265, %v3267
        %v3269 = vrot.slane %v3046, 5
        %v3270 = vsel %vm3191, %v3267, %v3269
        %v3271 = vrot.slane %v3047, 5
        %v3272 = vsel %vm3191, %v3269, %v3271
        %v3273 = vrot.slane %v3048, 5
        %v3274 = vsel %vm3191, %v3271, %v3273
        %v3275 = vrot.slane %v3049, 5
        %v3276 = vsel %vm3191, %v3273, %v3275
        %v3277 = vrot.slane %v3050, 5
        %v3278 = vsel %vm3191, %v3275, %v3277
        %v3279 = vrot.slane %v3051, 5
        %v3280 = vsel %vm3191, %v3277, %v3279
        %v3281 = vrot.slane %v3052, 5
        %v3282 = vsel %vm3191, %v3279, %v3281
        %v3283 = vrot.slane %v3053, 5
        %v3284 = vsel %vm3191, %v3281, %v3283
        %v3285 = vrot.slane %v3054, 5
        %v3286 = vsel %vm3191, %v3283, %v3285
        %v3287 = vrot.slane %v3055, 5
        %v3288 = vsel %vm3191, %v3285, %v3287
        %v3289 = vrot.slane %v3056, 5
        %v3290 = vsel %vm3191, %v3287, %v3289
        %v3291 = vrot.slane %v3057, 5
        %v3292 = vsel %vm3191, %v3289, %v3291
        %v3293 = vrot.slane %v3058, 5
        %v3294 = vsel %vm3191, %v3291, %v3293
        %v3295 = vrot.slane %v3059, 5
        %v3296 = vsel %vm3191, %v3293, %v3295
        %v3297 = vrot.slane %v3060, 5
        %v3298 = vsel %vm3191, %v3295, %v3297
        %v3299 = vrot.slane %v3061, 5
        %v3300 = vsel %vm3191, %v3297, %v3299
        %v3301 = vrot.slane %v3062, 5
        %v3302 = vsel %vm3191, %v3299, %v3301
        %v3303 = vrot.slane %v3063, 5
        %v3304 = vsel %vm3191, %v3301, %v3303
        %v3305 = vrot.slane %v3064, 5
        %v3306 = vsel %vm3191, %v3303, %v3305
        %v3307 = vrot.slane %v3065, 5
        %v3308 = vsel %vm3191, %v3305, %v3307
        %v3309 = vrot.slane %v3066, 5
        %v3310 = vsel %vm3191, %v3307, %v3309
        %v3311 = vrot.slane %v3067, 5
        %v3312 = vsel %vm3191, %v3309, %v3311
        %v3313 = vrot.slane %v3068, 5
        %v3314 = vsel %vm3191, %v3311, %v3313
        %v3315 = vrot.slane %v3069, 5
        %v3316 = vsel %vm3191, %v3313, %v3315
        %v3317 = vrot.slane %v3070, 5
        %v3318 = vsel %vm3191, %v3315, %v3317
        %v3319 = vrot.slane %v3071, 5
        %v3320 = vsel %vm3191, %v3317, %v3319
        %v3321 = vrot.slane %v3072, 5
        %v3322 = vsel %vm3191, %v3319, %v3321
        %v3323 = vrot.slane %v3073, 5
        %v3324 = vsel %vm3191, %v3321, %v3323
        %v3325 = vrot.slane %v3074, 5
        %v3326 = vsel %vm3191, %v3323, %v3325
        %v3327 = vrot.slane %v3075, 5
        %v3328 = vsel %vm3191, %v3325, %v3327
        %v3329 = vrot.slane %v3076, 5
        %v3330 = vsel %vm3191, %v3327, %v3329
        %v3331 = vrot.slane %v3077, 5
        %v3332 = vsel %vm3191, %v3329, %v3331
        %v3333 = vrot.slane %v3078, 5
        %v3334 = vsel %vm3191, %v3331, %v3333
        %v3335 = vrot.slane %v3079, 5
        %v3336 = vsel %vm3191, %v3333, %v3335
        %v3337 = vrot.slane %v3080, 5
        %v3338 = vsel %vm3191, %v3335, %v3337
        %v3339 = vrot.slane %v3081, 5
        %v3340 = vsel %vm3191, %v3337, %v3339
        %v3341 = vrot.slane %v3082, 5
        %v3342 = vsel %vm3191, %v3339, %v3341
        %v3343 = vrot.slane %v3083, 5
        %v3344 = vsel %vm3191, %v3341, %v3343
        %v3345 = vrot.slane %v3084, 5
        %v3346 = vsel %vm3191, %v3343, %v3345
        %v3347 = vrot.slane %v3085, 5
        %v3348 = vsel %vm3191, %v3345, %v3347
        %v3349 = vrot.slane %v3086, 5
        %v3350 = vsel %vm3191, %v3347, %v3349
        %v3351 = vrot.slane %v3087, 5
        %v3352 = vsel %vm3191, %v3349, %v3351
        %v3353 = vrot.slane %v3088, 5
        %v3354 = vsel %vm3191, %v3351, %v3353
        %v3355 = vrot.slane %v3089, 5
        %v3356 = vsel %vm3191, %v3353, %v3355
        %v3357 = vrot.slane %v3090, 5
        %v3358 = vsel %vm3191, %v3355, %v3357
        %v3359 = vrot.slane %v3091, 5
        %v3360 = vsel %vm3191, %v3357, %v3359
        %v3361 = vrot.slane %v3092, 5
        %v3362 = vsel %vm3191, %v3359, %v3361
        %v3363 = vrot.slane %v3093, 5
        %v3364 = vsel %vm3191, %v3361, %v3363
        %v3365 = vrot.slane %v3094, 5
        %v3366 = vsel %vm3191, %v3363, %v3365
        %v3367 = vrot.slane %v3095, 5
        %v3368 = vsel %vm3191, %v3365, %v3367
        %v3369 = vrot.slane %v3096, 5
        %v3370 = vsel %vm3191, %v3367, %v3369
        %v3371 = vrot.slane %v3097, 5
        %v3372 = vsel %vm3191, %v3369, %v3371
        %v3373 = vrot.slane %v3098, 5
        %v3374 = vsel %vm3191, %v3371, %v3373
        %v3466 = vadd.f32 %v2912, %v3194
        %v3467 = vadd.f32 %v2913, %v3196
        %v3468 = vadd.f32 %v2914, %v3198
        %v3469 = vadd.f32 %v2915, %v3200
        %v3470 = vadd.f32 %v2916, %v3202
        %v3471 = vadd.f32 %v2917, %v3204
        %v3472 = vadd.f32 %v2918, %v3206
        %v3473 = vadd.f32 %v2919, %v3208
        %v3474 = vadd.f32 %v2920, %v3210
        %v3475 = vadd.f32 %v2921, %v3212
        %v3476 = vadd.f32 %v2922, %v3214
        %v3477 = vadd.f32 %v2923, %v3216
        %v3478 = vadd.f32 %v2924, %v3218
        %v3479 = vadd.f32 %v2925, %v3220
        %v3480 = vadd.f32 %v2926, %v3222
        %v3481 = vadd.f32 %v2927, %v3224
        %v3482 = vadd.f32 %v2928, %v3226
        %v3483 = vadd.f32 %v2929, %v3228
        %v3484 = vadd.f32 %v2930, %v3230
        %v3485 = vadd.f32 %v2931, %v3232
        %v3486 = vadd.f32 %v2932, %v3234
        %v3487 = vadd.f32 %v2933, %v3236
        %v3488 = vadd.f32 %v2934, %v3238
        %v3489 = vadd.f32 %v2935, %v3240
        %v3490 = vadd.f32 %v2936, %v3242
        %v3491 = vadd.f32 %v2937, %v3244
        %v3492 = vadd.f32 %v2938, %v3246
        %v3493 = vadd.f32 %v2939, %v3248
        %v3494 = vadd.f32 %v2940, %v3250
        %v3495 = vadd.f32 %v2941, %v3252
        %v3496 = vadd.f32 %v2942, %v3254
        %v3497 = vadd.f32 %v2943, %v3256
        %v3498 = vadd.f32 %v2944, %v3258
        %v3499 = vadd.f32 %v2945, %v3260
        %v3500 = vadd.f32 %v2946, %v3262
        %v3501 = vadd.f32 %v2947, %v3264
        %v3502 = vadd.f32 %v2948, %v3266
        %v3503 = vadd.f32 %v2949, %v3268
        %v3504 = vadd.f32 %v2950, %v3270
        %v3505 = vadd.f32 %v2951, %v3272
        %v3506 = vadd.f32 %v2952, %v3274
        %v3507 = vadd.f32 %v2953, %v3276
        %v3508 = vadd.f32 %v2954, %v3278
        %v3509 = vadd.f32 %v2955, %v3280
        %v3510 = vadd.f32 %v2956, %v3282
        %v3511 = vadd.f32 %v2957, %v3284
        %v3512 = vadd.f32 %v2958, %v3286
        %v3513 = vadd.f32 %v2959, %v3288
        %v3514 = vadd.f32 %v2960, %v3290
        %v3515 = vadd.f32 %v2961, %v3292
        %v3516 = vadd.f32 %v2962, %v3294
        %v3517 = vadd.f32 %v2963, %v3296
        %v3518 = vadd.f32 %v2964, %v3298
        %v3519 = vadd.f32 %v2965, %v3300
        %v3520 = vadd.f32 %v2966, %v3302
        %v3521 = vadd.f32 %v2967, %v3304
        %v3522 = vadd.f32 %v2968, %v3306
        %v3523 = vadd.f32 %v2969, %v3308
        %v3524 = vadd.f32 %v2970, %v3310
        %v3525 = vadd.f32 %v2971, %v3312
        %v3526 = vadd.f32 %v2972, %v3314
        %v3527 = vadd.f32 %v2973, %v3316
        %v3528 = vadd.f32 %v2974, %v3318
        %v3529 = vadd.f32 %v2975, %v3320
        %v3530 = vadd.f32 %v2976, %v3322
        %v3531 = vadd.f32 %v2977, %v3324
        %v3532 = vadd.f32 %v2978, %v3326
        %v3533 = vadd.f32 %v2979, %v3328
        %v3534 = vadd.f32 %v2980, %v3330
        %v3535 = vadd.f32 %v2981, %v3332
        %v3536 = vadd.f32 %v2982, %v3334
        %v3537 = vadd.f32 %v2983, %v3336
        %v3538 = vadd.f32 %v2984, %v3338
        %v3539 = vadd.f32 %v2985, %v3340
        %v3540 = vadd.f32 %v2986, %v3342
        %v3541 = vadd.f32 %v2987, %v3344
        %v3542 = vadd.f32 %v2988, %v3346
        %v3543 = vadd.f32 %v2989, %v3348
        %v3544 = vadd.f32 %v2990, %v3350
        %v3545 = vadd.f32 %v2991, %v3352
        %v3546 = vadd.f32 %v2992, %v3354
        %v3547 = vadd.f32 %v2993, %v3356
        %v3548 = vadd.f32 %v2994, %v3358
        %v3549 = vadd.f32 %v2995, %v3360
        %v3550 = vadd.f32 %v2996, %v3362
        %v3551 = vadd.f32 %v2997, %v3364
        %v3552 = vadd.f32 %v2998, %v3366
        %v3553 = vadd.f32 %v2999, %v3368
        %v3554 = vadd.f32 %v3000, %v3370
        %v3555 = vadd.f32 %v3001, %v3372
        %v3556 = vadd.f32 %v3002, %v3374
        %v3557 = vlaneseq
        %v3558 = vshrl.u32 %v3557, 7
        %v3559 = vsub.s32 5, %v3558
        %v3560 = vrot.slane %v466, %v3559
        %v3561 = vmul.f32 %v698, %v3560
        %v3562 = vmul.f32 %v703, %v3560
        %v3563 = vmul.f32 %v708, %v3560
        %v3564 = vmul.f32 %v713, %v3560
        %v3565 = vmul.f32 %v718, %v3560
        %v3566 = vmul.f32 %v723, %v3560
        %v3567 = vmul.f32 %v728, %v3560
        %v3568 = vmul.f32 %v733, %v3560
        %v3569 = vmul.f32 %v738, %v3560
        %v3570 = vmul.f32 %v743, %v3560
        %v3571 = vmul.f32 %v748, %v3560
        %v3572 = vmul.f32 %v753, %v3560
        %v3573 = vmul.f32 %v758, %v3560
        %v3574 = vmul.f32 %v763, %v3560
        %v3575 = vmul.f32 %v768, %v3560
        %v3576 = vmul.f32 %v773, %v3560
        %v3577 = vmul.f32 %v778, %v3560
        %v3578 = vmul.f32 %v783, %v3560
        %v3579 = vmul.f32 %v788, %v3560
        %v3580 = vmul.f32 %v793, %v3560
        %v3581 = vmul.f32 %v798, %v3560
        %v3582 = vmul.f32 %v803, %v3560
        %v3583 = vmul.f32 %v808, %v3560
        %v3584 = vmul.f32 %v813, %v3560
        %v3585 = vmul.f32 %v818, %v3560
        %v3586 = vmul.f32 %v823, %v3560
        %v3587 = vmul.f32 %v828, %v3560
        %v3588 = vmul.f32 %v833, %v3560
        %v3589 = vmul.f32 %v838, %v3560
        %v3590 = vmul.f32 %v843, %v3560
        %v3591 = vmul.f32 %v848, %v3560
        %v3592 = vmul.f32 %v853, %v3560
        %v3593 = vmul.f32 %v858, %v3560
        %v3594 = vmul.f32 %v863, %v3560
        %v3595 = vmul.f32 %v868, %v3560
        %v3596 = vmul.f32 %v873, %v3560
        %v3597 = vmul.f32 %v878, %v3560
        %v3598 = vmul.f32 %v883, %v3560
        %v3599 = vmul.f32 %v888, %v3560
        %v3600 = vmul.f32 %v893, %v3560
        %v3601 = vmul.f32 %v898, %v3560
        %v3602 = vmul.f32 %v903, %v3560
        %v3603 = vmul.f32 %v908, %v3560
        %v3604 = vmul.f32 %v913, %v3560
        %v3605 = vmul.f32 %v918, %v3560
        %v3606 = vmul.f32 %v923, %v3560
        %v3607 = vmul.f32 %v928, %v3560
        %v3608 = vmul.f32 %v933, %v3560
        %v3609 = vmul.f32 %v938, %v3560
        %v3610 = vmul.f32 %v943, %v3560
        %v3611 = vmul.f32 %v948, %v3560
        %v3612 = vmul.f32 %v953, %v3560
        %v3613 = vmul.f32 %v958, %v3560
        %v3614 = vmul.f32 %v963, %v3560
        %v3615 = vmul.f32 %v968, %v3560
        %v3616 = vmul.f32 %v973, %v3560
        %v3617 = vmul.f32 %v978, %v3560
        %v3618 = vmul.f32 %v983, %v3560
        %v3619 = vmul.f32 %v988, %v3560
        %v3620 = vmul.f32 %v993, %v3560
        %v3621 = vmul.f32 %v998, %v3560
        %v3622 = vmul.f32 %v1003, %v3560
        %v3623 = vmul.f32 %v1008, %v3560
        %v3624 = vmul.f32 %v1013, %v3560
        %v3625 = vmul.f32 %v1018, %v3560
        %v3626 = vmul.f32 %v1023, %v3560
        %v3627 = vmul.f32 %v1028, %v3560
        %v3628 = vmul.f32 %v1033, %v3560
        %v3629 = vmul.f32 %v1038, %v3560
        %v3630 = vmul.f32 %v1043, %v3560
        %v3631 = vmul.f32 %v1048, %v3560
        %v3632 = vmul.f32 %v1053, %v3560
        %v3633 = vmul.f32 %v1058, %v3560
        %v3634 = vmul.f32 %v1063, %v3560
        %v3635 = vmul.f32 %v1068, %v3560
        %v3636 = vmul.f32 %v1073, %v3560
        %v3637 = vmul.f32 %v1078, %v3560
        %v3638 = vmul.f32 %v1083, %v3560
        %v3639 = vmul.f32 %v1088, %v3560
        %v3640 = vmul.f32 %v1093, %v3560
        %v3641 = vmul.f32 %v1098, %v3560
        %v3642 = vmul.f32 %v1103, %v3560
        %v3643 = vmul.f32 %v1108, %v3560
        %v3644 = vmul.f32 %v1113, %v3560
        %v3645 = vmul.f32 %v1118, %v3560
        %v3646 = vmul.f32 %v1123, %v3560
        %v3647 = vmul.f32 %v1128, %v3560
        %v3648 = vmul.f32 %v1133, %v3560
        %v3649 = vmul.f32 %v1324, %v3560
        %v3650 = vmul.f32 %v2437, %v3560
        %v3651 = vmul.f32 %v2442, %v3560
        %v3652 = vmul.f32 %v2447, %v3560
        %vm3745 = vcmask 1041408
        %v3746 = vrot.slane %v3561, 6
        %v3747 = vrot.slane %v3562, 6
        %v3748 = vsel %vm3745, %v3746, %v3747
        %v3749 = vrot.slane %v3563, 6
        %v3750 = vsel %vm3745, %v3747, %v3749
        %v3751 = vrot.slane %v3564, 6
        %v3752 = vsel %vm3745, %v3749, %v3751
        %v3753 = vrot.slane %v3565, 6
        %v3754 = vsel %vm3745, %v3751, %v3753
        %v3755 = vrot.slane %v3566, 6
        %v3756 = vsel %vm3745, %v3753, %v3755
        %v3757 = vrot.slane %v3567, 6
        %v3758 = vsel %vm3745, %v3755, %v3757
        %v3759 = vrot.slane %v3568, 6
        %v3760 = vsel %vm3745, %v3757, %v3759
        %v3761 = vrot.slane %v3569, 6
        %v3762 = vsel %vm3745, %v3759, %v3761
        %v3763 = vrot.slane %v3570, 6
        %v3764 = vsel %vm3745, %v3761, %v3763
        %v3765 = vrot.slane %v3571, 6
        %v3766 = vsel %vm3745, %v3763, %v3765
        %v3767 = vrot.slane %v3572, 6
        %v3768 = vsel %vm3745, %v3765, %v3767
        %v3769 = vrot.slane %v3573, 6
        %v3770 = vsel %vm3745, %v3767, %v3769
        %v3771 = vrot.slane %v3574, 6
        %v3772 = vsel %vm3745, %v3769, %v3771
        %v3773 = vrot.slane %v3575, 6
        %v3774 = vsel %vm3745, %v3771, %v3773
        %v3775 = vrot.slane %v3576, 6
        %v3776 = vsel %vm3745, %v3773, %v3775
        %v3777 = vrot.slane %v3577, 6
        %v3778 = vsel %vm3745, %v3775, %v3777
        %v3779 = vrot.slane %v3578, 6
        %v3780 = vsel %vm3745, %v3777, %v3779
        %v3781 = vrot.slane %v3579, 6
        %v3782 = vsel %vm3745, %v3779, %v3781
        %v3783 = vrot.slane %v3580, 6
        %v3784 = vsel %vm3745, %v3781, %v3783
        %v3785 = vrot.slane %v3581, 6
        %v3786 = vsel %vm3745, %v3783, %v3785
        %v3787 = vrot.slane %v3582, 6
        %v3788 = vsel %vm3745, %v3785, %v3787
        %v3789 = vrot.slane %v3583, 6
        %v3790 = vsel %vm3745, %v3787, %v3789
        %v3791 = vrot.slane %v3584, 6
        %v3792 = vsel %vm3745, %v3789, %v3791
        %v3793 = vrot.slane %v3585, 6
        %v3794 = vsel %vm3745, %v3791, %v3793
        %v3795 = vrot.slane %v3586, 6
        %v3796 = vsel %vm3745, %v3793, %v3795
        %v3797 = vrot.slane %v3587, 6
        %v3798 = vsel %vm3745, %v3795, %v3797
        %v3799 = vrot.slane %v3588, 6
        %v3800 = vsel %vm3745, %v3797, %v3799
        %v3801 = vrot.slane %v3589, 6
        %v3802 = vsel %vm3745, %v3799, %v3801
        %v3803 = vrot.slane %v3590, 6
        %v3804 = vsel %vm3745, %v3801, %v3803
        %v3805 = vrot.slane %v3591, 6
        %v3806 = vsel %vm3745, %v3803, %v3805
        %v3807 = vrot.slane %v3592, 6
        %v3808 = vsel %vm3745, %v3805, %v3807
        %v3809 = vrot.slane %v3593, 6
        %v3810 = vsel %vm3745, %v3807, %v3809
        %v3811 = vrot.slane %v3594, 6
        %v3812 = vsel %vm3745, %v3809, %v3811
        %v3813 = vrot.slane %v3595, 6
        %v3814 = vsel %vm3745, %v3811, %v3813
        %v3815 = vrot.slane %v3596, 6
        %v3816 = vsel %vm3745, %v3813, %v3815
        %v3817 = vrot.slane %v3597, 6
        %v3818 = vsel %vm3745, %v3815, %v3817
        %v3819 = vrot.slane %v3598, 6
        %v3820 = vsel %vm3745, %v3817, %v3819
        %v3821 = vrot.slane %v3599, 6
        %v3822 = vsel %vm3745, %v3819, %v3821
        %v3823 = vrot.slane %v3600, 6
        %v3824 = vsel %vm3745, %v3821, %v3823
        %v3825 = vrot.slane %v3601, 6
        %v3826 = vsel %vm3745, %v3823, %v3825
        %v3827 = vrot.slane %v3602, 6
        %v3828 = vsel %vm3745, %v3825, %v3827
        %v3829 = vrot.slane %v3603, 6
        %v3830 = vsel %vm3745, %v3827, %v3829
        %v3831 = vrot.slane %v3604, 6
        %v3832 = vsel %vm3745, %v3829, %v3831
        %v3833 = vrot.slane %v3605, 6
        %v3834 = vsel %vm3745, %v3831, %v3833
        %v3835 = vrot.slane %v3606, 6
        %v3836 = vsel %vm3745, %v3833, %v3835
        %v3837 = vrot.slane %v3607, 6
        %v3838 = vsel %vm3745, %v3835, %v3837
        %v3839 = vrot.slane %v3608, 6
        %v3840 = vsel %vm3745, %v3837, %v3839
        %v3841 = vrot.slane %v3609, 6
        %v3842 = vsel %vm3745, %v3839, %v3841
        %v3843 = vrot.slane %v3610, 6
        %v3844 = vsel %vm3745, %v3841, %v3843
        %v3845 = vrot.slane %v3611, 6
        %v3846 = vsel %vm3745, %v3843, %v3845
        %v3847 = vrot.slane %v3612, 6
        %v3848 = vsel %vm3745, %v3845, %v3847
        %v3849 = vrot.slane %v3613, 6
        %v3850 = vsel %vm3745, %v3847, %v3849
        %v3851 = vrot.slane %v3614, 6
        %v3852 = vsel %vm3745, %v3849, %v3851
        %v3853 = vrot.slane %v3615, 6
        %v3854 = vsel %vm3745, %v3851, %v3853
        %v3855 = vrot.slane %v3616, 6
        %v3856 = vsel %vm3745, %v3853, %v3855
        %v3857 = vrot.slane %v3617, 6
        %v3858 = vsel %vm3745, %v3855, %v3857
        %v3859 = vrot.slane %v3618, 6
        %v3860 = vsel %vm3745, %v3857, %v3859
        %v3861 = vrot.slane %v3619, 6
        %v3862 = vsel %vm3745, %v3859, %v3861
        %v3863 = vrot.slane %v3620, 6
        %v3864 = vsel %vm3745, %v3861, %v3863
        %v3865 = vrot.slane %v3621, 6
        %v3866 = vsel %vm3745, %v3863, %v3865
        %v3867 = vrot.slane %v3622, 6
        %v3868 = vsel %vm3745, %v3865, %v3867
        %v3869 = vrot.slane %v3623, 6
        %v3870 = vsel %vm3745, %v3867, %v3869
        %v3871 = vrot.slane %v3624, 6
        %v3872 = vsel %vm3745, %v3869, %v3871
        %v3873 = vrot.slane %v3625, 6
        %v3874 = vsel %vm3745, %v3871, %v3873
        %v3875 = vrot.slane %v3626, 6
        %v3876 = vsel %vm3745, %v3873, %v3875
        %v3877 = vrot.slane %v3627, 6
        %v3878 = vsel %vm3745, %v3875, %v3877
        %v3879 = vrot.slane %v3628, 6
        %v3880 = vsel %vm3745, %v3877, %v3879
        %v3881 = vrot.slane %v3629, 6
        %v3882 = vsel %vm3745, %v3879, %v3881
        %v3883 = vrot.slane %v3630, 6
        %v3884 = vsel %vm3745, %v3881, %v3883
        %v3885 = vrot.slane %v3631, 6
        %v3886 = vsel %vm3745, %v3883, %v3885
        %v3887 = vrot.slane %v3632, 6
        %v3888 = vsel %vm3745, %v3885, %v3887
        %v3889 = vrot.slane %v3633, 6
        %v3890 = vsel %vm3745, %v3887, %v3889
        %v3891 = vrot.slane %v3634, 6
        %v3892 = vsel %vm3745, %v3889, %v3891
        %v3893 = vrot.slane %v3635, 6
        %v3894 = vsel %vm3745, %v3891, %v3893
        %v3895 = vrot.slane %v3636, 6
        %v3896 = vsel %vm3745, %v3893, %v3895
        %v3897 = vrot.slane %v3637, 6
        %v3898 = vsel %vm3745, %v3895, %v3897
        %v3899 = vrot.slane %v3638, 6
        %v3900 = vsel %vm3745, %v3897, %v3899
        %v3901 = vrot.slane %v3639, 6
        %v3902 = vsel %vm3745, %v3899, %v3901
        %v3903 = vrot.slane %v3640, 6
        %v3904 = vsel %vm3745, %v3901, %v3903
        %v3905 = vrot.slane %v3641, 6
        %v3906 = vsel %vm3745, %v3903, %v3905
        %v3907 = vrot.slane %v3642, 6
        %v3908 = vsel %vm3745, %v3905, %v3907
        %v3909 = vrot.slane %v3643, 6
        %v3910 = vsel %vm3745, %v3907, %v3909
        %v3911 = vrot.slane %v3644, 6
        %v3912 = vsel %vm3745, %v3909, %v3911
        %v3913 = vrot.slane %v3645, 6
        %v3914 = vsel %vm3745, %v3911, %v3913
        %v3915 = vrot.slane %v3646, 6
        %v3916 = vsel %vm3745, %v3913, %v3915
        %v3917 = vrot.slane %v3647, 6
        %v3918 = vsel %vm3745, %v3915, %v3917
        %v3919 = vrot.slane %v3648, 6
        %v3920 = vsel %vm3745, %v3917, %v3919
        %v3921 = vrot.slane %v3649, 6
        %v3922 = vsel %vm3745, %v3919, %v3921
        %v3923 = vrot.slane %v3650, 6
        %v3924 = vsel %vm3745, %v3921, %v3923
        %v3925 = vrot.slane %v3651, 6
        %v3926 = vsel %vm3745, %v3923, %v3925
        %v3927 = vrot.slane %v3652, 6
        %v3928 = vsel %vm3745, %v3925, %v3927
        %v4020 = vadd.f32 %v3466, %v3748
        %v4021 = vadd.f32 %v3467, %v3750
        %v4022 = vadd.f32 %v3468, %v3752
        %v4023 = vadd.f32 %v3469, %v3754
        %v4024 = vadd.f32 %v3470, %v3756
        %v4025 = vadd.f32 %v3471, %v3758
        %v4026 = vadd.f32 %v3472, %v3760
        %v4027 = vadd.f32 %v3473, %v3762
        %v4028 = vadd.f32 %v3474, %v3764
        %v4029 = vadd.f32 %v3475, %v3766
        %v4030 = vadd.f32 %v3476, %v3768
        %v4031 = vadd.f32 %v3477, %v3770
        %v4032 = vadd.f32 %v3478, %v3772
        %v4033 = vadd.f32 %v3479, %v3774
        %v4034 = vadd.f32 %v3480, %v3776
        %v4035 = vadd.f32 %v3481, %v3778
        %v4036 = vadd.f32 %v3482, %v3780
        %v4037 = vadd.f32 %v3483, %v3782
        %v4038 = vadd.f32 %v3484, %v3784
        %v4039 = vadd.f32 %v3485, %v3786
        %v4040 = vadd.f32 %v3486, %v3788
        %v4041 = vadd.f32 %v3487, %v3790
        %v4042 = vadd.f32 %v3488, %v3792
        %v4043 = vadd.f32 %v3489, %v3794
        %v4044 = vadd.f32 %v3490, %v3796
        %v4045 = vadd.f32 %v3491, %v3798
        %v4046 = vadd.f32 %v3492, %v3800
        %v4047 = vadd.f32 %v3493, %v3802
        %v4048 = vadd.f32 %v3494, %v3804
        %v4049 = vadd.f32 %v3495, %v3806
        %v4050 = vadd.f32 %v3496, %v3808
        %v4051 = vadd.f32 %v3497, %v3810
        %v4052 = vadd.f32 %v3498, %v3812
        %v4053 = vadd.f32 %v3499, %v3814
        %v4054 = vadd.f32 %v3500, %v3816
        %v4055 = vadd.f32 %v3501, %v3818
        %v4056 = vadd.f32 %v3502, %v3820
        %v4057 = vadd.f32 %v3503, %v3822
        %v4058 = vadd.f32 %v3504, %v3824
        %v4059 = vadd.f32 %v3505, %v3826
        %v4060 = vadd.f32 %v3506, %v3828
        %v4061 = vadd.f32 %v3507, %v3830
        %v4062 = vadd.f32 %v3508, %v3832
        %v4063 = vadd.f32 %v3509, %v3834
        %v4064 = vadd.f32 %v3510, %v3836
        %v4065 = vadd.f32 %v3511, %v3838
        %v4066 = vadd.f32 %v3512, %v3840
        %v4067 = vadd.f32 %v3513, %v3842
        %v4068 = vadd.f32 %v3514, %v3844
        %v4069 = vadd.f32 %v3515, %v3846
        %v4070 = vadd.f32 %v3516, %v3848
        %v4071 = vadd.f32 %v3517, %v3850
        %v4072 = vadd.f32 %v3518, %v3852
        %v4073 = vadd.f32 %v3519, %v3854
        %v4074 = vadd.f32 %v3520, %v3856
        %v4075 = vadd.f32 %v3521, %v3858
        %v4076 = vadd.f32 %v3522, %v3860
        %v4077 = vadd.f32 %v3523, %v3862
        %v4078 = vadd.f32 %v3524, %v3864
        %v4079 = vadd.f32 %v3525, %v3866
        %v4080 = vadd.f32 %v3526, %v3868
        %v4081 = vadd.f32 %v3527, %v3870
        %v4082 = vadd.f32 %v3528, %v3872
        %v4083 = vadd.f32 %v3529, %v3874
        %v4084 = vadd.f32 %v3530, %v3876
        %v4085 = vadd.f32 %v3531, %v3878
        %v4086 = vadd.f32 %v3532, %v3880
        %v4087 = vadd.f32 %v3533, %v3882
        %v4088 = vadd.f32 %v3534, %v3884
        %v4089 = vadd.f32 %v3535, %v3886
        %v4090 = vadd.f32 %v3536, %v3888
        %v4091 = vadd.f32 %v3537, %v3890
        %v4092 = vadd.f32 %v3538, %v3892
        %v4093 = vadd.f32 %v3539, %v3894
        %v4094 = vadd.f32 %v3540, %v3896
        %v4095 = vadd.f32 %v3541, %v3898
        %v4096 = vadd.f32 %v3542, %v3900
        %v4097 = vadd.f32 %v3543, %v3902
        %v4098 = vadd.f32 %v3544, %v3904
        %v4099 = vadd.f32 %v3545, %v3906
        %v4100 = vadd.f32 %v3546, %v3908
        %v4101 = vadd.f32 %v3547, %v3910
        %v4102 = vadd.f32 %v3548, %v3912
        %v4103 = vadd.f32 %v3549, %v3914
        %v4104 = vadd.f32 %v3550, %v3916
        %v4105 = vadd.f32 %v3551, %v3918
        %v4106 = vadd.f32 %v3552, %v3920
        %v4107 = vadd.f32 %v3553, %v3922
        %v4108 = vadd.f32 %v3554, %v3924
        %v4109 = vadd.f32 %v3555, %v3926
        %v4110 = vadd.f32 %v3556, %v3928
        %4112 = vset.pattern.permute.xlu0 0
        %4113 = vperm.xlu0 %4112, %v677
        %v4114 = vpop.permute.xlu0 %4113
        %4117 = vset.pattern.permute.xlu0 0
        %4118 = vperm.xlu0 %4117, %v678
        %v4119 = vpop.permute.xlu0 %4118
        %4122 = vset.pattern.permute.xlu0 0
        %4123 = vperm.xlu0 %4122, %v679
        %v4124 = vpop.permute.xlu0 %4123
        %v4126 = vlaneseq
        %v4127 = vshrl.u32 %v4126, 7
        %v4128 = vsub.s32 6, %v4127
        %v4129 = vrot.slane %v466, %v4128
        %v4130 = vmul.f32 %v718, %v4129
        %v4131 = vmul.f32 %v723, %v4129
        %v4132 = vmul.f32 %v728, %v4129
        %v4133 = vmul.f32 %v733, %v4129
        %v4134 = vmul.f32 %v738, %v4129
        %v4135 = vmul.f32 %v743, %v4129
        %v4136 = vmul.f32 %v748, %v4129
        %v4137 = vmul.f32 %v753, %v4129
        %v4138 = vmul.f32 %v758, %v4129
        %v4139 = vmul.f32 %v763, %v4129
        %v4140 = vmul.f32 %v768, %v4129
        %v4141 = vmul.f32 %v773, %v4129
        %v4142 = vmul.f32 %v778, %v4129
        %v4143 = vmul.f32 %v783, %v4129
        %v4144 = vmul.f32 %v788, %v4129
        %v4145 = vmul.f32 %v793, %v4129
        %v4146 = vmul.f32 %v798, %v4129
        %v4147 = vmul.f32 %v803, %v4129
        %v4148 = vmul.f32 %v808, %v4129
        %v4149 = vmul.f32 %v813, %v4129
        %v4150 = vmul.f32 %v818, %v4129
        %v4151 = vmul.f32 %v823, %v4129
        %v4152 = vmul.f32 %v828, %v4129
        %v4153 = vmul.f32 %v833, %v4129
        %v4154 = vmul.f32 %v838, %v4129
        %v4155 = vmul.f32 %v843, %v4129
        %v4156 = vmul.f32 %v848, %v4129
        %v4157 = vmul.f32 %v853, %v4129
        %v4158 = vmul.f32 %v858, %v4129
        %v4159 = vmul.f32 %v863, %v4129
        %v4160 = vmul.f32 %v868, %v4129
        %v4161 = vmul.f32 %v873, %v4129
        %v4162 = vmul.f32 %v878, %v4129
        %v4163 = vmul.f32 %v883, %v4129
        %v4164 = vmul.f32 %v888, %v4129
        %v4165 = vmul.f32 %v893, %v4129
        %v4166 = vmul.f32 %v898, %v4129
        %v4167 = vmul.f32 %v903, %v4129
        %v4168 = vmul.f32 %v908, %v4129
        %v4169 = vmul.f32 %v913, %v4129
        %v4170 = vmul.f32 %v918, %v4129
        %v4171 = vmul.f32 %v923, %v4129
        %v4172 = vmul.f32 %v928, %v4129
        %v4173 = vmul.f32 %v933, %v4129
        %v4174 = vmul.f32 %v938, %v4129
        %v4175 = vmul.f32 %v943, %v4129
        %v4176 = vmul.f32 %v948, %v4129
        %v4177 = vmul.f32 %v953, %v4129
        %v4178 = vmul.f32 %v958, %v4129
        %v4179 = vmul.f32 %v963, %v4129
        %v4180 = vmul.f32 %v968, %v4129
        %v4181 = vmul.f32 %v973, %v4129
        %v4182 = vmul.f32 %v978, %v4129
        %v4183 = vmul.f32 %v983, %v4129
        %v4184 = vmul.f32 %v988, %v4129
        %v4185 = vmul.f32 %v993, %v4129
        %v4186 = vmul.f32 %v998, %v4129
        %v4187 = vmul.f32 %v1003, %v4129
        %v4188 = vmul.f32 %v1008, %v4129
        %v4189 = vmul.f32 %v1013, %v4129
        %v4190 = vmul.f32 %v1018, %v4129
        %v4191 = vmul.f32 %v1023, %v4129
        %v4192 = vmul.f32 %v1028, %v4129
        %v4193 = vmul.f32 %v1033, %v4129
        %v4194 = vmul.f32 %v1038, %v4129
        %v4195 = vmul.f32 %v1043, %v4129
        %v4196 = vmul.f32 %v1048, %v4129
        %v4197 = vmul.f32 %v1053, %v4129
        %v4198 = vmul.f32 %v1058, %v4129
        %v4199 = vmul.f32 %v1063, %v4129
        %v4200 = vmul.f32 %v1068, %v4129
        %v4201 = vmul.f32 %v1073, %v4129
        %v4202 = vmul.f32 %v1078, %v4129
        %v4203 = vmul.f32 %v1083, %v4129
        %v4204 = vmul.f32 %v1088, %v4129
        %v4205 = vmul.f32 %v1093, %v4129
        %v4206 = vmul.f32 %v1098, %v4129
        %v4207 = vmul.f32 %v1103, %v4129
        %v4208 = vmul.f32 %v1108, %v4129
        %v4209 = vmul.f32 %v1113, %v4129
        %v4210 = vmul.f32 %v1118, %v4129
        %v4211 = vmul.f32 %v1123, %v4129
        %v4212 = vmul.f32 %v1128, %v4129
        %v4213 = vmul.f32 %v1133, %v4129
        %v4214 = vmul.f32 %v1324, %v4129
        %v4215 = vmul.f32 %v2437, %v4129
        %v4216 = vmul.f32 %v2442, %v4129
        %v4217 = vmul.f32 %v2447, %v4129
        %v4218 = vmul.f32 %v4114, %v4129
        %v4219 = vmul.f32 %v4119, %v4129
        %v4220 = vmul.f32 %v4124, %v4129
        %v4221 = vadd.f32 %v4020, %v4130
        %v4222 = vadd.f32 %v4021, %v4131
        %v4223 = vadd.f32 %v4022, %v4132
        %v4224 = vadd.f32 %v4023, %v4133
        %v4225 = vadd.f32 %v4024, %v4134
        %v4226 = vadd.f32 %v4025, %v4135
        %v4227 = vadd.f32 %v4026, %v4136
        %v4228 = vadd.f32 %v4027, %v4137
        %v4229 = vadd.f32 %v4028, %v4138
        %v4230 = vadd.f32 %v4029, %v4139
        %v4231 = vadd.f32 %v4030, %v4140
        %v4232 = vadd.f32 %v4031, %v4141
        %v4233 = vadd.f32 %v4032, %v4142
        %v4234 = vadd.f32 %v4033, %v4143
        %v4235 = vadd.f32 %v4034, %v4144
        %v4236 = vadd.f32 %v4035, %v4145
        %v4237 = vadd.f32 %v4036, %v4146
        %v4238 = vadd.f32 %v4037, %v4147
        %v4239 = vadd.f32 %v4038, %v4148
        %v4240 = vadd.f32 %v4039, %v4149
        %v4241 = vadd.f32 %v4040, %v4150
        %v4242 = vadd.f32 %v4041, %v4151
        %v4243 = vadd.f32 %v4042, %v4152
        %v4244 = vadd.f32 %v4043, %v4153
        %v4245 = vadd.f32 %v4044, %v4154
        %v4246 = vadd.f32 %v4045, %v4155
        %v4247 = vadd.f32 %v4046, %v4156
        %v4248 = vadd.f32 %v4047, %v4157
        %v4249 = vadd.f32 %v4048, %v4158
        %v4250 = vadd.f32 %v4049, %v4159
        %v4251 = vadd.f32 %v4050, %v4160
        %v4252 = vadd.f32 %v4051, %v4161
        %v4253 = vadd.f32 %v4052, %v4162
        %v4254 = vadd.f32 %v4053, %v4163
        %v4255 = vadd.f32 %v4054, %v4164
        %v4256 = vadd.f32 %v4055, %v4165
        %v4257 = vadd.f32 %v4056, %v4166
        %v4258 = vadd.f32 %v4057, %v4167
        %v4259 = vadd.f32 %v4058, %v4168
        %v4260 = vadd.f32 %v4059, %v4169
        %v4261 = vadd.f32 %v4060, %v4170
        %v4262 = vadd.f32 %v4061, %v4171
        %v4263 = vadd.f32 %v4062, %v4172
        %v4264 = vadd.f32 %v4063, %v4173
        %v4265 = vadd.f32 %v4064, %v4174
        %v4266 = vadd.f32 %v4065, %v4175
        %v4267 = vadd.f32 %v4066, %v4176
        %v4268 = vadd.f32 %v4067, %v4177
        %v4269 = vadd.f32 %v4068, %v4178
        %v4270 = vadd.f32 %v4069, %v4179
        %v4271 = vadd.f32 %v4070, %v4180
        %v4272 = vadd.f32 %v4071, %v4181
        %v4273 = vadd.f32 %v4072, %v4182
        %v4274 = vadd.f32 %v4073, %v4183
        %v4275 = vadd.f32 %v4074, %v4184
        %v4276 = vadd.f32 %v4075, %v4185
        %v4277 = vadd.f32 %v4076, %v4186
        %v4278 = vadd.f32 %v4077, %v4187
        %v4279 = vadd.f32 %v4078, %v4188
        %v4280 = vadd.f32 %v4079, %v4189
        %v4281 = vadd.f32 %v4080, %v4190
        %v4282 = vadd.f32 %v4081, %v4191
        %v4283 = vadd.f32 %v4082, %v4192
        %v4284 = vadd.f32 %v4083, %v4193
        %v4285 = vadd.f32 %v4084, %v4194
        %v4286 = vadd.f32 %v4085, %v4195
        %v4287 = vadd.f32 %v4086, %v4196
        %v4288 = vadd.f32 %v4087, %v4197
        %v4289 = vadd.f32 %v4088, %v4198
        %v4290 = vadd.f32 %v4089, %v4199
        %v4291 = vadd.f32 %v4090, %v4200
        %v4292 = vadd.f32 %v4091, %v4201
        %v4293 = vadd.f32 %v4092, %v4202
        %v4294 = vadd.f32 %v4093, %v4203
        %v4295 = vadd.f32 %v4094, %v4204
        %v4296 = vadd.f32 %v4095, %v4205
        %v4297 = vadd.f32 %v4096, %v4206
        %v4298 = vadd.f32 %v4097, %v4207
        %v4299 = vadd.f32 %v4098, %v4208
        %v4300 = vadd.f32 %v4099, %v4209
        %v4301 = vadd.f32 %v4100, %v4210
        %v4302 = vadd.f32 %v4101, %v4211
        %v4303 = vadd.f32 %v4102, %v4212
        %v4304 = vadd.f32 %v4103, %v4213
        %v4305 = vadd.f32 %v4104, %v4214
        %v4306 = vadd.f32 %v4105, %v4215
        %v4307 = vadd.f32 %v4106, %v4216
        %v4308 = vadd.f32 %v4107, %v4217
        %v4309 = vadd.f32 %v4108, %v4218
        %v4310 = vadd.f32 %v4109, %v4219
        %v4311 = vadd.f32 %v4110, %v4220
        %4313 = vset.pattern.permute.xlu0 0
        %4314 = vperm.xlu0 %4313, 0.0
        %v4315 = vpop.permute.xlu0 %4314
        %v4317 = vlaneseq
        %v4318 = vshrl.u32 %v4317, 7
        %v4319 = vsub.s32 7, %v4318
        %v4320 = vrot.slane %v466, %v4319
        %v4321 = vmul.f32 %v718, %v4320
        %v4322 = vmul.f32 %v723, %v4320
        %v4323 = vmul.f32 %v728, %v4320
        %v4324 = vmul.f32 %v733, %v4320
        %v4325 = vmul.f32 %v738, %v4320
        %v4326 = vmul.f32 %v743, %v4320
        %v4327 = vmul.f32 %v748, %v4320
        %v4328 = vmul.f32 %v753, %v4320
        %v4329 = vmul.f32 %v758, %v4320
        %v4330 = vmul.f32 %v763, %v4320
        %v4331 = vmul.f32 %v768, %v4320
        %v4332 = vmul.f32 %v773, %v4320
        %v4333 = vmul.f32 %v778, %v4320
        %v4334 = vmul.f32 %v783, %v4320
        %v4335 = vmul.f32 %v788, %v4320
        %v4336 = vmul.f32 %v793, %v4320
        %v4337 = vmul.f32 %v798, %v4320
        %v4338 = vmul.f32 %v803, %v4320
        %v4339 = vmul.f32 %v808, %v4320
        %v4340 = vmul.f32 %v813, %v4320
        %v4341 = vmul.f32 %v818, %v4320
        %v4342 = vmul.f32 %v823, %v4320
        %v4343 = vmul.f32 %v828, %v4320
        %v4344 = vmul.f32 %v833, %v4320
        %v4345 = vmul.f32 %v838, %v4320
        %v4346 = vmul.f32 %v843, %v4320
        %v4347 = vmul.f32 %v848, %v4320
        %v4348 = vmul.f32 %v853, %v4320
        %v4349 = vmul.f32 %v858, %v4320
        %v4350 = vmul.f32 %v863, %v4320
        %v4351 = vmul.f32 %v868, %v4320
        %v4352 = vmul.f32 %v873, %v4320
        %v4353 = vmul.f32 %v878, %v4320
        %v4354 = vmul.f32 %v883, %v4320
        %v4355 = vmul.f32 %v888, %v4320
        %v4356 = vmul.f32 %v893, %v4320
        %v4357 = vmul.f32 %v898, %v4320
        %v4358 = vmul.f32 %v903, %v4320
        %v4359 = vmul.f32 %v908, %v4320
        %v4360 = vmul.f32 %v913, %v4320
        %v4361 = vmul.f32 %v918, %v4320
        %v4362 = vmul.f32 %v923, %v4320
        %v4363 = vmul.f32 %v928, %v4320
        %v4364 = vmul.f32 %v933, %v4320
        %v4365 = vmul.f32 %v938, %v4320
        %v4366 = vmul.f32 %v943, %v4320
        %v4367 = vmul.f32 %v948, %v4320
        %v4368 = vmul.f32 %v953, %v4320
        %v4369 = vmul.f32 %v958, %v4320
        %v4370 = vmul.f32 %v963, %v4320
        %v4371 = vmul.f32 %v968, %v4320
        %v4372 = vmul.f32 %v973, %v4320
        %v4373 = vmul.f32 %v978, %v4320
        %v4374 = vmul.f32 %v983, %v4320
        %v4375 = vmul.f32 %v988, %v4320
        %v4376 = vmul.f32 %v993, %v4320
        %v4377 = vmul.f32 %v998, %v4320
        %v4378 = vmul.f32 %v1003, %v4320
        %v4379 = vmul.f32 %v1008, %v4320
        %v4380 = vmul.f32 %v1013, %v4320
        %v4381 = vmul.f32 %v1018, %v4320
        %v4382 = vmul.f32 %v1023, %v4320
        %v4383 = vmul.f32 %v1028, %v4320
        %v4384 = vmul.f32 %v1033, %v4320
        %v4385 = vmul.f32 %v1038, %v4320
        %v4386 = vmul.f32 %v1043, %v4320
        %v4387 = vmul.f32 %v1048, %v4320
        %v4388 = vmul.f32 %v1053, %v4320
        %v4389 = vmul.f32 %v1058, %v4320
        %v4390 = vmul.f32 %v1063, %v4320
        %v4391 = vmul.f32 %v1068, %v4320
        %v4392 = vmul.f32 %v1073, %v4320
        %v4393 = vmul.f32 %v1078, %v4320
        %v4394 = vmul.f32 %v1083, %v4320
        %v4395 = vmul.f32 %v1088, %v4320
        %v4396 = vmul.f32 %v1093, %v4320
        %v4397 = vmul.f32 %v1098, %v4320
        %v4398 = vmul.f32 %v1103, %v4320
        %v4399 = vmul.f32 %v1108, %v4320
        %v4400 = vmul.f32 %v1113, %v4320
        %v4401 = vmul.f32 %v1118, %v4320
        %v4402 = vmul.f32 %v1123, %v4320
        %v4403 = vmul.f32 %v1128, %v4320
        %v4404 = vmul.f32 %v1133, %v4320
        %v4405 = vmul.f32 %v1324, %v4320
        %v4406 = vmul.f32 %v2437, %v4320
        %v4407 = vmul.f32 %v2442, %v4320
        %v4408 = vmul.f32 %v2447, %v4320
        %v4409 = vmul.f32 %v4114, %v4320
        %v4410 = vmul.f32 %v4119, %v4320
        %v4411 = vmul.f32 %v4124, %v4320
        %v4412 = vmul.f32 %v4315, %v4320
        %v4505 = vrot.slane %v4321, 1
        %v4506 = vrot.slane %v4322, 1
        %v4507 = vsel %vm1514, %v4505, %v4506
        %v4508 = vrot.slane %v4323, 1
        %v4509 = vsel %vm1514, %v4506, %v4508
        %v4510 = vrot.slane %v4324, 1
        %v4511 = vsel %vm1514, %v4508, %v4510
        %v4512 = vrot.slane %v4325, 1
        %v4513 = vsel %vm1514, %v4510, %v4512
        %v4514 = vrot.slane %v4326, 1
        %v4515 = vsel %vm1514, %v4512, %v4514
        %v4516 = vrot.slane %v4327, 1
        %v4517 = vsel %vm1514, %v4514, %v4516
        %v4518 = vrot.slane %v4328, 1
        %v4519 = vsel %vm1514, %v4516, %v4518
        %v4520 = vrot.slane %v4329, 1
        %v4521 = vsel %vm1514, %v4518, %v4520
        %v4522 = vrot.slane %v4330, 1
        %v4523 = vsel %vm1514, %v4520, %v4522
        %v4524 = vrot.slane %v4331, 1
        %v4525 = vsel %vm1514, %v4522, %v4524
        %v4526 = vrot.slane %v4332, 1
        %v4527 = vsel %vm1514, %v4524, %v4526
        %v4528 = vrot.slane %v4333, 1
        %v4529 = vsel %vm1514, %v4526, %v4528
        %v4530 = vrot.slane %v4334, 1
        %v4531 = vsel %vm1514, %v4528, %v4530
        %v4532 = vrot.slane %v4335, 1
        %v4533 = vsel %vm1514, %v4530, %v4532
        %v4534 = vrot.slane %v4336, 1
        %v4535 = vsel %vm1514, %v4532, %v4534
        %v4536 = vrot.slane %v4337, 1
        %v4537 = vsel %vm1514, %v4534, %v4536
        %v4538 = vrot.slane %v4338, 1
        %v4539 = vsel %vm1514, %v4536, %v4538
        %v4540 = vrot.slane %v4339, 1
        %v4541 = vsel %vm1514, %v4538, %v4540
        %v4542 = vrot.slane %v4340, 1
        %v4543 = vsel %vm1514, %v4540, %v4542
        %v4544 = vrot.slane %v4341, 1
        %v4545 = vsel %vm1514, %v4542, %v4544
        %v4546 = vrot.slane %v4342, 1
        %v4547 = vsel %vm1514, %v4544, %v4546
        %v4548 = vrot.slane %v4343, 1
        %v4549 = vsel %vm1514, %v4546, %v4548
        %v4550 = vrot.slane %v4344, 1
        %v4551 = vsel %vm1514, %v4548, %v4550
        %v4552 = vrot.slane %v4345, 1
        %v4553 = vsel %vm1514, %v4550, %v4552
        %v4554 = vrot.slane %v4346, 1
        %v4555 = vsel %vm1514, %v4552, %v4554
        %v4556 = vrot.slane %v4347, 1
        %v4557 = vsel %vm1514, %v4554, %v4556
        %v4558 = vrot.slane %v4348, 1
        %v4559 = vsel %vm1514, %v4556, %v4558
        %v4560 = vrot.slane %v4349, 1
        %v4561 = vsel %vm1514, %v4558, %v4560
        %v4562 = vrot.slane %v4350, 1
        %v4563 = vsel %vm1514, %v4560, %v4562
        %v4564 = vrot.slane %v4351, 1
        %v4565 = vsel %vm1514, %v4562, %v4564
        %v4566 = vrot.slane %v4352, 1
        %v4567 = vsel %vm1514, %v4564, %v4566
        %v4568 = vrot.slane %v4353, 1
        %v4569 = vsel %vm1514, %v4566, %v4568
        %v4570 = vrot.slane %v4354, 1
        %v4571 = vsel %vm1514, %v4568, %v4570
        %v4572 = vrot.slane %v4355, 1
        %v4573 = vsel %vm1514, %v4570, %v4572
        %v4574 = vrot.slane %v4356, 1
        %v4575 = vsel %vm1514, %v4572, %v4574
        %v4576 = vrot.slane %v4357, 1
        %v4577 = vsel %vm1514, %v4574, %v4576
        %v4578 = vrot.slane %v4358, 1
        %v4579 = vsel %vm1514, %v4576, %v4578
        %v4580 = vrot.slane %v4359, 1
        %v4581 = vsel %vm1514, %v4578, %v4580
        %v4582 = vrot.slane %v4360, 1
        %v4583 = vsel %vm1514, %v4580, %v4582
        %v4584 = vrot.slane %v4361, 1
        %v4585 = vsel %vm1514, %v4582, %v4584
        %v4586 = vrot.slane %v4362, 1
        %v4587 = vsel %vm1514, %v4584, %v4586
        %v4588 = vrot.slane %v4363, 1
        %v4589 = vsel %vm1514, %v4586, %v4588
        %v4590 = vrot.slane %v4364, 1
        %v4591 = vsel %vm1514, %v4588, %v4590
        %v4592 = vrot.slane %v4365, 1
        %v4593 = vsel %vm1514, %v4590, %v4592
        %v4594 = vrot.slane %v4366, 1
        %v4595 = vsel %vm1514, %v4592, %v4594
        %v4596 = vrot.slane %v4367, 1
        %v4597 = vsel %vm1514, %v4594, %v4596
        %v4598 = vrot.slane %v4368, 1
        %v4599 = vsel %vm1514, %v4596, %v4598
        %v4600 = vrot.slane %v4369, 1
        %v4601 = vsel %vm1514, %v4598, %v4600
        %v4602 = vrot.slane %v4370, 1
        %v4603 = vsel %vm1514, %v4600, %v4602
        %v4604 = vrot.slane %v4371, 1
        %v4605 = vsel %vm1514, %v4602, %v4604
        %v4606 = vrot.slane %v4372, 1
        %v4607 = vsel %vm1514, %v4604, %v4606
        %v4608 = vrot.slane %v4373, 1
        %v4609 = vsel %vm1514, %v4606, %v4608
        %v4610 = vrot.slane %v4374, 1
        %v4611 = vsel %vm1514, %v4608, %v4610
        %v4612 = vrot.slane %v4375, 1
        %v4613 = vsel %vm1514, %v4610, %v4612
        %v4614 = vrot.slane %v4376, 1
        %v4615 = vsel %vm1514, %v4612, %v4614
        %v4616 = vrot.slane %v4377, 1
        %v4617 = vsel %vm1514, %v4614, %v4616
        %v4618 = vrot.slane %v4378, 1
        %v4619 = vsel %vm1514, %v4616, %v4618
        %v4620 = vrot.slane %v4379, 1
        %v4621 = vsel %vm1514, %v4618, %v4620
        %v4622 = vrot.slane %v4380, 1
        %v4623 = vsel %vm1514, %v4620, %v4622
        %v4624 = vrot.slane %v4381, 1
        %v4625 = vsel %vm1514, %v4622, %v4624
        %v4626 = vrot.slane %v4382, 1
        %v4627 = vsel %vm1514, %v4624, %v4626
        %v4628 = vrot.slane %v4383, 1
        %v4629 = vsel %vm1514, %v4626, %v4628
        %v4630 = vrot.slane %v4384, 1
        %v4631 = vsel %vm1514, %v4628, %v4630
        %v4632 = vrot.slane %v4385, 1
        %v4633 = vsel %vm1514, %v4630, %v4632
        %v4634 = vrot.slane %v4386, 1
        %v4635 = vsel %vm1514, %v4632, %v4634
        %v4636 = vrot.slane %v4387, 1
        %v4637 = vsel %vm1514, %v4634, %v4636
        %v4638 = vrot.slane %v4388, 1
        %v4639 = vsel %vm1514, %v4636, %v4638
        %v4640 = vrot.slane %v4389, 1
        %v4641 = vsel %vm1514, %v4638, %v4640
        %v4642 = vrot.slane %v4390, 1
        %v4643 = vsel %vm1514, %v4640, %v4642
        %v4644 = vrot.slane %v4391, 1
        %v4645 = vsel %vm1514, %v4642, %v4644
        %v4646 = vrot.slane %v4392, 1
        %v4647 = vsel %vm1514, %v4644, %v4646
        %v4648 = vrot.slane %v4393, 1
        %v4649 = vsel %vm1514, %v4646, %v4648
        %v4650 = vrot.slane %v4394, 1
        %v4651 = vsel %vm1514, %v4648, %v4650
        %v4652 = vrot.slane %v4395, 1
        %v4653 = vsel %vm1514, %v4650, %v4652
        %v4654 = vrot.slane %v4396, 1
        %v4655 = vsel %vm1514, %v4652, %v4654
        %v4656 = vrot.slane %v4397, 1
        %v4657 = vsel %vm1514, %v4654, %v4656
        %v4658 = vrot.slane %v4398, 1
        %v4659 = vsel %vm1514, %v4656, %v4658
        %v4660 = vrot.slane %v4399, 1
        %v4661 = vsel %vm1514, %v4658, %v4660
        %v4662 = vrot.slane %v4400, 1
        %v4663 = vsel %vm1514, %v4660, %v4662
        %v4664 = vrot.slane %v4401, 1
        %v4665 = vsel %vm1514, %v4662, %v4664
        %v4666 = vrot.slane %v4402, 1
        %v4667 = vsel %vm1514, %v4664, %v4666
        %v4668 = vrot.slane %v4403, 1
        %v4669 = vsel %vm1514, %v4666, %v4668
        %v4670 = vrot.slane %v4404, 1
        %v4671 = vsel %vm1514, %v4668, %v4670
        %v4672 = vrot.slane %v4405, 1
        %v4673 = vsel %vm1514, %v4670, %v4672
        %v4674 = vrot.slane %v4406, 1
        %v4675 = vsel %vm1514, %v4672, %v4674
        %v4676 = vrot.slane %v4407, 1
        %v4677 = vsel %vm1514, %v4674, %v4676
        %v4678 = vrot.slane %v4408, 1
        %v4679 = vsel %vm1514, %v4676, %v4678
        %v4680 = vrot.slane %v4409, 1
        %v4681 = vsel %vm1514, %v4678, %v4680
        %v4682 = vrot.slane %v4410, 1
        %v4683 = vsel %vm1514, %v4680, %v4682
        %v4684 = vrot.slane %v4411, 1
        %v4685 = vsel %vm1514, %v4682, %v4684
        %v4686 = vrot.slane %v4412, 1
        %v4687 = vsel %vm1514, %v4684, %v4686
        %v4779 = vadd.f32 %v4221, %v4507
        %v4780 = vadd.f32 %v4222, %v4509
        %v4781 = vadd.f32 %v4223, %v4511
        %v4782 = vadd.f32 %v4224, %v4513
        %v4783 = vadd.f32 %v4225, %v4515
        %v4784 = vadd.f32 %v4226, %v4517
        %v4785 = vadd.f32 %v4227, %v4519
        %v4786 = vadd.f32 %v4228, %v4521
        %v4787 = vadd.f32 %v4229, %v4523
        %v4788 = vadd.f32 %v4230, %v4525
        %v4789 = vadd.f32 %v4231, %v4527
        %v4790 = vadd.f32 %v4232, %v4529
        %v4791 = vadd.f32 %v4233, %v4531
        %v4792 = vadd.f32 %v4234, %v4533
        %v4793 = vadd.f32 %v4235, %v4535
        %v4794 = vadd.f32 %v4236, %v4537
        %v4795 = vadd.f32 %v4237, %v4539
        %v4796 = vadd.f32 %v4238, %v4541
        %v4797 = vadd.f32 %v4239, %v4543
        %v4798 = vadd.f32 %v4240, %v4545
        %v4799 = vadd.f32 %v4241, %v4547
        %v4800 = vadd.f32 %v4242, %v4549
        %v4801 = vadd.f32 %v4243, %v4551
        %v4802 = vadd.f32 %v4244, %v4553
        %v4803 = vadd.f32 %v4245, %v4555
        %v4804 = vadd.f32 %v4246, %v4557
        %v4805 = vadd.f32 %v4247, %v4559
        %v4806 = vadd.f32 %v4248, %v4561
        %v4807 = vadd.f32 %v4249, %v4563
        %v4808 = vadd.f32 %v4250, %v4565
        %v4809 = vadd.f32 %v4251, %v4567
        %v4810 = vadd.f32 %v4252, %v4569
        %v4811 = vadd.f32 %v4253, %v4571
        %v4812 = vadd.f32 %v4254, %v4573
        %v4813 = vadd.f32 %v4255, %v4575
        %v4814 = vadd.f32 %v4256, %v4577
        %v4815 = vadd.f32 %v4257, %v4579
        %v4816 = vadd.f32 %v4258, %v4581
        %v4817 = vadd.f32 %v4259, %v4583
        %v4818 = vadd.f32 %v4260, %v4585
        %v4819 = vadd.f32 %v4261, %v4587
        %v4820 = vadd.f32 %v4262, %v4589
        %v4821 = vadd.f32 %v4263, %v4591
        %v4822 = vadd.f32 %v4264, %v4593
        %v4823 = vadd.f32 %v4265, %v4595
        %v4824 = vadd.f32 %v4266, %v4597
        %v4825 = vadd.f32 %v4267, %v4599
        %v4826 = vadd.f32 %v4268, %v4601
        %v4827 = vadd.f32 %v4269, %v4603
        %v4828 = vadd.f32 %v4270, %v4605
        %v4829 = vadd.f32 %v4271, %v4607
        %v4830 = vadd.f32 %v4272, %v4609
        %v4831 = vadd.f32 %v4273, %v4611
        %v4832 = vadd.f32 %v4274, %v4613
        %v4833 = vadd.f32 %v4275, %v4615
        %v4834 = vadd.f32 %v4276, %v4617
        %v4835 = vadd.f32 %v4277, %v4619
        %v4836 = vadd.f32 %v4278, %v4621
        %v4837 = vadd.f32 %v4279, %v4623
        %v4838 = vadd.f32 %v4280, %v4625
        %v4839 = vadd.f32 %v4281, %v4627
        %v4840 = vadd.f32 %v4282, %v4629
        %v4841 = vadd.f32 %v4283, %v4631
        %v4842 = vadd.f32 %v4284, %v4633
        %v4843 = vadd.f32 %v4285, %v4635
        %v4844 = vadd.f32 %v4286, %v4637
        %v4845 = vadd.f32 %v4287, %v4639
        %v4846 = vadd.f32 %v4288, %v4641
        %v4847 = vadd.f32 %v4289, %v4643
        %v4848 = vadd.f32 %v4290, %v4645
        %v4849 = vadd.f32 %v4291, %v4647
        %v4850 = vadd.f32 %v4292, %v4649
        %v4851 = vadd.f32 %v4293, %v4651
        %v4852 = vadd.f32 %v4294, %v4653
        %v4853 = vadd.f32 %v4295, %v4655
        %v4854 = vadd.f32 %v4296, %v4657
        %v4855 = vadd.f32 %v4297, %v4659
        %v4856 = vadd.f32 %v4298, %v4661
        %v4857 = vadd.f32 %v4299, %v4663
        %v4858 = vadd.f32 %v4300, %v4665
        %v4859 = vadd.f32 %v4301, %v4667
        %v4860 = vadd.f32 %v4302, %v4669
        %v4861 = vadd.f32 %v4303, %v4671
        %v4862 = vadd.f32 %v4304, %v4673
        %v4863 = vadd.f32 %v4305, %v4675
        %v4864 = vadd.f32 %v4306, %v4677
        %v4865 = vadd.f32 %v4307, %v4679
        %v4866 = vadd.f32 %v4308, %v4681
        %v4867 = vadd.f32 %v4309, %v4683
        %v4868 = vadd.f32 %v4310, %v4685
        %v4869 = vadd.f32 %v4311, %v4687
        %v4870 = vlaneseq
        %v4871 = vshrl.u32 %v4870, 7
        %v4872 = vsub.s32 0, %v4871
        %v4873 = vrot.slane %v467, %v4872
        %v4874 = vmul.f32 %v718, %v4873
        %v4875 = vmul.f32 %v723, %v4873
        %v4876 = vmul.f32 %v728, %v4873
        %v4877 = vmul.f32 %v733, %v4873
        %v4878 = vmul.f32 %v738, %v4873
        %v4879 = vmul.f32 %v743, %v4873
        %v4880 = vmul.f32 %v748, %v4873
        %v4881 = vmul.f32 %v753, %v4873
        %v4882 = vmul.f32 %v758, %v4873
        %v4883 = vmul.f32 %v763, %v4873
        %v4884 = vmul.f32 %v768, %v4873
        %v4885 = vmul.f32 %v773, %v4873
        %v4886 = vmul.f32 %v778, %v4873
        %v4887 = vmul.f32 %v783, %v4873
        %v4888 = vmul.f32 %v788, %v4873
        %v4889 = vmul.f32 %v793, %v4873
        %v4890 = vmul.f32 %v798, %v4873
        %v4891 = vmul.f32 %v803, %v4873
        %v4892 = vmul.f32 %v808, %v4873
        %v4893 = vmul.f32 %v813, %v4873
        %v4894 = vmul.f32 %v818, %v4873
        %v4895 = vmul.f32 %v823, %v4873
        %v4896 = vmul.f32 %v828, %v4873
        %v4897 = vmul.f32 %v833, %v4873
        %v4898 = vmul.f32 %v838, %v4873
        %v4899 = vmul.f32 %v843, %v4873
        %v4900 = vmul.f32 %v848, %v4873
        %v4901 = vmul.f32 %v853, %v4873
        %v4902 = vmul.f32 %v858, %v4873
        %v4903 = vmul.f32 %v863, %v4873
        %v4904 = vmul.f32 %v868, %v4873
        %v4905 = vmul.f32 %v873, %v4873
        %v4906 = vmul.f32 %v878, %v4873
        %v4907 = vmul.f32 %v883, %v4873
        %v4908 = vmul.f32 %v888, %v4873
        %v4909 = vmul.f32 %v893, %v4873
        %v4910 = vmul.f32 %v898, %v4873
        %v4911 = vmul.f32 %v903, %v4873
        %v4912 = vmul.f32 %v908, %v4873
        %v4913 = vmul.f32 %v913, %v4873
        %v4914 = vmul.f32 %v918, %v4873
        %v4915 = vmul.f32 %v923, %v4873
        %v4916 = vmul.f32 %v928, %v4873
        %v4917 = vmul.f32 %v933, %v4873
        %v4918 = vmul.f32 %v938, %v4873
        %v4919 = vmul.f32 %v943, %v4873
        %v4920 = vmul.f32 %v948, %v4873
        %v4921 = vmul.f32 %v953, %v4873
        %v4922 = vmul.f32 %v958, %v4873
        %v4923 = vmul.f32 %v963, %v4873
        %v4924 = vmul.f32 %v968, %v4873
        %v4925 = vmul.f32 %v973, %v4873
        %v4926 = vmul.f32 %v978, %v4873
        %v4927 = vmul.f32 %v983, %v4873
        %v4928 = vmul.f32 %v988, %v4873
        %v4929 = vmul.f32 %v993, %v4873
        %v4930 = vmul.f32 %v998, %v4873
        %v4931 = vmul.f32 %v1003, %v4873
        %v4932 = vmul.f32 %v1008, %v4873
        %v4933 = vmul.f32 %v1013, %v4873
        %v4934 = vmul.f32 %v1018, %v4873
        %v4935 = vmul.f32 %v1023, %v4873
        %v4936 = vmul.f32 %v1028, %v4873
        %v4937 = vmul.f32 %v1033, %v4873
        %v4938 = vmul.f32 %v1038, %v4873
        %v4939 = vmul.f32 %v1043, %v4873
        %v4940 = vmul.f32 %v1048, %v4873
        %v4941 = vmul.f32 %v1053, %v4873
        %v4942 = vmul.f32 %v1058, %v4873
        %v4943 = vmul.f32 %v1063, %v4873
        %v4944 = vmul.f32 %v1068, %v4873
        %v4945 = vmul.f32 %v1073, %v4873
        %v4946 = vmul.f32 %v1078, %v4873
        %v4947 = vmul.f32 %v1083, %v4873
        %v4948 = vmul.f32 %v1088, %v4873
        %v4949 = vmul.f32 %v1093, %v4873
        %v4950 = vmul.f32 %v1098, %v4873
        %v4951 = vmul.f32 %v1103, %v4873
        %v4952 = vmul.f32 %v1108, %v4873
        %v4953 = vmul.f32 %v1113, %v4873
        %v4954 = vmul.f32 %v1118, %v4873
        %v4955 = vmul.f32 %v1123, %v4873
        %v4956 = vmul.f32 %v1128, %v4873
        %v4957 = vmul.f32 %v1133, %v4873
        %v4958 = vmul.f32 %v1324, %v4873
        %v4959 = vmul.f32 %v2437, %v4873
        %v4960 = vmul.f32 %v2442, %v4873
        %v4961 = vmul.f32 %v2447, %v4873
        %v4962 = vmul.f32 %v4114, %v4873
        %v4963 = vmul.f32 %v4119, %v4873
        %v4964 = vmul.f32 %v4124, %v4873
        %v4965 = vmul.f32 %v4315, %v4873
        %v5058 = vrot.slane %v4874, 2
        %v5059 = vrot.slane %v4875, 2
        %v5060 = vsel %vm2068, %v5058, %v5059
        %v5061 = vrot.slane %v4876, 2
        %v5062 = vsel %vm2068, %v5059, %v5061
        %v5063 = vrot.slane %v4877, 2
        %v5064 = vsel %vm2068, %v5061, %v5063
        %v5065 = vrot.slane %v4878, 2
        %v5066 = vsel %vm2068, %v5063, %v5065
        %v5067 = vrot.slane %v4879, 2
        %v5068 = vsel %vm2068, %v5065, %v5067
        %v5069 = vrot.slane %v4880, 2
        %v5070 = vsel %vm2068, %v5067, %v5069
        %v5071 = vrot.slane %v4881, 2
        %v5072 = vsel %vm2068, %v5069, %v5071
        %v5073 = vrot.slane %v4882, 2
        %v5074 = vsel %vm2068, %v5071, %v5073
        %v5075 = vrot.slane %v4883, 2
        %v5076 = vsel %vm2068, %v5073, %v5075
        %v5077 = vrot.slane %v4884, 2
        %v5078 = vsel %vm2068, %v5075, %v5077
        %v5079 = vrot.slane %v4885, 2
        %v5080 = vsel %vm2068, %v5077, %v5079
        %v5081 = vrot.slane %v4886, 2
        %v5082 = vsel %vm2068, %v5079, %v5081
        %v5083 = vrot.slane %v4887, 2
        %v5084 = vsel %vm2068, %v5081, %v5083
        %v5085 = vrot.slane %v4888, 2
        %v5086 = vsel %vm2068, %v5083, %v5085
        %v5087 = vrot.slane %v4889, 2
        %v5088 = vsel %vm2068, %v5085, %v5087
        %v5089 = vrot.slane %v4890, 2
        %v5090 = vsel %vm2068, %v5087, %v5089
        %v5091 = vrot.slane %v4891, 2
        %v5092 = vsel %vm2068, %v5089, %v5091
        %v5093 = vrot.slane %v4892, 2
        %v5094 = vsel %vm2068, %v5091, %v5093
        %v5095 = vrot.slane %v4893, 2
        %v5096 = vsel %vm2068, %v5093, %v5095
        %v5097 = vrot.slane %v4894, 2
        %v5098 = vsel %vm2068, %v5095, %v5097
        %v5099 = vrot.slane %v4895, 2
        %v5100 = vsel %vm2068, %v5097, %v5099
        %v5101 = vrot.slane %v4896, 2
        %v5102 = vsel %vm2068, %v5099, %v5101
        %v5103 = vrot.slane %v4897, 2
        %v5104 = vsel %vm2068, %v5101, %v5103
        %v5105 = vrot.slane %v4898, 2
        %v5106 = vsel %vm2068, %v5103, %v5105
        %v5107 = vrot.slane %v4899, 2
        %v5108 = vsel %vm2068, %v5105, %v5107
        %v5109 = vrot.slane %v4900, 2
        %v5110 = vsel %vm2068, %v5107, %v5109
        %v5111 = vrot.slane %v4901, 2
        %v5112 = vsel %vm2068, %v5109, %v5111
        %v5113 = vrot.slane %v4902, 2
        %v5114 = vsel %vm2068, %v5111, %v5113
        %v5115 = vrot.slane %v4903, 2
        %v5116 = vsel %vm2068, %v5113, %v5115
        %v5117 = vrot.slane %v4904, 2
        %v5118 = vsel %vm2068, %v5115, %v5117
        %v5119 = vrot.slane %v4905, 2
        %v5120 = vsel %vm2068, %v5117, %v5119
        %v5121 = vrot.slane %v4906, 2
        %v5122 = vsel %vm2068, %v5119, %v5121
        %v5123 = vrot.slane %v4907, 2
        %v5124 = vsel %vm2068, %v5121, %v5123
        %v5125 = vrot.slane %v4908, 2
        %v5126 = vsel %vm2068, %v5123, %v5125
        %v5127 = vrot.slane %v4909, 2
        %v5128 = vsel %vm2068, %v5125, %v5127
        %v5129 = vrot.slane %v4910, 2
        %v5130 = vsel %vm2068, %v5127, %v5129
        %v5131 = vrot.slane %v4911, 2
        %v5132 = vsel %vm2068, %v5129, %v5131
        %v5133 = vrot.slane %v4912, 2
        %v5134 = vsel %vm2068, %v5131, %v5133
        %v5135 = vrot.slane %v4913, 2
        %v5136 = vsel %vm2068, %v5133, %v5135
        %v5137 = vrot.slane %v4914, 2
        %v5138 = vsel %vm2068, %v5135, %v5137
        %v5139 = vrot.slane %v4915, 2
        %v5140 = vsel %vm2068, %v5137, %v5139
        %v5141 = vrot.slane %v4916, 2
        %v5142 = vsel %vm2068, %v5139, %v5141
        %v5143 = vrot.slane %v4917, 2
        %v5144 = vsel %vm2068, %v5141, %v5143
        %v5145 = vrot.slane %v4918, 2
        %v5146 = vsel %vm2068, %v5143, %v5145
        %v5147 = vrot.slane %v4919, 2
        %v5148 = vsel %vm2068, %v5145, %v5147
        %v5149 = vrot.slane %v4920, 2
        %v5150 = vsel %vm2068, %v5147, %v5149
        %v5151 = vrot.slane %v4921, 2
        %v5152 = vsel %vm2068, %v5149, %v5151
        %v5153 = vrot.slane %v4922, 2
        %v5154 = vsel %vm2068, %v5151, %v5153
        %v5155 = vrot.slane %v4923, 2
        %v5156 = vsel %vm2068, %v5153, %v5155
        %v5157 = vrot.slane %v4924, 2
        %v5158 = vsel %vm2068, %v5155, %v5157
        %v5159 = vrot.slane %v4925, 2
        %v5160 = vsel %vm2068, %v5157, %v5159
        %v5161 = vrot.slane %v4926, 2
        %v5162 = vsel %vm2068, %v5159, %v5161
        %v5163 = vrot.slane %v4927, 2
        %v5164 = vsel %vm2068, %v5161, %v5163
        %v5165 = vrot.slane %v4928, 2
        %v5166 = vsel %vm2068, %v5163, %v5165
        %v5167 = vrot.slane %v4929, 2
        %v5168 = vsel %vm2068, %v5165, %v5167
        %v5169 = vrot.slane %v4930, 2
        %v5170 = vsel %vm2068, %v5167, %v5169
        %v5171 = vrot.slane %v4931, 2
        %v5172 = vsel %vm2068, %v5169, %v5171
        %v5173 = vrot.slane %v4932, 2
        %v5174 = vsel %vm2068, %v5171, %v5173
        %v5175 = vrot.slane %v4933, 2
        %v5176 = vsel %vm2068, %v5173, %v5175
        %v5177 = vrot.slane %v4934, 2
        %v5178 = vsel %vm2068, %v5175, %v5177
        %v5179 = vrot.slane %v4935, 2
        %v5180 = vsel %vm2068, %v5177, %v5179
        %v5181 = vrot.slane %v4936, 2
        %v5182 = vsel %vm2068, %v5179, %v5181
        %v5183 = vrot.slane %v4937, 2
        %v5184 = vsel %vm2068, %v5181, %v5183
        %v5185 = vrot.slane %v4938, 2
        %v5186 = vsel %vm2068, %v5183, %v5185
        %v5187 = vrot.slane %v4939, 2
        %v5188 = vsel %vm2068, %v5185, %v5187
        %v5189 = vrot.slane %v4940, 2
        %v5190 = vsel %vm2068, %v5187, %v5189
        %v5191 = vrot.slane %v4941, 2
        %v5192 = vsel %vm2068, %v5189, %v5191
        %v5193 = vrot.slane %v4942, 2
        %v5194 = vsel %vm2068, %v5191, %v5193
        %v5195 = vrot.slane %v4943, 2
        %v5196 = vsel %vm2068, %v5193, %v5195
        %v5197 = vrot.slane %v4944, 2
        %v5198 = vsel %vm2068, %v5195, %v5197
        %v5199 = vrot.slane %v4945, 2
        %v5200 = vsel %vm2068, %v5197, %v5199
        %v5201 = vrot.slane %v4946, 2
        %v5202 = vsel %vm2068, %v5199, %v5201
        %v5203 = vrot.slane %v4947, 2
        %v5204 = vsel %vm2068, %v5201, %v5203
        %v5205 = vrot.slane %v4948, 2
        %v5206 = vsel %vm2068, %v5203, %v5205
        %v5207 = vrot.slane %v4949, 2
        %v5208 = vsel %vm2068, %v5205, %v5207
        %v5209 = vrot.slane %v4950, 2
        %v5210 = vsel %vm2068, %v5207, %v5209
        %v5211 = vrot.slane %v4951, 2
        %v5212 = vsel %vm2068, %v5209, %v5211
        %v5213 = vrot.slane %v4952, 2
        %v5214 = vsel %vm2068, %v5211, %v5213
        %v5215 = vrot.slane %v4953, 2
        %v5216 = vsel %vm2068, %v5213, %v5215
        %v5217 = vrot.slane %v4954, 2
        %v5218 = vsel %vm2068, %v5215, %v5217
        %v5219 = vrot.slane %v4955, 2
        %v5220 = vsel %vm2068, %v5217, %v5219
        %v5221 = vrot.slane %v4956, 2
        %v5222 = vsel %vm2068, %v5219, %v5221
        %v5223 = vrot.slane %v4957, 2
        %v5224 = vsel %vm2068, %v5221, %v5223
        %v5225 = vrot.slane %v4958, 2
        %v5226 = vsel %vm2068, %v5223, %v5225
        %v5227 = vrot.slane %v4959, 2
        %v5228 = vsel %vm2068, %v5225, %v5227
        %v5229 = vrot.slane %v4960, 2
        %v5230 = vsel %vm2068, %v5227, %v5229
        %v5231 = vrot.slane %v4961, 2
        %v5232 = vsel %vm2068, %v5229, %v5231
        %v5233 = vrot.slane %v4962, 2
        %v5234 = vsel %vm2068, %v5231, %v5233
        %v5235 = vrot.slane %v4963, 2
        %v5236 = vsel %vm2068, %v5233, %v5235
        %v5237 = vrot.slane %v4964, 2
        %v5238 = vsel %vm2068, %v5235, %v5237
        %v5239 = vrot.slane %v4965, 2
        %v5240 = vsel %vm2068, %v5237, %v5239
        %v5332 = vadd.f32 %v4779, %v5060
        %v5333 = vadd.f32 %v4780, %v5062
        %v5334 = vadd.f32 %v4781, %v5064
        %v5335 = vadd.f32 %v4782, %v5066
        %v5336 = vadd.f32 %v4783, %v5068
        %v5337 = vadd.f32 %v4784, %v5070
        %v5338 = vadd.f32 %v4785, %v5072
        %v5339 = vadd.f32 %v4786, %v5074
        %v5340 = vadd.f32 %v4787, %v5076
        %v5341 = vadd.f32 %v4788, %v5078
        %v5342 = vadd.f32 %v4789, %v5080
        %v5343 = vadd.f32 %v4790, %v5082
        %v5344 = vadd.f32 %v4791, %v5084
        %v5345 = vadd.f32 %v4792, %v5086
        %v5346 = vadd.f32 %v4793, %v5088
        %v5347 = vadd.f32 %v4794, %v5090
        %v5348 = vadd.f32 %v4795, %v5092
        %v5349 = vadd.f32 %v4796, %v5094
        %v5350 = vadd.f32 %v4797, %v5096
        %v5351 = vadd.f32 %v4798, %v5098
        %v5352 = vadd.f32 %v4799, %v5100
        %v5353 = vadd.f32 %v4800, %v5102
        %v5354 = vadd.f32 %v4801, %v5104
        %v5355 = vadd.f32 %v4802, %v5106
        %v5356 = vadd.f32 %v4803, %v5108
        %v5357 = vadd.f32 %v4804, %v5110
        %v5358 = vadd.f32 %v4805, %v5112
        %v5359 = vadd.f32 %v4806, %v5114
        %v5360 = vadd.f32 %v4807, %v5116
        %v5361 = vadd.f32 %v4808, %v5118
        %v5362 = vadd.f32 %v4809, %v5120
        %v5363 = vadd.f32 %v4810, %v5122
        %v5364 = vadd.f32 %v4811, %v5124
        %v5365 = vadd.f32 %v4812, %v5126
        %v5366 = vadd.f32 %v4813, %v5128
        %v5367 = vadd.f32 %v4814, %v5130
        %v5368 = vadd.f32 %v4815, %v5132
        %v5369 = vadd.f32 %v4816, %v5134
        %v5370 = vadd.f32 %v4817, %v5136
        %v5371 = vadd.f32 %v4818, %v5138
        %v5372 = vadd.f32 %v4819, %v5140
        %v5373 = vadd.f32 %v4820, %v5142
        %v5374 = vadd.f32 %v4821, %v5144
        %v5375 = vadd.f32 %v4822, %v5146
        %v5376 = vadd.f32 %v4823, %v5148
        %v5377 = vadd.f32 %v4824, %v5150
        %v5378 = vadd.f32 %v4825, %v5152
        %v5379 = vadd.f32 %v4826, %v5154
        %v5380 = vadd.f32 %v4827, %v5156
        %v5381 = vadd.f32 %v4828, %v5158
        %v5382 = vadd.f32 %v4829, %v5160
        %v5383 = vadd.f32 %v4830, %v5162
        %v5384 = vadd.f32 %v4831, %v5164
        %v5385 = vadd.f32 %v4832, %v5166
        %v5386 = vadd.f32 %v4833, %v5168
        %v5387 = vadd.f32 %v4834, %v5170
        %v5388 = vadd.f32 %v4835, %v5172
        %v5389 = vadd.f32 %v4836, %v5174
        %v5390 = vadd.f32 %v4837, %v5176
        %v5391 = vadd.f32 %v4838, %v5178
        %v5392 = vadd.f32 %v4839, %v5180
        %v5393 = vadd.f32 %v4840, %v5182
        %v5394 = vadd.f32 %v4841, %v5184
        %v5395 = vadd.f32 %v4842, %v5186
        %v5396 = vadd.f32 %v4843, %v5188
        %v5397 = vadd.f32 %v4844, %v5190
        %v5398 = vadd.f32 %v4845, %v5192
        %v5399 = vadd.f32 %v4846, %v5194
        %v5400 = vadd.f32 %v4847, %v5196
        %v5401 = vadd.f32 %v4848, %v5198
        %v5402 = vadd.f32 %v4849, %v5200
        %v5403 = vadd.f32 %v4850, %v5202
        %v5404 = vadd.f32 %v4851, %v5204
        %v5405 = vadd.f32 %v4852, %v5206
        %v5406 = vadd.f32 %v4853, %v5208
        %v5407 = vadd.f32 %v4854, %v5210
        %v5408 = vadd.f32 %v4855, %v5212
        %v5409 = vadd.f32 %v4856, %v5214
        %v5410 = vadd.f32 %v4857, %v5216
        %v5411 = vadd.f32 %v4858, %v5218
        %v5412 = vadd.f32 %v4859, %v5220
        %v5413 = vadd.f32 %v4860, %v5222
        %v5414 = vadd.f32 %v4861, %v5224
        %v5415 = vadd.f32 %v4862, %v5226
        %v5416 = vadd.f32 %v4863, %v5228
        %v5417 = vadd.f32 %v4864, %v5230
        %v5418 = vadd.f32 %v4865, %v5232
        %v5419 = vadd.f32 %v4866, %v5234
        %v5420 = vadd.f32 %v4867, %v5236
        %v5421 = vadd.f32 %v4868, %v5238
        %v5422 = vadd.f32 %v4869, %v5240
        %v5424 = vlaneseq
        %v5425 = vshrl.u32 %v5424, 7
        %v5426 = vsub.s32 0, %v5425
        %v5427 = vrot.slane %v468, %v5426
        %v5429 = vmul.f32 %v5332, %v5427
        %v5430 = vmul.f32 %v5333, %v5427
        %v5431 = vmul.f32 %v5334, %v5427
        %v5432 = vmul.f32 %v5335, %v5427
        %v5433 = vmul.f32 %v5336, %v5427
        %v5434 = vmul.f32 %v5337, %v5427
        %v5435 = vmul.f32 %v5338, %v5427
        %v5436 = vmul.f32 %v5339, %v5427
        %v5437 = vmul.f32 %v5340, %v5427
        %v5438 = vmul.f32 %v5341, %v5427
        %v5439 = vmul.f32 %v5342, %v5427
        %v5440 = vmul.f32 %v5343, %v5427
        %v5441 = vmul.f32 %v5344, %v5427
        %v5442 = vmul.f32 %v5345, %v5427
        %v5443 = vmul.f32 %v5346, %v5427
        %v5444 = vmul.f32 %v5347, %v5427
        %v5445 = vmul.f32 %v5348, %v5427
        %v5446 = vmul.f32 %v5349, %v5427
        %v5447 = vmul.f32 %v5350, %v5427
        %v5448 = vmul.f32 %v5351, %v5427
        %v5449 = vmul.f32 %v5352, %v5427
        %v5450 = vmul.f32 %v5353, %v5427
        %v5451 = vmul.f32 %v5354, %v5427
        %v5452 = vmul.f32 %v5355, %v5427
        %v5453 = vmul.f32 %v5356, %v5427
        %v5454 = vmul.f32 %v5357, %v5427
        %v5455 = vmul.f32 %v5358, %v5427
        %v5456 = vmul.f32 %v5359, %v5427
        %v5457 = vmul.f32 %v5360, %v5427
        %v5458 = vmul.f32 %v5361, %v5427
        %v5459 = vmul.f32 %v5362, %v5427
        %v5460 = vmul.f32 %v5363, %v5427
        %v5461 = vmul.f32 %v5364, %v5427
        %v5462 = vmul.f32 %v5365, %v5427
        %v5463 = vmul.f32 %v5366, %v5427
        %v5464 = vmul.f32 %v5367, %v5427
        %v5465 = vmul.f32 %v5368, %v5427
        %v5466 = vmul.f32 %v5369, %v5427
        %v5467 = vmul.f32 %v5370, %v5427
        %v5468 = vmul.f32 %v5371, %v5427
        %v5469 = vmul.f32 %v5372, %v5427
        %v5470 = vmul.f32 %v5373, %v5427
        %v5471 = vmul.f32 %v5374, %v5427
        %v5472 = vmul.f32 %v5375, %v5427
        %v5473 = vmul.f32 %v5376, %v5427
        %v5474 = vmul.f32 %v5377, %v5427
        %v5475 = vmul.f32 %v5378, %v5427
        %v5476 = vmul.f32 %v5379, %v5427
        %v5477 = vmul.f32 %v5380, %v5427
        %v5478 = vmul.f32 %v5381, %v5427
        %v5479 = vmul.f32 %v5382, %v5427
        %v5480 = vmul.f32 %v5383, %v5427
        %v5481 = vmul.f32 %v5384, %v5427
        %v5482 = vmul.f32 %v5385, %v5427
        %v5483 = vmul.f32 %v5386, %v5427
        %v5484 = vmul.f32 %v5387, %v5427
        %v5485 = vmul.f32 %v5388, %v5427
        %v5486 = vmul.f32 %v5389, %v5427
        %v5487 = vmul.f32 %v5390, %v5427
        %v5488 = vmul.f32 %v5391, %v5427
        %v5489 = vmul.f32 %v5392, %v5427
        %v5490 = vmul.f32 %v5393, %v5427
        %v5491 = vmul.f32 %v5394, %v5427
        %v5492 = vmul.f32 %v5395, %v5427
        %v5493 = vmul.f32 %v5396, %v5427
        %v5494 = vmul.f32 %v5397, %v5427
        %v5495 = vmul.f32 %v5398, %v5427
        %v5496 = vmul.f32 %v5399, %v5427
        %v5497 = vmul.f32 %v5400, %v5427
        %v5498 = vmul.f32 %v5401, %v5427
        %v5499 = vmul.f32 %v5402, %v5427
        %v5500 = vmul.f32 %v5403, %v5427
        %v5501 = vmul.f32 %v5404, %v5427
        %v5502 = vmul.f32 %v5405, %v5427
        %v5503 = vmul.f32 %v5406, %v5427
        %v5504 = vmul.f32 %v5407, %v5427
        %v5505 = vmul.f32 %v5408, %v5427
        %v5506 = vmul.f32 %v5409, %v5427
        %v5507 = vmul.f32 %v5410, %v5427
        %v5508 = vmul.f32 %v5411, %v5427
        %v5509 = vmul.f32 %v5412, %v5427
        %v5510 = vmul.f32 %v5413, %v5427
        %v5511 = vmul.f32 %v5414, %v5427
        %v5512 = vmul.f32 %v5415, %v5427
        %v5513 = vmul.f32 %v5416, %v5427
        %v5514 = vmul.f32 %v5417, %v5427
        %v5515 = vmul.f32 %v5418, %v5427
        %v5516 = vmul.f32 %v5419, %v5427
        %v5517 = vmul.f32 %v5420, %v5427
        %v5518 = vmul.f32 %v5421, %v5427
        %v5519 = vmul.f32 %v5422, %v5427
        %v5521 = vlaneseq
        %v5522 = vshrl.u32 %v5521, 7
        %v5523 = vsub.s32 0, %v5522
        %v5524 = vrot.slane %v469, %v5523
        %v5526 = vadd.f32 %v5429, %v5524
        %v5527 = vadd.f32 %v5430, %v5524
        %v5528 = vadd.f32 %v5431, %v5524
        %v5529 = vadd.f32 %v5432, %v5524
        %v5530 = vadd.f32 %v5433, %v5524
        %v5531 = vadd.f32 %v5434, %v5524
        %v5532 = vadd.f32 %v5435, %v5524
        %v5533 = vadd.f32 %v5436, %v5524
        %v5534 = vadd.f32 %v5437, %v5524
        %v5535 = vadd.f32 %v5438, %v5524
        %v5536 = vadd.f32 %v5439, %v5524
        %v5537 = vadd.f32 %v5440, %v5524
        %v5538 = vadd.f32 %v5441, %v5524
        %v5539 = vadd.f32 %v5442, %v5524
        %v5540 = vadd.f32 %v5443, %v5524
        %v5541 = vadd.f32 %v5444, %v5524
        %v5542 = vadd.f32 %v5445, %v5524
        %v5543 = vadd.f32 %v5446, %v5524
        %v5544 = vadd.f32 %v5447, %v5524
        %v5545 = vadd.f32 %v5448, %v5524
        %v5546 = vadd.f32 %v5449, %v5524
        %v5547 = vadd.f32 %v5450, %v5524
        %v5548 = vadd.f32 %v5451, %v5524
        %v5549 = vadd.f32 %v5452, %v5524
        %v5550 = vadd.f32 %v5453, %v5524
        %v5551 = vadd.f32 %v5454, %v5524
        %v5552 = vadd.f32 %v5455, %v5524
        %v5553 = vadd.f32 %v5456, %v5524
        %v5554 = vadd.f32 %v5457, %v5524
        %v5555 = vadd.f32 %v5458, %v5524
        %v5556 = vadd.f32 %v5459, %v5524
        %v5557 = vadd.f32 %v5460, %v5524
        %v5558 = vadd.f32 %v5461, %v5524
        %v5559 = vadd.f32 %v5462, %v5524
        %v5560 = vadd.f32 %v5463, %v5524
        %v5561 = vadd.f32 %v5464, %v5524
        %v5562 = vadd.f32 %v5465, %v5524
        %v5563 = vadd.f32 %v5466, %v5524
        %v5564 = vadd.f32 %v5467, %v5524
        %v5565 = vadd.f32 %v5468, %v5524
        %v5566 = vadd.f32 %v5469, %v5524
        %v5567 = vadd.f32 %v5470, %v5524
        %v5568 = vadd.f32 %v5471, %v5524
        %v5569 = vadd.f32 %v5472, %v5524
        %v5570 = vadd.f32 %v5473, %v5524
        %v5571 = vadd.f32 %v5474, %v5524
        %v5572 = vadd.f32 %v5475, %v5524
        %v5573 = vadd.f32 %v5476, %v5524
        %v5574 = vadd.f32 %v5477, %v5524
        %v5575 = vadd.f32 %v5478, %v5524
        %v5576 = vadd.f32 %v5479, %v5524
        %v5577 = vadd.f32 %v5480, %v5524
        %v5578 = vadd.f32 %v5481, %v5524
        %v5579 = vadd.f32 %v5482, %v5524
        %v5580 = vadd.f32 %v5483, %v5524
        %v5581 = vadd.f32 %v5484, %v5524
        %v5582 = vadd.f32 %v5485, %v5524
        %v5583 = vadd.f32 %v5486, %v5524
        %v5584 = vadd.f32 %v5487, %v5524
        %v5585 = vadd.f32 %v5488, %v5524
        %v5586 = vadd.f32 %v5489, %v5524
        %v5587 = vadd.f32 %v5490, %v5524
        %v5588 = vadd.f32 %v5491, %v5524
        %v5589 = vadd.f32 %v5492, %v5524
        %v5590 = vadd.f32 %v5493, %v5524
        %v5591 = vadd.f32 %v5494, %v5524
        %v5592 = vadd.f32 %v5495, %v5524
        %v5593 = vadd.f32 %v5496, %v5524
        %v5594 = vadd.f32 %v5497, %v5524
        %v5595 = vadd.f32 %v5498, %v5524
        %v5596 = vadd.f32 %v5499, %v5524
        %v5597 = vadd.f32 %v5500, %v5524
        %v5598 = vadd.f32 %v5501, %v5524
        %v5599 = vadd.f32 %v5502, %v5524
        %v5600 = vadd.f32 %v5503, %v5524
        %v5601 = vadd.f32 %v5504, %v5524
        %v5602 = vadd.f32 %v5505, %v5524
        %v5603 = vadd.f32 %v5506, %v5524
        %v5604 = vadd.f32 %v5507, %v5524
        %v5605 = vadd.f32 %v5508, %v5524
        %v5606 = vadd.f32 %v5509, %v5524
        %v5607 = vadd.f32 %v5510, %v5524
        %v5608 = vadd.f32 %v5511, %v5524
        %v5609 = vadd.f32 %v5512, %v5524
        %v5610 = vadd.f32 %v5513, %v5524
        %v5611 = vadd.f32 %v5514, %v5524
        %v5612 = vadd.f32 %v5515, %v5524
        %v5613 = vadd.f32 %v5516, %v5524
        %v5614 = vadd.f32 %v5517, %v5524
        %v5615 = vadd.f32 %v5518, %v5524
        %v5616 = vadd.f32 %v5519, %v5524
        %v5617 = vmax.f32 %v5526, 0.0
        %v5618 = vmax.f32 %v5527, 0.0
        %v5619 = vmax.f32 %v5528, 0.0
        %v5620 = vmax.f32 %v5529, 0.0
        %v5621 = vmax.f32 %v5530, 0.0
        %v5622 = vmax.f32 %v5531, 0.0
        %v5623 = vmax.f32 %v5532, 0.0
        %v5624 = vmax.f32 %v5533, 0.0
        %v5625 = vmax.f32 %v5534, 0.0
        %v5626 = vmax.f32 %v5535, 0.0
        %v5627 = vmax.f32 %v5536, 0.0
        %v5628 = vmax.f32 %v5537, 0.0
        %v5629 = vmax.f32 %v5538, 0.0
        %v5630 = vmax.f32 %v5539, 0.0
        %v5631 = vmax.f32 %v5540, 0.0
        %v5632 = vmax.f32 %v5541, 0.0
        %v5633 = vmax.f32 %v5542, 0.0
        %v5634 = vmax.f32 %v5543, 0.0
        %v5635 = vmax.f32 %v5544, 0.0
        %v5636 = vmax.f32 %v5545, 0.0
        %v5637 = vmax.f32 %v5546, 0.0
        %v5638 = vmax.f32 %v5547, 0.0
        %v5639 = vmax.f32 %v5548, 0.0
        %v5640 = vmax.f32 %v5549, 0.0
        %v5641 = vmax.f32 %v5550, 0.0
        %v5642 = vmax.f32 %v5551, 0.0
        %v5643 = vmax.f32 %v5552, 0.0
        %v5644 = vmax.f32 %v5553, 0.0
        %v5645 = vmax.f32 %v5554, 0.0
        %v5646 = vmax.f32 %v5555, 0.0
        %v5647 = vmax.f32 %v5556, 0.0
        %v5648 = vmax.f32 %v5557, 0.0
        %v5649 = vmax.f32 %v5558, 0.0
        %v5650 = vmax.f32 %v5559, 0.0
        %v5651 = vmax.f32 %v5560, 0.0
        %v5652 = vmax.f32 %v5561, 0.0
        %v5653 = vmax.f32 %v5562, 0.0
        %v5654 = vmax.f32 %v5563, 0.0
        %v5655 = vmax.f32 %v5564, 0.0
        %v5656 = vmax.f32 %v5565, 0.0
        %v5657 = vmax.f32 %v5566, 0.0
        %v5658 = vmax.f32 %v5567, 0.0
        %v5659 = vmax.f32 %v5568, 0.0
        %v5660 = vmax.f32 %v5569, 0.0
        %v5661 = vmax.f32 %v5570, 0.0
        %v5662 = vmax.f32 %v5571, 0.0
        %v5663 = vmax.f32 %v5572, 0.0
        %v5664 = vmax.f32 %v5573, 0.0
        %v5665 = vmax.f32 %v5574, 0.0
        %v5666 = vmax.f32 %v5575, 0.0
        %v5667 = vmax.f32 %v5576, 0.0
        %v5668 = vmax.f32 %v5577, 0.0
        %v5669 = vmax.f32 %v5578, 0.0
        %v5670 = vmax.f32 %v5579, 0.0
        %v5671 = vmax.f32 %v5580, 0.0
        %v5672 = vmax.f32 %v5581, 0.0
        %v5673 = vmax.f32 %v5582, 0.0
        %v5674 = vmax.f32 %v5583, 0.0
        %v5675 = vmax.f32 %v5584, 0.0
        %v5676 = vmax.f32 %v5585, 0.0
        %v5677 = vmax.f32 %v5586, 0.0
        %v5678 = vmax.f32 %v5587, 0.0
        %v5679 = vmax.f32 %v5588, 0.0
        %v5680 = vmax.f32 %v5589, 0.0
        %v5681 = vmax.f32 %v5590, 0.0
        %v5682 = vmax.f32 %v5591, 0.0
        %v5683 = vmax.f32 %v5592, 0.0
        %v5684 = vmax.f32 %v5593, 0.0
        %v5685 = vmax.f32 %v5594, 0.0
        %v5686 = vmax.f32 %v5595, 0.0
        %v5687 = vmax.f32 %v5596, 0.0
        %v5688 = vmax.f32 %v5597, 0.0
        %v5689 = vmax.f32 %v5598, 0.0
        %v5690 = vmax.f32 %v5599, 0.0
        %v5691 = vmax.f32 %v5600, 0.0
        %v5692 = vmax.f32 %v5601, 0.0
        %v5693 = vmax.f32 %v5602, 0.0
        %v5694 = vmax.f32 %v5603, 0.0
        %v5695 = vmax.f32 %v5604, 0.0
        %v5696 = vmax.f32 %v5605, 0.0
        %v5697 = vmax.f32 %v5606, 0.0
        %v5698 = vmax.f32 %v5607, 0.0
        %v5699 = vmax.f32 %v5608, 0.0
        %v5700 = vmax.f32 %v5609, 0.0
        %v5701 = vmax.f32 %v5610, 0.0
        %v5702 = vmax.f32 %v5611, 0.0
        %v5703 = vmax.f32 %v5612, 0.0
        %v5704 = vmax.f32 %v5613, 0.0
        %v5705 = vmax.f32 %v5614, 0.0
        %v5706 = vmax.f32 %v5615, 0.0
        %v5707 = vmax.f32 %v5616, 0.0
        %v5799 = vrot.slane %v5617, 1
        %v5800 = vrot.slane %v5618, 1
        %v5801 = vsel %vm1514, %v5799, %v5800
        %v5802 = vrot.slane %v5619, 1
        %v5803 = vsel %vm1514, %v5800, %v5802
        %v5804 = vrot.slane %v5620, 1
        %v5805 = vsel %vm1514, %v5802, %v5804
        %v5806 = vrot.slane %v5621, 1
        %v5807 = vsel %vm1514, %v5804, %v5806
        %v5808 = vrot.slane %v5622, 1
        %v5809 = vsel %vm1514, %v5806, %v5808
        %v5810 = vrot.slane %v5623, 1
        %v5811 = vsel %vm1514, %v5808, %v5810
        %v5812 = vrot.slane %v5624, 1
        %v5813 = vsel %vm1514, %v5810, %v5812
        %v5814 = vrot.slane %v5625, 1
        %v5815 = vsel %vm1514, %v5812, %v5814
        %v5816 = vrot.slane %v5626, 1
        %v5817 = vsel %vm1514, %v5814, %v5816
        %v5818 = vrot.slane %v5627, 1
        %v5819 = vsel %vm1514, %v5816, %v5818
        %v5820 = vrot.slane %v5628, 1
        %v5821 = vsel %vm1514, %v5818, %v5820
        %v5822 = vrot.slane %v5629, 1
        %v5823 = vsel %vm1514, %v5820, %v5822
        %v5824 = vrot.slane %v5630, 1
        %v5825 = vsel %vm1514, %v5822, %v5824
        %v5826 = vrot.slane %v5631, 1
        %v5827 = vsel %vm1514, %v5824, %v5826
        %v5828 = vrot.slane %v5632, 1
        %v5829 = vsel %vm1514, %v5826, %v5828
        %v5830 = vrot.slane %v5633, 1
        %v5831 = vsel %vm1514, %v5828, %v5830
        %v5832 = vrot.slane %v5634, 1
        %v5833 = vsel %vm1514, %v5830, %v5832
        %v5834 = vrot.slane %v5635, 1
        %v5835 = vsel %vm1514, %v5832, %v5834
        %v5836 = vrot.slane %v5636, 1
        %v5837 = vsel %vm1514, %v5834, %v5836
        %v5838 = vrot.slane %v5637, 1
        %v5839 = vsel %vm1514, %v5836, %v5838
        %v5840 = vrot.slane %v5638, 1
        %v5841 = vsel %vm1514, %v5838, %v5840
        %v5842 = vrot.slane %v5639, 1
        %v5843 = vsel %vm1514, %v5840, %v5842
        %v5844 = vrot.slane %v5640, 1
        %v5845 = vsel %vm1514, %v5842, %v5844
        %v5846 = vrot.slane %v5641, 1
        %v5847 = vsel %vm1514, %v5844, %v5846
        %v5848 = vrot.slane %v5642, 1
        %v5849 = vsel %vm1514, %v5846, %v5848
        %v5850 = vrot.slane %v5643, 1
        %v5851 = vsel %vm1514, %v5848, %v5850
        %v5852 = vrot.slane %v5644, 1
        %v5853 = vsel %vm1514, %v5850, %v5852
        %v5854 = vrot.slane %v5645, 1
        %v5855 = vsel %vm1514, %v5852, %v5854
        %v5856 = vrot.slane %v5646, 1
        %v5857 = vsel %vm1514, %v5854, %v5856
        %v5858 = vrot.slane %v5647, 1
        %v5859 = vsel %vm1514, %v5856, %v5858
        %v5860 = vrot.slane %v5648, 1
        %v5861 = vsel %vm1514, %v5858, %v5860
        %v5862 = vrot.slane %v5649, 1
        %v5863 = vsel %vm1514, %v5860, %v5862
        %v5864 = vrot.slane %v5650, 1
        %v5865 = vsel %vm1514, %v5862, %v5864
        %v5866 = vrot.slane %v5651, 1
        %v5867 = vsel %vm1514, %v5864, %v5866
        %v5868 = vrot.slane %v5652, 1
        %v5869 = vsel %vm1514, %v5866, %v5868
        %v5870 = vrot.slane %v5653, 1
        %v5871 = vsel %vm1514, %v5868, %v5870
        %v5872 = vrot.slane %v5654, 1
        %v5873 = vsel %vm1514, %v5870, %v5872
        %v5874 = vrot.slane %v5655, 1
        %v5875 = vsel %vm1514, %v5872, %v5874
        %v5876 = vrot.slane %v5656, 1
        %v5877 = vsel %vm1514, %v5874, %v5876
        %v5878 = vrot.slane %v5657, 1
        %v5879 = vsel %vm1514, %v5876, %v5878
        %v5880 = vrot.slane %v5658, 1
        %v5881 = vsel %vm1514, %v5878, %v5880
        %v5882 = vrot.slane %v5659, 1
        %v5883 = vsel %vm1514, %v5880, %v5882
        %v5884 = vrot.slane %v5660, 1
        %v5885 = vsel %vm1514, %v5882, %v5884
        %v5886 = vrot.slane %v5661, 1
        %v5887 = vsel %vm1514, %v5884, %v5886
        %v5888 = vrot.slane %v5662, 1
        %v5889 = vsel %vm1514, %v5886, %v5888
        %v5890 = vrot.slane %v5663, 1
        %v5891 = vsel %vm1514, %v5888, %v5890
        %v5892 = vrot.slane %v5664, 1
        %v5893 = vsel %vm1514, %v5890, %v5892
        %v5894 = vrot.slane %v5665, 1
        %v5895 = vsel %vm1514, %v5892, %v5894
        %v5896 = vrot.slane %v5666, 1
        %v5897 = vsel %vm1514, %v5894, %v5896
        %v5898 = vrot.slane %v5667, 1
        %v5899 = vsel %vm1514, %v5896, %v5898
        %v5900 = vrot.slane %v5668, 1
        %v5901 = vsel %vm1514, %v5898, %v5900
        %v5902 = vrot.slane %v5669, 1
        %v5903 = vsel %vm1514, %v5900, %v5902
        %v5904 = vrot.slane %v5670, 1
        %v5905 = vsel %vm1514, %v5902, %v5904
        %v5906 = vrot.slane %v5671, 1
        %v5907 = vsel %vm1514, %v5904, %v5906
        %v5908 = vrot.slane %v5672, 1
        %v5909 = vsel %vm1514, %v5906, %v5908
        %v5910 = vrot.slane %v5673, 1
        %v5911 = vsel %vm1514, %v5908, %v5910
        %v5912 = vrot.slane %v5674, 1
        %v5913 = vsel %vm1514, %v5910, %v5912
        %v5914 = vrot.slane %v5675, 1
        %v5915 = vsel %vm1514, %v5912, %v5914
        %v5916 = vrot.slane %v5676, 1
        %v5917 = vsel %vm1514, %v5914, %v5916
        %v5918 = vrot.slane %v5677, 1
        %v5919 = vsel %vm1514, %v5916, %v5918
        %v5920 = vrot.slane %v5678, 1
        %v5921 = vsel %vm1514, %v5918, %v5920
        %v5922 = vrot.slane %v5679, 1
        %v5923 = vsel %vm1514, %v5920, %v5922
        %v5924 = vrot.slane %v5680, 1
        %v5925 = vsel %vm1514, %v5922, %v5924
        %v5926 = vrot.slane %v5681, 1
        %v5927 = vsel %vm1514, %v5924, %v5926
        %v5928 = vrot.slane %v5682, 1
        %v5929 = vsel %vm1514, %v5926, %v5928
        %v5930 = vrot.slane %v5683, 1
        %v5931 = vsel %vm1514, %v5928, %v5930
        %v5932 = vrot.slane %v5684, 1
        %v5933 = vsel %vm1514, %v5930, %v5932
        %v5934 = vrot.slane %v5685, 1
        %v5935 = vsel %vm1514, %v5932, %v5934
        %v5936 = vrot.slane %v5686, 1
        %v5937 = vsel %vm1514, %v5934, %v5936
        %v5938 = vrot.slane %v5687, 1
        %v5939 = vsel %vm1514, %v5936, %v5938
        %v5940 = vrot.slane %v5688, 1
        %v5941 = vsel %vm1514, %v5938, %v5940
        %v5942 = vrot.slane %v5689, 1
        %v5943 = vsel %vm1514, %v5940, %v5942
        %v5944 = vrot.slane %v5690, 1
        %v5945 = vsel %vm1514, %v5942, %v5944
        %v5946 = vrot.slane %v5691, 1
        %v5947 = vsel %vm1514, %v5944, %v5946
        %v5948 = vrot.slane %v5692, 1
        %v5949 = vsel %vm1514, %v5946, %v5948
        %v5950 = vrot.slane %v5693, 1
        %v5951 = vsel %vm1514, %v5948, %v5950
        %v5952 = vrot.slane %v5694, 1
        %v5953 = vsel %vm1514, %v5950, %v5952
        %v5954 = vrot.slane %v5695, 1
        %v5955 = vsel %vm1514, %v5952, %v5954
        %v5956 = vrot.slane %v5696, 1
        %v5957 = vsel %vm1514, %v5954, %v5956
        %v5958 = vrot.slane %v5697, 1
        %v5959 = vsel %vm1514, %v5956, %v5958
        %v5960 = vrot.slane %v5698, 1
        %v5961 = vsel %vm1514, %v5958, %v5960
        %v5962 = vrot.slane %v5699, 1
        %v5963 = vsel %vm1514, %v5960, %v5962
        %v5964 = vrot.slane %v5700, 1
        %v5965 = vsel %vm1514, %v5962, %v5964
        %v5966 = vrot.slane %v5701, 1
        %v5967 = vsel %vm1514, %v5964, %v5966
        %v5968 = vrot.slane %v5702, 1
        %v5969 = vsel %vm1514, %v5966, %v5968
        %v5970 = vrot.slane %v5703, 1
        %v5971 = vsel %vm1514, %v5968, %v5970
        %v5972 = vrot.slane %v5704, 1
        %v5973 = vsel %vm1514, %v5970, %v5972
        %v5974 = vrot.slane %v5705, 1
        %v5975 = vsel %vm1514, %v5972, %v5974
        %v5976 = vrot.slane %v5706, 1
        %v5977 = vsel %vm1514, %v5974, %v5976
        %v5978 = vrot.slane %v5707, 1
        %v5979 = vsel %vm1514, %v5976, %v5978
        %v5980 = vrot.slane 0.0, 1
        %v5981 = vsel %vm1514, %v5978, %v5980
        %v6073 = vmax.f32 %v5617, %v5801
        %v6074 = vmax.f32 %v5618, %v5803
        %v6075 = vmax.f32 %v5619, %v5805
        %v6076 = vmax.f32 %v5620, %v5807
        %v6077 = vmax.f32 %v5621, %v5809
        %v6078 = vmax.f32 %v5622, %v5811
        %v6079 = vmax.f32 %v5623, %v5813
        %v6080 = vmax.f32 %v5624, %v5815
        %v6081 = vmax.f32 %v5625, %v5817
        %v6082 = vmax.f32 %v5626, %v5819
        %v6083 = vmax.f32 %v5627, %v5821
        %v6084 = vmax.f32 %v5628, %v5823
        %v6085 = vmax.f32 %v5629, %v5825
        %v6086 = vmax.f32 %v5630, %v5827
        %v6087 = vmax.f32 %v5631, %v5829
        %v6088 = vmax.f32 %v5632, %v5831
        %v6089 = vmax.f32 %v5633, %v5833
        %v6090 = vmax.f32 %v5634, %v5835
        %v6091 = vmax.f32 %v5635, %v5837
        %v6092 = vmax.f32 %v5636, %v5839
        %v6093 = vmax.f32 %v5637, %v5841
        %v6094 = vmax.f32 %v5638, %v5843
        %v6095 = vmax.f32 %v5639, %v5845
        %v6096 = vmax.f32 %v5640, %v5847
        %v6097 = vmax.f32 %v5641, %v5849
        %v6098 = vmax.f32 %v5642, %v5851
        %v6099 = vmax.f32 %v5643, %v5853
        %v6100 = vmax.f32 %v5644, %v5855
        %v6101 = vmax.f32 %v5645, %v5857
        %v6102 = vmax.f32 %v5646, %v5859
        %v6103 = vmax.f32 %v5647, %v5861
        %v6104 = vmax.f32 %v5648, %v5863
        %v6105 = vmax.f32 %v5649, %v5865
        %v6106 = vmax.f32 %v5650, %v5867
        %v6107 = vmax.f32 %v5651, %v5869
        %v6108 = vmax.f32 %v5652, %v5871
        %v6109 = vmax.f32 %v5653, %v5873
        %v6110 = vmax.f32 %v5654, %v5875
        %v6111 = vmax.f32 %v5655, %v5877
        %v6112 = vmax.f32 %v5656, %v5879
        %v6113 = vmax.f32 %v5657, %v5881
        %v6114 = vmax.f32 %v5658, %v5883
        %v6115 = vmax.f32 %v5659, %v5885
        %v6116 = vmax.f32 %v5660, %v5887
        %v6117 = vmax.f32 %v5661, %v5889
        %v6118 = vmax.f32 %v5662, %v5891
        %v6119 = vmax.f32 %v5663, %v5893
        %v6120 = vmax.f32 %v5664, %v5895
        %v6121 = vmax.f32 %v5665, %v5897
        %v6122 = vmax.f32 %v5666, %v5899
        %v6123 = vmax.f32 %v5667, %v5901
        %v6124 = vmax.f32 %v5668, %v5903
        %v6125 = vmax.f32 %v5669, %v5905
        %v6126 = vmax.f32 %v5670, %v5907
        %v6127 = vmax.f32 %v5671, %v5909
        %v6128 = vmax.f32 %v5672, %v5911
        %v6129 = vmax.f32 %v5673, %v5913
        %v6130 = vmax.f32 %v5674, %v5915
        %v6131 = vmax.f32 %v5675, %v5917
        %v6132 = vmax.f32 %v5676, %v5919
        %v6133 = vmax.f32 %v5677, %v5921
        %v6134 = vmax.f32 %v5678, %v5923
        %v6135 = vmax.f32 %v5679, %v5925
        %v6136 = vmax.f32 %v5680, %v5927
        %v6137 = vmax.f32 %v5681, %v5929
        %v6138 = vmax.f32 %v5682, %v5931
        %v6139 = vmax.f32 %v5683, %v5933
        %v6140 = vmax.f32 %v5684, %v5935
        %v6141 = vmax.f32 %v5685, %v5937
        %v6142 = vmax.f32 %v5686, %v5939
        %v6143 = vmax.f32 %v5687, %v5941
        %v6144 = vmax.f32 %v5688, %v5943
        %v6145 = vmax.f32 %v5689, %v5945
        %v6146 = vmax.f32 %v5690, %v5947
        %v6147 = vmax.f32 %v5691, %v5949
        %v6148 = vmax.f32 %v5692, %v5951
        %v6149 = vmax.f32 %v5693, %v5953
        %v6150 = vmax.f32 %v5694, %v5955
        %v6151 = vmax.f32 %v5695, %v5957
        %v6152 = vmax.f32 %v5696, %v5959
        %v6153 = vmax.f32 %v5697, %v5961
        %v6154 = vmax.f32 %v5698, %v5963
        %v6155 = vmax.f32 %v5699, %v5965
        %v6156 = vmax.f32 %v5700, %v5967
        %v6157 = vmax.f32 %v5701, %v5969
        %v6158 = vmax.f32 %v5702, %v5971
        %v6159 = vmax.f32 %v5703, %v5973
        %v6160 = vmax.f32 %v5704, %v5975
        %v6161 = vmax.f32 %v5705, %v5977
        %v6162 = vmax.f32 %v5706, %v5979
        %v6163 = vmax.f32 %v5707, %v5981
        %v6252 = vrot.slane %v6076, 4
        %v6253 = vrot.slane %v6077, 4
        %v6254 = vsel %vm2637, %v6252, %v6253
        %v6255 = vrot.slane %v6078, 4
        %v6256 = vsel %vm2637, %v6253, %v6255
        %v6257 = vrot.slane %v6079, 4
        %v6258 = vsel %vm2637, %v6255, %v6257
        %v6259 = vrot.slane %v6080, 4
        %v6260 = vsel %vm2637, %v6257, %v6259
        %v6261 = vrot.slane %v6081, 4
        %v6262 = vsel %vm2637, %v6259, %v6261
        %v6263 = vrot.slane %v6082, 4
        %v6264 = vsel %vm2637, %v6261, %v6263
        %v6265 = vrot.slane %v6083, 4
        %v6266 = vsel %vm2637, %v6263, %v6265
        %v6267 = vrot.slane %v6084, 4
        %v6268 = vsel %vm2637, %v6265, %v6267
        %v6269 = vrot.slane %v6085, 4
        %v6270 = vsel %vm2637, %v6267, %v6269
        %v6271 = vrot.slane %v6086, 4
        %v6272 = vsel %vm2637, %v6269, %v6271
        %v6273 = vrot.slane %v6087, 4
        %v6274 = vsel %vm2637, %v6271, %v6273
        %v6275 = vrot.slane %v6088, 4
        %v6276 = vsel %vm2637, %v6273, %v6275
        %v6277 = vrot.slane %v6089, 4
        %v6278 = vsel %vm2637, %v6275, %v6277
        %v6279 = vrot.slane %v6090, 4
        %v6280 = vsel %vm2637, %v6277, %v6279
        %v6281 = vrot.slane %v6091, 4
        %v6282 = vsel %vm2637, %v6279, %v6281
        %v6283 = vrot.slane %v6092, 4
        %v6284 = vsel %vm2637, %v6281, %v6283
        %v6285 = vrot.slane %v6093, 4
        %v6286 = vsel %vm2637, %v6283, %v6285
        %v6287 = vrot.slane %v6094, 4
        %v6288 = vsel %vm2637, %v6285, %v6287
        %v6289 = vrot.slane %v6095, 4
        %v6290 = vsel %vm2637, %v6287, %v6289
        %v6291 = vrot.slane %v6096, 4
        %v6292 = vsel %vm2637, %v6289, %v6291
        %v6293 = vrot.slane %v6097, 4
        %v6294 = vsel %vm2637, %v6291, %v6293
        %v6295 = vrot.slane %v6098, 4
        %v6296 = vsel %vm2637, %v6293, %v6295
        %v6297 = vrot.slane %v6099, 4
        %v6298 = vsel %vm2637, %v6295, %v6297
        %v6299 = vrot.slane %v6100, 4
        %v6300 = vsel %vm2637, %v6297, %v6299
        %v6301 = vrot.slane %v6101, 4
        %v6302 = vsel %vm2637, %v6299, %v6301
        %v6303 = vrot.slane %v6102, 4
        %v6304 = vsel %vm2637, %v6301, %v6303
        %v6305 = vrot.slane %v6103, 4
        %v6306 = vsel %vm2637, %v6303, %v6305
        %v6307 = vrot.slane %v6104, 4
        %v6308 = vsel %vm2637, %v6305, %v6307
        %v6309 = vrot.slane %v6105, 4
        %v6310 = vsel %vm2637, %v6307, %v6309
        %v6311 = vrot.slane %v6106, 4
        %v6312 = vsel %vm2637, %v6309, %v6311
        %v6313 = vrot.slane %v6107, 4
        %v6314 = vsel %vm2637, %v6311, %v6313
        %v6315 = vrot.slane %v6108, 4
        %v6316 = vsel %vm2637, %v6313, %v6315
        %v6317 = vrot.slane %v6109, 4
        %v6318 = vsel %vm2637, %v6315, %v6317
        %v6319 = vrot.slane %v6110, 4
        %v6320 = vsel %vm2637, %v6317, %v6319
        %v6321 = vrot.slane %v6111, 4
        %v6322 = vsel %vm2637, %v6319, %v6321
        %v6323 = vrot.slane %v6112, 4
        %v6324 = vsel %vm2637, %v6321, %v6323
        %v6325 = vrot.slane %v6113, 4
        %v6326 = vsel %vm2637, %v6323, %v6325
        %v6327 = vrot.slane %v6114, 4
        %v6328 = vsel %vm2637, %v6325, %v6327
        %v6329 = vrot.slane %v6115, 4
        %v6330 = vsel %vm2637, %v6327, %v6329
        %v6331 = vrot.slane %v6116, 4
        %v6332 = vsel %vm2637, %v6329, %v6331
        %v6333 = vrot.slane %v6117, 4
        %v6334 = vsel %vm2637, %v6331, %v6333
        %v6335 = vrot.slane %v6118, 4
        %v6336 = vsel %vm2637, %v6333, %v6335
        %v6337 = vrot.slane %v6119, 4
        %v6338 = vsel %vm2637, %v6335, %v6337
        %v6339 = vrot.slane %v6120, 4
        %v6340 = vsel %vm2637, %v6337, %v6339
        %v6341 = vrot.slane %v6121, 4
        %v6342 = vsel %vm2637, %v6339, %v6341
        %v6343 = vrot.slane %v6122, 4
        %v6344 = vsel %vm2637, %v6341, %v6343
        %v6345 = vrot.slane %v6123, 4
        %v6346 = vsel %vm2637, %v6343, %v6345
        %v6347 = vrot.slane %v6124, 4
        %v6348 = vsel %vm2637, %v6345, %v6347
        %v6349 = vrot.slane %v6125, 4
        %v6350 = vsel %vm2637, %v6347, %v6349
        %v6351 = vrot.slane %v6126, 4
        %v6352 = vsel %vm2637, %v6349, %v6351
        %v6353 = vrot.slane %v6127, 4
        %v6354 = vsel %vm2637, %v6351, %v6353
        %v6355 = vrot.slane %v6128, 4
        %v6356 = vsel %vm2637, %v6353, %v6355
        %v6357 = vrot.slane %v6129, 4
        %v6358 = vsel %vm2637, %v6355, %v6357
        %v6359 = vrot.slane %v6130, 4
        %v6360 = vsel %vm2637, %v6357, %v6359
        %v6361 = vrot.slane %v6131, 4
        %v6362 = vsel %vm2637, %v6359, %v6361
        %v6363 = vrot.slane %v6132, 4
        %v6364 = vsel %vm2637, %v6361, %v6363
        %v6365 = vrot.slane %v6133, 4
        %v6366 = vsel %vm2637, %v6363, %v6365
        %v6367 = vrot.slane %v6134, 4
        %v6368 = vsel %vm2637, %v6365, %v6367
        %v6369 = vrot.slane %v6135, 4
        %v6370 = vsel %vm2637, %v6367, %v6369
        %v6371 = vrot.slane %v6136, 4
        %v6372 = vsel %vm2637, %v6369, %v6371
        %v6373 = vrot.slane %v6137, 4
        %v6374 = vsel %vm2637, %v6371, %v6373
        %v6375 = vrot.slane %v6138, 4
        %v6376 = vsel %vm2637, %v6373, %v6375
        %v6377 = vrot.slane %v6139, 4
        %v6378 = vsel %vm2637, %v6375, %v6377
        %v6379 = vrot.slane %v6140, 4
        %v6380 = vsel %vm2637, %v6377, %v6379
        %v6381 = vrot.slane %v6141, 4
        %v6382 = vsel %vm2637, %v6379, %v6381
        %v6383 = vrot.slane %v6142, 4
        %v6384 = vsel %vm2637, %v6381, %v6383
        %v6385 = vrot.slane %v6143, 4
        %v6386 = vsel %vm2637, %v6383, %v6385
        %v6387 = vrot.slane %v6144, 4
        %v6388 = vsel %vm2637, %v6385, %v6387
        %v6389 = vrot.slane %v6145, 4
        %v6390 = vsel %vm2637, %v6387, %v6389
        %v6391 = vrot.slane %v6146, 4
        %v6392 = vsel %vm2637, %v6389, %v6391
        %v6393 = vrot.slane %v6147, 4
        %v6394 = vsel %vm2637, %v6391, %v6393
        %v6395 = vrot.slane %v6148, 4
        %v6396 = vsel %vm2637, %v6393, %v6395
        %v6397 = vrot.slane %v6149, 4
        %v6398 = vsel %vm2637, %v6395, %v6397
        %v6399 = vrot.slane %v6150, 4
        %v6400 = vsel %vm2637, %v6397, %v6399
        %v6401 = vrot.slane %v6151, 4
        %v6402 = vsel %vm2637, %v6399, %v6401
        %v6403 = vrot.slane %v6152, 4
        %v6404 = vsel %vm2637, %v6401, %v6403
        %v6405 = vrot.slane %v6153, 4
        %v6406 = vsel %vm2637, %v6403, %v6405
        %v6407 = vrot.slane %v6154, 4
        %v6408 = vsel %vm2637, %v6405, %v6407
        %v6409 = vrot.slane %v6155, 4
        %v6410 = vsel %vm2637, %v6407, %v6409
        %v6411 = vrot.slane %v6156, 4
        %v6412 = vsel %vm2637, %v6409, %v6411
        %v6413 = vrot.slane %v6157, 4
        %v6414 = vsel %vm2637, %v6411, %v6413
        %v6415 = vrot.slane %v6158, 4
        %v6416 = vsel %vm2637, %v6413, %v6415
        %v6417 = vrot.slane %v6159, 4
        %v6418 = vsel %vm2637, %v6415, %v6417
        %v6419 = vrot.slane %v6160, 4
        %v6420 = vsel %vm2637, %v6417, %v6419
        %v6421 = vrot.slane %v6161, 4
        %v6422 = vsel %vm2637, %v6419, %v6421
        %v6423 = vrot.slane %v6162, 4
        %v6424 = vsel %vm2637, %v6421, %v6423
        %v6425 = vrot.slane %v6163, 4
        %v6426 = vsel %vm2637, %v6423, %v6425
        %v6515 = vmax.f32 %v6073, %v6254
        %v6516 = vmax.f32 %v6074, %v6256
        %v6517 = vmax.f32 %v6075, %v6258
        %v6518 = vmax.f32 %v6076, %v6260
        %v6519 = vmax.f32 %v6077, %v6262
        %v6520 = vmax.f32 %v6078, %v6264
        %v6521 = vmax.f32 %v6079, %v6266
        %v6522 = vmax.f32 %v6080, %v6268
        %v6523 = vmax.f32 %v6081, %v6270
        %v6524 = vmax.f32 %v6082, %v6272
        %v6525 = vmax.f32 %v6083, %v6274
        %v6526 = vmax.f32 %v6084, %v6276
        %v6527 = vmax.f32 %v6085, %v6278
        %v6528 = vmax.f32 %v6086, %v6280
        %v6529 = vmax.f32 %v6087, %v6282
        %v6530 = vmax.f32 %v6088, %v6284
        %v6531 = vmax.f32 %v6089, %v6286
        %v6532 = vmax.f32 %v6090, %v6288
        %v6533 = vmax.f32 %v6091, %v6290
        %v6534 = vmax.f32 %v6092, %v6292
        %v6535 = vmax.f32 %v6093, %v6294
        %v6536 = vmax.f32 %v6094, %v6296
        %v6537 = vmax.f32 %v6095, %v6298
        %v6538 = vmax.f32 %v6096, %v6300
        %v6539 = vmax.f32 %v6097, %v6302
        %v6540 = vmax.f32 %v6098, %v6304
        %v6541 = vmax.f32 %v6099, %v6306
        %v6542 = vmax.f32 %v6100, %v6308
        %v6543 = vmax.f32 %v6101, %v6310
        %v6544 = vmax.f32 %v6102, %v6312
        %v6545 = vmax.f32 %v6103, %v6314
        %v6546 = vmax.f32 %v6104, %v6316
        %v6547 = vmax.f32 %v6105, %v6318
        %v6548 = vmax.f32 %v6106, %v6320
        %v6549 = vmax.f32 %v6107, %v6322
        %v6550 = vmax.f32 %v6108, %v6324
        %v6551 = vmax.f32 %v6109, %v6326
        %v6552 = vmax.f32 %v6110, %v6328
        %v6553 = vmax.f32 %v6111, %v6330
        %v6554 = vmax.f32 %v6112, %v6332
        %v6555 = vmax.f32 %v6113, %v6334
        %v6556 = vmax.f32 %v6114, %v6336
        %v6557 = vmax.f32 %v6115, %v6338
        %v6558 = vmax.f32 %v6116, %v6340
        %v6559 = vmax.f32 %v6117, %v6342
        %v6560 = vmax.f32 %v6118, %v6344
        %v6561 = vmax.f32 %v6119, %v6346
        %v6562 = vmax.f32 %v6120, %v6348
        %v6563 = vmax.f32 %v6121, %v6350
        %v6564 = vmax.f32 %v6122, %v6352
        %v6565 = vmax.f32 %v6123, %v6354
        %v6566 = vmax.f32 %v6124, %v6356
        %v6567 = vmax.f32 %v6125, %v6358
        %v6568 = vmax.f32 %v6126, %v6360
        %v6569 = vmax.f32 %v6127, %v6362
        %v6570 = vmax.f32 %v6128, %v6364
        %v6571 = vmax.f32 %v6129, %v6366
        %v6572 = vmax.f32 %v6130, %v6368
        %v6573 = vmax.f32 %v6131, %v6370
        %v6574 = vmax.f32 %v6132, %v6372
        %v6575 = vmax.f32 %v6133, %v6374
        %v6576 = vmax.f32 %v6134, %v6376
        %v6577 = vmax.f32 %v6135, %v6378
        %v6578 = vmax.f32 %v6136, %v6380
        %v6579 = vmax.f32 %v6137, %v6382
        %v6580 = vmax.f32 %v6138, %v6384
        %v6581 = vmax.f32 %v6139, %v6386
        %v6582 = vmax.f32 %v6140, %v6388
        %v6583 = vmax.f32 %v6141, %v6390
        %v6584 = vmax.f32 %v6142, %v6392
        %v6585 = vmax.f32 %v6143, %v6394
        %v6586 = vmax.f32 %v6144, %v6396
        %v6587 = vmax.f32 %v6145, %v6398
        %v6588 = vmax.f32 %v6146, %v6400
        %v6589 = vmax.f32 %v6147, %v6402
        %v6590 = vmax.f32 %v6148, %v6404
        %v6591 = vmax.f32 %v6149, %v6406
        %v6592 = vmax.f32 %v6150, %v6408
        %v6593 = vmax.f32 %v6151, %v6410
        %v6594 = vmax.f32 %v6152, %v6412
        %v6595 = vmax.f32 %v6153, %v6414
        %v6596 = vmax.f32 %v6154, %v6416
        %v6597 = vmax.f32 %v6155, %v6418
        %v6598 = vmax.f32 %v6156, %v6420
        %v6599 = vmax.f32 %v6157, %v6422
        %v6600 = vmax.f32 %v6158, %v6424
        %v6601 = vmax.f32 %v6159, %v6426
        %v6602 = vmax.f32 %v6160, %v6425
        %vm6603 = vcmask 261120
        %6604 = vst.msk [vmem:[#allocation2] sm:$0xff] %vm6603, %v6515
        %6605 = vst.msk [vmem:[#allocation2 + $0x8] sm:$0xff] %vm6603, %v6516
        %6606 = vst.msk [vmem:[#allocation2 + $0x10] sm:$0xff] %vm6603, %v6517
        %6607 = vst.msk [vmem:[#allocation2 + $0x18] sm:$0xff] %vm6603, %v6518
        %6608 = vst.msk [vmem:[#allocation2 + $0x20] sm:$0xff] %vm6603, %v6519
        %6609 = vst.msk [vmem:[#allocation2 + $0x28] sm:$0xff] %vm6603, %v6520
        %6610 = vst.msk [vmem:[#allocation2 + $0x30] sm:$0xff] %vm6603, %v6521
        %6611 = vst.msk [vmem:[#allocation2 + $0x38] sm:$0xff] %vm6603, %v6522
        %6612 = vst.msk [vmem:[#allocation2 + $0x40] sm:$0xff] %vm6603, %v6523
        %6613 = vst.msk [vmem:[#allocation2 + $0x48] sm:$0xff] %vm6603, %v6524
        %6614 = vst.msk [vmem:[#allocation2 + $0x50] sm:$0xff] %vm6603, %v6525
        %6615 = vst.msk [vmem:[#allocation2 + $0x58] sm:$0xff] %vm6603, %v6526
        %6616 = vst.msk [vmem:[#allocation2 + $0x60] sm:$0xff] %vm6603, %v6527
        %6617 = vst.msk [vmem:[#allocation2 + $0x68] sm:$0xff] %vm6603, %v6528
        %6618 = vst.msk [vmem:[#allocation2 + $0x70] sm:$0xff] %vm6603, %v6529
        %6619 = vst.msk [vmem:[#allocation2 + $0x78] sm:$0xff] %vm6603, %v6530
        %6620 = vst.msk [vmem:[#allocation2 + $0x80] sm:$0xff] %vm6603, %v6531
        %6621 = vst.msk [vmem:[#allocation2 + $0x88] sm:$0xff] %vm6603, %v6532
        %6622 = vst.msk [vmem:[#allocation2 + $0x90] sm:$0xff] %vm6603, %v6533
        %6623 = vst.msk [vmem:[#allocation2 + $0x98] sm:$0xff] %vm6603, %v6534
        %6624 = vst.msk [vmem:[#allocation2 + $0xa0] sm:$0xff] %vm6603, %v6535
        %6625 = vst.msk [vmem:[#allocation2 + $0xa8] sm:$0xff] %vm6603, %v6536
        %6626 = vst.msk [vmem:[#allocation2 + $0xb0] sm:$0xff] %vm6603, %v6537
        %6627 = vst.msk [vmem:[#allocation2 + $0xb8] sm:$0xff] %vm6603, %v6538
        %6628 = vst.msk [vmem:[#allocation2 + $0xc0] sm:$0xff] %vm6603, %v6539
        %6629 = vst.msk [vmem:[#allocation2 + $0xc8] sm:$0xff] %vm6603, %v6540
        %6630 = vst.msk [vmem:[#allocation2 + $0xd0] sm:$0xff] %vm6603, %v6541
        %6631 = vst.msk [vmem:[#allocation2 + $0xd8] sm:$0xff] %vm6603, %v6542
        %6632 = vst.msk [vmem:[#allocation2 + $0xe0] sm:$0xff] %vm6603, %v6543
        %6633 = vst.msk [vmem:[#allocation2 + $0xe8] sm:$0xff] %vm6603, %v6544
        %6634 = vst.msk [vmem:[#allocation2 + $0xf0] sm:$0xff] %vm6603, %v6545
        %6635 = vst.msk [vmem:[#allocation2 + $0xf8] sm:$0xff] %vm6603, %v6546
        %6636 = vst.msk [vmem:[#allocation2 + $0x100] sm:$0xff] %vm6603, %v6547
        %6637 = vst.msk [vmem:[#allocation2 + $0x108] sm:$0xff] %vm6603, %v6548
        %6638 = vst.msk [vmem:[#allocation2 + $0x110] sm:$0xff] %vm6603, %v6549
        %6639 = vst.msk [vmem:[#allocation2 + $0x118] sm:$0xff] %vm6603, %v6550
        %6640 = vst.msk [vmem:[#allocation2 + $0x120] sm:$0xff] %vm6603, %v6551
        %6641 = vst.msk [vmem:[#allocation2 + $0x128] sm:$0xff] %vm6603, %v6552
        %6642 = vst.msk [vmem:[#allocation2 + $0x130] sm:$0xff] %vm6603, %v6553
        %6643 = vst.msk [vmem:[#allocation2 + $0x138] sm:$0xff] %vm6603, %v6554
        %6644 = vst.msk [vmem:[#allocation2 + $0x140] sm:$0xff] %vm6603, %v6555
        %6645 = vst.msk [vmem:[#allocation2 + $0x148] sm:$0xff] %vm6603, %v6556
        %6646 = vst.msk [vmem:[#allocation2 + $0x150] sm:$0xff] %vm6603, %v6557
        %6647 = vst.msk [vmem:[#allocation2 + $0x158] sm:$0xff] %vm6603, %v6558
        %6648 = vst.msk [vmem:[#allocation2 + $0x160] sm:$0xff] %vm6603, %v6559
        %6649 = vst.msk [vmem:[#allocation2 + $0x168] sm:$0xff] %vm6603, %v6560
        %6650 = vst.msk [vmem:[#allocation2 + $0x170] sm:$0xff] %vm6603, %v6561
        %6651 = vst.msk [vmem:[#allocation2 + $0x178] sm:$0xff] %vm6603, %v6562
        %6652 = vst.msk [vmem:[#allocation2 + $0x180] sm:$0xff] %vm6603, %v6563
        %6653 = vst.msk [vmem:[#allocation2 + $0x188] sm:$0xff] %vm6603, %v6564
        %6654 = vst.msk [vmem:[#allocation2 + $0x190] sm:$0xff] %vm6603, %v6565
        %6655 = vst.msk [vmem:[#allocation2 + $0x198] sm:$0xff] %vm6603, %v6566
        %6656 = vst.msk [vmem:[#allocation2 + $0x1a0] sm:$0xff] %vm6603, %v6567
        %6657 = vst.msk [vmem:[#allocation2 + $0x1a8] sm:$0xff] %vm6603, %v6568
        %6658 = vst.msk [vmem:[#allocation2 + $0x1b0] sm:$0xff] %vm6603, %v6569
        %6659 = vst.msk [vmem:[#allocation2 + $0x1b8] sm:$0xff] %vm6603, %v6570
        %6660 = vst.msk [vmem:[#allocation2 + $0x1c0] sm:$0xff] %vm6603, %v6571
        %6661 = vst.msk [vmem:[#allocation2 + $0x1c8] sm:$0xff] %vm6603, %v6572
        %6662 = vst.msk [vmem:[#allocation2 + $0x1d0] sm:$0xff] %vm6603, %v6573
        %6663 = vst.msk [vmem:[#allocation2 + $0x1d8] sm:$0xff] %vm6603, %v6574
        %6664 = vst.msk [vmem:[#allocation2 + $0x1e0] sm:$0xff] %vm6603, %v6575
        %6665 = vst.msk [vmem:[#allocation2 + $0x1e8] sm:$0xff] %vm6603, %v6576
        %6666 = vst.msk [vmem:[#allocation2 + $0x1f0] sm:$0xff] %vm6603, %v6577
        %6667 = vst.msk [vmem:[#allocation2 + $0x1f8] sm:$0xff] %vm6603, %v6578
        %6668 = vst.msk [vmem:[#allocation2 + $0x200] sm:$0xff] %vm6603, %v6579
        %6669 = vst.msk [vmem:[#allocation2 + $0x208] sm:$0xff] %vm6603, %v6580
        %6670 = vst.msk [vmem:[#allocation2 + $0x210] sm:$0xff] %vm6603, %v6581
        %6671 = vst.msk [vmem:[#allocation2 + $0x218] sm:$0xff] %vm6603, %v6582
        %6672 = vst.msk [vmem:[#allocation2 + $0x220] sm:$0xff] %vm6603, %v6583
        %6673 = vst.msk [vmem:[#allocation2 + $0x228] sm:$0xff] %vm6603, %v6584
        %6674 = vst.msk [vmem:[#allocation2 + $0x230] sm:$0xff] %vm6603, %v6585
        %6675 = vst.msk [vmem:[#allocation2 + $0x238] sm:$0xff] %vm6603, %v6586
        %6676 = vst.msk [vmem:[#allocation2 + $0x240] sm:$0xff] %vm6603, %v6587
        %6677 = vst.msk [vmem:[#allocation2 + $0x248] sm:$0xff] %vm6603, %v6588
        %6678 = vst.msk [vmem:[#allocation2 + $0x250] sm:$0xff] %vm6603, %v6589
        %6679 = vst.msk [vmem:[#allocation2 + $0x258] sm:$0xff] %vm6603, %v6590
        %6680 = vst.msk [vmem:[#allocation2 + $0x260] sm:$0xff] %vm6603, %v6591
        %6681 = vst.msk [vmem:[#allocation2 + $0x268] sm:$0xff] %vm6603, %v6592
        %6682 = vst.msk [vmem:[#allocation2 + $0x270] sm:$0xff] %vm6603, %v6593
        %6683 = vst.msk [vmem:[#allocation2 + $0x278] sm:$0xff] %vm6603, %v6594
        %6684 = vst.msk [vmem:[#allocation2 + $0x280] sm:$0xff] %vm6603, %v6595
        %6685 = vst.msk [vmem:[#allocation2 + $0x288] sm:$0xff] %vm6603, %v6596
        %6686 = vst.msk [vmem:[#allocation2 + $0x290] sm:$0xff] %vm6603, %v6597
        %6687 = vst.msk [vmem:[#allocation2 + $0x298] sm:$0xff] %vm6603, %v6598
        %6688 = vst.msk [vmem:[#allocation2 + $0x2a0] sm:$0xff] %vm6603, %v6599
        %6689 = vst.msk [vmem:[#allocation2 + $0x2a8] sm:$0xff] %vm6603, %v6600
        %6690 = vst.msk [vmem:[#allocation2 + $0x2b0] sm:$0xff] %vm6603, %v6601
        %vm6691 = vcmask 257024
        %6692 = vst.msk [vmem:[#allocation2 + $0x2b8] sm:$0xf] %vm6691, %v6602
        %v6693 = vld [vmem:[#allocation2] ss:$2 sm:$0xff]
        %s6694 = scalar_lea.vmem [#allocation2], 16
        %v6695 = vld [vmem:[%s6694] ss:$2 sm:$0x1f]
        %v6696 = vpack.c.bf16 %v6695, %v6693
        %v6698 = vunpack.c.l.b16 %v6696
        %v6699 = vunpack.c.h.b16 %v6696
        %v6700 = vpack.c.b16 %v6698, %v6698
        %v6701 = vpack.c.b16 %v6699, %v6699
        %6704 = vst.msk [vmem:[#allocation4] sm:$0xf] %vm6691, %v6700
        %vm6705 = vcmask 256000
        %vm6706 = vsmask.f32 2304
        %vm6707 = vmand %vm6705, %vm6706
        %v6708 = vld [vmem:[#allocation4 + $0x4] sm:$0x7]
        %v6709 = vsel %vm6707, %v6701, %v6708
        %6710 = vst [vmem:[#allocation4 + $0x4] sm:$0x7] %v6709
        %s6711 = scalar_lea.vmem [#allocation2], 56
        %v6712 = vld [vmem:[%s6711] ss:$2 sm:$0xff]
        %s6713 = scalar_lea.vmem [#allocation2], 72
        %v6714 = vld [vmem:[%s6713] ss:$2 sm:$0x1f]
        %v6715 = vpack.c.bf16 %v6714, %v6712
        %v6717 = vunpack.c.l.b16 %v6715
        %v6718 = vunpack.c.h.b16 %v6715
        %v6719 = vpack.c.b16 %v6717, %v6717
        %v6720 = vpack.c.b16 %v6718, %v6718
        %vm6721 = vsmask.f32 6416
        %vm6722 = vmor %vm6706, %vm6721
        %v6724 = vshrl.u32 %v6719, 16
        %v6726 = vrot.slane %v6724, 5
        %v6727 = vshll.u32 %v6719, 16
        %v6729 = vrot.slane %v6727, 6
        %v6730 = vor.u32 %v6726, %v6729
        %v6731 = vrot.slane %v6730, 4
        %v6733 = vshrl.u32 %v6720, 16
        %v6735 = vrot.slane %v6733, 5
        %v6736 = vshll.u32 %v6720, 16
        %v6738 = vrot.slane %v6736, 6
        %v6739 = vor.u32 %v6735, %v6738
        %v6740 = vsel %vm6722, %v6731, %v6739
        %v6741 = vrot.slane %v6739, 4
        %vm6745 = vcmask 257026
        %vm6746 = vsmask.f32 7946
        %vm6747 = vmand %vm6745, %vm6746
        %v6748 = vld [vmem:[#allocation4 + $0x4] sm:$0xc]
        %v6749 = vsel %vm6747, %v6730, %v6748
        %6750 = vst [vmem:[#allocation4 + $0x4] sm:$0xc] %v6749
        %6751 = vst.msk [vmem:[#allocation4 + $0x8] sm:$0xf] %vm6691, %v6740
        %vm6752 = vcmask 253952
        %6753 = vst.msk [vmem:[#allocation4 + $0xc] sm:$0x1] %vm6752, %v6741
        %s6754 = scalar_lea.vmem [#allocation2], 112
        %v6755 = vld [vmem:[%s6754] ss:$2 sm:$0xff]
        %s6756 = scalar_lea.vmem [#allocation2], 128
        %v6757 = vld [vmem:[%s6756] ss:$2 sm:$0x1f]
        %v6758 = vpack.c.bf16 %v6757, %v6755
        %v6760 = vunpack.c.l.b16 %v6758
        %v6761 = vunpack.c.h.b16 %v6758
        %v6762 = vpack.c.b16 %v6760, %v6760
        %v6763 = vpack.c.b16 %v6761, %v6761
        %vm6764 = vcmask 1040384
        %vm6765 = vcmask 1044484
        %vm6766 = vmor %vm6764, %vm6765
        %v6767 = vrot.slane %v6762, 7
        %v6768 = vrot.slane %v6767, 4
        %v6769 = vrot.slane %v6763, 7
        %v6770 = vsel %vm6766, %v6768, %v6769
        %vm6773 = vcmask 257025
        %6774 = vst.msk [vmem:[#allocation4 + $0xc] sm:$0xe] %vm6773, %v6767
        %vm6775 = vcmask 257024
        %vm6776 = vsmask.f32 3328
        %vm6777 = vmand %vm6775, %vm6776
        %v6778 = vld [vmem:[#allocation4 + $0x10] sm:$0xf]
        %v6779 = vsel %vm6777, %v6770, %v6778
        %6780 = vst [vmem:[#allocation4 + $0x10] sm:$0xf] %v6779
        %s6781 = scalar_lea.vmem [#allocation2], 168
        %v6782 = vld [vmem:[%s6781] ss:$2 sm:$0xff]
        %s6783 = scalar_lea.vmem [#allocation2], 184
        %v6784 = vld [vmem:[%s6783] ss:$2 sm:$0x1f]
        %v6785 = vpack.c.bf16 %v6784, %v6782
        %v6787 = vunpack.c.l.b16 %v6785
        %v6788 = vunpack.c.h.b16 %v6785
        %v6789 = vpack.c.b16 %v6787, %v6787
        %v6790 = vpack.c.b16 %v6788, %v6788
        %vm6791 = vsmask.f32 7440
        %vm6792 = vmor %vm6776, %vm6791
        %v6794 = vshll.u32 %v6789, 16
        %v6796 = vrot.slane %v6794, 5
        %v6797 = vshrl.u32 %v6789, 16
        %v6799 = vrot.slane %v6797, 4
        %v6800 = vor.u32 %v6799, %v6796
        %v6801 = vrot.slane %v6800, 4
        %v6803 = vshll.u32 %v6790, 16
        %v6805 = vrot.slane %v6803, 5
        %v6806 = vsel %vm6792, %v6801, %v6805
        %v6807 = vshrl.u32 %v6790, 16
        %v6809 = vrot.slane %v6807, 4
        %v6810 = vor.u32 %v6809, %v6805
        %v6811 = vrot.slane %v6810, 4
        %vm6815 = vcmask 257027
        %vm6816 = vsmask.f32 7950
        %vm6817 = vmand %vm6815, %vm6816
        %v6818 = vld [vmem:[#allocation4 + $0x10] sm:$0x8]
        %v6819 = vsel %vm6817, %v6796, %v6818
        %6820 = vst [vmem:[#allocation4 + $0x10] sm:$0x8] %v6819
        %6821 = vst.msk [vmem:[#allocation4 + $0x14] sm:$0xf] %vm6691, %v6806
        %vm6822 = vcmask 254976
        %6823 = vst.msk [vmem:[#allocation4 + $0x18] sm:$0x3] %vm6822, %v6811
        %s6824 = scalar_lea.vmem [#allocation2], 224
        %v6825 = vld [vmem:[%s6824] ss:$2 sm:$0xff]
        %s6826 = scalar_lea.vmem [#allocation2], 240
        %v6827 = vld [vmem:[%s6826] ss:$2 sm:$0x1f]
        %v6828 = vpack.c.bf16 %v6827, %v6825
        %v6830 = vunpack.c.l.b16 %v6828
        %v6831 = vunpack.c.h.b16 %v6828
        %v6832 = vpack.c.b16 %v6830, %v6830
        %v6833 = vpack.c.b16 %v6831, %v6831
        %vm6834 = vcmask 1041408
        %vm6835 = vcmask 1045508
        %vm6836 = vmor %vm6834, %vm6835
        %v6837 = vrot.slane %v6832, 6
        %v6838 = vrot.slane %v6837, 4
        %v6839 = vrot.slane %v6833, 6
        %v6840 = vsel %vm6836, %v6838, %v6839
        %v6841 = vrot.slane %v6839, 4
        %vm6845 = vcmask 257026
        %6846 = vst.msk [vmem:[#allocation4 + $0x18] sm:$0xc] %vm6845, %v6837
        %6847 = vst.msk [vmem:[#allocation4 + $0x1c] sm:$0xf] %vm6691, %v6840
        %vm6848 = vcmask 253952
        %vm6849 = vsmask.f32 256
        %vm6850 = vmand %vm6848, %vm6849
        %v6851 = vld [vmem:[#allocation4 + $0x20] sm:$0x1]
        %v6852 = vsel %vm6850, %v6841, %v6851
        %6853 = vst [vmem:[#allocation4 + $0x20] sm:$0x1] %v6852
        %s6854 = scalar_lea.vmem [#allocation2], 280
        %v6855 = vld [vmem:[%s6854] ss:$2 sm:$0xff]
        %s6856 = scalar_lea.vmem [#allocation2], 296
        %v6857 = vld [vmem:[%s6856] ss:$2 sm:$0x1f]
        %v6858 = vpack.c.bf16 %v6857, %v6855
        %v6860 = vunpack.c.l.b16 %v6858
        %v6861 = vunpack.c.h.b16 %v6858
        %v6862 = vpack.c.b16 %v6860, %v6860
        %v6863 = vpack.c.b16 %v6861, %v6861
        %vm6864 = vsmask.f32 4368
        %vm6865 = vmor %vm6849, %vm6864
        %v6867 = vshrl.u32 %v6862, 16
        %v6869 = vrot.slane %v6867, 7
        %v6870 = vshll.u32 %v6862, 16
        %v6872 = vor.u32 %v6869, %v6870
        %v6873 = vrot.slane %v6869, 4
        %v6875 = vshrl.u32 %v6863, 16
        %v6877 = vrot.slane %v6875, 7
        %v6878 = vshll.u32 %v6863, 16
        %v6880 = vor.u32 %v6877, %v6878
        %v6881 = vsel %vm6865, %v6873, %v6880
        %vm6884 = vsmask.f32 7938
        %vm6885 = vmand %vm6775, %vm6884
        %v6886 = vld [vmem:[#allocation4 + $0x20] sm:$0xf]
        %v6887 = vsel %vm6885, %v6872, %v6886
        %6888 = vst [vmem:[#allocation4 + $0x20] sm:$0xf] %v6887
        %vm6889 = vcmask 256000
        %6890 = vst.msk [vmem:[#allocation4 + $0x24] sm:$0x7] %vm6889, %v6881
        %s6891 = scalar_lea.vmem [#allocation2], 336
        %v6892 = vld [vmem:[%s6891] ss:$2 sm:$0xff]
        %s6893 = scalar_lea.vmem [#allocation2], 352
        %v6894 = vld [vmem:[%s6893] ss:$2 sm:$0x1f]
        %v6895 = vpack.c.bf16 %v6894, %v6892
        %v6897 = vunpack.c.l.b16 %v6895
        %v6898 = vunpack.c.h.b16 %v6895
        %v6899 = vpack.c.b16 %v6897, %v6897
        %v6900 = vpack.c.b16 %v6898, %v6898
        %vm6901 = vcmask 1042432
        %vm6902 = vcmask 1046532
        %vm6903 = vmor %vm6901, %vm6902
        %v6904 = vrot.slane %v6899, 5
        %v6905 = vrot.slane %v6904, 4
        %v6906 = vrot.slane %v6900, 5
        %v6907 = vsel %vm6903, %v6905, %v6906
        %v6908 = vrot.slane %v6906, 4
        %vm6912 = vcmask 257027
        %6913 = vst.msk [vmem:[#allocation4 + $0x24] sm:$0x8] %vm6912, %v6904
        %6914 = vst.msk [vmem:[#allocation4 + $0x28] sm:$0xf] %vm6691, %v6907
        %vm6915 = vcmask 254976
        %vm6916 = vsmask.f32 1280
        %vm6917 = vmand %vm6915, %vm6916
        %v6918 = vld [vmem:[#allocation4 + $0x2c] sm:$0x3]
        %v6919 = vsel %vm6917, %v6908, %v6918
        %6920 = vst [vmem:[#allocation4 + $0x2c] sm:$0x3] %v6919
        %s6921 = scalar_lea.vmem [#allocation2], 392
        %v6922 = vld [vmem:[%s6921] ss:$2 sm:$0xff]
        %s6923 = scalar_lea.vmem [#allocation2], 408
        %v6924 = vld [vmem:[%s6923] ss:$2 sm:$0x1f]
        %v6925 = vpack.c.bf16 %v6924, %v6922
        %v6927 = vunpack.c.l.b16 %v6925
        %v6928 = vunpack.c.h.b16 %v6925
        %v6929 = vpack.c.b16 %v6927, %v6927
        %v6930 = vpack.c.b16 %v6928, %v6928
        %vm6931 = vsmask.f32 5392
        %vm6932 = vmor %vm6916, %vm6931
        %v6934 = vshrl.u32 %v6929, 16
        %v6936 = vrot.slane %v6934, 6
        %v6937 = vshll.u32 %v6929, 16
        %v6939 = vrot.slane %v6937, 7
        %v6940 = vor.u32 %v6936, %v6939
        %v6941 = vrot.slane %v6940, 4
        %v6943 = vshrl.u32 %v6930, 16
        %v6945 = vrot.slane %v6943, 6
        %v6946 = vshll.u32 %v6930, 16
        %v6948 = vrot.slane %v6946, 7
        %v6949 = vor.u32 %v6945, %v6948
        %v6950 = vsel %vm6932, %v6941, %v6949
        %vm6953 = vcmask 257025
        %vm6954 = vsmask.f32 7942
        %vm6955 = vmand %vm6953, %vm6954
        %v6956 = vld [vmem:[#allocation4 + $0x2c] sm:$0xe]
        %v6957 = vsel %vm6955, %v6940, %v6956
        %6958 = vst [vmem:[#allocation4 + $0x2c] sm:$0xe] %v6957
        %6959 = vst.msk [vmem:[#allocation4 + $0x30] sm:$0xf] %vm6691, %v6950
        %s6960 = scalar_lea.vmem [#allocation2], 448
        %v6961 = vld [vmem:[%s6960] ss:$2 sm:$0xff]
        %s6962 = scalar_lea.vmem [#allocation2], 464
        %v6963 = vld [vmem:[%s6962] ss:$2 sm:$0x1f]
        %v6964 = vpack.c.bf16 %v6963, %v6961
        %v6966 = vunpack.c.l.b16 %v6964
        %v6967 = vunpack.c.h.b16 %v6964
        %v6968 = vpack.c.b16 %v6966, %v6966
        %v6969 = vpack.c.b16 %v6967, %v6967
        %6972 = vst.msk [vmem:[#allocation4 + $0x34] sm:$0xf] %vm6691, %v6968
        %v6973 = vld [vmem:[#allocation4 + $0x38] sm:$0x7]
        %v6974 = vsel %vm6707, %v6969, %v6973
        %6975 = vst [vmem:[#allocation4 + $0x38] sm:$0x7] %v6974
        %s6976 = scalar_lea.vmem [#allocation2], 504
        %v6977 = vld [vmem:[%s6976] ss:$2 sm:$0xff]
        %s6978 = scalar_lea.vmem [#allocation2], 520
        %v6979 = vld [vmem:[%s6978] ss:$2 sm:$0x1f]
        %v6980 = vpack.c.bf16 %v6979, %v6977
        %v6982 = vunpack.c.l.b16 %v6980
        %v6983 = vunpack.c.h.b16 %v6980
        %v6984 = vpack.c.b16 %v6982, %v6982
        %v6985 = vpack.c.b16 %v6983, %v6983
        %v6987 = vshrl.u32 %v6984, 16
        %v6989 = vrot.slane %v6987, 5
        %v6990 = vshll.u32 %v6984, 16
        %v6992 = vrot.slane %v6990, 6
        %v6993 = vor.u32 %v6989, %v6992
        %v6994 = vrot.slane %v6993, 4
        %v6996 = vshrl.u32 %v6985, 16
        %v6998 = vrot.slane %v6996, 5
        %v6999 = vshll.u32 %v6985, 16
        %v7001 = vrot.slane %v6999, 6
        %v7002 = vor.u32 %v6998, %v7001
        %v7003 = vsel %vm6722, %v6994, %v7002
        %v7004 = vrot.slane %v7002, 4
        %v7008 = vld [vmem:[#allocation4 + $0x38] sm:$0xc]
        %v7009 = vsel %vm6747, %v6993, %v7008
        %7010 = vst [vmem:[#allocation4 + $0x38] sm:$0xc] %v7009
        %7011 = vst.msk [vmem:[#allocation4 + $0x3c] sm:$0xf] %vm6691, %v7003
        %7012 = vst.msk [vmem:[#allocation4 + $0x40] sm:$0x1] %vm6752, %v7004
        %s7013 = scalar_lea.vmem [#allocation2], 560
        %v7014 = vld [vmem:[%s7013] ss:$2 sm:$0xff]
        %s7015 = scalar_lea.vmem [#allocation2], 576
        %v7016 = vld [vmem:[%s7015] ss:$2 sm:$0x1f]
        %v7017 = vpack.c.bf16 %v7016, %v7014
        %v7019 = vunpack.c.l.b16 %v7017
        %v7020 = vunpack.c.h.b16 %v7017
        %v7021 = vpack.c.b16 %v7019, %v7019
        %v7022 = vpack.c.b16 %v7020, %v7020
        %v7023 = vrot.slane %v7021, 7
        %v7024 = vrot.slane %v7023, 4
        %v7025 = vrot.slane %v7022, 7
        %v7026 = vsel %vm6766, %v7024, %v7025
        %7029 = vst.msk [vmem:[#allocation4 + $0x40] sm:$0xe] %vm6773, %v7023
        %v7030 = vld [vmem:[#allocation4 + $0x44] sm:$0xf]
        %v7031 = vsel %vm6777, %v7026, %v7030
        %7032 = vst [vmem:[#allocation4 + $0x44] sm:$0xf] %v7031
        %s7033 = scalar_lea.vmem [#allocation2], 616
        %v7034 = vld [vmem:[%s7033] ss:$2 sm:$0xff]
        %s7035 = scalar_lea.vmem [#allocation2], 632
        %v7036 = vld [vmem:[%s7035] ss:$2 sm:$0x1f]
        %v7037 = vpack.c.bf16 %v7036, %v7034
        %v7039 = vunpack.c.l.b16 %v7037
        %v7040 = vunpack.c.h.b16 %v7037
        %v7041 = vpack.c.b16 %v7039, %v7039
        %v7042 = vpack.c.b16 %v7040, %v7040
        %v7044 = vshll.u32 %v7041, 16
        %v7046 = vrot.slane %v7044, 5
        %v7047 = vshrl.u32 %v7041, 16
        %v7049 = vrot.slane %v7047, 4
        %v7050 = vor.u32 %v7049, %v7046
        %v7051 = vrot.slane %v7050, 4
        %v7053 = vshll.u32 %v7042, 16
        %v7055 = vrot.slane %v7053, 5
        %v7056 = vsel %vm6792, %v7051, %v7055
        %v7057 = vshrl.u32 %v7042, 16
        %v7059 = vrot.slane %v7057, 4
        %v7060 = vor.u32 %v7059, %v7055
        %v7061 = vrot.slane %v7060, 4
        %v7065 = vld [vmem:[#allocation4 + $0x44] sm:$0x8]
        %v7066 = vsel %vm6817, %v7046, %v7065
        %7067 = vst [vmem:[#allocation4 + $0x44] sm:$0x8] %v7066
        %7068 = vst.msk [vmem:[#allocation4 + $0x48] sm:$0xf] %vm6691, %v7056
        %7069 = vst.msk [vmem:[#allocation4 + $0x4c] sm:$0x3] %vm6822, %v7061
        %s7070 = scalar_lea.vmem [#allocation2], 672
        %v7071 = vld [vmem:[%s7070] ss:$2 sm:$0xff]
        %s7072 = scalar_lea.vmem [#allocation2], 688
        %v7073 = vld [vmem:[%s7072] ss:$2 sm:$0x1f]
        %v7074 = vpack.c.bf16 %v7073, %v7071
        %v7076 = vunpack.c.l.b16 %v7074
        %v7077 = vunpack.c.h.b16 %v7074
        %v7078 = vpack.c.b16 %v7076, %v7076
        %v7079 = vpack.c.b16 %v7077, %v7077
        %v7080 = vrot.slane %v7078, 6
        %v7081 = vrot.slane %v7080, 4
        %v7082 = vrot.slane %v7079, 6
        %v7083 = vsel %vm6836, %v7081, %v7082
        %v7084 = vrot.slane %v7082, 4
        %7088 = vst.msk [vmem:[#allocation4 + $0x4c] sm:$0xc] %vm6845, %v7080
        %7089 = vst.msk [vmem:[#allocation4 + $0x50] sm:$0xf] %vm6691, %v7083
        %v7090 = vld [vmem:[#allocation4 + $0x54] sm:$0x1]
        %v7091 = vsel %vm6850, %v7084, %v7090
        %7092 = vst [vmem:[#allocation4 + $0x54] sm:$0x1] %v7091
        %v7093 = vld [vmem:[#allocation4] sm:$0xf]
        %v7094 = vld [vmem:[#allocation4 + $0x4] sm:$0xf]
        %v7095 = vld [vmem:[#allocation4 + $0x8] sm:$0xf]
        %v7096 = vld [vmem:[#allocation4 + $0xc] sm:$0xf]
        %v7097 = vld [vmem:[#allocation4 + $0x10] sm:$0xf]
        %v7098 = vld [vmem:[#allocation4 + $0x14] sm:$0xf]
        %v7099 = vld [vmem:[#allocation4 + $0x18] sm:$0xf]
        %v7100 = vld [vmem:[#allocation4 + $0x1c] sm:$0xf]
        %v7101 = vld [vmem:[#allocation4 + $0x20] sm:$0xf]
        %v7102 = vld [vmem:[#allocation4 + $0x24] sm:$0xf]
        %v7103 = vld [vmem:[#allocation4 + $0x28] sm:$0xf]
        %v7104 = vld [vmem:[#allocation4 + $0x2c] sm:$0xf]
        %v7105 = vld [vmem:[#allocation4 + $0x30] sm:$0xf]
        %v7106 = vld [vmem:[#allocation4 + $0x34] sm:$0xf]
        %v7107 = vld [vmem:[#allocation4 + $0x38] sm:$0xf]
        %v7108 = vld [vmem:[#allocation4 + $0x3c] sm:$0xf]
        %v7109 = vld [vmem:[#allocation4 + $0x40] sm:$0xf]
        %v7110 = vld [vmem:[#allocation4 + $0x44] sm:$0xf]
        %v7111 = vld [vmem:[#allocation4 + $0x48] sm:$0xf]
        %v7112 = vld [vmem:[#allocation4 + $0x4c] sm:$0xf]
        %v7113 = vld [vmem:[#allocation4 + $0x50] sm:$0xf]
        %v7114 = vld [vmem:[#allocation4 + $0x54] sm:$0x1]
        %v7137 = vunpack.c.l.b16 %v7093
        %v7138 = vunpack.c.l.b16 %v7094
        %v7139 = vunpack.c.l.b16 %v7095
        %v7140 = vunpack.c.l.b16 %v7096
        %v7141 = vunpack.c.l.b16 %v7097
        %v7142 = vunpack.c.l.b16 %v7098
        %v7143 = vunpack.c.l.b16 %v7099
        %v7144 = vunpack.c.l.b16 %v7100
        %v7145 = vunpack.c.l.b16 %v7101
        %v7146 = vunpack.c.l.b16 %v7102
        %v7147 = vunpack.c.l.b16 %v7103
        %v7148 = vunpack.c.l.b16 %v7104
        %v7149 = vunpack.c.l.b16 %v7105
        %v7150 = vunpack.c.l.b16 %v7106
        %v7151 = vunpack.c.l.b16 %v7107
        %v7152 = vunpack.c.l.b16 %v7108
        %v7153 = vunpack.c.l.b16 %v7109
        %v7154 = vunpack.c.l.b16 %v7110
        %v7155 = vunpack.c.l.b16 %v7111
        %v7156 = vunpack.c.l.b16 %v7112
        %v7157 = vunpack.c.l.b16 %v7113
        %v7158 = vunpack.c.l.b16 %v7114
        %v7159 = vpack.c.b16 %v7138, %v7137
        %v7160 = vpack.c.b16 %v7140, %v7139
        %v7161 = vpack.c.b16 %v7142, %v7141
        %v7162 = vpack.c.b16 %v7144, %v7143
        %v7163 = vpack.c.b16 %v7146, %v7145
        %v7164 = vpack.c.b16 %v7148, %v7147
        %v7165 = vpack.c.b16 %v7150, %v7149
        %v7166 = vpack.c.b16 %v7152, %v7151
        %v7167 = vpack.c.b16 %v7154, %v7153
        %v7168 = vpack.c.b16 %v7156, %v7155
        %v7169 = vpack.c.b16 %v7158, %v7157
        %vm7171 = vcmask 1044480
        %vm7172 = vsmask.f32 4352
        %vm7173 = vmand %vm7171, %vm7172
        %v7174 = vsel %vm7173, %v7169, 0
        %vm7175 = vsmask.f32 7424
        %v7177 = vshrl.u32 %v7159, 16
        %v7179 = vshll.u32 %v7159, 16
        %v7181 = vrot.slane %v7179, 1
        %v7182 = vor.u32 %v7177, %v7181
        %v7184 = vshll.u32 %v7160, 16
        %v7186 = vrot.slane %v7184, 1
        %v7187 = vsel %vm7175, %v7182, %v7186
        %v7188 = vshrl.u32 %v7160, 16
        %v7190 = vor.u32 %v7188, %v7186
        %v7192 = vshll.u32 %v7161, 16
        %v7194 = vrot.slane %v7192, 1
        %v7195 = vsel %vm7175, %v7190, %v7194
        %v7196 = vshrl.u32 %v7161, 16
        %v7198 = vor.u32 %v7196, %v7194
        %v7200 = vshll.u32 %v7162, 16
        %v7202 = vrot.slane %v7200, 1
        %v7203 = vsel %vm7175, %v7198, %v7202
        %v7204 = vshrl.u32 %v7162, 16
        %v7206 = vor.u32 %v7204, %v7202
        %v7208 = vshll.u32 %v7163, 16
        %v7210 = vrot.slane %v7208, 1
        %v7211 = vsel %vm7175, %v7206, %v7210
        %v7212 = vshrl.u32 %v7163, 16
        %v7214 = vor.u32 %v7212, %v7210
        %v7216 = vshll.u32 %v7164, 16
        %v7218 = vrot.slane %v7216, 1
        %v7219 = vsel %vm7175, %v7214, %v7218
        %v7220 = vshrl.u32 %v7164, 16
        %v7222 = vor.u32 %v7220, %v7218
        %v7224 = vshll.u32 %v7165, 16
        %v7226 = vrot.slane %v7224, 1
        %v7227 = vsel %vm7175, %v7222, %v7226
        %v7228 = vshrl.u32 %v7165, 16
        %v7230 = vor.u32 %v7228, %v7226
        %v7232 = vshll.u32 %v7166, 16
        %v7234 = vrot.slane %v7232, 1
        %v7235 = vsel %vm7175, %v7230, %v7234
        %v7236 = vshrl.u32 %v7166, 16
        %v7238 = vor.u32 %v7236, %v7234
        %v7240 = vshll.u32 %v7167, 16
        %v7242 = vrot.slane %v7240, 1
        %v7243 = vsel %vm7175, %v7238, %v7242
        %v7244 = vshrl.u32 %v7167, 16
        %v7246 = vor.u32 %v7244, %v7242
        %7247 = vrot.lane.b32.xlu0 %v7187, 32
        %v7248 = vpop.permute.xlu0 %7247
        %7249 = vrot.lane.b32.xlu0 %v7195, 32
        %v7250 = vpop.permute.xlu0 %7249
        %7251 = vrot.lane.b32.xlu0 %v7203, 32
        %v7252 = vpop.permute.xlu0 %7251
        %7253 = vrot.lane.b32.xlu0 %v7211, 32
        %v7254 = vpop.permute.xlu0 %7253
        %7255 = vrot.lane.b32.xlu0 %v7219, 32
        %v7256 = vpop.permute.xlu0 %7255
        %7257 = vrot.lane.b32.xlu0 %v7227, 32
        %v7258 = vpop.permute.xlu0 %7257
        %7259 = vrot.lane.b32.xlu0 %v7235, 32
        %v7260 = vpop.permute.xlu0 %7259
        %7261 = vrot.lane.b32.xlu0 %v7243, 32
        %v7262 = vpop.permute.xlu0 %7261
        %7263 = vrot.lane.b32.xlu0 %v7246, 32
        %v7264 = vpop.permute.xlu0 %7263
        %vm7265 = vcmask 1046528
        %v7266 = vrot.slane %v7159, 1
        %v7267 = vrot.slane %v7160, 1
        %v7268 = vsel %vm7265, %v7266, %v7267
        %v7269 = vrot.slane %v7161, 1
        %v7270 = vsel %vm7265, %v7267, %v7269
        %v7271 = vrot.slane %v7162, 1
        %v7272 = vsel %vm7265, %v7269, %v7271
        %v7273 = vrot.slane %v7163, 1
        %v7274 = vsel %vm7265, %v7271, %v7273
        %v7275 = vrot.slane %v7164, 1
        %v7276 = vsel %vm7265, %v7273, %v7275
        %v7277 = vrot.slane %v7165, 1
        %v7278 = vsel %vm7265, %v7275, %v7277
        %v7279 = vrot.slane %v7166, 1
        %v7280 = vsel %vm7265, %v7277, %v7279
        %v7281 = vrot.slane %v7167, 1
        %v7282 = vsel %vm7265, %v7279, %v7281
        %v7283 = vrot.slane %v7168, 1
        %v7284 = vsel %vm7265, %v7281, %v7283
        %7285 = vrot.lane.b32.xlu0 %v7268, 64
        %v7286 = vpop.permute.xlu0 %7285
        %7287 = vrot.lane.b32.xlu0 %v7270, 64
        %v7288 = vpop.permute.xlu0 %7287
        %7289 = vrot.lane.b32.xlu0 %v7272, 64
        %v7290 = vpop.permute.xlu0 %7289
        %7291 = vrot.lane.b32.xlu0 %v7274, 64
        %v7292 = vpop.permute.xlu0 %7291
        %7293 = vrot.lane.b32.xlu0 %v7276, 64
        %v7294 = vpop.permute.xlu0 %7293
        %7295 = vrot.lane.b32.xlu0 %v7278, 64
        %v7296 = vpop.permute.xlu0 %7295
        %7297 = vrot.lane.b32.xlu0 %v7280, 64
        %v7298 = vpop.permute.xlu0 %7297
        %7299 = vrot.lane.b32.xlu0 %v7282, 64
        %v7300 = vpop.permute.xlu0 %7299
        %7301 = vrot.lane.b32.xlu0 %v7284, 64
        %v7302 = vpop.permute.xlu0 %7301
        %v7303 = vrot.slane %v7177, 6
        %v7304 = vrot.slane %v7179, 7
        %v7305 = vor.u32 %v7303, %v7304
        %v7306 = vrot.slane %v7188, 6
        %v7307 = vrot.slane %v7184, 7
        %v7308 = vor.u32 %v7306, %v7307
        %v7309 = vsel %vm6916, %v7305, %v7308
        %v7310 = vrot.slane %v7196, 6
        %v7311 = vrot.slane %v7192, 7
        %v7312 = vor.u32 %v7310, %v7311
        %v7313 = vsel %vm6916, %v7308, %v7312
        %v7314 = vrot.slane %v7204, 6
        %v7315 = vrot.slane %v7200, 7
        %v7316 = vor.u32 %v7314, %v7315
        %v7317 = vsel %vm6916, %v7312, %v7316
        %v7318 = vrot.slane %v7212, 6
        %v7319 = vrot.slane %v7208, 7
        %v7320 = vor.u32 %v7318, %v7319
        %v7321 = vsel %vm6916, %v7316, %v7320
        %v7322 = vrot.slane %v7220, 6
        %v7323 = vrot.slane %v7216, 7
        %v7324 = vor.u32 %v7322, %v7323
        %v7325 = vsel %vm6916, %v7320, %v7324
        %v7326 = vrot.slane %v7228, 6
        %v7327 = vrot.slane %v7224, 7
        %v7328 = vor.u32 %v7326, %v7327
        %v7329 = vsel %vm6916, %v7324, %v7328
        %v7330 = vrot.slane %v7236, 6
        %v7331 = vrot.slane %v7232, 7
        %v7332 = vor.u32 %v7330, %v7331
        %v7333 = vsel %vm6916, %v7328, %v7332
        %v7334 = vrot.slane %v7244, 6
        %v7335 = vrot.slane %v7240, 7
        %v7336 = vor.u32 %v7334, %v7335
        %v7337 = vsel %vm6916, %v7332, %v7336
        %v7339 = vshrl.u32 %v7168, 16
        %v7341 = vrot.slane %v7339, 6
        %v7342 = vshll.u32 %v7168, 16
        %v7344 = vrot.slane %v7342, 7
        %v7345 = vor.u32 %v7341, %v7344
        %v7346 = vsel %vm6916, %v7336, %v7345
        %7347 = vrot.lane.b32.xlu0 %v7309, 96
        %v7348 = vpop.permute.xlu0 %7347
        %7349 = vrot.lane.b32.xlu0 %v7313, 96
        %v7350 = vpop.permute.xlu0 %7349
        %7351 = vrot.lane.b32.xlu0 %v7317, 96
        %v7352 = vpop.permute.xlu0 %7351
        %7353 = vrot.lane.b32.xlu0 %v7321, 96
        %v7354 = vpop.permute.xlu0 %7353
        %7355 = vrot.lane.b32.xlu0 %v7325, 96
        %v7356 = vpop.permute.xlu0 %7355
        %7357 = vrot.lane.b32.xlu0 %v7329, 96
        %v7358 = vpop.permute.xlu0 %7357
        %7359 = vrot.lane.b32.xlu0 %v7333, 96
        %v7360 = vpop.permute.xlu0 %7359
        %7361 = vrot.lane.b32.xlu0 %v7337, 96
        %v7362 = vpop.permute.xlu0 %7361
        %7363 = vrot.lane.b32.xlu0 %v7346, 96
        %v7364 = vpop.permute.xlu0 %7363
        %v7365 = vrot.slane %v7159, 7
        %v7366 = vrot.slane %v7160, 7
        %v7367 = vsel %vm6764, %v7365, %v7366
        %v7368 = vrot.slane %v7161, 7
        %v7369 = vsel %vm6764, %v7366, %v7368
        %v7370 = vrot.slane %v7162, 7
        %v7371 = vsel %vm6764, %v7368, %v7370
        %v7372 = vrot.slane %v7163, 7
        %v7373 = vsel %vm6764, %v7370, %v7372
        %v7374 = vrot.slane %v7164, 7
        %v7375 = vsel %vm6764, %v7372, %v7374
        %v7376 = vrot.slane %v7165, 7
        %v7377 = vsel %vm6764, %v7374, %v7376
        %v7378 = vrot.slane %v7166, 7
        %v7379 = vsel %vm6764, %v7376, %v7378
        %v7380 = vrot.slane %v7167, 7
        %v7381 = vsel %vm6764, %v7378, %v7380
        %v7382 = vrot.slane %v7168, 7
        %v7383 = vsel %vm6764, %v7380, %v7382
        %v7384 = vrot.slane %v7177, 7
        %v7385 = vrot.slane %v7188, 7
        %v7386 = vor.u32 %v7385, %v7184
        %v7387 = vsel %vm6849, %v7384, %v7386
        %v7388 = vrot.slane %v7196, 7
        %v7389 = vor.u32 %v7388, %v7192
        %v7390 = vsel %vm6849, %v7385, %v7389
        %v7391 = vrot.slane %v7204, 7
        %v7392 = vor.u32 %v7391, %v7200
        %v7393 = vsel %vm6849, %v7388, %v7392
        %v7394 = vrot.slane %v7212, 7
        %v7395 = vor.u32 %v7394, %v7208
        %v7396 = vsel %vm6849, %v7391, %v7395
        %v7397 = vrot.slane %v7220, 7
        %v7398 = vor.u32 %v7397, %v7216
        %v7399 = vsel %vm6849, %v7394, %v7398
        %v7400 = vrot.slane %v7228, 7
        %v7401 = vor.u32 %v7400, %v7224
        %v7402 = vsel %vm6849, %v7397, %v7401
        %v7403 = vrot.slane %v7236, 7
        %v7404 = vor.u32 %v7403, %v7232
        %v7405 = vsel %vm6849, %v7400, %v7404
        %v7406 = vrot.slane %v7244, 7
        %v7407 = vor.u32 %v7406, %v7240
        %v7408 = vsel %vm6849, %v7403, %v7407
        %v7409 = vrot.slane %v7339, 7
        %v7410 = vor.u32 %v7409, %v7342
        %v7411 = vsel %vm6849, %v7406, %v7410
        %7412 = vrot.lane.b32.xlu0 %v7387, 32
        %v7413 = vpop.permute.xlu0 %7412
        %7414 = vrot.lane.b32.xlu0 %v7390, 32
        %v7415 = vpop.permute.xlu0 %7414
        %7416 = vrot.lane.b32.xlu0 %v7393, 32
        %v7417 = vpop.permute.xlu0 %7416
        %7418 = vrot.lane.b32.xlu0 %v7396, 32
        %v7419 = vpop.permute.xlu0 %7418
        %7420 = vrot.lane.b32.xlu0 %v7399, 32
        %v7421 = vpop.permute.xlu0 %7420
        %7422 = vrot.lane.b32.xlu0 %v7402, 32
        %v7423 = vpop.permute.xlu0 %7422
        %7424 = vrot.lane.b32.xlu0 %v7405, 32
        %v7425 = vpop.permute.xlu0 %7424
        %7426 = vrot.lane.b32.xlu0 %v7408, 32
        %v7427 = vpop.permute.xlu0 %7426
        %7428 = vrot.lane.b32.xlu0 %v7411, 32
        %v7429 = vpop.permute.xlu0 %7428
        %v7431 = vrot.slane %v7160, 5
        %v7432 = vrot.slane %v7161, 5
        %v7433 = vsel %vm6901, %v7431, %v7432
        %v7434 = vrot.slane %v7162, 5
        %v7435 = vsel %vm6901, %v7432, %v7434
        %v7436 = vrot.slane %v7163, 5
        %v7437 = vsel %vm6901, %v7434, %v7436
        %v7438 = vrot.slane %v7164, 5
        %v7439 = vsel %vm6901, %v7436, %v7438
        %v7440 = vrot.slane %v7165, 5
        %v7441 = vsel %vm6901, %v7438, %v7440
        %v7442 = vrot.slane %v7166, 5
        %v7443 = vsel %vm6901, %v7440, %v7442
        %v7444 = vrot.slane %v7167, 5
        %v7445 = vsel %vm6901, %v7442, %v7444
        %v7446 = vrot.slane %v7168, 5
        %v7447 = vsel %vm6901, %v7444, %v7446
        %v7448 = vrot.slane %v7174, 5
        %v7449 = vsel %vm6901, %v7446, %v7448
        %7450 = vrot.lane.b32.xlu0 %v7433, 64
        %v7451 = vpop.permute.xlu0 %7450
        %7452 = vrot.lane.b32.xlu0 %v7435, 64
        %v7453 = vpop.permute.xlu0 %7452
        %7454 = vrot.lane.b32.xlu0 %v7437, 64
        %v7455 = vpop.permute.xlu0 %7454
        %7456 = vrot.lane.b32.xlu0 %v7439, 64
        %v7457 = vpop.permute.xlu0 %7456
        %7458 = vrot.lane.b32.xlu0 %v7441, 64
        %v7459 = vpop.permute.xlu0 %7458
        %7460 = vrot.lane.b32.xlu0 %v7443, 64
        %v7461 = vpop.permute.xlu0 %7460
        %7462 = vrot.lane.b32.xlu0 %v7445, 64
        %v7463 = vpop.permute.xlu0 %7462
        %7464 = vrot.lane.b32.xlu0 %v7447, 64
        %v7465 = vpop.permute.xlu0 %7464
        %7466 = vrot.lane.b32.xlu0 %v7449, 64
        %v7467 = vpop.permute.xlu0 %7466
        %v7468 = vrot.slane %v7188, 5
        %v7469 = vrot.slane %v7184, 6
        %v7470 = vor.u32 %v7468, %v7469
        %v7471 = vrot.slane %v7196, 5
        %v7472 = vrot.slane %v7192, 6
        %v7473 = vor.u32 %v7471, %v7472
        %v7474 = vsel %vm6706, %v7470, %v7473
        %v7475 = vrot.slane %v7204, 5
        %v7476 = vrot.slane %v7200, 6
        %v7477 = vor.u32 %v7475, %v7476
        %v7478 = vsel %vm6706, %v7473, %v7477
        %v7479 = vrot.slane %v7212, 5
        %v7480 = vrot.slane %v7208, 6
        %v7481 = vor.u32 %v7479, %v7480
        %v7482 = vsel %vm6706, %v7477, %v7481
        %v7483 = vrot.slane %v7220, 5
        %v7484 = vrot.slane %v7216, 6
        %v7485 = vor.u32 %v7483, %v7484
        %v7486 = vsel %vm6706, %v7481, %v7485
        %v7487 = vrot.slane %v7228, 5
        %v7488 = vrot.slane %v7224, 6
        %v7489 = vor.u32 %v7487, %v7488
        %v7490 = vsel %vm6706, %v7485, %v7489
        %v7491 = vrot.slane %v7236, 5
        %v7492 = vrot.slane %v7232, 6
        %v7493 = vor.u32 %v7491, %v7492
        %v7494 = vsel %vm6706, %v7489, %v7493
        %v7495 = vrot.slane %v7244, 5
        %v7496 = vrot.slane %v7240, 6
        %v7497 = vor.u32 %v7495, %v7496
        %v7498 = vsel %vm6706, %v7493, %v7497
        %v7499 = vrot.slane %v7339, 5
        %v7500 = vrot.slane %v7342, 6
        %v7501 = vor.u32 %v7499, %v7500
        %v7502 = vsel %vm6706, %v7497, %v7501
        %v7504 = vshrl.u32 %v7174, 16
        %v7506 = vrot.slane %v7504, 5
        %v7507 = vshll.u32 %v7174, 16
        %v7509 = vrot.slane %v7507, 6
        %v7510 = vor.u32 %v7506, %v7509
        %v7511 = vsel %vm6706, %v7501, %v7510
        %7512 = vrot.lane.b32.xlu0 %v7474, 96
        %v7513 = vpop.permute.xlu0 %7512
        %7514 = vrot.lane.b32.xlu0 %v7478, 96
        %v7515 = vpop.permute.xlu0 %7514
        %7516 = vrot.lane.b32.xlu0 %v7482, 96
        %v7517 = vpop.permute.xlu0 %7516
        %7518 = vrot.lane.b32.xlu0 %v7486, 96
        %v7519 = vpop.permute.xlu0 %7518
        %7520 = vrot.lane.b32.xlu0 %v7490, 96
        %v7521 = vpop.permute.xlu0 %7520
        %7522 = vrot.lane.b32.xlu0 %v7494, 96
        %v7523 = vpop.permute.xlu0 %7522
        %7524 = vrot.lane.b32.xlu0 %v7498, 96
        %v7525 = vpop.permute.xlu0 %7524
        %7526 = vrot.lane.b32.xlu0 %v7502, 96
        %v7527 = vpop.permute.xlu0 %7526
        %7528 = vrot.lane.b32.xlu0 %v7511, 96
        %v7529 = vpop.permute.xlu0 %7528
        %v7530 = vrot.slane %v7160, 6
        %v7531 = vrot.slane %v7161, 6
        %v7532 = vsel %vm6834, %v7530, %v7531
        %v7533 = vrot.slane %v7162, 6
        %v7534 = vsel %vm6834, %v7531, %v7533
        %v7535 = vrot.slane %v7163, 6
        %v7536 = vsel %vm6834, %v7533, %v7535
        %v7537 = vrot.slane %v7164, 6
        %v7538 = vsel %vm6834, %v7535, %v7537
        %v7539 = vrot.slane %v7165, 6
        %v7540 = vsel %vm6834, %v7537, %v7539
        %v7541 = vrot.slane %v7166, 6
        %v7542 = vsel %vm6834, %v7539, %v7541
        %v7543 = vrot.slane %v7167, 6
        %v7544 = vsel %vm6834, %v7541, %v7543
        %v7545 = vrot.slane %v7168, 6
        %v7546 = vsel %vm6834, %v7543, %v7545
        %v7547 = vrot.slane %v7174, 6
        %v7548 = vsel %vm6834, %v7545, %v7547
        %v7550 = vsel %vm6603, %v7159, %v7248
        %v7552 = vsel %vm6603, %v7160, %v7250
        %v7554 = vsel %vm6603, %v7161, %v7252
        %v7556 = vsel %vm6603, %v7162, %v7254
        %v7558 = vsel %vm6603, %v7163, %v7256
        %v7560 = vsel %vm6603, %v7164, %v7258
        %v7562 = vsel %vm6603, %v7165, %v7260
        %v7564 = vsel %vm6603, %v7166, %v7262
        %v7566 = vsel %vm6603, %v7167, %v7264
        %vm7567 = vcmask 523264
        %v7569 = vsel %vm7567, %v7550, %v7286
        %v7571 = vsel %vm7567, %v7552, %v7288
        %v7573 = vsel %vm7567, %v7554, %v7290
        %v7575 = vsel %vm7567, %v7556, %v7292
        %v7577 = vsel %vm7567, %v7558, %v7294
        %v7579 = vsel %vm7567, %v7560, %v7296
        %v7581 = vsel %vm7567, %v7562, %v7298
        %v7583 = vsel %vm7567, %v7564, %v7300
        %v7585 = vsel %vm7567, %v7566, %v7302
        %vm7586 = vcmask 785408
        %v7588 = vsel %vm7586, %v7569, %v7348
        %v7591 = vsel %vm7586, %v7571, %v7350
        %v7594 = vsel %vm7586, %v7573, %v7352
        %v7597 = vsel %vm7586, %v7575, %v7354
        %v7600 = vsel %vm7586, %v7577, %v7356
        %v7603 = vsel %vm7586, %v7579, %v7358
        %v7606 = vsel %vm7586, %v7581, %v7360
        %v7609 = vsel %vm7586, %v7583, %v7362
        %v7612 = vsel %vm7586, %v7585, %v7364
        %v7616 = vsel %vm6603, %v7367, %v7413
        %v7619 = vsel %vm6603, %v7369, %v7415
        %v7622 = vsel %vm6603, %v7371, %v7417
        %v7625 = vsel %vm6603, %v7373, %v7419
        %v7628 = vsel %vm6603, %v7375, %v7421
        %v7631 = vsel %vm6603, %v7377, %v7423
        %v7634 = vsel %vm6603, %v7379, %v7425
        %v7637 = vsel %vm6603, %v7381, %v7427
        %v7640 = vsel %vm6603, %v7383, %v7429
        %v7642 = vsel %vm7567, %v7616, %v7451
        %v7644 = vsel %vm7567, %v7619, %v7453
        %v7646 = vsel %vm7567, %v7622, %v7455
        %v7648 = vsel %vm7567, %v7625, %v7457
        %v7650 = vsel %vm7567, %v7628, %v7459
        %v7652 = vsel %vm7567, %v7631, %v7461
        %v7654 = vsel %vm7567, %v7634, %v7463
        %v7656 = vsel %vm7567, %v7637, %v7465
        %v7658 = vsel %vm7567, %v7640, %v7467
        %v7660 = vsel %vm7586, %v7642, %v7513
        %v7663 = vsel %vm7586, %v7644, %v7515
        %v7666 = vsel %vm7586, %v7646, %v7517
        %v7669 = vsel %vm7586, %v7648, %v7519
        %v7672 = vsel %vm7586, %v7650, %v7521
        %v7675 = vsel %vm7586, %v7652, %v7523
        %v7678 = vsel %vm7586, %v7654, %v7525
        %v7681 = vsel %vm7586, %v7656, %v7527
        %v7684 = vsel %vm7586, %v7658, %v7529
        %v7722 = vunpack.c.l.b16 %v470
        %v7723 = vunpack.c.l.b16 %v471
        %v7724 = vunpack.c.l.b16 %v472
        %v7725 = vunpack.c.l.b16 %v473
        %v7726 = vunpack.c.l.b16 %v474
        %v7727 = vunpack.c.l.b16 %v475
        %v7728 = vunpack.c.l.b16 %v476
        %v7729 = vunpack.c.l.b16 %v477
        %v7730 = vunpack.c.l.b16 %v478
        %v7731 = vunpack.c.l.b16 %v479
        %v7732 = vunpack.c.l.b16 %v480
        %v7733 = vunpack.c.l.b16 %v481
        %v7734 = vunpack.c.l.b16 %v482
        %v7735 = vunpack.c.l.b16 %v483
        %v7736 = vunpack.c.l.b16 %v484
        %v7737 = vunpack.c.l.b16 %v485
        %v7738 = vunpack.c.l.b16 %v486
        %v7739 = vunpack.c.l.b16 %v487
        %v7740 = vunpack.c.l.b16 %v488
        %v7741 = vunpack.c.l.b16 %v489
        %v7742 = vunpack.c.l.b16 %v490
        %v7743 = vunpack.c.l.b16 %v491
        %v7744 = vunpack.c.l.b16 %v492
        %v7745 = vunpack.c.l.b16 %v493
        %v7746 = vunpack.c.l.b16 %v494
        %v7747 = vunpack.c.l.b16 %v495
        %v7748 = vunpack.c.l.b16 %v496
        %v7749 = vunpack.c.l.b16 %v497
        %v7750 = vunpack.c.l.b16 %v498
        %v7751 = vunpack.c.l.b16 %v499
        %v7752 = vunpack.c.l.b16 %v500
        %v7753 = vunpack.c.l.b16 %v501
        %v7754 = vunpack.c.l.b16 %v502
        %v7755 = vunpack.c.l.b16 %v503
        %v7756 = vunpack.c.l.b16 %v504
        %v7757 = vunpack.c.l.b16 %v505
        %v7758 = vpack.c.b16 %v7723, %v7722
        %v7759 = vpack.c.b16 %v7725, %v7724
        %v7760 = vpack.c.b16 %v7727, %v7726
        %v7761 = vpack.c.b16 %v7729, %v7728
        %v7762 = vpack.c.b16 %v7731, %v7730
        %v7763 = vpack.c.b16 %v7733, %v7732
        %v7764 = vpack.c.b16 %v7735, %v7734
        %v7765 = vpack.c.b16 %v7737, %v7736
        %v7766 = vpack.c.b16 %v7739, %v7738
        %v7767 = vpack.c.b16 %v7741, %v7740
        %v7768 = vpack.c.b16 %v7743, %v7742
        %v7769 = vpack.c.b16 %v7745, %v7744
        %v7770 = vpack.c.b16 %v7747, %v7746
        %v7771 = vpack.c.b16 %v7749, %v7748
        %v7772 = vpack.c.b16 %v7751, %v7750
        %v7773 = vpack.c.b16 %v7753, %v7752
        %v7774 = vpack.c.b16 %v7755, %v7754
        %v7775 = vpack.c.b16 %v7757, %v7756
        %v7795 = vsel %vm6603, %v7532, 0
        %v7798 = vsel %vm6603, %v7534, 0
        %v7801 = vsel %vm6603, %v7536, 0
        %v7804 = vsel %vm6603, %v7538, 0
        %v7807 = vsel %vm6603, %v7540, 0
        %v7810 = vsel %vm6603, %v7542, 0
        %v7813 = vsel %vm6603, %v7544, 0
        %v7816 = vsel %vm6603, %v7546, 0
        %v7819 = vsel %vm6603, %v7548, 0
        %7821 = vmatprep.subr.bf16.mxu0 0
        %7822 = vmatpush1.bf16.msra.mxu0 %v7765
        %7823 = vmatprep.subr.bf16.mxu0 0
        %7824 = vmatpush1.bf16.msra.mxu0 %v7764
        %7825 = vmatprep.subr.bf16.mxu0 0
        %7826 = vmatpush1.bf16.msra.mxu0 %v7763
        %7827 = vmatprep.subr.bf16.mxu0 0
        %7828 = vmatpush1.bf16.msra.mxu0 %v7762
        %7829 = vmatprep.subr.bf16.mxu0 0
        %7830 = vmatpush1.bf16.msra.mxu0 %v7761
        %7831 = vmatprep.subr.bf16.mxu0 0
        %7832 = vmatpush1.bf16.msra.mxu0 %v7760
        %7833 = vmatprep.subr.bf16.mxu0 0
        %7834 = vmatpush1.bf16.msra.mxu0 %v7759
        %7835 = vmatprep.subr.bf16.mxu0 0
        %7836 = vmatpush1.bf16.msra.mxu0 %v7758
        %7837 = vmatprep.subr.bf16.mxu0 0
        %7838 = vmatpush2.bf16.msra.mxu0 %v7773
        %7839 = vmatprep.subr.bf16.mxu0 0
        %7840 = vmatpush2.bf16.msra.mxu0 %v7772
        %7841 = vmatprep.subr.bf16.mxu0 0
        %7842 = vmatpush2.bf16.msra.mxu0 %v7771
        %7843 = vmatprep.subr.bf16.mxu0 0
        %7844 = vmatpush2.bf16.msra.mxu0 %v7770
        %7845 = vmatprep.subr.bf16.mxu0 0
        %7846 = vmatpush2.bf16.msra.mxu0 %v7769
        %7847 = vmatprep.subr.bf16.mxu0 0
        %7848 = vmatpush2.bf16.msra.mxu0 %v7768
        %7849 = vmatprep.subr.bf16.mxu0 0
        %7850 = vmatpush2.bf16.msra.mxu0 %v7767
        %7851 = vmatprep.subr.bf16.mxu0 0
        %7852 = vmatpush2.bf16.msra.mxu0 %v7766
        %7853 = vmatprep.mubr.bf16.mxu0 %v7660
        %7854 = vmatmul.mubr.bf16.gmra.mxu0 %v7588
        %v7855 = vpop.f32.mrf.mxu0
        %v7856 = vadd.f32 0.0, %v7855
        %v7857 = vpop.f32.mrf.mxu0
        %v7858 = vpop.f32.mrf.mxu0
        %v7859 = vadd.f32 0.0, %v7858
        %v7860 = vpop.f32.mrf.mxu0
        %7861 = vmatprep.mubr.bf16.mxu0 %v7663
        %7862 = vmatmul.mubr.bf16.gmra.mxu0 %v7591
        %v7863 = vpop.f32.mrf.mxu0
        %v7864 = vadd.f32 0.0, %v7863
        %v7865 = vpop.f32.mrf.mxu0
        %v7866 = vpop.f32.mrf.mxu0
        %v7867 = vadd.f32 0.0, %v7866
        %v7868 = vpop.f32.mrf.mxu0
        %7869 = vmatprep.mubr.bf16.mxu0 %v7666
        %7870 = vmatmul.mubr.bf16.gmra.mxu0 %v7594
        %v7871 = vpop.f32.mrf.mxu0
        %v7872 = vadd.f32 0.0, %v7871
        %v7873 = vpop.f32.mrf.mxu0
        %v7874 = vpop.f32.mrf.mxu0
        %v7875 = vadd.f32 0.0, %v7874
        %v7876 = vpop.f32.mrf.mxu0
        %7877 = vmatprep.mubr.bf16.mxu0 %v7669
        %7878 = vmatmul.mubr.bf16.gmra.mxu0 %v7597
        %v7879 = vpop.f32.mrf.mxu0
        %v7880 = vadd.f32 0.0, %v7879
        %v7881 = vpop.f32.mrf.mxu0
        %v7882 = vpop.f32.mrf.mxu0
        %v7883 = vadd.f32 0.0, %v7882
        %v7884 = vpop.f32.mrf.mxu0
        %7885 = vmatprep.mubr.bf16.mxu0 %v7672
        %7886 = vmatmul.mubr.bf16.gmra.mxu0 %v7600
        %v7887 = vpop.f32.mrf.mxu0
        %v7888 = vadd.f32 0.0, %v7887
        %v7889 = vpop.f32.mrf.mxu0
        %v7890 = vpop.f32.mrf.mxu0
        %v7891 = vadd.f32 0.0, %v7890
        %v7892 = vpop.f32.mrf.mxu0
        %7893 = vmatprep.mubr.bf16.mxu0 %v7675
        %7894 = vmatmul.mubr.bf16.gmra.mxu0 %v7603
        %v7895 = vpop.f32.mrf.mxu0
        %v7896 = vadd.f32 0.0, %v7895
        %v7897 = vpop.f32.mrf.mxu0
        %v7898 = vpop.f32.mrf.mxu0
        %v7899 = vadd.f32 0.0, %v7898
        %v7900 = vpop.f32.mrf.mxu0
        %7901 = vmatprep.mubr.bf16.mxu0 %v7678
        %7902 = vmatmul.mubr.bf16.gmra.mxu0 %v7606
        %v7903 = vpop.f32.mrf.mxu0
        %v7904 = vadd.f32 0.0, %v7903
        %v7905 = vpop.f32.mrf.mxu0
        %v7906 = vpop.f32.mrf.mxu0
        %v7907 = vadd.f32 0.0, %v7906
        %v7908 = vpop.f32.mrf.mxu0
        %7909 = vmatprep.mubr.bf16.mxu0 %v7681
        %7910 = vmatmul.mubr.bf16.gmra.mxu0 %v7609
        %v7911 = vpop.f32.mrf.mxu0
        %v7912 = vadd.f32 0.0, %v7911
        %v7913 = vpop.f32.mrf.mxu0
        %v7914 = vpop.f32.mrf.mxu0
        %v7915 = vadd.f32 0.0, %v7914
        %v7916 = vpop.f32.mrf.mxu0
        %7917 = vmatprep.mubr.bf16.mxu0 %v7684
        %7918 = vmatmul.mubr.bf16.gmra.mxu0 %v7612
        %v7919 = vpop.f32.mrf.mxu0
        %v7920 = vadd.f32 0.0, %v7919
        %v7921 = vpop.f32.mrf.mxu0
        %v7922 = vpop.f32.mrf.mxu0
        %v7923 = vpop.f32.mrf.mxu0
        %7924 = vdwg.mxu0
        %7925 = vmatprep.subr.bf16.mxu0 0
        %7926 = vmatpush1.bf16.msra.mxu0 0
        %7927 = vmatprep.subr.bf16.mxu0 0
        %7928 = vmatpush1.bf16.msra.mxu0 0
        %7929 = vmatprep.subr.bf16.mxu0 0
        %7930 = vmatpush1.bf16.msra.mxu0 0
        %7931 = vmatprep.subr.bf16.mxu0 0
        %7932 = vmatpush1.bf16.msra.mxu0 0
        %7933 = vmatprep.subr.bf16.mxu0 0
        %7934 = vmatpush1.bf16.msra.mxu0 0
        %7935 = vmatprep.subr.bf16.mxu0 0
        %7936 = vmatpush1.bf16.msra.mxu0 0
        %7937 = vmatprep.subr.bf16.mxu0 0
        %7938 = vmatpush1.bf16.msra.mxu0 %v7775
        %7939 = vmatprep.subr.bf16.mxu0 0
        %7940 = vmatpush1.bf16.msra.mxu0 %v7774
        %7941 = vmatprep.subr.bf16.mxu0 0
        %7942 = vmatpush2.bf16.msra.mxu0 0
        %7943 = vmatprep.subr.bf16.mxu0 0
        %7944 = vmatpush2.bf16.msra.mxu0 0
        %7945 = vmatprep.subr.bf16.mxu0 0
        %7946 = vmatpush2.bf16.msra.mxu0 0
        %7947 = vmatprep.subr.bf16.mxu0 0
        %7948 = vmatpush2.bf16.msra.mxu0 0
        %7949 = vmatprep.subr.bf16.mxu0 0
        %7950 = vmatpush2.bf16.msra.mxu0 0
        %7951 = vmatprep.subr.bf16.mxu0 0
        %7952 = vmatpush2.bf16.msra.mxu0 0
        %7953 = vmatprep.subr.bf16.mxu0 0
        %7954 = vmatpush2.bf16.msra.mxu0 0
        %7955 = vmatprep.subr.bf16.mxu0 0
        %7956 = vmatpush2.bf16.msra.mxu0 0
        %7957 = vmatprep.mubr.bf16.mxu0 0
        %7958 = vmatmul.mubr.bf16.gmra.mxu0 %v7795
        %v7959 = vpop.f32.mrf.mxu0
        %v7960 = vadd.f32 %v7856, %v7959
        %v7961 = vpop.f32.mrf.mxu0
        %v7962 = vpop.f32.mrf.mxu0
        %v7963 = vadd.f32 %v7859, %v7962
        %v7964 = vpop.f32.mrf.mxu0
        %7965 = vmatprep.mubr.bf16.mxu0 0
        %7966 = vmatmul.mubr.bf16.gmra.mxu0 %v7798
        %v7967 = vpop.f32.mrf.mxu0
        %v7968 = vadd.f32 %v7864, %v7967
        %v7969 = vpop.f32.mrf.mxu0
        %v7970 = vpop.f32.mrf.mxu0
        %v7971 = vadd.f32 %v7867, %v7970
        %v7972 = vpop.f32.mrf.mxu0
        %7973 = vmatprep.mubr.bf16.mxu0 0
        %7974 = vmatmul.mubr.bf16.gmra.mxu0 %v7801
        %v7975 = vpop.f32.mrf.mxu0
        %v7976 = vadd.f32 %v7872, %v7975
        %v7977 = vpop.f32.mrf.mxu0
        %v7978 = vpop.f32.mrf.mxu0
        %v7979 = vadd.f32 %v7875, %v7978
        %v7980 = vpop.f32.mrf.mxu0
        %7981 = vmatprep.mubr.bf16.mxu0 0
        %7982 = vmatmul.mubr.bf16.gmra.mxu0 %v7804
        %v7983 = vpop.f32.mrf.mxu0
        %v7984 = vadd.f32 %v7880, %v7983
        %v7985 = vpop.f32.mrf.mxu0
        %v7986 = vpop.f32.mrf.mxu0
        %v7987 = vadd.f32 %v7883, %v7986
        %v7988 = vpop.f32.mrf.mxu0
        %7989 = vmatprep.mubr.bf16.mxu0 0
        %7990 = vmatmul.mubr.bf16.gmra.mxu0 %v7807
        %v7991 = vpop.f32.mrf.mxu0
        %v7992 = vadd.f32 %v7888, %v7991
        %v7993 = vpop.f32.mrf.mxu0
        %v7994 = vpop.f32.mrf.mxu0
        %v7995 = vadd.f32 %v7891, %v7994
        %v7996 = vpop.f32.mrf.mxu0
        %7997 = vmatprep.mubr.bf16.mxu0 0
        %7998 = vmatmul.mubr.bf16.gmra.mxu0 %v7810
        %v7999 = vpop.f32.mrf.mxu0
        %v8000 = vadd.f32 %v7896, %v7999
        %v8001 = vpop.f32.mrf.mxu0
        %v8002 = vpop.f32.mrf.mxu0
        %v8003 = vadd.f32 %v7899, %v8002
        %v8004 = vpop.f32.mrf.mxu0
        %8005 = vmatprep.mubr.bf16.mxu0 0
        %8006 = vmatmul.mubr.bf16.gmra.mxu0 %v7813
        %v8007 = vpop.f32.mrf.mxu0
        %v8008 = vadd.f32 %v7904, %v8007
        %v8009 = vpop.f32.mrf.mxu0
        %v8010 = vpop.f32.mrf.mxu0
        %v8011 = vadd.f32 %v7907, %v8010
        %v8012 = vpop.f32.mrf.mxu0
        %8013 = vmatprep.mubr.bf16.mxu0 0
        %8014 = vmatmul.mubr.bf16.gmra.mxu0 %v7816
        %v8015 = vpop.f32.mrf.mxu0
        %v8016 = vadd.f32 %v7912, %v8015
        %v8017 = vpop.f32.mrf.mxu0
        %v8018 = vpop.f32.mrf.mxu0
        %v8019 = vadd.f32 %v7915, %v8018
        %v8020 = vpop.f32.mrf.mxu0
        %8021 = vmatprep.mubr.bf16.mxu0 0
        %8022 = vmatmul.mubr.bf16.gmra.mxu0 %v7819
        %v8023 = vpop.f32.mrf.mxu0
        %v8024 = vadd.f32 %v7920, %v8023
        %v8025 = vpop.f32.mrf.mxu0
        %v8026 = vpop.f32.mrf.mxu0
        %v8027 = vpop.f32.mrf.mxu0
        %8028 = vdwg.mxu0
        %v8030 = vlaneseq
        %v8031 = vshrl.u32 %v8030, 7
        %v8032 = vsub.s32 0, %v8031
        %v8033 = vrot.slane %v506, %v8032
        %v8035 = vmul.f32 %v7960, %v8033
        %v8036 = vmul.f32 %v7963, %v8033
        %v8037 = vmul.f32 %v7968, %v8033
        %v8038 = vmul.f32 %v7971, %v8033
        %v8039 = vmul.f32 %v7976, %v8033
        %v8040 = vmul.f32 %v7979, %v8033
        %v8041 = vmul.f32 %v7984, %v8033
        %v8042 = vmul.f32 %v7987, %v8033
        %v8043 = vmul.f32 %v7992, %v8033
        %v8044 = vmul.f32 %v7995, %v8033
        %v8045 = vmul.f32 %v8000, %v8033
        %v8046 = vmul.f32 %v8003, %v8033
        %v8047 = vmul.f32 %v8008, %v8033
        %v8048 = vmul.f32 %v8011, %v8033
        %v8049 = vmul.f32 %v8016, %v8033
        %v8050 = vmul.f32 %v8019, %v8033
        %v8051 = vmul.f32 %v8024, %v8033
        %v8053 = vlaneseq
        %v8054 = vshrl.u32 %v8053, 7
        %v8055 = vsub.s32 0, %v8054
        %v8056 = vrot.slane %v507, %v8055
        %v8058 = vadd.f32 %v8035, %v8056
        %v8059 = vadd.f32 %v8036, %v8056
        %v8060 = vadd.f32 %v8037, %v8056
        %v8061 = vadd.f32 %v8038, %v8056
        %v8062 = vadd.f32 %v8039, %v8056
        %v8063 = vadd.f32 %v8040, %v8056
        %v8064 = vadd.f32 %v8041, %v8056
        %v8065 = vadd.f32 %v8042, %v8056
        %v8066 = vadd.f32 %v8043, %v8056
        %v8067 = vadd.f32 %v8044, %v8056
        %v8068 = vadd.f32 %v8045, %v8056
        %v8069 = vadd.f32 %v8046, %v8056
        %v8070 = vadd.f32 %v8047, %v8056
        %v8071 = vadd.f32 %v8048, %v8056
        %v8072 = vadd.f32 %v8049, %v8056
        %v8073 = vadd.f32 %v8050, %v8056
        %v8074 = vadd.f32 %v8051, %v8056
        %v8075 = vmax.f32 %v8058, 0.0
        %v8076 = vmax.f32 %v8059, 0.0
        %v8077 = vmax.f32 %v8060, 0.0
        %v8078 = vmax.f32 %v8061, 0.0
        %v8079 = vmax.f32 %v8062, 0.0
        %v8080 = vmax.f32 %v8063, 0.0
        %v8081 = vmax.f32 %v8064, 0.0
        %v8082 = vmax.f32 %v8065, 0.0
        %v8083 = vmax.f32 %v8066, 0.0
        %v8084 = vmax.f32 %v8067, 0.0
        %v8085 = vmax.f32 %v8068, 0.0
        %v8086 = vmax.f32 %v8069, 0.0
        %v8087 = vmax.f32 %v8070, 0.0
        %v8088 = vmax.f32 %v8071, 0.0
        %v8089 = vmax.f32 %v8072, 0.0
        %v8090 = vmax.f32 %v8073, 0.0
        %v8091 = vmax.f32 %v8074, 0.0
        %v8109 = vrot.slane %v8075, 1
        %v8110 = vrot.slane %v8076, 1
        %v8111 = vsel %vm1514, %v8109, %v8110
        %v8112 = vrot.slane %v8077, 1
        %v8113 = vsel %vm1514, %v8110, %v8112
        %v8114 = vrot.slane %v8078, 1
        %v8115 = vsel %vm1514, %v8112, %v8114
        %v8116 = vrot.slane %v8079, 1
        %v8117 = vsel %vm1514, %v8114, %v8116
        %v8118 = vrot.slane %v8080, 1
        %v8119 = vsel %vm1514, %v8116, %v8118
        %v8120 = vrot.slane %v8081, 1
        %v8121 = vsel %vm1514, %v8118, %v8120
        %v8122 = vrot.slane %v8082, 1
        %v8123 = vsel %vm1514, %v8120, %v8122
        %v8124 = vrot.slane %v8083, 1
        %v8125 = vsel %vm1514, %v8122, %v8124
        %v8126 = vrot.slane %v8084, 1
        %v8127 = vsel %vm1514, %v8124, %v8126
        %v8128 = vrot.slane %v8085, 1
        %v8129 = vsel %vm1514, %v8126, %v8128
        %v8130 = vrot.slane %v8086, 1
        %v8131 = vsel %vm1514, %v8128, %v8130
        %v8132 = vrot.slane %v8087, 1
        %v8133 = vsel %vm1514, %v8130, %v8132
        %v8134 = vrot.slane %v8088, 1
        %v8135 = vsel %vm1514, %v8132, %v8134
        %v8136 = vrot.slane %v8089, 1
        %v8137 = vsel %vm1514, %v8134, %v8136
        %v8138 = vrot.slane %v8090, 1
        %v8139 = vsel %vm1514, %v8136, %v8138
        %v8140 = vrot.slane %v8091, 1
        %v8141 = vsel %vm1514, %v8138, %v8140
        %v8158 = vmax.f32 %v8075, %v8111
        %v8159 = vmax.f32 %v8076, %v8113
        %v8160 = vmax.f32 %v8077, %v8115
        %v8161 = vmax.f32 %v8078, %v8117
        %v8162 = vmax.f32 %v8079, %v8119
        %v8163 = vmax.f32 %v8080, %v8121
        %v8164 = vmax.f32 %v8081, %v8123
        %v8165 = vmax.f32 %v8082, %v8125
        %v8166 = vmax.f32 %v8083, %v8127
        %v8167 = vmax.f32 %v8084, %v8129
        %v8168 = vmax.f32 %v8085, %v8131
        %v8169 = vmax.f32 %v8086, %v8133
        %v8170 = vmax.f32 %v8087, %v8135
        %v8171 = vmax.f32 %v8088, %v8137
        %v8172 = vmax.f32 %v8089, %v8139
        %v8173 = vmax.f32 %v8090, %v8141
        %v8189 = vrot.slane %v8159, 5
        %v8190 = vrot.slane %v8160, 5
        %v8191 = vsel %vm3191, %v8189, %v8190
        %v8192 = vrot.slane %v8161, 5
        %v8193 = vsel %vm3191, %v8190, %v8192
        %v8194 = vrot.slane %v8162, 5
        %v8195 = vsel %vm3191, %v8192, %v8194
        %v8196 = vrot.slane %v8163, 5
        %v8197 = vsel %vm3191, %v8194, %v8196
        %v8198 = vrot.slane %v8164, 5
        %v8199 = vsel %vm3191, %v8196, %v8198
        %v8200 = vrot.slane %v8165, 5
        %v8201 = vsel %vm3191, %v8198, %v8200
        %v8202 = vrot.slane %v8166, 5
        %v8203 = vsel %vm3191, %v8200, %v8202
        %v8204 = vrot.slane %v8167, 5
        %v8205 = vsel %vm3191, %v8202, %v8204
        %v8206 = vrot.slane %v8168, 5
        %v8207 = vsel %vm3191, %v8204, %v8206
        %v8208 = vrot.slane %v8169, 5
        %v8209 = vsel %vm3191, %v8206, %v8208
        %v8210 = vrot.slane %v8170, 5
        %v8211 = vsel %vm3191, %v8208, %v8210
        %v8212 = vrot.slane %v8171, 5
        %v8213 = vsel %vm3191, %v8210, %v8212
        %v8214 = vrot.slane %v8172, 5
        %v8215 = vsel %vm3191, %v8212, %v8214
        %v8216 = vrot.slane %v8173, 5
        %v8217 = vsel %vm3191, %v8214, %v8216
        %v8233 = vmax.f32 %v8158, %v8191
        %v8234 = vmax.f32 %v8159, %v8193
        %v8235 = vmax.f32 %v8160, %v8195
        %v8236 = vmax.f32 %v8161, %v8197
        %v8237 = vmax.f32 %v8162, %v8199
        %v8238 = vmax.f32 %v8163, %v8201
        %v8239 = vmax.f32 %v8164, %v8203
        %v8240 = vmax.f32 %v8165, %v8205
        %v8241 = vmax.f32 %v8166, %v8207
        %v8242 = vmax.f32 %v8167, %v8209
        %v8243 = vmax.f32 %v8168, %v8211
        %v8244 = vmax.f32 %v8169, %v8213
        %v8245 = vmax.f32 %v8170, %v8215
        %v8246 = vmax.f32 %v8171, %v8217
        %v8247 = vmax.f32 %v8172, %v8216
        %8248 = vst.msk [vmem:[#allocation3] sm:$0xff] %vm7567, %v8233
        %8249 = vst.msk [vmem:[#allocation3 + $0x8] sm:$0xff] %vm7567, %v8234
        %8250 = vst.msk [vmem:[#allocation3 + $0x10] sm:$0xff] %vm7567, %v8235
        %8251 = vst.msk [vmem:[#allocation3 + $0x18] sm:$0xff] %vm7567, %v8236
        %8252 = vst.msk [vmem:[#allocation3 + $0x20] sm:$0xff] %vm7567, %v8237
        %8253 = vst.msk [vmem:[#allocation3 + $0x28] sm:$0xff] %vm7567, %v8238
        %8254 = vst.msk [vmem:[#allocation3 + $0x30] sm:$0xff] %vm7567, %v8239
        %8255 = vst.msk [vmem:[#allocation3 + $0x38] sm:$0xff] %vm7567, %v8240
        %8256 = vst.msk [vmem:[#allocation3 + $0x40] sm:$0xff] %vm7567, %v8241
        %8257 = vst.msk [vmem:[#allocation3 + $0x48] sm:$0xff] %vm7567, %v8242
        %8258 = vst.msk [vmem:[#allocation3 + $0x50] sm:$0xff] %vm7567, %v8243
        %8259 = vst.msk [vmem:[#allocation3 + $0x58] sm:$0xff] %vm7567, %v8244
        %8260 = vst.msk [vmem:[#allocation3 + $0x60] sm:$0xff] %vm7567, %v8245
        %8261 = vst.msk [vmem:[#allocation3 + $0x68] sm:$0xff] %vm7567, %v8246
        %vm8262 = vcmask 516096
        %8263 = vst.msk [vmem:[#allocation3 + $0x70] sm:$0x1] %vm8262, %v8247
        %v8264 = vld [vmem:[#allocation3] ss:$2 sm:$0x1f]
        %v8265 = vpack.c.bf16 %v8264, %v8264
        %vm8266 = vcmask 518144
        %vm8267 = vmand %vm8266, %vm6706
        %v8268 = vld [vmem:[#allocation5] sm:$0x7]
        %v8269 = vsel %vm8267, %v8265, %v8268
        %8270 = vst [vmem:[#allocation5] sm:$0x7] %v8269
        %s8271 = scalar_lea.vmem [#allocation3], 26
        %v8272 = vld [vmem:[%s8271] ss:$2 sm:$0x1f]
        %v8273 = vpack.c.bf16 %v8272, %v8272
        %v8275 = vunpack.c.l.b16 %v8273
        %v8276 = vpack.c.b16 %v8275, %v8275
        %v8278 = vshrl.u32 %v8276, 16
        %v8280 = vrot.slane %v8278, 5
        %v8281 = vshll.u32 %v8276, 16
        %v8283 = vrot.slane %v8281, 6
        %v8284 = vor.u32 %v8280, %v8283
        %v8285 = vrot.slane %v8284, 4
        %vm8288 = vcmask 519170
        %vm8289 = vmand %vm8288, %vm6746
        %v8290 = vld [vmem:[#allocation5] sm:$0xc]
        %v8291 = vsel %vm8289, %v8284, %v8290
        %8292 = vst [vmem:[#allocation5] sm:$0xc] %v8291
        %8293 = vst.msk [vmem:[#allocation5 + $0x4] sm:$0x1] %vm8262, %v8285
        %s8294 = scalar_lea.vmem [#allocation3], 52
        %v8295 = vld [vmem:[%s8294] ss:$2 sm:$0x1f]
        %v8296 = vpack.c.bf16 %v8295, %v8295
        %v8298 = vunpack.c.l.b16 %v8296
        %v8299 = vpack.c.b16 %v8298, %v8298
        %v8300 = vrot.slane %v8299, 7
        %vm8302 = vcmask 519169
        %vm8303 = vmand %vm8302, %vm6776
        %v8304 = vld [vmem:[#allocation5 + $0x4] sm:$0xe]
        %v8305 = vsel %vm8303, %v8300, %v8304
        %8306 = vst [vmem:[#allocation5 + $0x4] sm:$0xe] %v8305
        %s8307 = scalar_lea.vmem [#allocation3], 78
        %v8308 = vld [vmem:[%s8307] ss:$2 sm:$0x1f]
        %v8309 = vpack.c.bf16 %v8308, %v8308
        %v8311 = vunpack.c.l.b16 %v8309
        %v8312 = vpack.c.b16 %v8311, %v8311
        %v8314 = vshll.u32 %v8312, 16
        %v8316 = vrot.slane %v8314, 5
        %v8317 = vshrl.u32 %v8312, 16
        %v8319 = vrot.slane %v8317, 4
        %v8320 = vor.u32 %v8319, %v8316
        %v8321 = vrot.slane %v8320, 4
        %vm8324 = vcmask 519171
        %vm8325 = vmand %vm8324, %vm6816
        %v8326 = vld [vmem:[#allocation5 + $0x4] sm:$0x8]
        %v8327 = vsel %vm8325, %v8316, %v8326
        %8328 = vst [vmem:[#allocation5 + $0x4] sm:$0x8] %v8327
        %vm8329 = vcmask 517120
        %8330 = vst.msk [vmem:[#allocation5 + $0x8] sm:$0x3] %vm8329, %v8321
        %s8331 = scalar_lea.vmem [#allocation3], 104
        %v8332 = vld [vmem:[%s8331] ss:$2 sm:$0x1f]
        %v8333 = vpack.c.bf16 %v8332, %v8332
        %v8335 = vunpack.c.l.b16 %v8333
        %v8336 = vpack.c.b16 %v8335, %v8335
        %v8337 = vrot.slane %v8336, 6
        %v8338 = vrot.slane %v8337, 4
        %vm8341 = vcmask 519170
        %8342 = vst.msk [vmem:[#allocation5 + $0x8] sm:$0xc] %vm8341, %v8337
        %vm8343 = vcmask 516096
        %vm8344 = vmand %vm8343, %vm6849
        %v8345 = vld [vmem:[#allocation5 + $0xc] sm:$0x1]
        %v8346 = vsel %vm8344, %v8338, %v8345
        %8347 = vst [vmem:[#allocation5 + $0xc] sm:$0x1] %v8346
        %v8348 = vld [vmem:[#allocation5] sm:$0xf]
        %v8349 = vld [vmem:[#allocation5 + $0x4] sm:$0xf]
        %v8350 = vld [vmem:[#allocation5 + $0x8] sm:$0xf]
        %v8351 = vld [vmem:[#allocation5 + $0xc] sm:$0x1]
        %v8356 = vunpack.c.l.b16 %v8348
        %v8357 = vunpack.c.l.b16 %v8349
        %v8358 = vunpack.c.l.b16 %v8350
        %v8359 = vunpack.c.l.b16 %v8351
        %v8360 = vpack.c.b16 %v8357, %v8356
        %v8361 = vpack.c.b16 %v8359, %v8358
        %v8363 = vsel %vm7173, %v8361, 0
        %v8365 = vshrl.u32 %v8360, 16
        %v8367 = vshll.u32 %v8360, 16
        %v8369 = vrot.slane %v8367, 1
        %v8370 = vor.u32 %v8365, %v8369
        %8371 = vrot.lane.b32.xlu0 %v8370, 64
        %v8372 = vpop.permute.xlu0 %8371
        %v8374 = vrot.slane %v8360, 1
        %v8375 = vrot.slane %v8363, 1
        %v8376 = vsel %vm7265, %v8374, %v8375
        %vm8377 = vsmask.f32 5376
        %v8378 = vrot.slane %v8365, 2
        %v8379 = vrot.slane %v8367, 3
        %v8380 = vor.u32 %v8378, %v8379
        %v8382 = vshrl.u32 %v8363, 16
        %v8384 = vrot.slane %v8382, 2
        %v8385 = vshll.u32 %v8363, 16
        %v8387 = vrot.slane %v8385, 3
        %v8388 = vor.u32 %v8384, %v8387
        %v8389 = vsel %vm8377, %v8380, %v8388
        %8390 = vrot.lane.b32.xlu0 %v8389, 64
        %v8391 = vpop.permute.xlu0 %8390
        %v8392 = vrot.slane %v8360, 3
        %v8393 = vrot.slane %v8363, 3
        %v8394 = vsel %vm7171, %v8392, %v8393
        %v8395 = vrot.slane %v8365, 3
        %v8396 = vrot.slane %v8367, 4
        %v8397 = vor.u32 %v8395, %v8396
        %v8398 = vrot.slane %v8382, 3
        %v8399 = vrot.slane %v8385, 4
        %v8400 = vor.u32 %v8398, %v8399
        %v8401 = vsel %vm7172, %v8397, %v8400
        %8402 = vrot.lane.b32.xlu0 %v8401, 64
        %v8403 = vpop.permute.xlu0 %8402
        %v8404 = vrot.slane %v8360, 5
        %v8405 = vrot.slane %v8363, 5
        %v8406 = vsel %vm6901, %v8404, %v8405
        %v8407 = vrot.slane %v8365, 5
        %v8408 = vrot.slane %v8367, 6
        %v8409 = vor.u32 %v8407, %v8408
        %v8410 = vrot.slane %v8382, 5
        %v8411 = vrot.slane %v8385, 6
        %v8412 = vor.u32 %v8410, %v8411
        %v8413 = vsel %vm6706, %v8409, %v8412
        %8414 = vrot.lane.b32.xlu0 %v8413, 64
        %v8415 = vpop.permute.xlu0 %8414
        %v8416 = vrot.slane %v8360, 6
        %v8417 = vrot.slane %v8363, 6
        %v8418 = vsel %vm6834, %v8416, %v8417
        %v8420 = vsel %vm7567, %v8360, %v8372
        %v8424 = vsel %vm7567, %v8376, %v8391
        %v8428 = vsel %vm7567, %v8394, %v8403
        %v8432 = vsel %vm7567, %v8406, %v8415
        %v8506 = vunpack.c.l.b16 %v508
        %v8507 = vunpack.c.l.b16 %v509
        %v8508 = vunpack.c.l.b16 %v510
        %v8509 = vunpack.c.l.b16 %v511
        %v8510 = vunpack.c.l.b16 %v512
        %v8511 = vunpack.c.l.b16 %v513
        %v8512 = vunpack.c.l.b16 %v514
        %v8513 = vunpack.c.l.b16 %v515
        %v8514 = vunpack.c.l.b16 %v516
        %v8515 = vunpack.c.l.b16 %v517
        %v8516 = vunpack.c.l.b16 %v518
        %v8517 = vunpack.c.l.b16 %v519
        %v8518 = vunpack.c.l.b16 %v520
        %v8519 = vunpack.c.l.b16 %v521
        %v8520 = vunpack.c.l.b16 %v522
        %v8521 = vunpack.c.l.b16 %v523
        %v8522 = vunpack.c.l.b16 %v524
        %v8523 = vunpack.c.l.b16 %v525
        %v8524 = vunpack.c.l.b16 %v526
        %v8525 = vunpack.c.l.b16 %v527
        %v8526 = vunpack.c.l.b16 %v528
        %v8527 = vunpack.c.l.b16 %v529
        %v8528 = vunpack.c.l.b16 %v530
        %v8529 = vunpack.c.l.b16 %v531
        %v8530 = vunpack.c.l.b16 %v532
        %v8531 = vunpack.c.l.b16 %v533
        %v8532 = vunpack.c.l.b16 %v534
        %v8533 = vunpack.c.l.b16 %v535
        %v8534 = vunpack.c.l.b16 %v536
        %v8535 = vunpack.c.l.b16 %v537
        %v8536 = vunpack.c.l.b16 %v538
        %v8537 = vunpack.c.l.b16 %v539
        %v8538 = vunpack.c.l.b16 %v540
        %v8539 = vunpack.c.l.b16 %v541
        %v8540 = vunpack.c.l.b16 %v542
        %v8541 = vunpack.c.l.b16 %v543
        %v8542 = vunpack.c.l.b16 %v544
        %v8543 = vunpack.c.l.b16 %v545
        %v8544 = vunpack.c.l.b16 %v546
        %v8545 = vunpack.c.l.b16 %v547
        %v8546 = vunpack.c.l.b16 %v548
        %v8547 = vunpack.c.l.b16 %v549
        %v8548 = vunpack.c.l.b16 %v550
        %v8549 = vunpack.c.l.b16 %v551
        %v8550 = vunpack.c.l.b16 %v552
        %v8551 = vunpack.c.l.b16 %v553
        %v8552 = vunpack.c.l.b16 %v554
        %v8553 = vunpack.c.l.b16 %v555
        %v8554 = vunpack.c.l.b16 %v556
        %v8555 = vunpack.c.l.b16 %v557
        %v8556 = vunpack.c.l.b16 %v558
        %v8557 = vunpack.c.l.b16 %v559
        %v8558 = vunpack.c.l.b16 %v560
        %v8559 = vunpack.c.l.b16 %v561
        %v8560 = vunpack.c.l.b16 %v562
        %v8561 = vunpack.c.l.b16 %v563
        %v8562 = vunpack.c.l.b16 %v564
        %v8563 = vunpack.c.l.b16 %v565
        %v8564 = vunpack.c.l.b16 %v566
        %v8565 = vunpack.c.l.b16 %v567
        %v8566 = vunpack.c.l.b16 %v568
        %v8567 = vunpack.c.l.b16 %v569
        %v8568 = vunpack.c.l.b16 %v570
        %v8569 = vunpack.c.l.b16 %v571
        %v8570 = vunpack.c.l.b16 %v572
        %v8571 = vunpack.c.l.b16 %v573
        %v8572 = vunpack.c.l.b16 %v574
        %v8573 = vunpack.c.l.b16 %v575
        %v8574 = vunpack.c.l.b16 %v576
        %v8575 = vunpack.c.l.b16 %v577
        %v8576 = vunpack.c.l.b16 %v578
        %v8577 = vunpack.c.l.b16 %v579
        %v8578 = vpack.c.b16 %v8507, %v8506
        %v8579 = vpack.c.b16 %v8509, %v8508
        %v8580 = vpack.c.b16 %v8511, %v8510
        %v8581 = vpack.c.b16 %v8513, %v8512
        %v8582 = vpack.c.b16 %v8515, %v8514
        %v8583 = vpack.c.b16 %v8517, %v8516
        %v8584 = vpack.c.b16 %v8519, %v8518
        %v8585 = vpack.c.b16 %v8521, %v8520
        %v8586 = vpack.c.b16 %v8523, %v8522
        %v8587 = vpack.c.b16 %v8525, %v8524
        %v8588 = vpack.c.b16 %v8527, %v8526
        %v8589 = vpack.c.b16 %v8529, %v8528
        %v8590 = vpack.c.b16 %v8531, %v8530
        %v8591 = vpack.c.b16 %v8533, %v8532
        %v8592 = vpack.c.b16 %v8535, %v8534
        %v8593 = vpack.c.b16 %v8537, %v8536
        %v8594 = vpack.c.b16 %v8539, %v8538
        %v8595 = vpack.c.b16 %v8541, %v8540
        %v8596 = vpack.c.b16 %v8543, %v8542
        %v8597 = vpack.c.b16 %v8545, %v8544
        %v8598 = vpack.c.b16 %v8547, %v8546
        %v8599 = vpack.c.b16 %v8549, %v8548
        %v8600 = vpack.c.b16 %v8551, %v8550
        %v8601 = vpack.c.b16 %v8553, %v8552
        %v8602 = vpack.c.b16 %v8555, %v8554
        %v8603 = vpack.c.b16 %v8557, %v8556
        %v8604 = vpack.c.b16 %v8559, %v8558
        %v8605 = vpack.c.b16 %v8561, %v8560
        %v8606 = vpack.c.b16 %v8563, %v8562
        %v8607 = vpack.c.b16 %v8565, %v8564
        %v8608 = vpack.c.b16 %v8567, %v8566
        %v8609 = vpack.c.b16 %v8569, %v8568
        %v8610 = vpack.c.b16 %v8571, %v8570
        %v8611 = vpack.c.b16 %v8573, %v8572
        %v8612 = vpack.c.b16 %v8575, %v8574
        %v8613 = vpack.c.b16 %v8577, %v8576
        %v8651 = vsel %vm7567, %v8418, 0
        %8653 = vmatprep.subr.bf16.mxu0 0
        %8654 = vmatpush1.bf16.msra.mxu0 %v8585
        %8655 = vmatprep.subr.bf16.mxu0 0
        %8656 = vmatpush1.bf16.msra.mxu0 %v8584
        %8657 = vmatprep.subr.bf16.mxu0 0
        %8658 = vmatpush1.bf16.msra.mxu0 %v8583
        %8659 = vmatprep.subr.bf16.mxu0 0
        %8660 = vmatpush1.bf16.msra.mxu0 %v8582
        %8661 = vmatprep.subr.bf16.mxu0 0
        %8662 = vmatpush1.bf16.msra.mxu0 %v8581
        %8663 = vmatprep.subr.bf16.mxu0 0
        %8664 = vmatpush1.bf16.msra.mxu0 %v8580
        %8665 = vmatprep.subr.bf16.mxu0 0
        %8666 = vmatpush1.bf16.msra.mxu0 %v8579
        %8667 = vmatprep.subr.bf16.mxu0 0
        %8668 = vmatpush1.bf16.msra.mxu0 %v8578
        %8669 = vmatprep.subr.bf16.mxu0 0
        %8670 = vmatpush2.bf16.msra.mxu0 %v8593
        %8671 = vmatprep.subr.bf16.mxu0 0
        %8672 = vmatpush2.bf16.msra.mxu0 %v8592
        %8673 = vmatprep.subr.bf16.mxu0 0
        %8674 = vmatpush2.bf16.msra.mxu0 %v8591
        %8675 = vmatprep.subr.bf16.mxu0 0
        %8676 = vmatpush2.bf16.msra.mxu0 %v8590
        %8677 = vmatprep.subr.bf16.mxu0 0
        %8678 = vmatpush2.bf16.msra.mxu0 %v8589
        %8679 = vmatprep.subr.bf16.mxu0 0
        %8680 = vmatpush2.bf16.msra.mxu0 %v8588
        %8681 = vmatprep.subr.bf16.mxu0 0
        %8682 = vmatpush2.bf16.msra.mxu0 %v8587
        %8683 = vmatprep.subr.bf16.mxu0 0
        %8684 = vmatpush2.bf16.msra.mxu0 %v8586
        %8685 = vmatprep.mubr.bf16.mxu0 %v8424
        %8686 = vmatmul.mubr.bf16.gmra.mxu0 %v8420
        %v8687 = vpop.f32.mrf.mxu0
        %v8688 = vadd.f32 0.0, %v8687
        %v8689 = vpop.f32.mrf.mxu0
        %v8690 = vpop.f32.mrf.mxu0
        %v8691 = vadd.f32 0.0, %v8690
        %v8692 = vpop.f32.mrf.mxu0
        %8693 = vdwg.mxu0
        %8694 = vmatprep.subr.bf16.mxu0 0
        %8695 = vmatpush1.bf16.msra.mxu0 %v8601
        %8696 = vmatprep.subr.bf16.mxu0 0
        %8697 = vmatpush1.bf16.msra.mxu0 %v8600
        %8698 = vmatprep.subr.bf16.mxu0 0
        %8699 = vmatpush1.bf16.msra.mxu0 %v8599
        %8700 = vmatprep.subr.bf16.mxu0 0
        %8701 = vmatpush1.bf16.msra.mxu0 %v8598
        %8702 = vmatprep.subr.bf16.mxu0 0
        %8703 = vmatpush1.bf16.msra.mxu0 %v8597
        %8704 = vmatprep.subr.bf16.mxu0 0
        %8705 = vmatpush1.bf16.msra.mxu0 %v8596
        %8706 = vmatprep.subr.bf16.mxu0 0
        %8707 = vmatpush1.bf16.msra.mxu0 %v8595
        %8708 = vmatprep.subr.bf16.mxu0 0
        %8709 = vmatpush1.bf16.msra.mxu0 %v8594
        %8710 = vmatprep.subr.bf16.mxu0 0
        %8711 = vmatpush2.bf16.msra.mxu0 %v8609
        %8712 = vmatprep.subr.bf16.mxu0 0
        %8713 = vmatpush2.bf16.msra.mxu0 %v8608
        %8714 = vmatprep.subr.bf16.mxu0 0
        %8715 = vmatpush2.bf16.msra.mxu0 %v8607
        %8716 = vmatprep.subr.bf16.mxu0 0
        %8717 = vmatpush2.bf16.msra.mxu0 %v8606
        %8718 = vmatprep.subr.bf16.mxu0 0
        %8719 = vmatpush2.bf16.msra.mxu0 %v8605
        %8720 = vmatprep.subr.bf16.mxu0 0
        %8721 = vmatpush2.bf16.msra.mxu0 %v8604
        %8722 = vmatprep.subr.bf16.mxu0 0
        %8723 = vmatpush2.bf16.msra.mxu0 %v8603
        %8724 = vmatprep.subr.bf16.mxu0 0
        %8725 = vmatpush2.bf16.msra.mxu0 %v8602
        %8726 = vmatprep.mubr.bf16.mxu0 %v8432
        %8727 = vmatmul.mubr.bf16.gmra.mxu0 %v8428
        %v8728 = vpop.f32.mrf.mxu0
        %v8729 = vadd.f32 %v8688, %v8728
        %v8730 = vpop.f32.mrf.mxu0
        %v8731 = vpop.f32.mrf.mxu0
        %v8732 = vadd.f32 %v8691, %v8731
        %v8733 = vpop.f32.mrf.mxu0
        %8734 = vdwg.mxu0
        %8735 = vmatprep.subr.bf16.mxu0 0
        %8736 = vmatpush1.bf16.msra.mxu0 0
        %8737 = vmatprep.subr.bf16.mxu0 0
        %8738 = vmatpush1.bf16.msra.mxu0 0
        %8739 = vmatprep.subr.bf16.mxu0 0
        %8740 = vmatpush1.bf16.msra.mxu0 0
        %8741 = vmatprep.subr.bf16.mxu0 0
        %8742 = vmatpush1.bf16.msra.mxu0 0
        %8743 = vmatprep.subr.bf16.mxu0 0
        %8744 = vmatpush1.bf16.msra.mxu0 %v8613
        %8745 = vmatprep.subr.bf16.mxu0 0
        %8746 = vmatpush1.bf16.msra.mxu0 %v8612
        %8747 = vmatprep.subr.bf16.mxu0 0
        %8748 = vmatpush1.bf16.msra.mxu0 %v8611
        %8749 = vmatprep.subr.bf16.mxu0 0
        %8750 = vmatpush1.bf16.msra.mxu0 %v8610
        %8751 = vmatprep.subr.bf16.mxu0 0
        %8752 = vmatpush2.bf16.msra.mxu0 0
        %8753 = vmatprep.subr.bf16.mxu0 0
        %8754 = vmatpush2.bf16.msra.mxu0 0
        %8755 = vmatprep.subr.bf16.mxu0 0
        %8756 = vmatpush2.bf16.msra.mxu0 0
        %8757 = vmatprep.subr.bf16.mxu0 0
        %8758 = vmatpush2.bf16.msra.mxu0 0
        %8759 = vmatprep.subr.bf16.mxu0 0
        %8760 = vmatpush2.bf16.msra.mxu0 0
        %8761 = vmatprep.subr.bf16.mxu0 0
        %8762 = vmatpush2.bf16.msra.mxu0 0
        %8763 = vmatprep.subr.bf16.mxu0 0
        %8764 = vmatpush2.bf16.msra.mxu0 0
        %8765 = vmatprep.subr.bf16.mxu0 0
        %8766 = vmatpush2.bf16.msra.mxu0 0
        %8767 = vmatprep.mubr.bf16.mxu0 0
        %8768 = vmatmul.mubr.bf16.gmra.mxu0 %v8651
        %v8769 = vpop.f32.mrf.mxu0
        %v8770 = vadd.f32 %v8729, %v8769
        %v8771 = vpop.f32.mrf.mxu0
        %v8772 = vpop.f32.mrf.mxu0
        %v8773 = vadd.f32 %v8732, %v8772
        %v8774 = vpop.f32.mrf.mxu0
        %8775 = vdwg.mxu0
        %v8777 = vlaneseq
        %v8778 = vshrl.u32 %v8777, 7
        %v8779 = vsub.s32 0, %v8778
        %v8780 = vrot.slane %v580, %v8779
        %v8782 = vmul.f32 %v8770, %v8780
        %v8783 = vmul.f32 %v8773, %v8780
        %v8785 = vlaneseq
        %v8786 = vshrl.u32 %v8785, 7
        %v8787 = vsub.s32 0, %v8786
        %v8788 = vrot.slane %v581, %v8787
        %v8790 = vadd.f32 %v8782, %v8788
        %v8791 = vadd.f32 %v8783, %v8788
        %v8792 = vmax.f32 %v8790, 0.0
        %v8793 = vmax.f32 %v8791, 0.0
        %v8794 = vpack.c.bf16 %v8793, %v8792
        %v8796 = vshrl.u32 %v8794, 16
        %v8799 = vrot.slane %v8794, 1
        %v8800 = vrot.slane %v8796, 2
        %v8801 = vrot.slane %v8794, 3
        %v8802 = vrot.slane %v8796, 3
        %v8803 = vrot.slane %v8794, 5
        %v8804 = vrot.slane %v8796, 5
        %v8805 = vrot.slane %v8794, 6
        %v8806 = vcombine.low %v8794, %v8796
        %v8807 = vcombine.low %v8799, %v8800
        %v8808 = vcombine.low %v8801, %v8802
        %v8809 = vcombine.low %v8803, %v8804
        %v8811 = vunpack.c.l.s4 1966171168
        %v8812 = vunpack.c.0.s8 %v8811
        %v8813 = vlaneseq
        %v8814 = vshrl.u32 %v8813, 7
        %v8815 = vsub.s32 %v8812, %v8814
        %v8816 = vrot.slane %v8806, %v8815
        %v8818 = vunpack.c.l.s4 1966171168
        %v8819 = vunpack.c.0.s8 %v8818
        %v8820 = vlaneseq
        %v8821 = vshrl.u32 %v8820, 7
        %v8822 = vsub.s32 %v8819, %v8821
        %v8823 = vrot.slane %v8807, %v8822
        %v8825 = vunpack.c.l.s4 1966171168
        %v8826 = vunpack.c.0.s8 %v8825
        %v8827 = vlaneseq
        %v8828 = vshrl.u32 %v8827, 7
        %v8829 = vsub.s32 %v8826, %v8828
        %v8830 = vrot.slane %v8808, %v8829
        %v8832 = vunpack.c.l.s4 1966171168
        %v8833 = vunpack.c.0.s8 %v8832
        %v8834 = vlaneseq
        %v8835 = vshrl.u32 %v8834, 7
        %v8836 = vsub.s32 %v8833, %v8835
        %v8837 = vrot.slane %v8809, %v8836
        %v8838 = vcombine.low %v8816, %v8823
        %v8839 = vcombine.low %v8830, %v8837
        %v8841 = vunpack.c.l.s4 1966171168
        %v8842 = vunpack.c.0.s8 %v8841
        %v8843 = vlaneseq
        %v8844 = vshrl.u32 %v8843, 7
        %v8845 = vsub.s32 %v8842, %v8844
        %v8846 = vrot.slane %v8838, %v8845
        %v8848 = vunpack.c.l.s4 1966171168
        %v8849 = vunpack.c.0.s8 %v8848
        %v8850 = vlaneseq
        %v8851 = vshrl.u32 %v8850, 7
        %v8852 = vsub.s32 %v8849, %v8851
        %v8853 = vrot.slane %v8839, %v8852
        %v8854 = vcombine.low %v8846, %v8853
        %v8856 = vunpack.c.l.s4 1966171168
        %v8857 = vunpack.c.0.s8 %v8856
        %v8858 = vlaneseq
        %v8859 = vshrl.u32 %v8858, 7
        %v8860 = vsub.s32 %v8857, %v8859
        %v8861 = vrot.slane %v8805, %v8860
        %v8863 = vunpack.c.l.s4 1966171168
        %v8864 = vunpack.c.0.s8 %v8863
        %v8865 = vlaneseq
        %v8866 = vshrl.u32 %v8865, 7
        %v8867 = vsub.s32 %v8864, %v8866
        %v8868 = vrot.slane %v8861, %v8867
        %vm8871 = vmand %vm6764, %vm6849
        %vm8872 = vcmask 1041409
        %vm8873 = vmand %vm8872, %vm6916
        %vm8874 = vmor %vm8873, %vm8871
        %vm8875 = vcmask 1042434
        %vm8876 = vmand %vm8875, %vm6706
        %vm8877 = vmor %vm8876, %vm8874
        %vm8878 = vcmask 1043459
        %vm8879 = vmand %vm8878, %vm6776
        %vm8880 = vmor %vm8879, %vm8877
        %vm8881 = vmand %vm6765, %vm7172
        %vm8882 = vmor %vm8881, %vm8880
        %vm8883 = vcmask 1045509
        %vm8884 = vmand %vm8883, %vm8377
        %vm8885 = vmor %vm8884, %vm8882
        %vm8886 = vcmask 1046534
        %vm8887 = vsmask.f32 6400
        %vm8888 = vmand %vm8886, %vm8887
        %vm8889 = vmor %vm8888, %vm8885
        %vm8890 = vcmask 1047559
        %vm8891 = vmand %vm8890, %vm7175
        %vm8892 = vmor %vm8891, %vm8889
        %v8893 = vld [vmem:[#allocation6] sm:$0xff]
        %v8894 = vsel %vm8892, %v8854, %v8893
        %8895 = vst [vmem:[#allocation6] sm:$0xff] %v8894
        %v8896 = vld [vmem:[#allocation6 + $0x8] sm:$0x1]
        %v8897 = vsel %vm8871, %v8868, %v8896
        %8898 = vst [vmem:[#allocation6 + $0x8] sm:$0x1] %v8897
        %v8899 = vld [vmem:[#allocation6] sm:$0xff]
        %v8900 = vld [vmem:[#allocation6 + $0x8] sm:$0x1]
        %v8901 = vld [vmem:[%s10] sm:$0xff]
        %v8902 = vld [vmem:[%s10 + $0x8] sm:$0xff]
        %v8903 = vld [vmem:[%s10 + $0x10] sm:$0xff]
        %v8904 = vld [vmem:[%s10 + $0x18] sm:$0xff]
        %v8905 = vld [vmem:[%s10 + $0x20] sm:$0xff]
        %v8906 = vld [vmem:[%s10 + $0x28] sm:$0xff]
        %v8907 = vld [vmem:[%s10 + $0x30] sm:$0xff]
        %v8908 = vld [vmem:[%s10 + $0x38] sm:$0xff]
        %v8909 = vld [vmem:[%s10 + $0x40] sm:$0xff]
        %v8910 = vld [vmem:[%s10 + $0x48] sm:$0xff]
        %v8911 = vld [vmem:[%s10 + $0x50] sm:$0xff]
        %v8912 = vld [vmem:[%s10 + $0x58] sm:$0xff]
        %v8913 = vld [vmem:[%s10 + $0x60] sm:$0xff]
        %v8914 = vld [vmem:[%s10 + $0x68] sm:$0xff]
        %v8915 = vld [vmem:[%s10 + $0x70] sm:$0xff]
        %v8916 = vld [vmem:[%s10 + $0x78] sm:$0xff]
        %v8917 = vld [vmem:[%s10 + $0x80] sm:$0xff]
        %v8918 = vld [vmem:[%s10 + $0x88] sm:$0xff]
        %v8919 = vld [vmem:[%s10 + $0x90] sm:$0xff]
        %v8920 = vld [vmem:[%s10 + $0x98] sm:$0xff]
        %v8921 = vld [vmem:[%s10 + $0xa0] sm:$0xff]
        %v8922 = vld [vmem:[%s10 + $0xa8] sm:$0xff]
        %v8923 = vld [vmem:[%s10 + $0xb0] sm:$0xff]
        %v8924 = vld [vmem:[%s10 + $0xb8] sm:$0xff]
        %v8925 = vld [vmem:[%s10 + $0xc0] sm:$0xff]
        %v8926 = vld [vmem:[%s10 + $0xc8] sm:$0xff]
        %v8927 = vld [vmem:[%s10 + $0xd0] sm:$0xff]
        %v8928 = vld [vmem:[%s10 + $0xd8] sm:$0xff]
        %v8929 = vld [vmem:[%s10 + $0xe0] sm:$0xff]
        %v8930 = vld [vmem:[%s10 + $0xe8] sm:$0xff]
        %v8931 = vld [vmem:[%s10 + $0xf0] sm:$0xff]
        %v8932 = vld [vmem:[%s10 + $0xf8] sm:$0xff]
        %v8933 = vld [vmem:[%s10 + $0x100] sm:$0xff]
        %v8934 = vld [vmem:[%s10 + $0x108] sm:$0xff]
        %v8935 = vld [vmem:[%s10 + $0x110] sm:$0xff]
        %v8936 = vld [vmem:[%s10 + $0x118] sm:$0xff]
        %v8937 = vld [vmem:[%s10 + $0x120] sm:$0xff]
        %v8938 = vld [vmem:[%s10 + $0x128] sm:$0xff]
        %v8939 = vld [vmem:[%s10 + $0x130] sm:$0xff]
        %v8940 = vld [vmem:[%s10 + $0x138] sm:$0xff]
        %v8941 = vld [vmem:[%s10 + $0x140] sm:$0xff]
        %v8942 = vld [vmem:[%s10 + $0x148] sm:$0xff]
        %v8943 = vld [vmem:[%s10 + $0x150] sm:$0xff]
        %v8944 = vld [vmem:[%s10 + $0x158] sm:$0xff]
        %v8945 = vld [vmem:[%s10 + $0x160] sm:$0xff]
        %v8946 = vld [vmem:[%s10 + $0x168] sm:$0xff]
        %v8947 = vld [vmem:[%s10 + $0x170] sm:$0xff]
        %v8948 = vld [vmem:[%s10 + $0x178] sm:$0xff]
        %v8949 = vld [vmem:[%s10 + $0x180] sm:$0xff]
        %v8950 = vld [vmem:[%s10 + $0x188] sm:$0xff]
        %v8951 = vld [vmem:[%s10 + $0x190] sm:$0xff]
        %v8952 = vld [vmem:[%s10 + $0x198] sm:$0xff]
        %v8953 = vld [vmem:[%s10 + $0x1a0] sm:$0xff]
        %v8954 = vld [vmem:[%s10 + $0x1a8] sm:$0xff]
        %v8955 = vld [vmem:[%s10 + $0x1b0] sm:$0xff]
        %v8956 = vld [vmem:[%s10 + $0x1b8] sm:$0xff]
        %v8957 = vld [vmem:[%s10 + $0x1c0] sm:$0xff]
        %v8958 = vld [vmem:[%s10 + $0x1c8] sm:$0xff]
        %v8959 = vld [vmem:[%s10 + $0x1d0] sm:$0xff]
        %v8960 = vld [vmem:[%s10 + $0x1d8] sm:$0xff]
        %v8961 = vld [vmem:[%s10 + $0x1e0] sm:$0xff]
        %v8962 = vld [vmem:[%s10 + $0x1e8] sm:$0xff]
        %v8963 = vld [vmem:[%s10 + $0x1f0] sm:$0xff]
        %v8964 = vld [vmem:[%s10 + $0x1f8] sm:$0xff]
        %v8965 = vld [vmem:[%s10 + $0x200] sm:$0xff]
        %v8966 = vld [vmem:[%s10 + $0x208] sm:$0xff]
        %v8967 = vld [vmem:[%s10 + $0x210] sm:$0xff]
        %v8968 = vld [vmem:[%s10 + $0x218] sm:$0xff]
        %v8969 = vld [vmem:[%s10 + $0x220] sm:$0xff]
        %v8970 = vld [vmem:[%s10 + $0x228] sm:$0xff]
        %v8971 = vld [vmem:[%s10 + $0x230] sm:$0xff]
        %v8972 = vld [vmem:[%s10 + $0x238] sm:$0xff]
        %v8973 = vld [vmem:[%s10 + $0x240] sm:$0xff]
        %v8974 = vld [vmem:[%s10 + $0x248] sm:$0xff]
        %v8975 = vld [vmem:[%s10 + $0x250] sm:$0xff]
        %v8976 = vld [vmem:[%s10 + $0x258] sm:$0xff]
        %v8977 = vld [vmem:[%s10 + $0x260] sm:$0xff]
        %v8978 = vld [vmem:[%s10 + $0x268] sm:$0xff]
        %v8979 = vld [vmem:[%s10 + $0x270] sm:$0xff]
        %v8980 = vld [vmem:[%s10 + $0x278] sm:$0xff]
        %v8981 = vld [vmem:[%s10 + $0x280] sm:$0xff]
        %v8982 = vld [vmem:[%s10 + $0x288] sm:$0xff]
        %v8983 = vld [vmem:[%s10 + $0x290] sm:$0xff]
        %v8984 = vld [vmem:[%s10 + $0x298] sm:$0xff]
        %v8985 = vld [vmem:[%s10 + $0x2a0] sm:$0xff]
        %v8986 = vld [vmem:[%s10 + $0x2a8] sm:$0xff]
        %v8987 = vld [vmem:[%s10 + $0x2b0] sm:$0xff]
        %v8988 = vld [vmem:[%s10 + $0x2b8] sm:$0xff]
        %v8989 = vld [vmem:[%s10 + $0x2c0] sm:$0xff]
        %v8990 = vld [vmem:[%s10 + $0x2c8] sm:$0xff]
        %v8991 = vld [vmem:[%s10 + $0x2d0] sm:$0xff]
        %v8992 = vld [vmem:[%s10 + $0x2d8] sm:$0xff]
        %v8993 = vld [vmem:[%s10 + $0x2e0] sm:$0xff]
        %v8994 = vld [vmem:[%s10 + $0x2e8] sm:$0xff]
        %v8995 = vld [vmem:[%s10 + $0x2f0] sm:$0xff]
        %v8996 = vld [vmem:[%s10 + $0x2f8] sm:$0xff]
        %v8997 = vld [vmem:[%s10 + $0x300] sm:$0xff]
        %v8998 = vld [vmem:[%s10 + $0x308] sm:$0xff]
        %v8999 = vld [vmem:[%s10 + $0x310] sm:$0xff]
        %v9000 = vld [vmem:[%s10 + $0x318] sm:$0xff]
        %v9001 = vld [vmem:[%s10 + $0x320] sm:$0xff]
        %v9002 = vld [vmem:[%s10 + $0x328] sm:$0xff]
        %v9003 = vld [vmem:[%s10 + $0x330] sm:$0xff]
        %v9004 = vld [vmem:[%s10 + $0x338] sm:$0xff]
        %v9005 = vld [vmem:[%s10 + $0x340] sm:$0xff]
        %v9006 = vld [vmem:[%s10 + $0x348] sm:$0xff]
        %v9007 = vld [vmem:[%s10 + $0x350] sm:$0xff]
        %v9008 = vld [vmem:[%s10 + $0x358] sm:$0xff]
        %v9009 = vld [vmem:[%s10 + $0x360] sm:$0xff]
        %v9010 = vld [vmem:[%s10 + $0x368] sm:$0xff]
        %v9011 = vld [vmem:[%s10 + $0x370] sm:$0xff]
        %v9012 = vld [vmem:[%s10 + $0x378] sm:$0xff]
        %v9013 = vld [vmem:[%s10 + $0x380] sm:$0xff]
        %v9014 = vld [vmem:[%s10 + $0x388] sm:$0xff]
        %v9015 = vld [vmem:[%s10 + $0x390] sm:$0xff]
        %v9016 = vld [vmem:[%s10 + $0x398] sm:$0xff]
        %v9017 = vld [vmem:[%s10 + $0x3a0] sm:$0xff]
        %v9018 = vld [vmem:[%s10 + $0x3a8] sm:$0xff]
        %v9019 = vld [vmem:[%s10 + $0x3b0] sm:$0xff]
        %v9020 = vld [vmem:[%s10 + $0x3b8] sm:$0xff]
        %v9021 = vld [vmem:[%s10 + $0x3c0] sm:$0xff]
        %v9022 = vld [vmem:[%s10 + $0x3c8] sm:$0xff]
        %v9023 = vld [vmem:[%s10 + $0x3d0] sm:$0xff]
        %v9024 = vld [vmem:[%s10 + $0x3d8] sm:$0xff]
        %v9025 = vld [vmem:[%s10 + $0x3e0] sm:$0xff]
        %v9026 = vld [vmem:[%s10 + $0x3e8] sm:$0xff]
        %v9027 = vld [vmem:[%s10 + $0x3f0] sm:$0xff]
        %v9028 = vld [vmem:[%s10 + $0x3f8] sm:$0xff]
        %v9029 = vld [vmem:[%s10 + $0x400] sm:$0xff]
        %v9030 = vld [vmem:[%s10 + $0x408] sm:$0xff]
        %v9031 = vld [vmem:[%s10 + $0x410] sm:$0xff]
        %v9032 = vld [vmem:[%s10 + $0x418] sm:$0xff]
        %v9033 = vld [vmem:[%s10 + $0x420] sm:$0xff]
        %v9034 = vld [vmem:[%s10 + $0x428] sm:$0xff]
        %v9035 = vld [vmem:[%s10 + $0x430] sm:$0xff]
        %v9036 = vld [vmem:[%s10 + $0x438] sm:$0xff]
        %v9037 = vld [vmem:[%s10 + $0x440] sm:$0xff]
        %v9038 = vld [vmem:[%s10 + $0x448] sm:$0xff]
        %v9039 = vld [vmem:[%s10 + $0x450] sm:$0xff]
        %v9040 = vld [vmem:[%s10 + $0x458] sm:$0xff]
        %v9041 = vld [vmem:[%s10 + $0x460] sm:$0xff]
        %v9042 = vld [vmem:[%s10 + $0x468] sm:$0xff]
        %v9043 = vld [vmem:[%s10 + $0x470] sm:$0xff]
        %v9044 = vld [vmem:[%s10 + $0x478] sm:$0xff]
        %v9045 = vld [vmem:[%s11] sm:$0x3]
        %v9048 = vcombine.high %v8899, %v8899
        %v9050 = vunpack.c.l.s4 1966171168
        %v9051 = vunpack.c.0.s8 %v9050
        %v9052 = vlaneseq
        %v9053 = vshrl.u32 %v9052, 7
        %v9054 = vsub.s32 %v9051, %v9053
        %v9055 = vrot.slane %v8899, %v9054
        %v9057 = vunpack.c.l.s4 1966171168
        %v9058 = vunpack.c.0.s8 %v9057
        %v9059 = vlaneseq
        %v9060 = vshrl.u32 %v9059, 7
        %v9061 = vsub.s32 %v9058, %v9060
        %v9062 = vrot.slane %v9048, %v9061
        %v9063 = vcombine.high %v9055, %v9055
        %v9064 = vcombine.high %v9062, %v9062
        %v9066 = vunpack.c.l.s4 1966171168
        %v9067 = vunpack.c.0.s8 %v9066
        %v9068 = vlaneseq
        %v9069 = vshrl.u32 %v9068, 7
        %v9070 = vsub.s32 %v9067, %v9069
        %v9071 = vrot.slane %v9055, %v9070
        %v9073 = vunpack.c.l.s4 1966171168
        %v9074 = vunpack.c.0.s8 %v9073
        %v9075 = vlaneseq
        %v9076 = vshrl.u32 %v9075, 7
        %v9077 = vsub.s32 %v9074, %v9076
        %v9078 = vrot.slane %v9062, %v9077
        %v9080 = vunpack.c.l.s4 1966171168
        %v9081 = vunpack.c.0.s8 %v9080
        %v9082 = vlaneseq
        %v9083 = vshrl.u32 %v9082, 7
        %v9084 = vsub.s32 %v9081, %v9083
        %v9085 = vrot.slane %v9063, %v9084
        %v9087 = vunpack.c.l.s4 1966171168
        %v9088 = vunpack.c.0.s8 %v9087
        %v9089 = vlaneseq
        %v9090 = vshrl.u32 %v9089, 7
        %v9091 = vsub.s32 %v9088, %v9090
        %v9092 = vrot.slane %v9064, %v9091
        %v9093 = vcombine.high %v9071, %v9071
        %v9094 = vcombine.high %v9078, %v9078
        %v9095 = vcombine.high %v9085, %v9085
        %v9096 = vcombine.high %v9092, %v9092
        %v9098 = vunpack.c.l.s4 1966171168
        %v9099 = vunpack.c.0.s8 %v9098
        %v9100 = vlaneseq
        %v9101 = vshrl.u32 %v9100, 7
        %v9102 = vsub.s32 %v9099, %v9101
        %v9103 = vrot.slane %v8900, %v9102
        %v9105 = vunpack.c.l.s4 1966171168
        %v9106 = vunpack.c.0.s8 %v9105
        %v9107 = vlaneseq
        %v9108 = vshrl.u32 %v9107, 7
        %v9109 = vsub.s32 %v9106, %v9108
        %v9110 = vrot.slane %v9103, %v9109
        %v9264 = vunpack.c.l.b16 %v8901
        %v9265 = vunpack.c.h.b16 %v8901
        %v9266 = vunpack.c.l.b16 %v8902
        %v9267 = vunpack.c.h.b16 %v8902
        %v9268 = vunpack.c.l.b16 %v8903
        %v9269 = vunpack.c.h.b16 %v8903
        %v9270 = vunpack.c.l.b16 %v8904
        %v9271 = vunpack.c.h.b16 %v8904
        %v9272 = vunpack.c.l.b16 %v8905
        %v9273 = vunpack.c.h.b16 %v8905
        %v9274 = vunpack.c.l.b16 %v8906
        %v9275 = vunpack.c.h.b16 %v8906
        %v9276 = vunpack.c.l.b16 %v8907
        %v9277 = vunpack.c.h.b16 %v8907
        %v9278 = vunpack.c.l.b16 %v8908
        %v9279 = vunpack.c.h.b16 %v8908
        %v9280 = vunpack.c.l.b16 %v8909
        %v9281 = vunpack.c.h.b16 %v8909
        %v9282 = vunpack.c.l.b16 %v8910
        %v9283 = vunpack.c.h.b16 %v8910
        %v9284 = vunpack.c.l.b16 %v8911
        %v9285 = vunpack.c.h.b16 %v8911
        %v9286 = vunpack.c.l.b16 %v8912
        %v9287 = vunpack.c.h.b16 %v8912
        %v9288 = vunpack.c.l.b16 %v8913
        %v9289 = vunpack.c.h.b16 %v8913
        %v9290 = vunpack.c.l.b16 %v8914
        %v9291 = vunpack.c.h.b16 %v8914
        %v9292 = vunpack.c.l.b16 %v8915
        %v9293 = vunpack.c.h.b16 %v8915
        %v9294 = vunpack.c.l.b16 %v8916
        %v9295 = vunpack.c.h.b16 %v8916
        %v9296 = vunpack.c.l.b16 %v8917
        %v9297 = vunpack.c.h.b16 %v8917
        %v9298 = vunpack.c.l.b16 %v8918
        %v9299 = vunpack.c.h.b16 %v8918
        %v9300 = vunpack.c.l.b16 %v8919
        %v9301 = vunpack.c.h.b16 %v8919
        %v9302 = vunpack.c.l.b16 %v8920
        %v9303 = vunpack.c.h.b16 %v8920
        %v9304 = vunpack.c.l.b16 %v8921
        %v9305 = vunpack.c.h.b16 %v8921
        %v9306 = vunpack.c.l.b16 %v8922
        %v9307 = vunpack.c.h.b16 %v8922
        %v9308 = vunpack.c.l.b16 %v8923
        %v9309 = vunpack.c.h.b16 %v8923
        %v9310 = vunpack.c.l.b16 %v8924
        %v9311 = vunpack.c.h.b16 %v8924
        %v9312 = vunpack.c.l.b16 %v8925
        %v9313 = vunpack.c.h.b16 %v8925
        %v9314 = vunpack.c.l.b16 %v8926
        %v9315 = vunpack.c.h.b16 %v8926
        %v9316 = vunpack.c.l.b16 %v8927
        %v9317 = vunpack.c.h.b16 %v8927
        %v9318 = vunpack.c.l.b16 %v8928
        %v9319 = vunpack.c.h.b16 %v8928
        %v9320 = vunpack.c.l.b16 %v8929
        %v9321 = vunpack.c.h.b16 %v8929
        %v9322 = vunpack.c.l.b16 %v8930
        %v9323 = vunpack.c.h.b16 %v8930
        %v9324 = vunpack.c.l.b16 %v8931
        %v9325 = vunpack.c.h.b16 %v8931
        %v9326 = vunpack.c.l.b16 %v8932
        %v9327 = vunpack.c.h.b16 %v8932
        %v9328 = vunpack.c.l.b16 %v8933
        %v9329 = vunpack.c.h.b16 %v8933
        %v9330 = vunpack.c.l.b16 %v8934
        %v9331 = vunpack.c.h.b16 %v8934
        %v9332 = vunpack.c.l.b16 %v8935
        %v9333 = vunpack.c.h.b16 %v8935
        %v9334 = vunpack.c.l.b16 %v8936
        %v9335 = vunpack.c.h.b16 %v8936
        %v9336 = vunpack.c.l.b16 %v8937
        %v9337 = vunpack.c.h.b16 %v8937
        %v9338 = vunpack.c.l.b16 %v8938
        %v9339 = vunpack.c.h.b16 %v8938
        %v9340 = vunpack.c.l.b16 %v8939
        %v9341 = vunpack.c.h.b16 %v8939
        %v9342 = vunpack.c.l.b16 %v8940
        %v9343 = vunpack.c.h.b16 %v8940
        %v9344 = vunpack.c.l.b16 %v8941
        %v9345 = vunpack.c.h.b16 %v8941
        %v9346 = vunpack.c.l.b16 %v8942
        %v9347 = vunpack.c.h.b16 %v8942
        %v9348 = vunpack.c.l.b16 %v8943
        %v9349 = vunpack.c.h.b16 %v8943
        %v9350 = vunpack.c.l.b16 %v8944
        %v9351 = vunpack.c.h.b16 %v8944
        %v9352 = vunpack.c.l.b16 %v8945
        %v9353 = vunpack.c.h.b16 %v8945
        %v9354 = vunpack.c.l.b16 %v8946
        %v9355 = vunpack.c.h.b16 %v8946
        %v9356 = vunpack.c.l.b16 %v8947
        %v9357 = vunpack.c.h.b16 %v8947
        %v9358 = vunpack.c.l.b16 %v8948
        %v9359 = vunpack.c.h.b16 %v8948
        %v9360 = vunpack.c.l.b16 %v8949
        %v9361 = vunpack.c.h.b16 %v8949
        %v9362 = vunpack.c.l.b16 %v8950
        %v9363 = vunpack.c.h.b16 %v8950
        %v9364 = vunpack.c.l.b16 %v8951
        %v9365 = vunpack.c.h.b16 %v8951
        %v9366 = vunpack.c.l.b16 %v8952
        %v9367 = vunpack.c.h.b16 %v8952
        %v9368 = vunpack.c.l.b16 %v8953
        %v9369 = vunpack.c.h.b16 %v8953
        %v9370 = vunpack.c.l.b16 %v8954
        %v9371 = vunpack.c.h.b16 %v8954
        %v9372 = vunpack.c.l.b16 %v8955
        %v9373 = vunpack.c.h.b16 %v8955
        %v9374 = vunpack.c.l.b16 %v8956
        %v9375 = vunpack.c.h.b16 %v8956
        %v9376 = vunpack.c.l.b16 %v8957
        %v9377 = vunpack.c.h.b16 %v8957
        %v9378 = vunpack.c.l.b16 %v8958
        %v9379 = vunpack.c.h.b16 %v8958
        %v9380 = vunpack.c.l.b16 %v8959
        %v9381 = vunpack.c.h.b16 %v8959
        %v9382 = vunpack.c.l.b16 %v8960
        %v9383 = vunpack.c.h.b16 %v8960
        %v9384 = vunpack.c.l.b16 %v8961
        %v9385 = vunpack.c.h.b16 %v8961
        %v9386 = vunpack.c.l.b16 %v8962
        %v9387 = vunpack.c.h.b16 %v8962
        %v9388 = vunpack.c.l.b16 %v8963
        %v9389 = vunpack.c.h.b16 %v8963
        %v9390 = vunpack.c.l.b16 %v8964
        %v9391 = vunpack.c.h.b16 %v8964
        %v9392 = vunpack.c.l.b16 %v8965
        %v9393 = vunpack.c.h.b16 %v8965
        %v9394 = vunpack.c.l.b16 %v8966
        %v9395 = vunpack.c.h.b16 %v8966
        %v9396 = vunpack.c.l.b16 %v8967
        %v9397 = vunpack.c.h.b16 %v8967
        %v9398 = vunpack.c.l.b16 %v8968
        %v9399 = vunpack.c.h.b16 %v8968
        %v9400 = vunpack.c.l.b16 %v8969
        %v9401 = vunpack.c.h.b16 %v8969
        %v9402 = vunpack.c.l.b16 %v8970
        %v9403 = vunpack.c.h.b16 %v8970
        %v9404 = vunpack.c.l.b16 %v8971
        %v9405 = vunpack.c.h.b16 %v8971
        %v9406 = vunpack.c.l.b16 %v8972
        %v9407 = vunpack.c.h.b16 %v8972
        %v9408 = vunpack.c.l.b16 %v8973
        %v9409 = vunpack.c.h.b16 %v8973
        %v9410 = vunpack.c.l.b16 %v8974
        %v9411 = vunpack.c.h.b16 %v8974
        %v9412 = vunpack.c.l.b16 %v8975
        %v9413 = vunpack.c.h.b16 %v8975
        %v9414 = vunpack.c.l.b16 %v8976
        %v9415 = vunpack.c.h.b16 %v8976
        %v9416 = vunpack.c.l.b16 %v8977
        %v9417 = vunpack.c.h.b16 %v8977
        %v9418 = vunpack.c.l.b16 %v8978
        %v9419 = vunpack.c.h.b16 %v8978
        %v9420 = vunpack.c.l.b16 %v8979
        %v9421 = vunpack.c.h.b16 %v8979
        %v9422 = vunpack.c.l.b16 %v8980
        %v9423 = vunpack.c.h.b16 %v8980
        %v9424 = vunpack.c.l.b16 %v8981
        %v9425 = vunpack.c.h.b16 %v8981
        %v9426 = vunpack.c.l.b16 %v8982
        %v9427 = vunpack.c.h.b16 %v8982
        %v9428 = vunpack.c.l.b16 %v8983
        %v9429 = vunpack.c.h.b16 %v8983
        %v9430 = vunpack.c.l.b16 %v8984
        %v9431 = vunpack.c.h.b16 %v8984
        %v9432 = vunpack.c.l.b16 %v8985
        %v9433 = vunpack.c.h.b16 %v8985
        %v9434 = vunpack.c.l.b16 %v8986
        %v9435 = vunpack.c.h.b16 %v8986
        %v9436 = vunpack.c.l.b16 %v8987
        %v9437 = vunpack.c.h.b16 %v8987
        %v9438 = vunpack.c.l.b16 %v8988
        %v9439 = vunpack.c.h.b16 %v8988
        %v9440 = vunpack.c.l.b16 %v8989
        %v9441 = vunpack.c.h.b16 %v8989
        %v9442 = vunpack.c.l.b16 %v8990
        %v9443 = vunpack.c.h.b16 %v8990
        %v9444 = vunpack.c.l.b16 %v8991
        %v9445 = vunpack.c.h.b16 %v8991
        %v9446 = vunpack.c.l.b16 %v8992
        %v9447 = vunpack.c.h.b16 %v8992
        %v9448 = vunpack.c.l.b16 %v8993
        %v9449 = vunpack.c.h.b16 %v8993
        %v9450 = vunpack.c.l.b16 %v8994
        %v9451 = vunpack.c.h.b16 %v8994
        %v9452 = vunpack.c.l.b16 %v8995
        %v9453 = vunpack.c.h.b16 %v8995
        %v9454 = vunpack.c.l.b16 %v8996
        %v9455 = vunpack.c.h.b16 %v8996
        %v9456 = vunpack.c.l.b16 %v8997
        %v9457 = vunpack.c.h.b16 %v8997
        %v9458 = vunpack.c.l.b16 %v8998
        %v9459 = vunpack.c.h.b16 %v8998
        %v9460 = vunpack.c.l.b16 %v8999
        %v9461 = vunpack.c.h.b16 %v8999
        %v9462 = vunpack.c.l.b16 %v9000
        %v9463 = vunpack.c.h.b16 %v9000
        %v9464 = vunpack.c.l.b16 %v9001
        %v9465 = vunpack.c.h.b16 %v9001
        %v9466 = vunpack.c.l.b16 %v9002
        %v9467 = vunpack.c.h.b16 %v9002
        %v9468 = vunpack.c.l.b16 %v9003
        %v9469 = vunpack.c.h.b16 %v9003
        %v9470 = vunpack.c.l.b16 %v9004
        %v9471 = vunpack.c.h.b16 %v9004
        %v9472 = vunpack.c.l.b16 %v9005
        %v9473 = vunpack.c.h.b16 %v9005
        %v9474 = vunpack.c.l.b16 %v9006
        %v9475 = vunpack.c.h.b16 %v9006
        %v9476 = vunpack.c.l.b16 %v9007
        %v9477 = vunpack.c.h.b16 %v9007
        %v9478 = vunpack.c.l.b16 %v9008
        %v9479 = vunpack.c.h.b16 %v9008
        %v9480 = vunpack.c.l.b16 %v9009
        %v9481 = vunpack.c.h.b16 %v9009
        %v9482 = vunpack.c.l.b16 %v9010
        %v9483 = vunpack.c.h.b16 %v9010
        %v9484 = vunpack.c.l.b16 %v9011
        %v9485 = vunpack.c.h.b16 %v9011
        %v9486 = vunpack.c.l.b16 %v9012
        %v9487 = vunpack.c.h.b16 %v9012
        %v9488 = vunpack.c.l.b16 %v9013
        %v9489 = vunpack.c.h.b16 %v9013
        %v9490 = vunpack.c.l.b16 %v9014
        %v9491 = vunpack.c.h.b16 %v9014
        %v9492 = vunpack.c.l.b16 %v9015
        %v9493 = vunpack.c.h.b16 %v9015
        %v9494 = vunpack.c.l.b16 %v9016
        %v9495 = vunpack.c.h.b16 %v9016
        %v9496 = vunpack.c.l.b16 %v9017
        %v9497 = vunpack.c.h.b16 %v9017
        %v9498 = vunpack.c.l.b16 %v9018
        %v9499 = vunpack.c.h.b16 %v9018
        %v9500 = vunpack.c.l.b16 %v9019
        %v9501 = vunpack.c.h.b16 %v9019
        %v9502 = vunpack.c.l.b16 %v9020
        %v9503 = vunpack.c.h.b16 %v9020
        %v9504 = vunpack.c.l.b16 %v9021
        %v9505 = vunpack.c.h.b16 %v9021
        %v9506 = vunpack.c.l.b16 %v9022
        %v9507 = vunpack.c.h.b16 %v9022
        %v9508 = vunpack.c.l.b16 %v9023
        %v9509 = vunpack.c.h.b16 %v9023
        %v9510 = vunpack.c.l.b16 %v9024
        %v9511 = vunpack.c.h.b16 %v9024
        %v9512 = vunpack.c.l.b16 %v9025
        %v9513 = vunpack.c.h.b16 %v9025
        %v9514 = vunpack.c.l.b16 %v9026
        %v9515 = vunpack.c.h.b16 %v9026
        %v9516 = vunpack.c.l.b16 %v9027
        %v9517 = vunpack.c.h.b16 %v9027
        %v9518 = vunpack.c.l.b16 %v9028
        %v9519 = vunpack.c.h.b16 %v9028
        %v9520 = vunpack.c.l.b16 %v9029
        %v9521 = vunpack.c.h.b16 %v9029
        %v9522 = vunpack.c.l.b16 %v9030
        %v9523 = vunpack.c.h.b16 %v9030
        %v9524 = vunpack.c.l.b16 %v9031
        %v9525 = vunpack.c.h.b16 %v9031
        %v9526 = vunpack.c.l.b16 %v9032
        %v9527 = vunpack.c.h.b16 %v9032
        %v9528 = vunpack.c.l.b16 %v9033
        %v9529 = vunpack.c.h.b16 %v9033
        %v9530 = vunpack.c.l.b16 %v9034
        %v9531 = vunpack.c.h.b16 %v9034
        %v9532 = vunpack.c.l.b16 %v9035
        %v9533 = vunpack.c.h.b16 %v9035
        %v9534 = vunpack.c.l.b16 %v9036
        %v9535 = vunpack.c.h.b16 %v9036
        %v9536 = vunpack.c.l.b16 %v9037
        %v9537 = vunpack.c.h.b16 %v9037
        %v9538 = vunpack.c.l.b16 %v9038
        %v9539 = vunpack.c.h.b16 %v9038
        %v9540 = vunpack.c.l.b16 %v9039
        %v9541 = vunpack.c.h.b16 %v9039
        %v9542 = vunpack.c.l.b16 %v9040
        %v9543 = vunpack.c.h.b16 %v9040
        %v9544 = vunpack.c.l.b16 %v9041
        %v9545 = vunpack.c.h.b16 %v9041
        %v9546 = vunpack.c.l.b16 %v9042
        %v9547 = vunpack.c.h.b16 %v9042
        %v9548 = vunpack.c.l.b16 %v9043
        %v9549 = vunpack.c.h.b16 %v9043
        %v9550 = vunpack.c.l.b16 %v9044
        %v9551 = vunpack.c.h.b16 %v9044
        %v9552 = vpack.c.b16 %v9266, %v9264
        %v9553 = vpack.c.b16 %v9267, %v9265
        %v9554 = vpack.c.b16 %v9270, %v9268
        %v9555 = vpack.c.b16 %v9271, %v9269
        %v9556 = vpack.c.b16 %v9274, %v9272
        %v9557 = vpack.c.b16 %v9275, %v9273
        %v9558 = vpack.c.b16 %v9278, %v9276
        %v9559 = vpack.c.b16 %v9279, %v9277
        %v9560 = vpack.c.b16 %v9282, %v9280
        %v9561 = vpack.c.b16 %v9283, %v9281
        %v9562 = vpack.c.b16 %v9286, %v9284
        %v9563 = vpack.c.b16 %v9287, %v9285
        %v9564 = vpack.c.b16 %v9290, %v9288
        %v9565 = vpack.c.b16 %v9291, %v9289
        %v9566 = vpack.c.b16 %v9294, %v9292
        %v9567 = vpack.c.b16 %v9295, %v9293
        %v9568 = vpack.c.b16 %v9298, %v9296
        %v9569 = vpack.c.b16 %v9299, %v9297
        %v9570 = vpack.c.b16 %v9302, %v9300
        %v9571 = vpack.c.b16 %v9303, %v9301
        %v9572 = vpack.c.b16 %v9306, %v9304
        %v9573 = vpack.c.b16 %v9307, %v9305
        %v9574 = vpack.c.b16 %v9310, %v9308
        %v9575 = vpack.c.b16 %v9311, %v9309
        %v9576 = vpack.c.b16 %v9314, %v9312
        %v9577 = vpack.c.b16 %v9315, %v9313
        %v9578 = vpack.c.b16 %v9318, %v9316
        %v9579 = vpack.c.b16 %v9319, %v9317
        %v9580 = vpack.c.b16 %v9322, %v9320
        %v9581 = vpack.c.b16 %v9323, %v9321
        %v9582 = vpack.c.b16 %v9326, %v9324
        %v9583 = vpack.c.b16 %v9327, %v9325
        %v9584 = vpack.c.b16 %v9330, %v9328
        %v9585 = vpack.c.b16 %v9331, %v9329
        %v9586 = vpack.c.b16 %v9334, %v9332
        %v9587 = vpack.c.b16 %v9335, %v9333
        %v9588 = vpack.c.b16 %v9338, %v9336
        %v9589 = vpack.c.b16 %v9339, %v9337
        %v9590 = vpack.c.b16 %v9342, %v9340
        %v9591 = vpack.c.b16 %v9343, %v9341
        %v9592 = vpack.c.b16 %v9346, %v9344
        %v9593 = vpack.c.b16 %v9347, %v9345
        %v9594 = vpack.c.b16 %v9350, %v9348
        %v9595 = vpack.c.b16 %v9351, %v9349
        %v9596 = vpack.c.b16 %v9354, %v9352
        %v9597 = vpack.c.b16 %v9355, %v9353
        %v9598 = vpack.c.b16 %v9358, %v9356
        %v9599 = vpack.c.b16 %v9359, %v9357
        %v9600 = vpack.c.b16 %v9362, %v9360
        %v9601 = vpack.c.b16 %v9363, %v9361
        %v9602 = vpack.c.b16 %v9366, %v9364
        %v9603 = vpack.c.b16 %v9367, %v9365
        %v9604 = vpack.c.b16 %v9370, %v9368
        %v9605 = vpack.c.b16 %v9371, %v9369
        %v9606 = vpack.c.b16 %v9374, %v9372
        %v9607 = vpack.c.b16 %v9375, %v9373
        %v9608 = vpack.c.b16 %v9378, %v9376
        %v9609 = vpack.c.b16 %v9379, %v9377
        %v9610 = vpack.c.b16 %v9382, %v9380
        %v9611 = vpack.c.b16 %v9383, %v9381
        %v9612 = vpack.c.b16 %v9386, %v9384
        %v9613 = vpack.c.b16 %v9387, %v9385
        %v9614 = vpack.c.b16 %v9390, %v9388
        %v9615 = vpack.c.b16 %v9391, %v9389
        %v9616 = vpack.c.b16 %v9394, %v9392
        %v9617 = vpack.c.b16 %v9395, %v9393
        %v9618 = vpack.c.b16 %v9398, %v9396
        %v9619 = vpack.c.b16 %v9399, %v9397
        %v9620 = vpack.c.b16 %v9402, %v9400
        %v9621 = vpack.c.b16 %v9403, %v9401
        %v9622 = vpack.c.b16 %v9406, %v9404
        %v9623 = vpack.c.b16 %v9407, %v9405
        %v9624 = vpack.c.b16 %v9410, %v9408
        %v9625 = vpack.c.b16 %v9411, %v9409
        %v9626 = vpack.c.b16 %v9414, %v9412
        %v9627 = vpack.c.b16 %v9415, %v9413
        %v9628 = vpack.c.b16 %v9418, %v9416
        %v9629 = vpack.c.b16 %v9419, %v9417
        %v9630 = vpack.c.b16 %v9422, %v9420
        %v9631 = vpack.c.b16 %v9423, %v9421
        %v9632 = vpack.c.b16 %v9426, %v9424
        %v9633 = vpack.c.b16 %v9427, %v9425
        %v9634 = vpack.c.b16 %v9430, %v9428
        %v9635 = vpack.c.b16 %v9431, %v9429
        %v9636 = vpack.c.b16 %v9434, %v9432
        %v9637 = vpack.c.b16 %v9435, %v9433
        %v9638 = vpack.c.b16 %v9438, %v9436
        %v9639 = vpack.c.b16 %v9439, %v9437
        %v9640 = vpack.c.b16 %v9442, %v9440
        %v9641 = vpack.c.b16 %v9443, %v9441
        %v9642 = vpack.c.b16 %v9446, %v9444
        %v9643 = vpack.c.b16 %v9447, %v9445
        %v9644 = vpack.c.b16 %v9450, %v9448
        %v9645 = vpack.c.b16 %v9451, %v9449
        %v9646 = vpack.c.b16 %v9454, %v9452
        %v9647 = vpack.c.b16 %v9455, %v9453
        %v9648 = vpack.c.b16 %v9458, %v9456
        %v9649 = vpack.c.b16 %v9459, %v9457
        %v9650 = vpack.c.b16 %v9462, %v9460
        %v9651 = vpack.c.b16 %v9463, %v9461
        %v9652 = vpack.c.b16 %v9466, %v9464
        %v9653 = vpack.c.b16 %v9467, %v9465
        %v9654 = vpack.c.b16 %v9470, %v9468
        %v9655 = vpack.c.b16 %v9471, %v9469
        %v9656 = vpack.c.b16 %v9474, %v9472
        %v9657 = vpack.c.b16 %v9475, %v9473
        %v9658 = vpack.c.b16 %v9478, %v9476
        %v9659 = vpack.c.b16 %v9479, %v9477
        %v9660 = vpack.c.b16 %v9482, %v9480
        %v9661 = vpack.c.b16 %v9483, %v9481
        %v9662 = vpack.c.b16 %v9486, %v9484
        %v9663 = vpack.c.b16 %v9487, %v9485
        %v9664 = vpack.c.b16 %v9490, %v9488
        %v9665 = vpack.c.b16 %v9491, %v9489
        %v9666 = vpack.c.b16 %v9494, %v9492
        %v9667 = vpack.c.b16 %v9495, %v9493
        %v9668 = vpack.c.b16 %v9498, %v9496
        %v9669 = vpack.c.b16 %v9499, %v9497
        %v9670 = vpack.c.b16 %v9502, %v9500
        %v9671 = vpack.c.b16 %v9503, %v9501
        %v9672 = vpack.c.b16 %v9506, %v9504
        %v9673 = vpack.c.b16 %v9507, %v9505
        %v9674 = vpack.c.b16 %v9510, %v9508
        %v9675 = vpack.c.b16 %v9511, %v9509
        %v9676 = vpack.c.b16 %v9514, %v9512
        %v9677 = vpack.c.b16 %v9515, %v9513
        %v9678 = vpack.c.b16 %v9518, %v9516
        %v9679 = vpack.c.b16 %v9519, %v9517
        %v9680 = vpack.c.b16 %v9522, %v9520
        %v9681 = vpack.c.b16 %v9523, %v9521
        %v9682 = vpack.c.b16 %v9526, %v9524
        %v9683 = vpack.c.b16 %v9527, %v9525
        %v9684 = vpack.c.b16 %v9530, %v9528
        %v9685 = vpack.c.b16 %v9531, %v9529
        %v9686 = vpack.c.b16 %v9534, %v9532
        %v9687 = vpack.c.b16 %v9535, %v9533
        %v9688 = vpack.c.b16 %v9538, %v9536
        %v9689 = vpack.c.b16 %v9539, %v9537
        %v9690 = vpack.c.b16 %v9542, %v9540
        %v9691 = vpack.c.b16 %v9543, %v9541
        %v9692 = vpack.c.b16 %v9546, %v9544
        %v9693 = vpack.c.b16 %v9547, %v9545
        %v9694 = vpack.c.b16 %v9550, %v9548
        %v9695 = vpack.c.b16 %v9551, %v9549
        %v9841 = vlaneseq
        %v9842 = vshrl.u32 %v9841, 7
        %v9843 = vsub.s32 0, %v9842
        %v9844 = vrot.slane %v9045, %v9843
        %v9845 = vlaneseq
        %v9846 = vshrl.u32 %v9845, 7
        %v9847 = vsub.s32 1, %v9846
        %v9848 = vrot.slane %v9045, %v9847
        %9851 = vmatprep.subr.bf16.mxu0 %v9567
        %9852 = vmatpush1.bf16.msra.mxu0 %v9566
        %9853 = vmatprep.subr.bf16.mxu0 %v9565
        %9854 = vmatpush1.bf16.msra.mxu0 %v9564
        %9855 = vmatprep.subr.bf16.mxu0 %v9563
        %9856 = vmatpush1.bf16.msra.mxu0 %v9562
        %9857 = vmatprep.subr.bf16.mxu0 %v9561
        %9858 = vmatpush1.bf16.msra.mxu0 %v9560
        %9859 = vmatprep.subr.bf16.mxu0 %v9559
        %9860 = vmatpush1.bf16.msra.mxu0 %v9558
        %9861 = vmatprep.subr.bf16.mxu0 %v9557
        %9862 = vmatpush1.bf16.msra.mxu0 %v9556
        %9863 = vmatprep.subr.bf16.mxu0 %v9555
        %9864 = vmatpush1.bf16.msra.mxu0 %v9554
        %9865 = vmatprep.subr.bf16.mxu0 %v9553
        %9866 = vmatpush1.bf16.msra.mxu0 %v9552
        %9867 = vmatprep.subr.bf16.mxu0 %v9583
        %9868 = vmatpush2.bf16.msra.mxu0 %v9582
        %9869 = vmatprep.subr.bf16.mxu0 %v9581
        %9870 = vmatpush2.bf16.msra.mxu0 %v9580
        %9871 = vmatprep.subr.bf16.mxu0 %v9579
        %9872 = vmatpush2.bf16.msra.mxu0 %v9578
        %9873 = vmatprep.subr.bf16.mxu0 %v9577
        %9874 = vmatpush2.bf16.msra.mxu0 %v9576
        %9875 = vmatprep.subr.bf16.mxu0 %v9575
        %9876 = vmatpush2.bf16.msra.mxu0 %v9574
        %9877 = vmatprep.subr.bf16.mxu0 %v9573
        %9878 = vmatpush2.bf16.msra.mxu0 %v9572
        %9879 = vmatprep.subr.bf16.mxu0 %v9571
        %9880 = vmatpush2.bf16.msra.mxu0 %v9570
        %9881 = vmatprep.subr.bf16.mxu0 %v9569
        %9882 = vmatpush2.bf16.msra.mxu0 %v9568
        %9883 = vmatprep.mubr.bf16.mxu0 %v9085
        %9884 = vmatmul.mubr.bf16.gmra.mxu0 %v9071
        %v9885 = vpop.f32.mrf.mxu0
        %v9886 = vadd.f32 %v9844, %v9885
        %v9887 = vpop.f32.mrf.mxu0
        %v9888 = vadd.f32 %v9848, %v9887
        %v9889 = vpop.f32.mrf.mxu0
        %v9890 = vpop.f32.mrf.mxu0
        %9891 = vdwg.mxu0
        %9892 = vmatprep.subr.bf16.mxu0 %v9599
        %9893 = vmatpush1.bf16.msra.mxu0 %v9598
        %9894 = vmatprep.subr.bf16.mxu0 %v9597
        %9895 = vmatpush1.bf16.msra.mxu0 %v9596
        %9896 = vmatprep.subr.bf16.mxu0 %v9595
        %9897 = vmatpush1.bf16.msra.mxu0 %v9594
        %9898 = vmatprep.subr.bf16.mxu0 %v9593
        %9899 = vmatpush1.bf16.msra.mxu0 %v9592
        %9900 = vmatprep.subr.bf16.mxu0 %v9591
        %9901 = vmatpush1.bf16.msra.mxu0 %v9590
        %9902 = vmatprep.subr.bf16.mxu0 %v9589
        %9903 = vmatpush1.bf16.msra.mxu0 %v9588
        %9904 = vmatprep.subr.bf16.mxu0 %v9587
        %9905 = vmatpush1.bf16.msra.mxu0 %v9586
        %9906 = vmatprep.subr.bf16.mxu0 %v9585
        %9907 = vmatpush1.bf16.msra.mxu0 %v9584
        %9908 = vmatprep.subr.bf16.mxu0 %v9615
        %9909 = vmatpush2.bf16.msra.mxu0 %v9614
        %9910 = vmatprep.subr.bf16.mxu0 %v9613
        %9911 = vmatpush2.bf16.msra.mxu0 %v9612
        %9912 = vmatprep.subr.bf16.mxu0 %v9611
        %9913 = vmatpush2.bf16.msra.mxu0 %v9610
        %9914 = vmatprep.subr.bf16.mxu0 %v9609
        %9915 = vmatpush2.bf16.msra.mxu0 %v9608
        %9916 = vmatprep.subr.bf16.mxu0 %v9607
        %9917 = vmatpush2.bf16.msra.mxu0 %v9606
        %9918 = vmatprep.subr.bf16.mxu0 %v9605
        %9919 = vmatpush2.bf16.msra.mxu0 %v9604
        %9920 = vmatprep.subr.bf16.mxu0 %v9603
        %9921 = vmatpush2.bf16.msra.mxu0 %v9602
        %9922 = vmatprep.subr.bf16.mxu0 %v9601
        %9923 = vmatpush2.bf16.msra.mxu0 %v9600
        %9924 = vmatprep.mubr.bf16.mxu0 %v9095
        %9925 = vmatmul.mubr.bf16.gmra.mxu0 %v9093
        %v9926 = vpop.f32.mrf.mxu0
        %v9927 = vadd.f32 %v9886, %v9926
        %v9928 = vpop.f32.mrf.mxu0
        %v9929 = vadd.f32 %v9888, %v9928
        %v9930 = vpop.f32.mrf.mxu0
        %v9931 = vpop.f32.mrf.mxu0
        %9932 = vdwg.mxu0
        %9933 = vmatprep.subr.bf16.mxu0 %v9631
        %9934 = vmatpush1.bf16.msra.mxu0 %v9630
        %9935 = vmatprep.subr.bf16.mxu0 %v9629
        %9936 = vmatpush1.bf16.msra.mxu0 %v9628
        %9937 = vmatprep.subr.bf16.mxu0 %v9627
        %9938 = vmatpush1.bf16.msra.mxu0 %v9626
        %9939 = vmatprep.subr.bf16.mxu0 %v9625
        %9940 = vmatpush1.bf16.msra.mxu0 %v9624
        %9941 = vmatprep.subr.bf16.mxu0 %v9623
        %9942 = vmatpush1.bf16.msra.mxu0 %v9622
        %9943 = vmatprep.subr.bf16.mxu0 %v9621
        %9944 = vmatpush1.bf16.msra.mxu0 %v9620
        %9945 = vmatprep.subr.bf16.mxu0 %v9619
        %9946 = vmatpush1.bf16.msra.mxu0 %v9618
        %9947 = vmatprep.subr.bf16.mxu0 %v9617
        %9948 = vmatpush1.bf16.msra.mxu0 %v9616
        %9949 = vmatprep.subr.bf16.mxu0 %v9647
        %9950 = vmatpush2.bf16.msra.mxu0 %v9646
        %9951 = vmatprep.subr.bf16.mxu0 %v9645
        %9952 = vmatpush2.bf16.msra.mxu0 %v9644
        %9953 = vmatprep.subr.bf16.mxu0 %v9643
        %9954 = vmatpush2.bf16.msra.mxu0 %v9642
        %9955 = vmatprep.subr.bf16.mxu0 %v9641
        %9956 = vmatpush2.bf16.msra.mxu0 %v9640
        %9957 = vmatprep.subr.bf16.mxu0 %v9639
        %9958 = vmatpush2.bf16.msra.mxu0 %v9638
        %9959 = vmatprep.subr.bf16.mxu0 %v9637
        %9960 = vmatpush2.bf16.msra.mxu0 %v9636
        %9961 = vmatprep.subr.bf16.mxu0 %v9635
        %9962 = vmatpush2.bf16.msra.mxu0 %v9634
        %9963 = vmatprep.subr.bf16.mxu0 %v9633
        %9964 = vmatpush2.bf16.msra.mxu0 %v9632
        %9965 = vmatprep.mubr.bf16.mxu0 %v9092
        %9966 = vmatmul.mubr.bf16.gmra.mxu0 %v9078
        %v9967 = vpop.f32.mrf.mxu0
        %v9968 = vadd.f32 %v9927, %v9967
        %v9969 = vpop.f32.mrf.mxu0
        %v9970 = vadd.f32 %v9929, %v9969
        %v9971 = vpop.f32.mrf.mxu0
        %v9972 = vpop.f32.mrf.mxu0
        %9973 = vdwg.mxu0
        %9974 = vmatprep.subr.bf16.mxu0 %v9663
        %9975 = vmatpush1.bf16.msra.mxu0 %v9662
        %9976 = vmatprep.subr.bf16.mxu0 %v9661
        %9977 = vmatpush1.bf16.msra.mxu0 %v9660
        %9978 = vmatprep.subr.bf16.mxu0 %v9659
        %9979 = vmatpush1.bf16.msra.mxu0 %v9658
        %9980 = vmatprep.subr.bf16.mxu0 %v9657
        %9981 = vmatpush1.bf16.msra.mxu0 %v9656
        %9982 = vmatprep.subr.bf16.mxu0 %v9655
        %9983 = vmatpush1.bf16.msra.mxu0 %v9654
        %9984 = vmatprep.subr.bf16.mxu0 %v9653
        %9985 = vmatpush1.bf16.msra.mxu0 %v9652
        %9986 = vmatprep.subr.bf16.mxu0 %v9651
        %9987 = vmatpush1.bf16.msra.mxu0 %v9650
        %9988 = vmatprep.subr.bf16.mxu0 %v9649
        %9989 = vmatpush1.bf16.msra.mxu0 %v9648
        %9990 = vmatprep.subr.bf16.mxu0 %v9679
        %9991 = vmatpush2.bf16.msra.mxu0 %v9678
        %9992 = vmatprep.subr.bf16.mxu0 %v9677
        %9993 = vmatpush2.bf16.msra.mxu0 %v9676
        %9994 = vmatprep.subr.bf16.mxu0 %v9675
        %9995 = vmatpush2.bf16.msra.mxu0 %v9674
        %9996 = vmatprep.subr.bf16.mxu0 %v9673
        %9997 = vmatpush2.bf16.msra.mxu0 %v9672
        %9998 = vmatprep.subr.bf16.mxu0 %v9671
        %9999 = vmatpush2.bf16.msra.mxu0 %v9670
        %10000 = vmatprep.subr.bf16.mxu0 %v9669
        %10001 = vmatpush2.bf16.msra.mxu0 %v9668
        %10002 = vmatprep.subr.bf16.mxu0 %v9667
        %10003 = vmatpush2.bf16.msra.mxu0 %v9666
        %10004 = vmatprep.subr.bf16.mxu0 %v9665
        %10005 = vmatpush2.bf16.msra.mxu0 %v9664
        %10006 = vmatprep.mubr.bf16.mxu0 %v9096
        %10007 = vmatmul.mubr.bf16.gmra.mxu0 %v9094
        %v10008 = vpop.f32.mrf.mxu0
        %v10009 = vadd.f32 %v9968, %v10008
        %v10010 = vpop.f32.mrf.mxu0
        %v10011 = vadd.f32 %v9970, %v10010
        %v10012 = vpop.f32.mrf.mxu0
        %v10013 = vpop.f32.mrf.mxu0
        %10014 = vdwg.mxu0
        %10015 = vmatprep.subr.bf16.mxu0 %v9695
        %10016 = vmatpush1.bf16.msra.mxu0 %v9694
        %10017 = vmatprep.subr.bf16.mxu0 %v9693
        %10018 = vmatpush1.bf16.msra.mxu0 %v9692
        %10019 = vmatprep.subr.bf16.mxu0 %v9691
        %10020 = vmatpush1.bf16.msra.mxu0 %v9690
        %10021 = vmatprep.subr.bf16.mxu0 %v9689
        %10022 = vmatpush1.bf16.msra.mxu0 %v9688
        %10023 = vmatprep.subr.bf16.mxu0 %v9687
        %10024 = vmatpush1.bf16.msra.mxu0 %v9686
        %10025 = vmatprep.subr.bf16.mxu0 %v9685
        %10026 = vmatpush1.bf16.msra.mxu0 %v9684
        %10027 = vmatprep.subr.bf16.mxu0 %v9683
        %10028 = vmatpush1.bf16.msra.mxu0 %v9682
        %10029 = vmatprep.subr.bf16.mxu0 %v9681
        %10030 = vmatpush1.bf16.msra.mxu0 %v9680
        %10031 = vmatprep.subr.bf16.mxu0 0
        %10032 = vmatpush2.bf16.msra.mxu0 0
        %10033 = vmatprep.subr.bf16.mxu0 0
        %10034 = vmatpush2.bf16.msra.mxu0 0
        %10035 = vmatprep.subr.bf16.mxu0 0
        %10036 = vmatpush2.bf16.msra.mxu0 0
        %10037 = vmatprep.subr.bf16.mxu0 0
        %10038 = vmatpush2.bf16.msra.mxu0 0
        %10039 = vmatprep.subr.bf16.mxu0 0
        %10040 = vmatpush2.bf16.msra.mxu0 0
        %10041 = vmatprep.subr.bf16.mxu0 0
        %10042 = vmatpush2.bf16.msra.mxu0 0
        %10043 = vmatprep.subr.bf16.mxu0 0
        %10044 = vmatpush2.bf16.msra.mxu0 0
        %10045 = vmatprep.subr.bf16.mxu0 0
        %10046 = vmatpush2.bf16.msra.mxu0 0
        %10047 = vmatprep.mubr.bf16.mxu0 0
        %10048 = vmatmul.mubr.bf16.gmra.mxu0 %v9110
        %v10049 = vpop.f32.mrf.mxu0
        %v10050 = vadd.f32 %v10009, %v10049
        %v10051 = vpop.f32.mrf.mxu0
        %v10052 = vadd.f32 %v10011, %v10051
        %v10053 = vpop.f32.mrf.mxu0
        %v10054 = vpop.f32.mrf.mxu0
        %10055 = vdwg.mxu0
        %v10056 = vmax.f32 %v10050, 0.0
        %v10057 = vmax.f32 %v10052, 0.0
        %v10058 = vpack.c.bf16 %v10056, %v10056
        %v10059 = vpack.c.bf16 %v10057, %v10057
        %v10060 = vld [vmem:[%s12] sm:$0xf]
        %v10061 = vld [vmem:[%s12 + $0x4] sm:$0xf]
        %v10062 = vld [vmem:[%s12 + $0x8] sm:$0xf]
        %v10063 = vld [vmem:[%s12 + $0xc] sm:$0xf]
        %v10064 = vld [vmem:[%s12 + $0x10] sm:$0xf]
        %v10065 = vld [vmem:[%s12 + $0x14] sm:$0xf]
        %v10066 = vld [vmem:[%s12 + $0x18] sm:$0xf]
        %v10067 = vld [vmem:[%s12 + $0x1c] sm:$0xf]
        %v10068 = vld [vmem:[%s12 + $0x20] sm:$0xf]
        %v10069 = vld [vmem:[%s12 + $0x24] sm:$0xf]
        %v10070 = vld [vmem:[%s12 + $0x28] sm:$0xf]
        %v10071 = vld [vmem:[%s12 + $0x2c] sm:$0xf]
        %v10072 = vld [vmem:[%s12 + $0x30] sm:$0xf]
        %v10073 = vld [vmem:[%s12 + $0x34] sm:$0xf]
        %v10074 = vld [vmem:[%s12 + $0x38] sm:$0xf]
        %v10075 = vld [vmem:[%s12 + $0x3c] sm:$0xf]
        %v10076 = vld [vmem:[%s12 + $0x40] sm:$0xf]
        %v10077 = vld [vmem:[%s12 + $0x44] sm:$0xf]
        %v10078 = vld [vmem:[%s12 + $0x48] sm:$0xf]
        %v10079 = vld [vmem:[%s12 + $0x4c] sm:$0xf]
        %v10080 = vld [vmem:[%s12 + $0x50] sm:$0xf]
        %v10081 = vld [vmem:[%s12 + $0x54] sm:$0xf]
        %v10082 = vld [vmem:[%s12 + $0x58] sm:$0xf]
        %v10083 = vld [vmem:[%s12 + $0x5c] sm:$0xf]
        %v10084 = vld [vmem:[%s12 + $0x60] sm:$0xf]
        %v10085 = vld [vmem:[%s12 + $0x64] sm:$0xf]
        %v10086 = vld [vmem:[%s12 + $0x68] sm:$0xf]
        %v10087 = vld [vmem:[%s12 + $0x6c] sm:$0xf]
        %v10088 = vld [vmem:[%s12 + $0x70] sm:$0xf]
        %v10089 = vld [vmem:[%s12 + $0x74] sm:$0xf]
        %v10090 = vld [vmem:[%s12 + $0x78] sm:$0xf]
        %v10091 = vld [vmem:[%s12 + $0x7c] sm:$0xf]
        %v10092 = vld [vmem:[%s13] sm:$0x1]
        %v10125 = vunpack.c.l.b16 %v10060
        %v10126 = vunpack.c.l.b16 %v10061
        %v10127 = vunpack.c.l.b16 %v10062
        %v10128 = vunpack.c.l.b16 %v10063
        %v10129 = vunpack.c.l.b16 %v10064
        %v10130 = vunpack.c.l.b16 %v10065
        %v10131 = vunpack.c.l.b16 %v10066
        %v10132 = vunpack.c.l.b16 %v10067
        %v10133 = vunpack.c.l.b16 %v10068
        %v10134 = vunpack.c.l.b16 %v10069
        %v10135 = vunpack.c.l.b16 %v10070
        %v10136 = vunpack.c.l.b16 %v10071
        %v10137 = vunpack.c.l.b16 %v10072
        %v10138 = vunpack.c.l.b16 %v10073
        %v10139 = vunpack.c.l.b16 %v10074
        %v10140 = vunpack.c.l.b16 %v10075
        %v10141 = vunpack.c.l.b16 %v10076
        %v10142 = vunpack.c.l.b16 %v10077
        %v10143 = vunpack.c.l.b16 %v10078
        %v10144 = vunpack.c.l.b16 %v10079
        %v10145 = vunpack.c.l.b16 %v10080
        %v10146 = vunpack.c.l.b16 %v10081
        %v10147 = vunpack.c.l.b16 %v10082
        %v10148 = vunpack.c.l.b16 %v10083
        %v10149 = vunpack.c.l.b16 %v10084
        %v10150 = vunpack.c.l.b16 %v10085
        %v10151 = vunpack.c.l.b16 %v10086
        %v10152 = vunpack.c.l.b16 %v10087
        %v10153 = vunpack.c.l.b16 %v10088
        %v10154 = vunpack.c.l.b16 %v10089
        %v10155 = vunpack.c.l.b16 %v10090
        %v10156 = vunpack.c.l.b16 %v10091
        %v10157 = vpack.c.b16 %v10126, %v10125
        %v10158 = vpack.c.b16 %v10128, %v10127
        %v10159 = vpack.c.b16 %v10130, %v10129
        %v10160 = vpack.c.b16 %v10132, %v10131
        %v10161 = vpack.c.b16 %v10134, %v10133
        %v10162 = vpack.c.b16 %v10136, %v10135
        %v10163 = vpack.c.b16 %v10138, %v10137
        %v10164 = vpack.c.b16 %v10140, %v10139
        %v10165 = vpack.c.b16 %v10142, %v10141
        %v10166 = vpack.c.b16 %v10144, %v10143
        %v10167 = vpack.c.b16 %v10146, %v10145
        %v10168 = vpack.c.b16 %v10148, %v10147
        %v10169 = vpack.c.b16 %v10150, %v10149
        %v10170 = vpack.c.b16 %v10152, %v10151
        %v10171 = vpack.c.b16 %v10154, %v10153
        %v10172 = vpack.c.b16 %v10156, %v10155
        %10189 = vmatprep.subr.bf16.mxu0 0
        %10190 = vmatpush1.bf16.msra.mxu0 %v10164
        %10191 = vmatprep.subr.bf16.mxu0 0
        %10192 = vmatpush1.bf16.msra.mxu0 %v10163
        %10193 = vmatprep.subr.bf16.mxu0 0
        %10194 = vmatpush1.bf16.msra.mxu0 %v10162
        %10195 = vmatprep.subr.bf16.mxu0 0
        %10196 = vmatpush1.bf16.msra.mxu0 %v10161
        %10197 = vmatprep.subr.bf16.mxu0 0
        %10198 = vmatpush1.bf16.msra.mxu0 %v10160
        %10199 = vmatprep.subr.bf16.mxu0 0
        %10200 = vmatpush1.bf16.msra.mxu0 %v10159
        %10201 = vmatprep.subr.bf16.mxu0 0
        %10202 = vmatpush1.bf16.msra.mxu0 %v10158
        %10203 = vmatprep.subr.bf16.mxu0 0
        %10204 = vmatpush1.bf16.msra.mxu0 %v10157
        %10205 = vmatprep.subr.bf16.mxu0 0
        %10206 = vmatpush2.bf16.msra.mxu0 %v10172
        %10207 = vmatprep.subr.bf16.mxu0 0
        %10208 = vmatpush2.bf16.msra.mxu0 %v10171
        %10209 = vmatprep.subr.bf16.mxu0 0
        %10210 = vmatpush2.bf16.msra.mxu0 %v10170
        %10211 = vmatprep.subr.bf16.mxu0 0
        %10212 = vmatpush2.bf16.msra.mxu0 %v10169
        %10213 = vmatprep.subr.bf16.mxu0 0
        %10214 = vmatpush2.bf16.msra.mxu0 %v10168
        %10215 = vmatprep.subr.bf16.mxu0 0
        %10216 = vmatpush2.bf16.msra.mxu0 %v10167
        %10217 = vmatprep.subr.bf16.mxu0 0
        %10218 = vmatpush2.bf16.msra.mxu0 %v10166
        %10219 = vmatprep.subr.bf16.mxu0 0
        %10220 = vmatpush2.bf16.msra.mxu0 %v10165
        %10221 = vmatprep.mubr.bf16.mxu0 %v10059
        %10222 = vmatmul.mubr.bf16.gmra.mxu0 %v10058
        %v10223 = vpop.f32.mrf.mxu0
        %v10224 = vadd.f32 %v10092, %v10223
        %v10225 = vpop.f32.mrf.mxu0
        %v10226 = vpop.f32.mrf.mxu0
        %v10227 = vpop.f32.mrf.mxu0
        %10228 = vdwg.mxu0
        %10229 = vst [vmem:[%s459] sm:$0x1] %v10224
        %s10230 = sand.u32 %s335, 1
        %s10231 = scalar_lea.sflag [#allocation8], %s10230
        %s10232 = sand.u32 %s335, 1
        %s10233 = scalar_lea.vmem [#allocation7], %s10232
        // Predicated region
        $region77: #{cnn_base_forward.1} parent=75 // pred_check
          %p10234 = pneg %p345
        $region78: #{cnn_base_forward.1} parent=75 // pred_check_branch
          %10236 = sbr.rel (%p10234) target = $region80
        $region79: #{cnn_base_forward.1} parent=75 // pred_region
          %s10238 = ssub.s32 16, 16
          %10239 = vsyncadd %s10231, %s10238
          %s10240 = smul.addr %s28, 16
          %s10241 = scalar_lea.hbm %s14, %s10240
          %s10243 = sshll.u32 %s10233, 4
          %s10244 = int_to_ptr.vmem [resolvable:$true] %s10243
          %10246 = dma.vmem_to_hbm [thread:$0]  %s10244, 16, %s10241, %s10231
        $region80: #{cnn_base_forward.1} parent=75 // pred_fallthru
          _
      $region76: #{cnn_base_forward.1} parent=5 // pred_fallthru
        _
      %p10247 = scmp.le.s32.totalorder 2, %s23
      // Predicated region
      $region81: #{cnn_base_forward.1} parent=5 // pred_check
        %p10248 = pneg %p10247
      $region82: #{cnn_base_forward.1} parent=5 // pred_check_branch
        %10250 = sbr.rel (%p10248) target = $region84
      $region83: #{cnn_base_forward.1} parent=5 // pred_region
        %s10251 = ssub.s32 %s23, 2
        // Predicated region
        $region85: #{cnn_base_forward.1} parent=83 // pred_check
          %p10252 = pneg %p351
        $region86: #{cnn_base_forward.1} parent=83 // pred_check_branch
          %10254 = sbr.rel (%p10252) target = $region88
        $region87: #{cnn_base_forward.1} parent=83 // pred_region
          %s10255 = sand.u32 %s336, 1
          %s10256 = scalar_lea.sflag [#allocation8], %s10255
          %s10257 = sand.u32 %s336, 1
          %s10258 = scalar_lea.vmem [#allocation7], %s10257
          %10259 = dma.done %s10256, 16
        $region88: #{cnn_base_forward.1} parent=83 // pred_fallthru
          _
      $region84: #{cnn_base_forward.1} parent=5 // pred_fallthru
        _
    $region6: #{cnn_base_forward.1} parent=1 // loop_footer
      %s27 = sadd.s32 1, %s23
    $region7: #{cnn_base_forward.1} parent=1 // loop_footer_branch
      %22 = sbr.rel target = $region3
    $region8: #{cnn_base_forward.1} parent=1 // loop_exit
      _
    %10260 = vsyncpa [#allocation8], 1
    %s10261 = scalar_lea.sflag [#allocation8], 1
    %10262 = vsyncpa %s10261, 1

</llo_original>
